<compile_context>
chip_gen: v5e
topology: v5e:2x2
jax: 0.10.0
libtpu: 0.0.40
codegen_flags: <defaults>
</compile_context>

<pallas_src>
from functools import partial

import jax
import jax.numpy as jnp
from jax.experimental import pallas as pl
from jax.experimental.pallas import tpu as pltpu


INPUT_DIM = 784
HIDDEN_DIM = 400
LATENT_DIM = 200
BOTTLENECK = 2
HEADS = 2 * BOTTLENECK          # fused mean|logvar head width

HIDDEN_PAD = 512                # 400 -> 512  (lane multiple of 128, zero-padded)
LATENT_PAD = 256                # 200 -> 256  (lane multiple of 128, zero-padded)


# ----------------------------------------------------------------------------
# Generation gating
# ----------------------------------------------------------------------------
def _tpu_generation():
    try:
        kind = jax.devices()[0].device_kind.lower()
    except Exception:
        return "unknown"
    if "v5" in kind:
        return "v5e"
    if "v6" in kind:
        return "v6e"
    if "v7" in kind:
        return "v7x"
    return "unknown"


def _make_config():
    gen = _tpu_generation()
    if gen == "v7x":
        # 64 MiB VMEM per TC, 2 TCs: smaller tile, split grid for megacore, fast HBM.
        return dict(gen=gen, tm_cap=512, act_dtype=jnp.bfloat16,
                    x_dtype=jnp.float32, vmem_cap=56 << 20, split_for_megacore=True)
    if gen == "v6e":
        # HBM-bound on x / x_hat streaming: bf16 x, bf16 activations, big tile.
        return dict(gen=gen, tm_cap=1024, act_dtype=jnp.bfloat16,
                    x_dtype=jnp.bfloat16, vmem_cap=100 << 20, split_for_megacore=False)
    if gen == "v5e":
        # MXU-bound; no native bf16 VALU -> keep elementwise math f32, big tile.
        return dict(gen=gen, tm_cap=1024, act_dtype=jnp.float32,
                    x_dtype=jnp.float32, vmem_cap=100 << 20, split_for_megacore=False)
    # Unknown generation: conservative settings that run everywhere.
    return dict(gen=gen, tm_cap=512, act_dtype=jnp.float32,
                x_dtype=jnp.float32, vmem_cap=48 << 20, split_for_megacore=False)


_CFG = _make_config()


# ----------------------------------------------------------------------------
# Kernel
# ----------------------------------------------------------------------------
def _leaky_relu(x, slope=0.2):
    return jnp.where(x > 0, x, slope * x)


def vae_kernel(x_ref, eps_ref,
               w1_ref, b1_ref, w2_ref, b2_ref,
               wml_ref, bml_ref,
               wd1_ref, bd1_ref, wd2_ref, bd2_ref, wd3_ref, bd3_ref,
               xhat_ref, ml_ref, *, act_dtype):
    bf16 = jnp.bfloat16

    # ---- encoder: Linear -> LeakyReLU(0.2) -> Linear -> LeakyReLU(0.2)
    x = x_ref[...].astype(bf16)                      # no-op when x is streamed as bf16
    h = jnp.dot(x, w1_ref[...], preferred_element_type=jnp.float32) + b1_ref[...]
    h = _leaky_relu(h.astype(act_dtype))
    h = jnp.dot(h.astype(bf16), w2_ref[...],
                preferred_element_type=jnp.float32) + b2_ref[...]
    h = _leaky_relu(h.astype(act_dtype))

    # ---- fused mean|logvar heads: one (latent_pad, 4) matmul instead of two N=2 matmuls
    ml = jnp.dot(h.astype(bf16), wml_ref[...],
                 preferred_element_type=jnp.float32) + bml_ref[...]
    mean = ml[:, 0:BOTTLENECK]
    logvar = ml[:, BOTTLENECK:HEADS]

    # ---- reparameterization (matches torch source: z = mean + logvar * eps)
    z = mean + logvar * eps_ref[...]

    # ---- decoder layer 1: K=2 matmul as a VPU outer product (MXU would be ~1% utilized)
    d = (z[:, 0:1] * wd1_ref[0:1, :]
         + z[:, 1:2] * wd1_ref[1:2, :]
         + bd1_ref[...])
    d = _leaky_relu(d.astype(act_dtype))
    d = jnp.dot(d.astype(bf16), wd2_ref[...],
                preferred_element_type=jnp.float32) + bd2_ref[...]
    d = _leaky_relu(d.astype(act_dtype))
    logits = jnp.dot(d.astype(bf16), wd3_ref[...],
                     preferred_element_type=jnp.float32) + bd3_ref[...]

    # ---- sigmoid = 1 / (1 + exp(-x)); exp and reciprocal both ride the EUP slot
    xhat_ref[...] = pl.reciprocal(1.0 + jnp.exp(-logits),
                                  approx=True).astype(xhat_ref.dtype)
    ml_ref[...] = ml


# ----------------------------------------------------------------------------
# Wrapper
# ----------------------------------------------------------------------------
def _pick_tile(B, cfg):
    tm_cap = cfg["tm_cap"]
    if B <= tm_cap:
        # Single-pass tile; on v7x split mid-size batches so both TCs get a grid step.
        if cfg["split_for_megacore"] and B >= 16 and B % 16 == 0:
            return B // 2
        return B
    return tm_cap


def _vmem_limit_bytes(tm, x_bytes, vmem_cap):
    # Resident weights (single-buffered, constant index_map).
    w_bf16 = (INPUT_DIM * HIDDEN_PAD + HIDDEN_PAD * LATENT_PAD + LATENT_PAD * HEADS
              + LATENT_PAD * HIDDEN_PAD + HIDDEN_PAD * INPUT_DIM) * 2
    w_f32 = (BOTTLENECK * LATENT_PAD + 2 * HIDDEN_PAD + 2 * LATENT_PAD
             + HEADS + INPUT_DIM) * 4
    # Double-buffered streamed tiles (x, eps in; x_hat, ml out).
    stream = 2 * tm * (INPUT_DIM * x_bytes + BOTTLENECK * 4 + INPUT_DIM * 4 + HEADS * 4)
    # In-flight activation temporaries (counted at f32 width, conservative).
    temps = tm * (2 * HIDDEN_PAD + 2 * LATENT_PAD + HEADS + INPUT_DIM) * 4
    total = w_bf16 + w_f32 + stream + temps
    return int(min(max(int(total * 1.5), 24 << 20), vmem_cap))


@partial(jax.jit, static_argnames=("single_buffer_weights",))
def vae_forward(x, eps, params, single_buffer_weights=True):
    cfg = _CFG
    B = x.shape[0]
    tm = _pick_tile(B, cfg)
    grid = (pl.cdiv(B, tm),)

    # Stream x at the generation-appropriate width (bf16 on v6e halves input HBM traffic).
    x = x.astype(cfg["x_dtype"])
    x_bytes = jnp.dtype(cfg["x_dtype"]).itemsize

    def batch_spec(cols):
        return pl.BlockSpec((tm, cols), lambda i: (i, 0))

    def resident_spec(shape):
        # Constant block index -> weight stays VMEM-resident across the whole grid.
        if single_buffer_weights:
            return pl.BlockSpec(shape, lambda i: (0, 0), pipeline_mode=pl.Buffered(1))
        return pl.BlockSpec(shape, lambda i: (0, 0))

    w_order = ("w1", "b1", "w2", "b2", "wml", "bml",
               "wd1", "bd1", "wd2", "bd2", "wd3", "bd3")
    weight_inputs = tuple(params[k] for k in w_order)
    weight_specs = [resident_spec(params[k].shape) for k in w_order]

    xhat, ml = pl.pallas_call(
        partial(vae_kernel, act_dtype=cfg["act_dtype"]),
        grid=grid,
        in_specs=[batch_spec(INPUT_DIM), batch_spec(BOTTLENECK)] + weight_specs,
        out_specs=(batch_spec(INPUT_DIM), batch_spec(HEADS)),
        out_shape=(
            jax.ShapeDtypeStruct((B, INPUT_DIM), jnp.float32),   # x_hat
            jax.ShapeDtypeStruct((B, HEADS), jnp.float32),       # [mean | logvar]
        ),
        compiler_params=pltpu.CompilerParams(
            dimension_semantics=("parallel",),            # v7x: 2 TCs split the batch
            vmem_limit_bytes=_vmem_limit_bytes(tm, x_bytes, cfg["vmem_cap"]),
        ),
    )(x, eps, *weight_inputs)

    mean = ml[:, :BOTTLENECK]
    logvar = ml[:, BOTTLENECK:]
    return xhat, mean, logvar


# ----------------------------------------------------------------------------
# Params
# ----------------------------------------------------------------------------
def init_params(key):
    """Deterministic PyTorch-style init: U(-1/sqrt(fan_in), 1/sqrt(fan_in)), f32."""
    def linear(key, fan_in, fan_out):
        kw, kb = jax.random.split(key)
        bound = 1.0 / jnp.sqrt(fan_in)
        w = jax.random.uniform(kw, (fan_in, fan_out), jnp.float32, -bound, bound)
        b = jax.random.uniform(kb, (1, fan_out), jnp.float32, -bound, bound)
        return w, b

    keys = jax.random.split(key, 8)
    p = {}
    p["w1"], p["b1"] = linear(keys[0], INPUT_DIM, HIDDEN_DIM)
    p["w2"], p["b2"] = linear(keys[1], HIDDEN_DIM, LATENT_DIM)
    p["wm"], p["bm"] = linear(keys[2], LATENT_DIM, BOTTLENECK)
    p["wv"], p["bv"] = linear(keys[3], LATENT_DIM, BOTTLENECK)
    p["wd1"], p["bd1"] = linear(keys[4], BOTTLENECK, LATENT_DIM)
    p["wd2"], p["bd2"] = linear(keys[5], LATENT_DIM, HIDDEN_DIM)
    p["wd3"], p["bd3"] = linear(keys[6], HIDDEN_DIM, INPUT_DIM)
    return p


def _pad2(a, rows, cols):
    r, c = a.shape
    return jnp.pad(a, ((0, rows - r), (0, cols - c)))   # zero padding (keeps lanes inert)


def pack_params(p32):
    """Cast/fuse/pad f32 params into the kernel layout:
       * bf16 matmul weights, f32 biases, f32 tiny K=2 decoder-input weight (VPU path)
       * fused mean|logvar head
       * HIDDEN 400->512, LATENT 200->256 zero-padded so lane dims are 128-multiples."""
    bf16 = jnp.bfloat16
    wml = jnp.concatenate([p32["wm"], p32["wv"]], axis=1)   # (latent, 4)
    bml = jnp.concatenate([p32["bm"], p32["bv"]], axis=1)   # (1, 4)
    return {
        "w1": _pad2(p32["w1"], INPUT_DIM, HIDDEN_PAD).astype(bf16),
        "b1": _pad2(p32["b1"], 1, HIDDEN_PAD),
        "w2": _pad2(p32["w2"], HIDDEN_PAD, LATENT_PAD).astype(bf16),
        "b2": _pad2(p32["b2"], 1, LATENT_PAD),
        "wml": _pad2(wml, LATENT_PAD, HEADS).astype(bf16),
        "bml": bml,
        "wd1": _pad2(p32["wd1"], BOTTLENECK, LATENT_PAD),   # f32: VPU outer product
        "bd1": _pad2(p32["bd1"], 1, LATENT_PAD),
        "wd2": _pad2(p32["wd2"], LATENT_PAD, HIDDEN_PAD).astype(bf16),
        "bd2": _pad2(p32["bd2"], 1, HIDDEN_PAD),
        "wd3": _pad2(p32["wd3"], HIDDEN_PAD, INPUT_DIM).astype(bf16),
        "bd3": p32["bd3"],
    }


def vae_forward_ref(x, eps, p):
    """Pure-JAX f32 reference reproducing the original torch module semantics."""
    lrelu = lambda v: jnp.where(v > 0, v, 0.2 * v)
    h = lrelu(x @ p["w1"] + p["b1"])
    h = lrelu(h @ p["w2"] + p["b2"])
    mean = h @ p["wm"] + p["bm"]
    logvar = h @ p["wv"] + p["bv"]
    z = mean + logvar * eps
    d = lrelu(z @ p["wd1"] + p["bd1"])
    d = lrelu(d @ p["wd2"] + p["bd2"])
    x_hat = jax.nn.sigmoid(d @ p["wd3"] + p["bd3"])
    return x_hat, mean, logvar


if __name__ == "__main__":
    key = jax.random.PRNGKey(0)
    k_param, k_x, k_eps = jax.random.split(key, 3)

    B = 8
    p32 = init_params(k_param)
    params = pack_params(p32)
    x = jax.random.uniform(k_x, (B, INPUT_DIM), jnp.float32)       # MNIST-like input
    # TODO(synk): torch.randn_like noise is supplied as an explicit eps input
    # (could be generated in-kernel with pltpu.prng_* if desired).
    eps = jax.random.normal(k_eps, (B, BOTTLENECK), jnp.float32)

    try:
        outs = vae_forward(x, eps, params, single_buffer_weights=True)
        jax.block_until_ready(outs)
    except Exception:
        # Fallback if pipeline_mode=pl.Buffered(1) is unsupported by this jax build.
        outs = vae_forward(x, eps, params, single_buffer_weights=False)
        jax.block_until_ready(outs)
    x_hat, mean, logvar = outs

    # correctness check vs f32 reference (relaxed tolerance: matmul weights are bf16)
    xh_ref, m_ref, lv_ref = vae_forward_ref(x, eps, p32)
    assert jnp.allclose(x_hat, xh_ref, atol=3e-2, rtol=3e-2), \
        float(jnp.max(jnp.abs(x_hat - xh_ref)))
    assert jnp.allclose(mean, m_ref, atol=3e-2, rtol=3e-2), \
        float(jnp.max(jnp.abs(mean - m_ref)))
    assert jnp.allclose(logvar, lv_ref, atol=3e-2, rtol=3e-2), \
        float(jnp.max(jnp.abs(logvar - lv_ref)))

    print("KERNEL_OK")
</pallas_src>

<mosaic_0001>
module attributes {stable_mosaic.version = 11 : i64} {
  func.func @vae_kernel(%arg0: i32, %arg1: memref<8x784xf32, #tpu.memory_space<vmem>>, %arg2: memref<8x2xf32, #tpu.memory_space<vmem>>, %arg3: memref<784x512xbf16, #tpu.memory_space<vmem>>, %arg4: memref<1x512xf32, #tpu.memory_space<vmem>>, %arg5: memref<512x256xbf16, #tpu.memory_space<vmem>>, %arg6: memref<1x256xf32, #tpu.memory_space<vmem>>, %arg7: memref<256x4xbf16, #tpu.memory_space<vmem>>, %arg8: memref<1x4xf32, #tpu.memory_space<vmem>>, %arg9: memref<2x256xf32, #tpu.memory_space<vmem>>, %arg10: memref<1x256xf32, #tpu.memory_space<vmem>>, %arg11: memref<256x512xbf16, #tpu.memory_space<vmem>>, %arg12: memref<1x512xf32, #tpu.memory_space<vmem>>, %arg13: memref<512x784xbf16, #tpu.memory_space<vmem>>, %arg14: memref<1x784xf32, #tpu.memory_space<vmem>>, %arg15: memref<8x784xf32, #tpu.memory_space<vmem>>, %arg16: memref<8x4xf32, #tpu.memory_space<vmem>>) attributes {dimension_semantics = [#tpu.dimension_semantics<parallel>], iteration_bounds = array<i64: 1>, scalar_prefetch = 0 : i64, scratch_operands = 0 : i64, tpu.core_type = #tpu.core_type<tc>, window_params = [{transform_indices = @transform_0, window_bounds = array<i64: 8, 784>}, {transform_indices = @transform_1, window_bounds = array<i64: 8, 2>}, {pipeline_mode = #tpu.pipeline_mode<synchronous>, transform_indices = @transform_2, window_bounds = array<i64: 784, 512>}, {pipeline_mode = #tpu.pipeline_mode<synchronous>, transform_indices = @transform_3, window_bounds = array<i64: 1, 512>}, {pipeline_mode = #tpu.pipeline_mode<synchronous>, transform_indices = @transform_4, window_bounds = array<i64: 512, 256>}, {pipeline_mode = #tpu.pipeline_mode<synchronous>, transform_indices = @transform_5, window_bounds = array<i64: 1, 256>}, {pipeline_mode = #tpu.pipeline_mode<synchronous>, transform_indices = @transform_6, window_bounds = array<i64: 256, 4>}, {pipeline_mode = #tpu.pipeline_mode<synchronous>, transform_indices = @transform_7, window_bounds = array<i64: 1, 4>}, {pipeline_mode = #tpu.pipeline_mode<synchronous>, transform_indices = @transform_8, window_bounds = array<i64: 2, 256>}, {pipeline_mode = #tpu.pipeline_mode<synchronous>, transform_indices = @transform_9, window_bounds = array<i64: 1, 256>}, {pipeline_mode = #tpu.pipeline_mode<synchronous>, transform_indices = @transform_10, window_bounds = array<i64: 256, 512>}, {pipeline_mode = #tpu.pipeline_mode<synchronous>, transform_indices = @transform_11, window_bounds = array<i64: 1, 512>}, {pipeline_mode = #tpu.pipeline_mode<synchronous>, transform_indices = @transform_12, window_bounds = array<i64: 512, 784>}, {pipeline_mode = #tpu.pipeline_mode<synchronous>, transform_indices = @transform_13, window_bounds = array<i64: 1, 784>}, {transform_indices = @transform_14, window_bounds = array<i64: 8, 784>}, {transform_indices = @transform_15, window_bounds = array<i64: 8, 4>}]} {
    %c0 = arith.constant 0 : index
    %c0_0 = arith.constant 0 : index
    %0 = vector.load %arg1[%c0, %c0_0] : memref<8x784xf32, #tpu.memory_space<vmem>>, vector<8x784xf32>
    %1 = arith.truncf %0 : vector<8x784xf32> to vector<8x784xbf16>
    %c0_1 = arith.constant 0 : index
    %c0_2 = arith.constant 0 : index
    %2 = vector.load %arg3[%c0_1, %c0_2] : memref<784x512xbf16, #tpu.memory_space<vmem>>, vector<784x512xbf16>
    %cst = arith.constant dense<0.000000e+00> : vector<8x512xf32>
    %3 = tpu.matmul %1, %2, %cst {dimension_numbers = #tpu.dot_dimension_numbers<[1], [0], [0], [1], [0, 0, 1, 1], [], []>} : vector<8x784xbf16>, vector<784x512xbf16>, vector<8x512xf32> -> vector<8x512xf32>
    %c0_3 = arith.constant 0 : index
    %c0_4 = arith.constant 0 : index
    %4 = vector.load %arg4[%c0_3, %c0_4] : memref<1x512xf32, #tpu.memory_space<vmem>>, vector<1x512xf32>
    %5 = vector.broadcast %4 : vector<1x512xf32> to vector<8x512xf32>
    %6 = arith.addf %3, %5 : vector<8x512xf32>
    %cst_5 = arith.constant 0.000000e+00 : f32
    %7 = vector.broadcast %cst_5 : f32 to vector<8x512xf32>
    %8 = arith.cmpf ogt, %6, %7 : vector<8x512xf32>
    %cst_6 = arith.constant 2.000000e-01 : f32
    %9 = vector.broadcast %cst_6 : f32 to vector<8x512xf32>
    %10 = arith.mulf %9, %6 : vector<8x512xf32>
    %11 = arith.select %8, %6, %10 : vector<8x512xi1>, vector<8x512xf32>
    %12 = arith.truncf %11 : vector<8x512xf32> to vector<8x512xbf16>
    %c0_7 = arith.constant 0 : index
    %c0_8 = arith.constant 0 : index
    %13 = vector.load %arg5[%c0_7, %c0_8] : memref<512x256xbf16, #tpu.memory_space<vmem>>, vector<512x256xbf16>
    %cst_9 = arith.constant dense<0.000000e+00> : vector<8x256xf32>
    %14 = tpu.matmul %12, %13, %cst_9 {dimension_numbers = #tpu.dot_dimension_numbers<[1], [0], [0], [1], [0, 0, 1, 1], [], []>} : vector<8x512xbf16>, vector<512x256xbf16>, vector<8x256xf32> -> vector<8x256xf32>
    %c0_10 = arith.constant 0 : index
    %c0_11 = arith.constant 0 : index
    %15 = vector.load %arg6[%c0_10, %c0_11] : memref<1x256xf32, #tpu.memory_space<vmem>>, vector<1x256xf32>
    %16 = vector.broadcast %15 : vector<1x256xf32> to vector<8x256xf32>
    %17 = arith.addf %14, %16 : vector<8x256xf32>
    %cst_12 = arith.constant 0.000000e+00 : f32
    %18 = vector.broadcast %cst_12 : f32 to vector<8x256xf32>
    %19 = arith.cmpf ogt, %17, %18 : vector<8x256xf32>
    %cst_13 = arith.constant 2.000000e-01 : f32
    %20 = vector.broadcast %cst_13 : f32 to vector<8x256xf32>
    %21 = arith.mulf %20, %17 : vector<8x256xf32>
    %22 = arith.select %19, %17, %21 : vector<8x256xi1>, vector<8x256xf32>
    %23 = arith.truncf %22 : vector<8x256xf32> to vector<8x256xbf16>
    %c0_14 = arith.constant 0 : index
    %c0_15 = arith.constant 0 : index
    %24 = vector.load %arg7[%c0_14, %c0_15] : memref<256x4xbf16, #tpu.memory_space<vmem>>, vector<256x4xbf16>
    %cst_16 = arith.constant dense<0.000000e+00> : vector<8x4xf32>
    %25 = tpu.matmul %23, %24, %cst_16 {dimension_numbers = #tpu.dot_dimension_numbers<[1], [0], [0], [1], [0, 0, 1, 1], [], []>} : vector<8x256xbf16>, vector<256x4xbf16>, vector<8x4xf32> -> vector<8x4xf32>
    %c0_17 = arith.constant 0 : index
    %c0_18 = arith.constant 0 : index
    %26 = vector.load %arg8[%c0_17, %c0_18] : memref<1x4xf32, #tpu.memory_space<vmem>>, vector<1x4xf32>
    %27 = vector.broadcast %26 : vector<1x4xf32> to vector<8x4xf32>
    %28 = arith.addf %25, %27 : vector<8x4xf32>
    %29 = vector.extract_strided_slice %28 {offsets = [0, 0], sizes = [8, 2], strides = [1, 1]} : vector<8x4xf32> to vector<8x2xf32>
    %30 = vector.extract_strided_slice %28 {offsets = [0, 2], sizes = [8, 2], strides = [1, 1]} : vector<8x4xf32> to vector<8x2xf32>
    %c0_19 = arith.constant 0 : index
    %c0_20 = arith.constant 0 : index
    %31 = vector.load %arg2[%c0_19, %c0_20] : memref<8x2xf32, #tpu.memory_space<vmem>>, vector<8x2xf32>
    %32 = arith.mulf %30, %31 : vector<8x2xf32>
    %33 = arith.addf %29, %32 : vector<8x2xf32>
    %34 = vector.extract_strided_slice %33 {offsets = [0, 0], sizes = [8, 1], strides = [1, 1]} : vector<8x2xf32> to vector<8x1xf32>
    %c0_21 = arith.constant 0 : index
    %c0_22 = arith.constant 0 : index
    %35 = vector.load %arg9[%c0_21, %c0_22] : memref<2x256xf32, #tpu.memory_space<vmem>>, vector<1x256xf32>
    %36 = vector.broadcast %34 : vector<8x1xf32> to vector<8x256xf32>
    %37 = vector.broadcast %35 : vector<1x256xf32> to vector<8x256xf32>
    %38 = arith.mulf %36, %37 : vector<8x256xf32>
    %39 = vector.extract_strided_slice %33 {offsets = [0, 1], sizes = [8, 1], strides = [1, 1]} : vector<8x2xf32> to vector<8x1xf32>
    %c1 = arith.constant 1 : index
    %c0_23 = arith.constant 0 : index
    %40 = vector.load %arg9[%c1, %c0_23] : memref<2x256xf32, #tpu.memory_space<vmem>>, vector<1x256xf32>
    %41 = vector.broadcast %39 : vector<8x1xf32> to vector<8x256xf32>
    %42 = vector.broadcast %40 : vector<1x256xf32> to vector<8x256xf32>
    %43 = arith.mulf %41, %42 : vector<8x256xf32>
    %44 = arith.addf %38, %43 : vector<8x256xf32>
    %c0_24 = arith.constant 0 : index
    %c0_25 = arith.constant 0 : index
    %45 = vector.load %arg10[%c0_24, %c0_25] : memref<1x256xf32, #tpu.memory_space<vmem>>, vector<1x256xf32>
    %46 = vector.broadcast %45 : vector<1x256xf32> to vector<8x256xf32>
    %47 = arith.addf %44, %46 : vector<8x256xf32>
    %cst_26 = arith.constant 0.000000e+00 : f32
    %48 = vector.broadcast %cst_26 : f32 to vector<8x256xf32>
    %49 = arith.cmpf ogt, %47, %48 : vector<8x256xf32>
    %cst_27 = arith.constant 2.000000e-01 : f32
    %50 = vector.broadcast %cst_27 : f32 to vector<8x256xf32>
    %51 = arith.mulf %50, %47 : vector<8x256xf32>
    %52 = arith.select %49, %47, %51 : vector<8x256xi1>, vector<8x256xf32>
    %53 = arith.truncf %52 : vector<8x256xf32> to vector<8x256xbf16>
    %c0_28 = arith.constant 0 : index
    %c0_29 = arith.constant 0 : index
    %54 = vector.load %arg11[%c0_28, %c0_29] : memref<256x512xbf16, #tpu.memory_space<vmem>>, vector<256x512xbf16>
    %cst_30 = arith.constant dense<0.000000e+00> : vector<8x512xf32>
    %55 = tpu.matmul %53, %54, %cst_30 {dimension_numbers = #tpu.dot_dimension_numbers<[1], [0], [0], [1], [0, 0, 1, 1], [], []>} : vector<8x256xbf16>, vector<256x512xbf16>, vector<8x512xf32> -> vector<8x512xf32>
    %c0_31 = arith.constant 0 : index
    %c0_32 = arith.constant 0 : index
    %56 = vector.load %arg12[%c0_31, %c0_32] : memref<1x512xf32, #tpu.memory_space<vmem>>, vector<1x512xf32>
    %57 = vector.broadcast %56 : vector<1x512xf32> to vector<8x512xf32>
    %58 = arith.addf %55, %57 : vector<8x512xf32>
    %cst_33 = arith.constant 0.000000e+00 : f32
    %59 = vector.broadcast %cst_33 : f32 to vector<8x512xf32>
    %60 = arith.cmpf ogt, %58, %59 : vector<8x512xf32>
    %cst_34 = arith.constant 2.000000e-01 : f32
    %61 = vector.broadcast %cst_34 : f32 to vector<8x512xf32>
    %62 = arith.mulf %61, %58 : vector<8x512xf32>
    %63 = arith.select %60, %58, %62 : vector<8x512xi1>, vector<8x512xf32>
    %64 = arith.truncf %63 : vector<8x512xf32> to vector<8x512xbf16>
    %c0_35 = arith.constant 0 : index
    %c0_36 = arith.constant 0 : index
    %65 = vector.load %arg13[%c0_35, %c0_36] : memref<512x784xbf16, #tpu.memory_space<vmem>>, vector<512x784xbf16>
    %cst_37 = arith.constant dense<0.000000e+00> : vector<8x784xf32>
    %66 = tpu.matmul %64, %65, %cst_37 {dimension_numbers = #tpu.dot_dimension_numbers<[1], [0], [0], [1], [0, 0, 1, 1], [], []>} : vector<8x512xbf16>, vector<512x784xbf16>, vector<8x784xf32> -> vector<8x784xf32>
    %c0_38 = arith.constant 0 : index
    %c0_39 = arith.constant 0 : index
    %67 = vector.load %arg14[%c0_38, %c0_39] : memref<1x784xf32, #tpu.memory_space<vmem>>, vector<1x784xf32>
    %68 = vector.broadcast %67 : vector<1x784xf32> to vector<8x784xf32>
    %69 = arith.addf %66, %68 : vector<8x784xf32>
    %cst_40 = arith.constant 0.000000e+00 : f32
    %70 = vector.broadcast %cst_40 : f32 to vector<8x784xf32>
    %71 = arith.subf %70, %69 : vector<8x784xf32>
    %72 = math.exp %71 : vector<8x784xf32>
    %cst_41 = arith.constant 1.000000e+00 : f32
    %73 = vector.broadcast %cst_41 : f32 to vector<8x784xf32>
    %74 = arith.addf %73, %72 : vector<8x784xf32>
    %75 = tpu.reciprocal %74 {approx = true} : vector<8x784xf32> -> vector<8x784xf32>
    %c0_42 = arith.constant 0 : index
    %c0_43 = arith.constant 0 : index
    %76 = vector.load %arg15[%c0_42, %c0_43] : memref<8x784xf32, #tpu.memory_space<vmem>>, vector<8x784xf32>
    tpu.vector_store %arg15[%c0_42, %c0_43], %75 {strides = array<i32>} : memref<8x784xf32, #tpu.memory_space<vmem>>, vector<8x784xf32>,
    %c0_44 = arith.constant 0 : index
    %c0_45 = arith.constant 0 : index
    %77 = vector.load %arg16[%c0_44, %c0_45] : memref<8x4xf32, #tpu.memory_space<vmem>>, vector<8x4xf32>
    tpu.vector_store %arg16[%c0_44, %c0_45], %28 {strides = array<i32>} : memref<8x4xf32, #tpu.memory_space<vmem>>, vector<8x4xf32>,
    return
  }
  func.func @transform_0(%arg0: i32) -> (i32, i32) {
    %c0_i32 = arith.constant 0 : i32
    %c0_i32_0 = arith.constant 0 : i32
    return %arg0, %c0_i32 : i32, i32
  }
  func.func @transform_1(%arg0: i32) -> (i32, i32) {
    %c0_i32 = arith.constant 0 : i32
    %c0_i32_0 = arith.constant 0 : i32
    return %arg0, %c0_i32 : i32, i32
  }
  func.func @transform_2(%arg0: i32) -> (i32, i32) {
    %c0_i32 = arith.constant 0 : i32
    %c0_i32_0 = arith.constant 0 : i32
    %c0_i32_1 = arith.constant 0 : i32
    return %c0_i32, %c0_i32_0 : i32, i32
  }
  func.func @transform_3(%arg0: i32) -> (i32, i32) {
    %c0_i32 = arith.constant 0 : i32
    %c0_i32_0 = arith.constant 0 : i32
    %c0_i32_1 = arith.constant 0 : i32
    return %c0_i32, %c0_i32_0 : i32, i32
  }
  func.func @transform_4(%arg0: i32) -> (i32, i32) {
    %c0_i32 = arith.constant 0 : i32
    %c0_i32_0 = arith.constant 0 : i32
    %c0_i32_1 = arith.constant 0 : i32
    return %c0_i32, %c0_i32_0 : i32, i32
  }
  func.func @transform_5(%arg0: i32) -> (i32, i32) {
    %c0_i32 = arith.constant 0 : i32
    %c0_i32_0 = arith.constant 0 : i32
    %c0_i32_1 = arith.constant 0 : i32
    return %c0_i32, %c0_i32_0 : i32, i32
  }
  func.func @transform_6(%arg0: i32) -> (i32, i32) {
    %c0_i32 = arith.constant 0 : i32
    %c0_i32_0 = arith.constant 0 : i32
    %c0_i32_1 = arith.constant 0 : i32
    return %c0_i32, %c0_i32_0 : i32, i32
  }
  func.func @transform_7(%arg0: i32) -> (i32, i32) {
    %c0_i32 = arith.constant 0 : i32
    %c0_i32_0 = arith.constant 0 : i32
    %c0_i32_1 = arith.constant 0 : i32
    return %c0_i32, %c0_i32_0 : i32, i32
  }
  func.func @transform_8(%arg0: i32) -> (i32, i32) {
    %c0_i32 = arith.constant 0 : i32
    %c0_i32_0 = arith.constant 0 : i32
    %c0_i32_1 = arith.constant 0 : i32
    return %c0_i32, %c0_i32_0 : i32, i32
  }
  func.func @transform_9(%arg0: i32) -> (i32, i32) {
    %c0_i32 = arith.constant 0 : i32
    %c0_i32_0 = arith.constant 0 : i32
    %c0_i32_1 = arith.constant 0 : i32
    return %c0_i32, %c0_i32_0 : i32, i32
  }
  func.func @transform_10(%arg0: i32) -> (i32, i32) {
    %c0_i32 = arith.constant 0 : i32
    %c0_i32_0 = arith.constant 0 : i32
    %c0_i32_1 = arith.constant 0 : i32
    return %c0_i32, %c0_i32_0 : i32, i32
  }
  func.func @transform_11(%arg0: i32) -> (i32, i32) {
    %c0_i32 = arith.constant 0 : i32
    %c0_i32_0 = arith.constant 0 : i32
    %c0_i32_1 = arith.constant 0 : i32
    return %c0_i32, %c0_i32_0 : i32, i32
  }
  func.func @transform_12(%arg0: i32) -> (i32, i32) {
    %c0_i32 = arith.constant 0 : i32
    %c0_i32_0 = arith.constant 0 : i32
    %c0_i32_1 = arith.constant 0 : i32
    return %c0_i32, %c0_i32_0 : i32, i32
  }
  func.func @transform_13(%arg0: i32) -> (i32, i32) {
    %c0_i32 = arith.constant 0 : i32
    %c0_i32_0 = arith.constant 0 : i32
    %c0_i32_1 = arith.constant 0 : i32
    return %c0_i32, %c0_i32_0 : i32, i32
  }
  func.func @transform_14(%arg0: i32) -> (i32, i32) {
    %c0_i32 = arith.constant 0 : i32
    %c0_i32_0 = arith.constant 0 : i32
    return %arg0, %c0_i32 : i32, i32
  }
  func.func @transform_15(%arg0: i32) -> (i32, i32) {
    %c0_i32 = arith.constant 0 : i32
    %c0_i32_0 = arith.constant 0 : i32
    return %arg0, %c0_i32 : i32, i32
  }
}

module attributes {stable_mosaic.version = 11 : i64} {
  func.func @vae_kernel(%arg0: i32, %arg1: memref<8x784xf32, #tpu.memory_space<vmem>>, %arg2: memref<8x2xf32, #tpu.memory_space<vmem>>, %arg3: memref<784x512xbf16, #tpu.memory_space<vmem>>, %arg4: memref<1x512xf32, #tpu.memory_space<vmem>>, %arg5: memref<512x256xbf16, #tpu.memory_space<vmem>>, %arg6: memref<1x256xf32, #tpu.memory_space<vmem>>, %arg7: memref<256x4xbf16, #tpu.memory_space<vmem>>, %arg8: memref<1x4xf32, #tpu.memory_space<vmem>>, %arg9: memref<2x256xf32, #tpu.memory_space<vmem>>, %arg10: memref<1x256xf32, #tpu.memory_space<vmem>>, %arg11: memref<256x512xbf16, #tpu.memory_space<vmem>>, %arg12: memref<1x512xf32, #tpu.memory_space<vmem>>, %arg13: memref<512x784xbf16, #tpu.memory_space<vmem>>, %arg14: memref<1x784xf32, #tpu.memory_space<vmem>>, %arg15: memref<8x784xf32, #tpu.memory_space<vmem>>, %arg16: memref<8x4xf32, #tpu.memory_space<vmem>>) attributes {dimension_semantics = [#tpu.dimension_semantics<parallel>], iteration_bounds = array<i64: 1>, scalar_prefetch = 0 : i64, scratch_operands = 0 : i64, tpu.core_type = #tpu.core_type<tc>, window_params = [{transform_indices = @transform_0, window_bounds = array<i64: 8, 784>}, {transform_indices = @transform_1, window_bounds = array<i64: 8, 2>}, {pipeline_mode = #tpu.pipeline_mode<synchronous>, transform_indices = @transform_2, window_bounds = array<i64: 784, 512>}, {pipeline_mode = #tpu.pipeline_mode<synchronous>, transform_indices = @transform_3, window_bounds = array<i64: 1, 512>}, {pipeline_mode = #tpu.pipeline_mode<synchronous>, transform_indices = @transform_4, window_bounds = array<i64: 512, 256>}, {pipeline_mode = #tpu.pipeline_mode<synchronous>, transform_indices = @transform_5, window_bounds = array<i64: 1, 256>}, {pipeline_mode = #tpu.pipeline_mode<synchronous>, transform_indices = @transform_6, window_bounds = array<i64: 256, 4>}, {pipeline_mode = #tpu.pipeline_mode<synchronous>, transform_indices = @transform_7, window_bounds = array<i64: 1, 4>}, {pipeline_mode = #tpu.pipeline_mode<synchronous>, transform_indices = @transform_8, window_bounds = array<i64: 2, 256>}, {pipeline_mode = #tpu.pipeline_mode<synchronous>, transform_indices = @transform_9, window_bounds = array<i64: 1, 256>}, {pipeline_mode = #tpu.pipeline_mode<synchronous>, transform_indices = @transform_10, window_bounds = array<i64: 256, 512>}, {pipeline_mode = #tpu.pipeline_mode<synchronous>, transform_indices = @transform_11, window_bounds = array<i64: 1, 512>}, {pipeline_mode = #tpu.pipeline_mode<synchronous>, transform_indices = @transform_12, window_bounds = array<i64: 512, 784>}, {pipeline_mode = #tpu.pipeline_mode<synchronous>, transform_indices = @transform_13, window_bounds = array<i64: 1, 784>}, {transform_indices = @transform_14, window_bounds = array<i64: 8, 784>}, {transform_indices = @transform_15, window_bounds = array<i64: 8, 4>}]} {
    %c0 = arith.constant 0 : index
    %c0_0 = arith.constant 0 : index
    %0 = vector.load %arg1[%c0, %c0_0] : memref<8x784xf32, #tpu.memory_space<vmem>>, vector<8x784xf32>
    %1 = arith.truncf %0 : vector<8x784xf32> to vector<8x784xbf16>
    %c0_1 = arith.constant 0 : index
    %c0_2 = arith.constant 0 : index
    %2 = vector.load %arg3[%c0_1, %c0_2] : memref<784x512xbf16, #tpu.memory_space<vmem>>, vector<784x512xbf16>
    %cst = arith.constant dense<0.000000e+00> : vector<8x512xf32>
    %3 = tpu.matmul %1, %2, %cst {dimension_numbers = #tpu.dot_dimension_numbers<[1], [0], [0], [1], [0, 0, 1, 1], [], []>} : vector<8x784xbf16>, vector<784x512xbf16>, vector<8x512xf32> -> vector<8x512xf32>
    %c0_3 = arith.constant 0 : index
    %c0_4 = arith.constant 0 : index
    %4 = vector.load %arg4[%c0_3, %c0_4] : memref<1x512xf32, #tpu.memory_space<vmem>>, vector<1x512xf32>
    %5 = vector.broadcast %4 : vector<1x512xf32> to vector<8x512xf32>
    %6 = arith.addf %3, %5 : vector<8x512xf32>
    %cst_5 = arith.constant 0.000000e+00 : f32
    %7 = vector.broadcast %cst_5 : f32 to vector<8x512xf32>
    %8 = arith.cmpf ogt, %6, %7 : vector<8x512xf32>
    %cst_6 = arith.constant 2.000000e-01 : f32
    %9 = vector.broadcast %cst_6 : f32 to vector<8x512xf32>
    %10 = arith.mulf %9, %6 : vector<8x512xf32>
    %11 = arith.select %8, %6, %10 : vector<8x512xi1>, vector<8x512xf32>
    %12 = arith.truncf %11 : vector<8x512xf32> to vector<8x512xbf16>
    %c0_7 = arith.constant 0 : index
    %c0_8 = arith.constant 0 : index
    %13 = vector.load %arg5[%c0_7, %c0_8] : memref<512x256xbf16, #tpu.memory_space<vmem>>, vector<512x256xbf16>
    %cst_9 = arith.constant dense<0.000000e+00> : vector<8x256xf32>
    %14 = tpu.matmul %12, %13, %cst_9 {dimension_numbers = #tpu.dot_dimension_numbers<[1], [0], [0], [1], [0, 0, 1, 1], [], []>} : vector<8x512xbf16>, vector<512x256xbf16>, vector<8x256xf32> -> vector<8x256xf32>
    %c0_10 = arith.constant 0 : index
    %c0_11 = arith.constant 0 : index
    %15 = vector.load %arg6[%c0_10, %c0_11] : memref<1x256xf32, #tpu.memory_space<vmem>>, vector<1x256xf32>
    %16 = vector.broadcast %15 : vector<1x256xf32> to vector<8x256xf32>
    %17 = arith.addf %14, %16 : vector<8x256xf32>
    %cst_12 = arith.constant 0.000000e+00 : f32
    %18 = vector.broadcast %cst_12 : f32 to vector<8x256xf32>
    %19 = arith.cmpf ogt, %17, %18 : vector<8x256xf32>
    %cst_13 = arith.constant 2.000000e-01 : f32
    %20 = vector.broadcast %cst_13 : f32 to vector<8x256xf32>
    %21 = arith.mulf %20, %17 : vector<8x256xf32>
    %22 = arith.select %19, %17, %21 : vector<8x256xi1>, vector<8x256xf32>
    %23 = arith.truncf %22 : vector<8x256xf32> to vector<8x256xbf16>
    %c0_14 = arith.constant 0 : index
    %c0_15 = arith.constant 0 : index
    %24 = vector.load %arg7[%c0_14, %c0_15] : memref<256x4xbf16, #tpu.memory_space<vmem>>, vector<256x4xbf16>
    %cst_16 = arith.constant dense<0.000000e+00> : vector<8x4xf32>
    %25 = tpu.matmul %23, %24, %cst_16 {dimension_numbers = #tpu.dot_dimension_numbers<[1], [0], [0], [1], [0, 0, 1, 1], [], []>} : vector<8x256xbf16>, vector<256x4xbf16>, vector<8x4xf32> -> vector<8x4xf32>
    %c0_17 = arith.constant 0 : index
    %c0_18 = arith.constant 0 : index
    %26 = vector.load %arg8[%c0_17, %c0_18] : memref<1x4xf32, #tpu.memory_space<vmem>>, vector<1x4xf32>
    %27 = vector.broadcast %26 : vector<1x4xf32> to vector<8x4xf32>
    %28 = arith.addf %25, %27 : vector<8x4xf32>
    %29 = vector.extract_strided_slice %28 {offsets = [0, 0], sizes = [8, 2], strides = [1, 1]} : vector<8x4xf32> to vector<8x2xf32>
    %30 = vector.extract_strided_slice %28 {offsets = [0, 2], sizes = [8, 2], strides = [1, 1]} : vector<8x4xf32> to vector<8x2xf32>
    %c0_19 = arith.constant 0 : index
    %c0_20 = arith.constant 0 : index
    %31 = vector.load %arg2[%c0_19, %c0_20] : memref<8x2xf32, #tpu.memory_space<vmem>>, vector<8x2xf32>
    %32 = arith.mulf %30, %31 : vector<8x2xf32>
    %33 = arith.addf %29, %32 : vector<8x2xf32>
    %34 = vector.extract_strided_slice %33 {offsets = [0, 0], sizes = [8, 1], strides = [1, 1]} : vector<8x2xf32> to vector<8x1xf32>
    %c0_21 = arith.constant 0 : index
    %c0_22 = arith.constant 0 : index
    %35 = vector.load %arg9[%c0_21, %c0_22] : memref<2x256xf32, #tpu.memory_space<vmem>>, vector<1x256xf32>
    %36 = vector.broadcast %34 : vector<8x1xf32> to vector<8x256xf32>
    %37 = vector.broadcast %35 : vector<1x256xf32> to vector<8x256xf32>
    %38 = arith.mulf %36, %37 : vector<8x256xf32>
    %39 = vector.extract_strided_slice %33 {offsets = [0, 1], sizes = [8, 1], strides = [1, 1]} : vector<8x2xf32> to vector<8x1xf32>
    %c1 = arith.constant 1 : index
    %c0_23 = arith.constant 0 : index
    %40 = vector.load %arg9[%c1, %c0_23] : memref<2x256xf32, #tpu.memory_space<vmem>>, vector<1x256xf32>
    %41 = vector.broadcast %39 : vector<8x1xf32> to vector<8x256xf32>
    %42 = vector.broadcast %40 : vector<1x256xf32> to vector<8x256xf32>
    %43 = arith.mulf %41, %42 : vector<8x256xf32>
    %44 = arith.addf %38, %43 : vector<8x256xf32>
    %c0_24 = arith.constant 0 : index
    %c0_25 = arith.constant 0 : index
    %45 = vector.load %arg10[%c0_24, %c0_25] : memref<1x256xf32, #tpu.memory_space<vmem>>, vector<1x256xf32>
    %46 = vector.broadcast %45 : vector<1x256xf32> to vector<8x256xf32>
    %47 = arith.addf %44, %46 : vector<8x256xf32>
    %cst_26 = arith.constant 0.000000e+00 : f32
    %48 = vector.broadcast %cst_26 : f32 to vector<8x256xf32>
    %49 = arith.cmpf ogt, %47, %48 : vector<8x256xf32>
    %cst_27 = arith.constant 2.000000e-01 : f32
    %50 = vector.broadcast %cst_27 : f32 to vector<8x256xf32>
    %51 = arith.mulf %50, %47 : vector<8x256xf32>
    %52 = arith.select %49, %47, %51 : vector<8x256xi1>, vector<8x256xf32>
    %53 = arith.truncf %52 : vector<8x256xf32> to vector<8x256xbf16>
    %c0_28 = arith.constant 0 : index
    %c0_29 = arith.constant 0 : index
    %54 = vector.load %arg11[%c0_28, %c0_29] : memref<256x512xbf16, #tpu.memory_space<vmem>>, vector<256x512xbf16>
    %cst_30 = arith.constant dense<0.000000e+00> : vector<8x512xf32>
    %55 = tpu.matmul %53, %54, %cst_30 {dimension_numbers = #tpu.dot_dimension_numbers<[1], [0], [0], [1], [0, 0, 1, 1], [], []>} : vector<8x256xbf16>, vector<256x512xbf16>, vector<8x512xf32> -> vector<8x512xf32>
    %c0_31 = arith.constant 0 : index
    %c0_32 = arith.constant 0 : index
    %56 = vector.load %arg12[%c0_31, %c0_32] : memref<1x512xf32, #tpu.memory_space<vmem>>, vector<1x512xf32>
    %57 = vector.broadcast %56 : vector<1x512xf32> to vector<8x512xf32>
    %58 = arith.addf %55, %57 : vector<8x512xf32>
    %cst_33 = arith.constant 0.000000e+00 : f32
    %59 = vector.broadcast %cst_33 : f32 to vector<8x512xf32>
    %60 = arith.cmpf ogt, %58, %59 : vector<8x512xf32>
    %cst_34 = arith.constant 2.000000e-01 : f32
    %61 = vector.broadcast %cst_34 : f32 to vector<8x512xf32>
    %62 = arith.mulf %61, %58 : vector<8x512xf32>
    %63 = arith.select %60, %58, %62 : vector<8x512xi1>, vector<8x512xf32>
    %64 = arith.truncf %63 : vector<8x512xf32> to vector<8x512xbf16>
    %c0_35 = arith.constant 0 : index
    %c0_36 = arith.constant 0 : index
    %65 = vector.load %arg13[%c0_35, %c0_36] : memref<512x784xbf16, #tpu.memory_space<vmem>>, vector<512x784xbf16>
    %cst_37 = arith.constant dense<0.000000e+00> : vector<8x784xf32>
    %66 = tpu.matmul %64, %65, %cst_37 {dimension_numbers = #tpu.dot_dimension_numbers<[1], [0], [0], [1], [0, 0, 1, 1], [], []>} : vector<8x512xbf16>, vector<512x784xbf16>, vector<8x784xf32> -> vector<8x784xf32>
    %c0_38 = arith.constant 0 : index
    %c0_39 = arith.constant 0 : index
    %67 = vector.load %arg14[%c0_38, %c0_39] : memref<1x784xf32, #tpu.memory_space<vmem>>, vector<1x784xf32>
    %68 = vector.broadcast %67 : vector<1x784xf32> to vector<8x784xf32>
    %69 = arith.addf %66, %68 : vector<8x784xf32>
    %cst_40 = arith.constant 0.000000e+00 : f32
    %70 = vector.broadcast %cst_40 : f32 to vector<8x784xf32>
    %71 = arith.subf %70, %69 : vector<8x784xf32>
    %72 = math.exp %71 : vector<8x784xf32>
    %cst_41 = arith.constant 1.000000e+00 : f32
    %73 = vector.broadcast %cst_41 : f32 to vector<8x784xf32>
    %74 = arith.addf %73, %72 : vector<8x784xf32>
    %75 = tpu.reciprocal %74 {approx = true} : vector<8x784xf32> -> vector<8x784xf32>
    %c0_42 = arith.constant 0 : index
    %c0_43 = arith.constant 0 : index
    %76 = vector.load %arg15[%c0_42, %c0_43] : memref<8x784xf32, #tpu.memory_space<vmem>>, vector<8x784xf32>
    tpu.vector_store %arg15[%c0_42, %c0_43], %75 {strides = array<i32>} : memref<8x784xf32, #tpu.memory_space<vmem>>, vector<8x784xf32>,
    %c0_44 = arith.constant 0 : index
    %c0_45 = arith.constant 0 : index
    %77 = vector.load %arg16[%c0_44, %c0_45] : memref<8x4xf32, #tpu.memory_space<vmem>>, vector<8x4xf32>
    tpu.vector_store %arg16[%c0_44, %c0_45], %28 {strides = array<i32>} : memref<8x4xf32, #tpu.memory_space<vmem>>, vector<8x4xf32>,
    return
  }
  func.func @transform_0(%arg0: i32) -> (i32, i32) {
    %c0_i32 = arith.constant 0 : i32
    %c0_i32_0 = arith.constant 0 : i32
    return %arg0, %c0_i32 : i32, i32
  }
  func.func @transform_1(%arg0: i32) -> (i32, i32) {
    %c0_i32 = arith.constant 0 : i32
    %c0_i32_0 = arith.constant 0 : i32
    return %arg0, %c0_i32 : i32, i32
  }
  func.func @transform_2(%arg0: i32) -> (i32, i32) {
    %c0_i32 = arith.constant 0 : i32
    %c0_i32_0 = arith.constant 0 : i32
    %c0_i32_1 = arith.constant 0 : i32
    return %c0_i32, %c0_i32_0 : i32, i32
  }
  func.func @transform_3(%arg0: i32) -> (i32, i32) {
    %c0_i32 = arith.constant 0 : i32
    %c0_i32_0 = arith.constant 0 : i32
    %c0_i32_1 = arith.constant 0 : i32
    return %c0_i32, %c0_i32_0 : i32, i32
  }
  func.func @transform_4(%arg0: i32) -> (i32, i32) {
    %c0_i32 = arith.constant 0 : i32
    %c0_i32_0 = arith.constant 0 : i32
    %c0_i32_1 = arith.constant 0 : i32
    return %c0_i32, %c0_i32_0 : i32, i32
  }
  func.func @transform_5(%arg0: i32) -> (i32, i32) {
    %c0_i32 = arith.constant 0 : i32
    %c0_i32_0 = arith.constant 0 : i32
    %c0_i32_1 = arith.constant 0 : i32
    return %c0_i32, %c0_i32_0 : i32, i32
  }
  func.func @transform_6(%arg0: i32) -> (i32, i32) {
    %c0_i32 = arith.constant 0 : i32
    %c0_i32_0 = arith.constant 0 : i32
    %c0_i32_1 = arith.constant 0 : i32
    return %c0_i32, %c0_i32_0 : i32, i32
  }
  func.func @transform_7(%arg0: i32) -> (i32, i32) {
    %c0_i32 = arith.constant 0 : i32
    %c0_i32_0 = arith.constant 0 : i32
    %c0_i32_1 = arith.constant 0 : i32
    return %c0_i32, %c0_i32_0 : i32, i32
  }
  func.func @transform_8(%arg0: i32) -> (i32, i32) {
    %c0_i32 = arith.constant 0 : i32
    %c0_i32_0 = arith.constant 0 : i32
    %c0_i32_1 = arith.constant 0 : i32
    return %c0_i32, %c0_i32_0 : i32, i32
  }
  func.func @transform_9(%arg0: i32) -> (i32, i32) {
    %c0_i32 = arith.constant 0 : i32
    %c0_i32_0 = arith.constant 0 : i32
    %c0_i32_1 = arith.constant 0 : i32
    return %c0_i32, %c0_i32_0 : i32, i32
  }
  func.func @transform_10(%arg0: i32) -> (i32, i32) {
    %c0_i32 = arith.constant 0 : i32
    %c0_i32_0 = arith.constant 0 : i32
    %c0_i32_1 = arith.constant 0 : i32
    return %c0_i32, %c0_i32_0 : i32, i32
  }
  func.func @transform_11(%arg0: i32) -> (i32, i32) {
    %c0_i32 = arith.constant 0 : i32
    %c0_i32_0 = arith.constant 0 : i32
    %c0_i32_1 = arith.constant 0 : i32
    return %c0_i32, %c0_i32_0 : i32, i32
  }
  func.func @transform_12(%arg0: i32) -> (i32, i32) {
    %c0_i32 = arith.constant 0 : i32
    %c0_i32_0 = arith.constant 0 : i32
    %c0_i32_1 = arith.constant 0 : i32
    return %c0_i32, %c0_i32_0 : i32, i32
  }
  func.func @transform_13(%arg0: i32) -> (i32, i32) {
    %c0_i32 = arith.constant 0 : i32
    %c0_i32_0 = arith.constant 0 : i32
    %c0_i32_1 = arith.constant 0 : i32
    return %c0_i32, %c0_i32_0 : i32, i32
  }
  func.func @transform_14(%arg0: i32) -> (i32, i32) {
    %c0_i32 = arith.constant 0 : i32
    %c0_i32_0 = arith.constant 0 : i32
    return %arg0, %c0_i32 : i32, i32
  }
  func.func @transform_15(%arg0: i32) -> (i32, i32) {
    %c0_i32 = arith.constant 0 : i32
    %c0_i32_0 = arith.constant 0 : i32
    return %arg0, %c0_i32 : i32, i32
  }
}

</mosaic_0001>

<llo_original>
// kernel: vae_forward.1
$region0: #{vae_forward.1}
  #allocation0 [shape = 'u32[]', space=smem, size = 0x4, offset = 0x4, fixed_abs, tag = 'smem constant byte address 0x4 - core index']
  #allocation1 [shape = 'u32[72,128]{1,0:T(1,128)}', space=vmem, size = 0x9000, scoped, tag = 'internal scratch']
  %s0 = inlined_call_operand.vmem [shape: f32[8,784], index: 0, kind: input, shape index: {}]
  %s1 = inlined_call_operand.vmem [shape: f32[8,2], index: 1, kind: input, shape index: {}]
  %s2 = inlined_call_operand.vmem [shape: bf16[784,512], index: 2, kind: input, shape index: {}]
  %s3 = inlined_call_operand.vmem [shape: f32[1,512], index: 3, kind: input, shape index: {}]
  %s4 = inlined_call_operand.vmem [shape: bf16[512,256], index: 4, kind: input, shape index: {}]
  %s5 = inlined_call_operand.vmem [shape: f32[1,256], index: 5, kind: input, shape index: {}]
  %s6 = inlined_call_operand.vmem [shape: bf16[256,4], index: 6, kind: input, shape index: {}]
  %s7 = inlined_call_operand.vmem [shape: f32[1,4], index: 7, kind: input, shape index: {}]
  %s8 = inlined_call_operand.vmem [shape: f32[2,256], index: 8, kind: input, shape index: {}]
  %s9 = inlined_call_operand.vmem [shape: f32[1,256], index: 9, kind: input, shape index: {}]
  %s10 = inlined_call_operand.vmem [shape: bf16[256,512], index: 10, kind: input, shape index: {}]
  %s11 = inlined_call_operand.vmem [shape: f32[1,512], index: 11, kind: input, shape index: {}]
  %s12 = inlined_call_operand.vmem [shape: bf16[512,784], index: 12, kind: input, shape index: {}]
  %s13 = inlined_call_operand.vmem [shape: f32[1,784], index: 13, kind: input, shape index: {}]
  %s14 = inlined_call_operand.hbm [shape: f32[8,784], index: 14, kind: output, shape index: {0}]
  %s15 = inlined_call_operand.vmem [shape: f32[8,4], index: 15, kind: output, shape index: {1}]
  %16 = xla_tuple %s14, %s15
  %s17 = sld [smem:[#allocation0]]
  $region74: #{vae_forward.1} parent=0
    _
  %s19 = ssub.s32 1, %s17
  %s20 = scalar_select 0, %s19, %s17
  $region1: #{vae_forward.1} parent=0
    #allocation2 [shape = 'u8[28672]{0}', space=vmem, size = 0x7000, scoped, tag = 'output window, operand 0, single buffered']
    #allocation3 [shape = 's32[1]{0}', space=sflag, size = 0x4, scoped, tag = 'scoped memory for vae_forward.1']
    %21 = vsyncpa [#allocation3], 0
    // Predicated region
    $region2: #{vae_forward.1} parent=1 // pred_check
      _
    $region3: #{vae_forward.1} parent=1 // pred_check_branch
      %23 = sbr.rel (0) target = $region5
    $region4: #{vae_forward.1} parent=1 // pred_region
      _
    $region5: #{vae_forward.1} parent=1 // pred_fallthru
      _
    // Predicated region
    $region6: #{vae_forward.1} parent=1 // pred_check
      _
    $region7: #{vae_forward.1} parent=1 // pred_check_branch
      %25 = sbr.rel (0) target = $region9
    $region8: #{vae_forward.1} parent=1 // pred_region
      _
    $region9: #{vae_forward.1} parent=1 // pred_fallthru
      _
    // Predicated region
    $region10: #{vae_forward.1} parent=1 // pred_check
      _
    $region11: #{vae_forward.1} parent=1 // pred_check_branch
      %27 = sbr.rel (0) target = $region13
    $region12: #{vae_forward.1} parent=1 // pred_region
      _
    $region13: #{vae_forward.1} parent=1 // pred_fallthru
      _
    // Predicated region
    $region14: #{vae_forward.1} parent=1 // pred_check
      _
    $region15: #{vae_forward.1} parent=1 // pred_check_branch
      %29 = sbr.rel (0) target = $region17
    $region16: #{vae_forward.1} parent=1 // pred_region
      _
    $region17: #{vae_forward.1} parent=1 // pred_fallthru
      _
    // Predicated region
    $region18: #{vae_forward.1} parent=1 // pred_check
      _
    $region19: #{vae_forward.1} parent=1 // pred_check_branch
      %31 = sbr.rel (0) target = $region21
    $region20: #{vae_forward.1} parent=1 // pred_region
      _
    $region21: #{vae_forward.1} parent=1 // pred_fallthru
      _
    // Predicated region
    $region22: #{vae_forward.1} parent=1 // pred_check
      _
    $region23: #{vae_forward.1} parent=1 // pred_check_branch
      %33 = sbr.rel (0) target = $region25
    $region24: #{vae_forward.1} parent=1 // pred_region
      _
    $region25: #{vae_forward.1} parent=1 // pred_fallthru
      _
    // Predicated region
    $region26: #{vae_forward.1} parent=1 // pred_check
      _
    $region27: #{vae_forward.1} parent=1 // pred_check_branch
      %35 = sbr.rel (0) target = $region29
    $region28: #{vae_forward.1} parent=1 // pred_region
      _
    $region29: #{vae_forward.1} parent=1 // pred_fallthru
      _
    // Predicated region
    $region30: #{vae_forward.1} parent=1 // pred_check
      _
    $region31: #{vae_forward.1} parent=1 // pred_check_branch
      %37 = sbr.rel (0) target = $region33
    $region32: #{vae_forward.1} parent=1 // pred_region
      _
    $region33: #{vae_forward.1} parent=1 // pred_fallthru
      _
    // Predicated region
    $region34: #{vae_forward.1} parent=1 // pred_check
      _
    $region35: #{vae_forward.1} parent=1 // pred_check_branch
      %39 = sbr.rel (0) target = $region37
    $region36: #{vae_forward.1} parent=1 // pred_region
      _
    $region37: #{vae_forward.1} parent=1 // pred_fallthru
      _
    // Predicated region
    $region38: #{vae_forward.1} parent=1 // pred_check
      _
    $region39: #{vae_forward.1} parent=1 // pred_check_branch
      %41 = sbr.rel (0) target = $region41
    $region40: #{vae_forward.1} parent=1 // pred_region
      _
    $region41: #{vae_forward.1} parent=1 // pred_fallthru
      _
    // Predicated region
    $region42: #{vae_forward.1} parent=1 // pred_check
      _
    $region43: #{vae_forward.1} parent=1 // pred_check_branch
      %43 = sbr.rel (0) target = $region45
    $region44: #{vae_forward.1} parent=1 // pred_region
      _
    $region45: #{vae_forward.1} parent=1 // pred_fallthru
      _
    // Predicated region
    $region46: #{vae_forward.1} parent=1 // pred_check
      _
    $region47: #{vae_forward.1} parent=1 // pred_check_branch
      %45 = sbr.rel (0) target = $region49
    $region48: #{vae_forward.1} parent=1 // pred_region
      _
    $region49: #{vae_forward.1} parent=1 // pred_fallthru
      _
    // Predicated region
    $region50: #{vae_forward.1} parent=1 // pred_check
      _
    $region51: #{vae_forward.1} parent=1 // pred_check_branch
      %47 = sbr.rel (0) target = $region53
    $region52: #{vae_forward.1} parent=1 // pred_region
      _
    $region53: #{vae_forward.1} parent=1 // pred_fallthru
      _
    // Predicated region
    $region54: #{vae_forward.1} parent=1 // pred_check
      _
    $region55: #{vae_forward.1} parent=1 // pred_check_branch
      %49 = sbr.rel (0) target = $region57
    $region56: #{vae_forward.1} parent=1 // pred_region
      _
    $region57: #{vae_forward.1} parent=1 // pred_fallthru
      _
    %v51 = vld [vmem:[%s0] sm:$0xff]
    %v52 = vld [vmem:[%s0 + $0x8] sm:$0xff]
    %v53 = vld [vmem:[%s0 + $0x10] sm:$0xff]
    %v54 = vld [vmem:[%s0 + $0x18] sm:$0xff]
    %v55 = vld [vmem:[%s0 + $0x20] sm:$0xff]
    %v56 = vld [vmem:[%s0 + $0x28] sm:$0xff]
    %v57 = vld [vmem:[%s0 + $0x30] sm:$0xff]
    %v58 = vpack.c.bf16 %v51, %v51
    %v59 = vpack.c.bf16 %v52, %v52
    %v60 = vpack.c.bf16 %v53, %v53
    %v61 = vpack.c.bf16 %v54, %v54
    %v62 = vpack.c.bf16 %v55, %v55
    %v63 = vpack.c.bf16 %v56, %v56
    %v64 = vpack.c.bf16 %v57, %v57
    %v65 = vld [vmem:[%s2] sm:$0xff]
    %v66 = vld [vmem:[%s2 + $0x8] sm:$0xff]
    %v67 = vld [vmem:[%s2 + $0x10] sm:$0xff]
    %v68 = vld [vmem:[%s2 + $0x18] sm:$0xff]
    %v69 = vld [vmem:[%s2 + $0x20] sm:$0xff]
    %v70 = vld [vmem:[%s2 + $0x28] sm:$0xff]
    %v71 = vld [vmem:[%s2 + $0x30] sm:$0xff]
    %v72 = vld [vmem:[%s2 + $0x38] sm:$0xff]
    %v73 = vld [vmem:[%s2 + $0x40] sm:$0xff]
    %v74 = vld [vmem:[%s2 + $0x48] sm:$0xff]
    %v75 = vld [vmem:[%s2 + $0x50] sm:$0xff]
    %v76 = vld [vmem:[%s2 + $0x58] sm:$0xff]
    %v77 = vld [vmem:[%s2 + $0x60] sm:$0xff]
    %v78 = vld [vmem:[%s2 + $0x68] sm:$0xff]
    %v79 = vld [vmem:[%s2 + $0x70] sm:$0xff]
    %v80 = vld [vmem:[%s2 + $0x78] sm:$0xff]
    %v81 = vld [vmem:[%s2 + $0x80] sm:$0xff]
    %v82 = vld [vmem:[%s2 + $0x88] sm:$0xff]
    %v83 = vld [vmem:[%s2 + $0x90] sm:$0xff]
    %v84 = vld [vmem:[%s2 + $0x98] sm:$0xff]
    %v85 = vld [vmem:[%s2 + $0xa0] sm:$0xff]
    %v86 = vld [vmem:[%s2 + $0xa8] sm:$0xff]
    %v87 = vld [vmem:[%s2 + $0xb0] sm:$0xff]
    %v88 = vld [vmem:[%s2 + $0xb8] sm:$0xff]
    %v89 = vld [vmem:[%s2 + $0xc0] sm:$0xff]
    %v90 = vld [vmem:[%s2 + $0xc8] sm:$0xff]
    %v91 = vld [vmem:[%s2 + $0xd0] sm:$0xff]
    %v92 = vld [vmem:[%s2 + $0xd8] sm:$0xff]
    %v93 = vld [vmem:[%s2 + $0xe0] sm:$0xff]
    %v94 = vld [vmem:[%s2 + $0xe8] sm:$0xff]
    %v95 = vld [vmem:[%s2 + $0xf0] sm:$0xff]
    %v96 = vld [vmem:[%s2 + $0xf8] sm:$0xff]
    %v97 = vld [vmem:[%s2 + $0x100] sm:$0xff]
    %v98 = vld [vmem:[%s2 + $0x108] sm:$0xff]
    %v99 = vld [vmem:[%s2 + $0x110] sm:$0xff]
    %v100 = vld [vmem:[%s2 + $0x118] sm:$0xff]
    %v101 = vld [vmem:[%s2 + $0x120] sm:$0xff]
    %v102 = vld [vmem:[%s2 + $0x128] sm:$0xff]
    %v103 = vld [vmem:[%s2 + $0x130] sm:$0xff]
    %v104 = vld [vmem:[%s2 + $0x138] sm:$0xff]
    %v105 = vld [vmem:[%s2 + $0x140] sm:$0xff]
    %v106 = vld [vmem:[%s2 + $0x148] sm:$0xff]
    %v107 = vld [vmem:[%s2 + $0x150] sm:$0xff]
    %v108 = vld [vmem:[%s2 + $0x158] sm:$0xff]
    %v109 = vld [vmem:[%s2 + $0x160] sm:$0xff]
    %v110 = vld [vmem:[%s2 + $0x168] sm:$0xff]
    %v111 = vld [vmem:[%s2 + $0x170] sm:$0xff]
    %v112 = vld [vmem:[%s2 + $0x178] sm:$0xff]
    %v113 = vld [vmem:[%s2 + $0x180] sm:$0xff]
    %v114 = vld [vmem:[%s2 + $0x188] sm:$0xff]
    %v115 = vld [vmem:[%s2 + $0x190] sm:$0xff]
    %v116 = vld [vmem:[%s2 + $0x198] sm:$0xff]
    %v117 = vld [vmem:[%s2 + $0x1a0] sm:$0xff]
    %v118 = vld [vmem:[%s2 + $0x1a8] sm:$0xff]
    %v119 = vld [vmem:[%s2 + $0x1b0] sm:$0xff]
    %v120 = vld [vmem:[%s2 + $0x1b8] sm:$0xff]
    %v121 = vld [vmem:[%s2 + $0x1c0] sm:$0xff]
    %v122 = vld [vmem:[%s2 + $0x1c8] sm:$0xff]
    %v123 = vld [vmem:[%s2 + $0x1d0] sm:$0xff]
    %v124 = vld [vmem:[%s2 + $0x1d8] sm:$0xff]
    %v125 = vld [vmem:[%s2 + $0x1e0] sm:$0xff]
    %v126 = vld [vmem:[%s2 + $0x1e8] sm:$0xff]
    %v127 = vld [vmem:[%s2 + $0x1f0] sm:$0xff]
    %v128 = vld [vmem:[%s2 + $0x1f8] sm:$0xff]
    %v129 = vld [vmem:[%s2 + $0x200] sm:$0xff]
    %v130 = vld [vmem:[%s2 + $0x208] sm:$0xff]
    %v131 = vld [vmem:[%s2 + $0x210] sm:$0xff]
    %v132 = vld [vmem:[%s2 + $0x218] sm:$0xff]
    %v133 = vld [vmem:[%s2 + $0x220] sm:$0xff]
    %v134 = vld [vmem:[%s2 + $0x228] sm:$0xff]
    %v135 = vld [vmem:[%s2 + $0x230] sm:$0xff]
    %v136 = vld [vmem:[%s2 + $0x238] sm:$0xff]
    %v137 = vld [vmem:[%s2 + $0x240] sm:$0xff]
    %v138 = vld [vmem:[%s2 + $0x248] sm:$0xff]
    %v139 = vld [vmem:[%s2 + $0x250] sm:$0xff]
    %v140 = vld [vmem:[%s2 + $0x258] sm:$0xff]
    %v141 = vld [vmem:[%s2 + $0x260] sm:$0xff]
    %v142 = vld [vmem:[%s2 + $0x268] sm:$0xff]
    %v143 = vld [vmem:[%s2 + $0x270] sm:$0xff]
    %v144 = vld [vmem:[%s2 + $0x278] sm:$0xff]
    %v145 = vld [vmem:[%s2 + $0x280] sm:$0xff]
    %v146 = vld [vmem:[%s2 + $0x288] sm:$0xff]
    %v147 = vld [vmem:[%s2 + $0x290] sm:$0xff]
    %v148 = vld [vmem:[%s2 + $0x298] sm:$0xff]
    %v149 = vld [vmem:[%s2 + $0x2a0] sm:$0xff]
    %v150 = vld [vmem:[%s2 + $0x2a8] sm:$0xff]
    %v151 = vld [vmem:[%s2 + $0x2b0] sm:$0xff]
    %v152 = vld [vmem:[%s2 + $0x2b8] sm:$0xff]
    %v153 = vld [vmem:[%s2 + $0x2c0] sm:$0xff]
    %v154 = vld [vmem:[%s2 + $0x2c8] sm:$0xff]
    %v155 = vld [vmem:[%s2 + $0x2d0] sm:$0xff]
    %v156 = vld [vmem:[%s2 + $0x2d8] sm:$0xff]
    %v157 = vld [vmem:[%s2 + $0x2e0] sm:$0xff]
    %v158 = vld [vmem:[%s2 + $0x2e8] sm:$0xff]
    %v159 = vld [vmem:[%s2 + $0x2f0] sm:$0xff]
    %v160 = vld [vmem:[%s2 + $0x2f8] sm:$0xff]
    %v161 = vld [vmem:[%s2 + $0x300] sm:$0xff]
    %v162 = vld [vmem:[%s2 + $0x308] sm:$0xff]
    %v163 = vld [vmem:[%s2 + $0x310] sm:$0xff]
    %v164 = vld [vmem:[%s2 + $0x318] sm:$0xff]
    %v165 = vld [vmem:[%s2 + $0x320] sm:$0xff]
    %v166 = vld [vmem:[%s2 + $0x328] sm:$0xff]
    %v167 = vld [vmem:[%s2 + $0x330] sm:$0xff]
    %v168 = vld [vmem:[%s2 + $0x338] sm:$0xff]
    %v169 = vld [vmem:[%s2 + $0x340] sm:$0xff]
    %v170 = vld [vmem:[%s2 + $0x348] sm:$0xff]
    %v171 = vld [vmem:[%s2 + $0x350] sm:$0xff]
    %v172 = vld [vmem:[%s2 + $0x358] sm:$0xff]
    %v173 = vld [vmem:[%s2 + $0x360] sm:$0xff]
    %v174 = vld [vmem:[%s2 + $0x368] sm:$0xff]
    %v175 = vld [vmem:[%s2 + $0x370] sm:$0xff]
    %v176 = vld [vmem:[%s2 + $0x378] sm:$0xff]
    %v177 = vld [vmem:[%s2 + $0x380] sm:$0xff]
    %v178 = vld [vmem:[%s2 + $0x388] sm:$0xff]
    %v179 = vld [vmem:[%s2 + $0x390] sm:$0xff]
    %v180 = vld [vmem:[%s2 + $0x398] sm:$0xff]
    %v181 = vld [vmem:[%s2 + $0x3a0] sm:$0xff]
    %v182 = vld [vmem:[%s2 + $0x3a8] sm:$0xff]
    %v183 = vld [vmem:[%s2 + $0x3b0] sm:$0xff]
    %v184 = vld [vmem:[%s2 + $0x3b8] sm:$0xff]
    %v185 = vld [vmem:[%s2 + $0x3c0] sm:$0xff]
    %v186 = vld [vmem:[%s2 + $0x3c8] sm:$0xff]
    %v187 = vld [vmem:[%s2 + $0x3d0] sm:$0xff]
    %v188 = vld [vmem:[%s2 + $0x3d8] sm:$0xff]
    %v189 = vld [vmem:[%s2 + $0x3e0] sm:$0xff]
    %v190 = vld [vmem:[%s2 + $0x3e8] sm:$0xff]
    %v191 = vld [vmem:[%s2 + $0x3f0] sm:$0xff]
    %v192 = vld [vmem:[%s2 + $0x3f8] sm:$0xff]
    %v193 = vld [vmem:[%s2 + $0x400] sm:$0xff]
    %v194 = vld [vmem:[%s2 + $0x408] sm:$0xff]
    %v195 = vld [vmem:[%s2 + $0x410] sm:$0xff]
    %v196 = vld [vmem:[%s2 + $0x418] sm:$0xff]
    %v197 = vld [vmem:[%s2 + $0x420] sm:$0xff]
    %v198 = vld [vmem:[%s2 + $0x428] sm:$0xff]
    %v199 = vld [vmem:[%s2 + $0x430] sm:$0xff]
    %v200 = vld [vmem:[%s2 + $0x438] sm:$0xff]
    %v201 = vld [vmem:[%s2 + $0x440] sm:$0xff]
    %v202 = vld [vmem:[%s2 + $0x448] sm:$0xff]
    %v203 = vld [vmem:[%s2 + $0x450] sm:$0xff]
    %v204 = vld [vmem:[%s2 + $0x458] sm:$0xff]
    %v205 = vld [vmem:[%s2 + $0x460] sm:$0xff]
    %v206 = vld [vmem:[%s2 + $0x468] sm:$0xff]
    %v207 = vld [vmem:[%s2 + $0x470] sm:$0xff]
    %v208 = vld [vmem:[%s2 + $0x478] sm:$0xff]
    %v209 = vld [vmem:[%s2 + $0x480] sm:$0xff]
    %v210 = vld [vmem:[%s2 + $0x488] sm:$0xff]
    %v211 = vld [vmem:[%s2 + $0x490] sm:$0xff]
    %v212 = vld [vmem:[%s2 + $0x498] sm:$0xff]
    %v213 = vld [vmem:[%s2 + $0x4a0] sm:$0xff]
    %v214 = vld [vmem:[%s2 + $0x4a8] sm:$0xff]
    %v215 = vld [vmem:[%s2 + $0x4b0] sm:$0xff]
    %v216 = vld [vmem:[%s2 + $0x4b8] sm:$0xff]
    %v217 = vld [vmem:[%s2 + $0x4c0] sm:$0xff]
    %v218 = vld [vmem:[%s2 + $0x4c8] sm:$0xff]
    %v219 = vld [vmem:[%s2 + $0x4d0] sm:$0xff]
    %v220 = vld [vmem:[%s2 + $0x4d8] sm:$0xff]
    %v221 = vld [vmem:[%s2 + $0x4e0] sm:$0xff]
    %v222 = vld [vmem:[%s2 + $0x4e8] sm:$0xff]
    %v223 = vld [vmem:[%s2 + $0x4f0] sm:$0xff]
    %v224 = vld [vmem:[%s2 + $0x4f8] sm:$0xff]
    %v225 = vld [vmem:[%s2 + $0x500] sm:$0xff]
    %v226 = vld [vmem:[%s2 + $0x508] sm:$0xff]
    %v227 = vld [vmem:[%s2 + $0x510] sm:$0xff]
    %v228 = vld [vmem:[%s2 + $0x518] sm:$0xff]
    %v229 = vld [vmem:[%s2 + $0x520] sm:$0xff]
    %v230 = vld [vmem:[%s2 + $0x528] sm:$0xff]
    %v231 = vld [vmem:[%s2 + $0x530] sm:$0xff]
    %v232 = vld [vmem:[%s2 + $0x538] sm:$0xff]
    %v233 = vld [vmem:[%s2 + $0x540] sm:$0xff]
    %v234 = vld [vmem:[%s2 + $0x548] sm:$0xff]
    %v235 = vld [vmem:[%s2 + $0x550] sm:$0xff]
    %v236 = vld [vmem:[%s2 + $0x558] sm:$0xff]
    %v237 = vld [vmem:[%s2 + $0x560] sm:$0xff]
    %v238 = vld [vmem:[%s2 + $0x568] sm:$0xff]
    %v239 = vld [vmem:[%s2 + $0x570] sm:$0xff]
    %v240 = vld [vmem:[%s2 + $0x578] sm:$0xff]
    %v241 = vld [vmem:[%s2 + $0x580] sm:$0xff]
    %v242 = vld [vmem:[%s2 + $0x588] sm:$0xff]
    %v243 = vld [vmem:[%s2 + $0x590] sm:$0xff]
    %v244 = vld [vmem:[%s2 + $0x598] sm:$0xff]
    %v245 = vld [vmem:[%s2 + $0x5a0] sm:$0xff]
    %v246 = vld [vmem:[%s2 + $0x5a8] sm:$0xff]
    %v247 = vld [vmem:[%s2 + $0x5b0] sm:$0xff]
    %v248 = vld [vmem:[%s2 + $0x5b8] sm:$0xff]
    %v249 = vld [vmem:[%s2 + $0x5c0] sm:$0xff]
    %v250 = vld [vmem:[%s2 + $0x5c8] sm:$0xff]
    %v251 = vld [vmem:[%s2 + $0x5d0] sm:$0xff]
    %v252 = vld [vmem:[%s2 + $0x5d8] sm:$0xff]
    %v253 = vld [vmem:[%s2 + $0x5e0] sm:$0xff]
    %v254 = vld [vmem:[%s2 + $0x5e8] sm:$0xff]
    %v255 = vld [vmem:[%s2 + $0x5f0] sm:$0xff]
    %v256 = vld [vmem:[%s2 + $0x5f8] sm:$0xff]
    %v257 = vld [vmem:[%s2 + $0x600] sm:$0xff]
    %v258 = vld [vmem:[%s2 + $0x608] sm:$0xff]
    %v259 = vld [vmem:[%s2 + $0x610] sm:$0xff]
    %v260 = vld [vmem:[%s2 + $0x618] sm:$0xff]
    %v261 = vld [vmem:[%s3] sm:$0xf]
    %v263 = vperm.slane %v261, 0
    %v264 = vperm.slane %v261, 1
    %v265 = vperm.slane %v261, 2
    %v266 = vperm.slane %v261, 3
    %v467 = vunpack.c.l.b16 %v65
    %v468 = vunpack.c.h.b16 %v65
    %v469 = vunpack.c.l.b16 %v66
    %v470 = vunpack.c.h.b16 %v66
    %v471 = vunpack.c.l.b16 %v67
    %v472 = vunpack.c.h.b16 %v67
    %v473 = vunpack.c.l.b16 %v68
    %v474 = vunpack.c.h.b16 %v68
    %v475 = vunpack.c.l.b16 %v69
    %v476 = vunpack.c.h.b16 %v69
    %v477 = vunpack.c.l.b16 %v70
    %v478 = vunpack.c.h.b16 %v70
    %v479 = vunpack.c.l.b16 %v71
    %v480 = vunpack.c.h.b16 %v71
    %v481 = vunpack.c.l.b16 %v72
    %v482 = vunpack.c.h.b16 %v72
    %v483 = vunpack.c.l.b16 %v73
    %v484 = vunpack.c.h.b16 %v73
    %v485 = vunpack.c.l.b16 %v74
    %v486 = vunpack.c.h.b16 %v74
    %v487 = vunpack.c.l.b16 %v75
    %v488 = vunpack.c.h.b16 %v75
    %v489 = vunpack.c.l.b16 %v76
    %v490 = vunpack.c.h.b16 %v76
    %v491 = vunpack.c.l.b16 %v77
    %v492 = vunpack.c.h.b16 %v77
    %v493 = vunpack.c.l.b16 %v78
    %v494 = vunpack.c.h.b16 %v78
    %v495 = vunpack.c.l.b16 %v79
    %v496 = vunpack.c.h.b16 %v79
    %v497 = vunpack.c.l.b16 %v80
    %v498 = vunpack.c.h.b16 %v80
    %v499 = vunpack.c.l.b16 %v81
    %v500 = vunpack.c.h.b16 %v81
    %v501 = vunpack.c.l.b16 %v82
    %v502 = vunpack.c.h.b16 %v82
    %v503 = vunpack.c.l.b16 %v83
    %v504 = vunpack.c.h.b16 %v83
    %v505 = vunpack.c.l.b16 %v84
    %v506 = vunpack.c.h.b16 %v84
    %v507 = vunpack.c.l.b16 %v85
    %v508 = vunpack.c.h.b16 %v85
    %v509 = vunpack.c.l.b16 %v86
    %v510 = vunpack.c.h.b16 %v86
    %v511 = vunpack.c.l.b16 %v87
    %v512 = vunpack.c.h.b16 %v87
    %v513 = vunpack.c.l.b16 %v88
    %v514 = vunpack.c.h.b16 %v88
    %v515 = vunpack.c.l.b16 %v89
    %v516 = vunpack.c.h.b16 %v89
    %v517 = vunpack.c.l.b16 %v90
    %v518 = vunpack.c.h.b16 %v90
    %v519 = vunpack.c.l.b16 %v91
    %v520 = vunpack.c.h.b16 %v91
    %v521 = vunpack.c.l.b16 %v92
    %v522 = vunpack.c.h.b16 %v92
    %v523 = vunpack.c.l.b16 %v93
    %v524 = vunpack.c.h.b16 %v93
    %v525 = vunpack.c.l.b16 %v94
    %v526 = vunpack.c.h.b16 %v94
    %v527 = vunpack.c.l.b16 %v95
    %v528 = vunpack.c.h.b16 %v95
    %v529 = vunpack.c.l.b16 %v96
    %v530 = vunpack.c.h.b16 %v96
    %v531 = vunpack.c.l.b16 %v97
    %v532 = vunpack.c.h.b16 %v97
    %v533 = vunpack.c.l.b16 %v98
    %v534 = vunpack.c.h.b16 %v98
    %v535 = vunpack.c.l.b16 %v99
    %v536 = vunpack.c.h.b16 %v99
    %v537 = vunpack.c.l.b16 %v100
    %v538 = vunpack.c.h.b16 %v100
    %v539 = vunpack.c.l.b16 %v101
    %v540 = vunpack.c.h.b16 %v101
    %v541 = vunpack.c.l.b16 %v102
    %v542 = vunpack.c.h.b16 %v102
    %v543 = vunpack.c.l.b16 %v103
    %v544 = vunpack.c.h.b16 %v103
    %v545 = vunpack.c.l.b16 %v104
    %v546 = vunpack.c.h.b16 %v104
    %v547 = vunpack.c.l.b16 %v105
    %v548 = vunpack.c.h.b16 %v105
    %v549 = vunpack.c.l.b16 %v106
    %v550 = vunpack.c.h.b16 %v106
    %v551 = vunpack.c.l.b16 %v107
    %v552 = vunpack.c.h.b16 %v107
    %v553 = vunpack.c.l.b16 %v108
    %v554 = vunpack.c.h.b16 %v108
    %v555 = vunpack.c.l.b16 %v109
    %v556 = vunpack.c.h.b16 %v109
    %v557 = vunpack.c.l.b16 %v110
    %v558 = vunpack.c.h.b16 %v110
    %v559 = vunpack.c.l.b16 %v111
    %v560 = vunpack.c.h.b16 %v111
    %v561 = vunpack.c.l.b16 %v112
    %v562 = vunpack.c.h.b16 %v112
    %v563 = vunpack.c.l.b16 %v113
    %v564 = vunpack.c.h.b16 %v113
    %v565 = vunpack.c.l.b16 %v114
    %v566 = vunpack.c.h.b16 %v114
    %v567 = vunpack.c.l.b16 %v115
    %v568 = vunpack.c.h.b16 %v115
    %v569 = vunpack.c.l.b16 %v116
    %v570 = vunpack.c.h.b16 %v116
    %v571 = vunpack.c.l.b16 %v117
    %v572 = vunpack.c.h.b16 %v117
    %v573 = vunpack.c.l.b16 %v118
    %v574 = vunpack.c.h.b16 %v118
    %v575 = vunpack.c.l.b16 %v119
    %v576 = vunpack.c.h.b16 %v119
    %v577 = vunpack.c.l.b16 %v120
    %v578 = vunpack.c.h.b16 %v120
    %v579 = vunpack.c.l.b16 %v121
    %v580 = vunpack.c.h.b16 %v121
    %v581 = vunpack.c.l.b16 %v122
    %v582 = vunpack.c.h.b16 %v122
    %v583 = vunpack.c.l.b16 %v123
    %v584 = vunpack.c.h.b16 %v123
    %v585 = vunpack.c.l.b16 %v124
    %v586 = vunpack.c.h.b16 %v124
    %v587 = vunpack.c.l.b16 %v125
    %v588 = vunpack.c.h.b16 %v125
    %v589 = vunpack.c.l.b16 %v126
    %v590 = vunpack.c.h.b16 %v126
    %v591 = vunpack.c.l.b16 %v127
    %v592 = vunpack.c.h.b16 %v127
    %v593 = vunpack.c.l.b16 %v128
    %v594 = vunpack.c.h.b16 %v128
    %v595 = vunpack.c.l.b16 %v129
    %v596 = vunpack.c.h.b16 %v129
    %v597 = vunpack.c.l.b16 %v130
    %v598 = vunpack.c.h.b16 %v130
    %v599 = vunpack.c.l.b16 %v131
    %v600 = vunpack.c.h.b16 %v131
    %v601 = vunpack.c.l.b16 %v132
    %v602 = vunpack.c.h.b16 %v132
    %v603 = vunpack.c.l.b16 %v133
    %v604 = vunpack.c.h.b16 %v133
    %v605 = vunpack.c.l.b16 %v134
    %v606 = vunpack.c.h.b16 %v134
    %v607 = vunpack.c.l.b16 %v135
    %v608 = vunpack.c.h.b16 %v135
    %v609 = vunpack.c.l.b16 %v136
    %v610 = vunpack.c.h.b16 %v136
    %v611 = vunpack.c.l.b16 %v137
    %v612 = vunpack.c.h.b16 %v137
    %v613 = vunpack.c.l.b16 %v138
    %v614 = vunpack.c.h.b16 %v138
    %v615 = vunpack.c.l.b16 %v139
    %v616 = vunpack.c.h.b16 %v139
    %v617 = vunpack.c.l.b16 %v140
    %v618 = vunpack.c.h.b16 %v140
    %v619 = vunpack.c.l.b16 %v141
    %v620 = vunpack.c.h.b16 %v141
    %v621 = vunpack.c.l.b16 %v142
    %v622 = vunpack.c.h.b16 %v142
    %v623 = vunpack.c.l.b16 %v143
    %v624 = vunpack.c.h.b16 %v143
    %v625 = vunpack.c.l.b16 %v144
    %v626 = vunpack.c.h.b16 %v144
    %v627 = vunpack.c.l.b16 %v145
    %v628 = vunpack.c.h.b16 %v145
    %v629 = vunpack.c.l.b16 %v146
    %v630 = vunpack.c.h.b16 %v146
    %v631 = vunpack.c.l.b16 %v147
    %v632 = vunpack.c.h.b16 %v147
    %v633 = vunpack.c.l.b16 %v148
    %v634 = vunpack.c.h.b16 %v148
    %v635 = vunpack.c.l.b16 %v149
    %v636 = vunpack.c.h.b16 %v149
    %v637 = vunpack.c.l.b16 %v150
    %v638 = vunpack.c.h.b16 %v150
    %v639 = vunpack.c.l.b16 %v151
    %v640 = vunpack.c.h.b16 %v151
    %v641 = vunpack.c.l.b16 %v152
    %v642 = vunpack.c.h.b16 %v152
    %v643 = vunpack.c.l.b16 %v153
    %v644 = vunpack.c.h.b16 %v153
    %v645 = vunpack.c.l.b16 %v154
    %v646 = vunpack.c.h.b16 %v154
    %v647 = vunpack.c.l.b16 %v155
    %v648 = vunpack.c.h.b16 %v155
    %v649 = vunpack.c.l.b16 %v156
    %v650 = vunpack.c.h.b16 %v156
    %v651 = vunpack.c.l.b16 %v157
    %v652 = vunpack.c.h.b16 %v157
    %v653 = vunpack.c.l.b16 %v158
    %v654 = vunpack.c.h.b16 %v158
    %v655 = vunpack.c.l.b16 %v159
    %v656 = vunpack.c.h.b16 %v159
    %v657 = vunpack.c.l.b16 %v160
    %v658 = vunpack.c.h.b16 %v160
    %v659 = vunpack.c.l.b16 %v161
    %v660 = vunpack.c.h.b16 %v161
    %v661 = vunpack.c.l.b16 %v162
    %v662 = vunpack.c.h.b16 %v162
    %v663 = vunpack.c.l.b16 %v163
    %v664 = vunpack.c.h.b16 %v163
    %v665 = vunpack.c.l.b16 %v164
    %v666 = vunpack.c.h.b16 %v164
    %v667 = vunpack.c.l.b16 %v165
    %v668 = vunpack.c.h.b16 %v165
    %v669 = vunpack.c.l.b16 %v166
    %v670 = vunpack.c.h.b16 %v166
    %v671 = vunpack.c.l.b16 %v167
    %v672 = vunpack.c.h.b16 %v167
    %v673 = vunpack.c.l.b16 %v168
    %v674 = vunpack.c.h.b16 %v168
    %v675 = vunpack.c.l.b16 %v169
    %v676 = vunpack.c.h.b16 %v169
    %v677 = vunpack.c.l.b16 %v170
    %v678 = vunpack.c.h.b16 %v170
    %v679 = vunpack.c.l.b16 %v171
    %v680 = vunpack.c.h.b16 %v171
    %v681 = vunpack.c.l.b16 %v172
    %v682 = vunpack.c.h.b16 %v172
    %v683 = vunpack.c.l.b16 %v173
    %v684 = vunpack.c.h.b16 %v173
    %v685 = vunpack.c.l.b16 %v174
    %v686 = vunpack.c.h.b16 %v174
    %v687 = vunpack.c.l.b16 %v175
    %v688 = vunpack.c.h.b16 %v175
    %v689 = vunpack.c.l.b16 %v176
    %v690 = vunpack.c.h.b16 %v176
    %v691 = vunpack.c.l.b16 %v177
    %v692 = vunpack.c.h.b16 %v177
    %v693 = vunpack.c.l.b16 %v178
    %v694 = vunpack.c.h.b16 %v178
    %v695 = vunpack.c.l.b16 %v179
    %v696 = vunpack.c.h.b16 %v179
    %v697 = vunpack.c.l.b16 %v180
    %v698 = vunpack.c.h.b16 %v180
    %v699 = vunpack.c.l.b16 %v181
    %v700 = vunpack.c.h.b16 %v181
    %v701 = vunpack.c.l.b16 %v182
    %v702 = vunpack.c.h.b16 %v182
    %v703 = vunpack.c.l.b16 %v183
    %v704 = vunpack.c.h.b16 %v183
    %v705 = vunpack.c.l.b16 %v184
    %v706 = vunpack.c.h.b16 %v184
    %v707 = vunpack.c.l.b16 %v185
    %v708 = vunpack.c.h.b16 %v185
    %v709 = vunpack.c.l.b16 %v186
    %v710 = vunpack.c.h.b16 %v186
    %v711 = vunpack.c.l.b16 %v187
    %v712 = vunpack.c.h.b16 %v187
    %v713 = vunpack.c.l.b16 %v188
    %v714 = vunpack.c.h.b16 %v188
    %v715 = vunpack.c.l.b16 %v189
    %v716 = vunpack.c.h.b16 %v189
    %v717 = vunpack.c.l.b16 %v190
    %v718 = vunpack.c.h.b16 %v190
    %v719 = vunpack.c.l.b16 %v191
    %v720 = vunpack.c.h.b16 %v191
    %v721 = vunpack.c.l.b16 %v192
    %v722 = vunpack.c.h.b16 %v192
    %v723 = vunpack.c.l.b16 %v193
    %v724 = vunpack.c.h.b16 %v193
    %v725 = vunpack.c.l.b16 %v194
    %v726 = vunpack.c.h.b16 %v194
    %v727 = vunpack.c.l.b16 %v195
    %v728 = vunpack.c.h.b16 %v195
    %v729 = vunpack.c.l.b16 %v196
    %v730 = vunpack.c.h.b16 %v196
    %v731 = vunpack.c.l.b16 %v197
    %v732 = vunpack.c.h.b16 %v197
    %v733 = vunpack.c.l.b16 %v198
    %v734 = vunpack.c.h.b16 %v198
    %v735 = vunpack.c.l.b16 %v199
    %v736 = vunpack.c.h.b16 %v199
    %v737 = vunpack.c.l.b16 %v200
    %v738 = vunpack.c.h.b16 %v200
    %v739 = vunpack.c.l.b16 %v201
    %v740 = vunpack.c.h.b16 %v201
    %v741 = vunpack.c.l.b16 %v202
    %v742 = vunpack.c.h.b16 %v202
    %v743 = vunpack.c.l.b16 %v203
    %v744 = vunpack.c.h.b16 %v203
    %v745 = vunpack.c.l.b16 %v204
    %v746 = vunpack.c.h.b16 %v204
    %v747 = vunpack.c.l.b16 %v205
    %v748 = vunpack.c.h.b16 %v205
    %v749 = vunpack.c.l.b16 %v206
    %v750 = vunpack.c.h.b16 %v206
    %v751 = vunpack.c.l.b16 %v207
    %v752 = vunpack.c.h.b16 %v207
    %v753 = vunpack.c.l.b16 %v208
    %v754 = vunpack.c.h.b16 %v208
    %v755 = vunpack.c.l.b16 %v209
    %v756 = vunpack.c.h.b16 %v209
    %v757 = vunpack.c.l.b16 %v210
    %v758 = vunpack.c.h.b16 %v210
    %v759 = vunpack.c.l.b16 %v211
    %v760 = vunpack.c.h.b16 %v211
    %v761 = vunpack.c.l.b16 %v212
    %v762 = vunpack.c.h.b16 %v212
    %v763 = vunpack.c.l.b16 %v213
    %v764 = vunpack.c.h.b16 %v213
    %v765 = vunpack.c.l.b16 %v214
    %v766 = vunpack.c.h.b16 %v214
    %v767 = vunpack.c.l.b16 %v215
    %v768 = vunpack.c.h.b16 %v215
    %v769 = vunpack.c.l.b16 %v216
    %v770 = vunpack.c.h.b16 %v216
    %v771 = vunpack.c.l.b16 %v217
    %v772 = vunpack.c.h.b16 %v217
    %v773 = vunpack.c.l.b16 %v218
    %v774 = vunpack.c.h.b16 %v218
    %v775 = vunpack.c.l.b16 %v219
    %v776 = vunpack.c.h.b16 %v219
    %v777 = vunpack.c.l.b16 %v220
    %v778 = vunpack.c.h.b16 %v220
    %v779 = vunpack.c.l.b16 %v221
    %v780 = vunpack.c.h.b16 %v221
    %v781 = vunpack.c.l.b16 %v222
    %v782 = vunpack.c.h.b16 %v222
    %v783 = vunpack.c.l.b16 %v223
    %v784 = vunpack.c.h.b16 %v223
    %v785 = vunpack.c.l.b16 %v224
    %v786 = vunpack.c.h.b16 %v224
    %v787 = vunpack.c.l.b16 %v225
    %v788 = vunpack.c.h.b16 %v225
    %v789 = vunpack.c.l.b16 %v226
    %v790 = vunpack.c.h.b16 %v226
    %v791 = vunpack.c.l.b16 %v227
    %v792 = vunpack.c.h.b16 %v227
    %v793 = vunpack.c.l.b16 %v228
    %v794 = vunpack.c.h.b16 %v228
    %v795 = vunpack.c.l.b16 %v229
    %v796 = vunpack.c.h.b16 %v229
    %v797 = vunpack.c.l.b16 %v230
    %v798 = vunpack.c.h.b16 %v230
    %v799 = vunpack.c.l.b16 %v231
    %v800 = vunpack.c.h.b16 %v231
    %v801 = vunpack.c.l.b16 %v232
    %v802 = vunpack.c.h.b16 %v232
    %v803 = vunpack.c.l.b16 %v233
    %v804 = vunpack.c.h.b16 %v233
    %v805 = vunpack.c.l.b16 %v234
    %v806 = vunpack.c.h.b16 %v234
    %v807 = vunpack.c.l.b16 %v235
    %v808 = vunpack.c.h.b16 %v235
    %v809 = vunpack.c.l.b16 %v236
    %v810 = vunpack.c.h.b16 %v236
    %v811 = vunpack.c.l.b16 %v237
    %v812 = vunpack.c.h.b16 %v237
    %v813 = vunpack.c.l.b16 %v238
    %v814 = vunpack.c.h.b16 %v238
    %v815 = vunpack.c.l.b16 %v239
    %v816 = vunpack.c.h.b16 %v239
    %v817 = vunpack.c.l.b16 %v240
    %v818 = vunpack.c.h.b16 %v240
    %v819 = vunpack.c.l.b16 %v241
    %v820 = vunpack.c.h.b16 %v241
    %v821 = vunpack.c.l.b16 %v242
    %v822 = vunpack.c.h.b16 %v242
    %v823 = vunpack.c.l.b16 %v243
    %v824 = vunpack.c.h.b16 %v243
    %v825 = vunpack.c.l.b16 %v244
    %v826 = vunpack.c.h.b16 %v244
    %v827 = vunpack.c.l.b16 %v245
    %v828 = vunpack.c.h.b16 %v245
    %v829 = vunpack.c.l.b16 %v246
    %v830 = vunpack.c.h.b16 %v246
    %v831 = vunpack.c.l.b16 %v247
    %v832 = vunpack.c.h.b16 %v247
    %v833 = vunpack.c.l.b16 %v248
    %v834 = vunpack.c.h.b16 %v248
    %v835 = vunpack.c.l.b16 %v249
    %v836 = vunpack.c.h.b16 %v249
    %v837 = vunpack.c.l.b16 %v250
    %v838 = vunpack.c.h.b16 %v250
    %v839 = vunpack.c.l.b16 %v251
    %v840 = vunpack.c.h.b16 %v251
    %v841 = vunpack.c.l.b16 %v252
    %v842 = vunpack.c.h.b16 %v252
    %v843 = vunpack.c.l.b16 %v253
    %v844 = vunpack.c.h.b16 %v253
    %v845 = vunpack.c.l.b16 %v254
    %v846 = vunpack.c.h.b16 %v254
    %v847 = vunpack.c.l.b16 %v255
    %v848 = vunpack.c.h.b16 %v255
    %v849 = vunpack.c.l.b16 %v256
    %v850 = vunpack.c.h.b16 %v256
    %v851 = vunpack.c.l.b16 %v257
    %v852 = vunpack.c.h.b16 %v257
    %v853 = vunpack.c.l.b16 %v258
    %v854 = vunpack.c.h.b16 %v258
    %v855 = vunpack.c.l.b16 %v259
    %v856 = vunpack.c.h.b16 %v259
    %v857 = vunpack.c.l.b16 %v260
    %v858 = vunpack.c.h.b16 %v260
    %v859 = vpack.c.b16 %v471, %v467
    %v860 = vpack.c.b16 %v472, %v468
    %v861 = vpack.c.b16 %v473, %v469
    %v862 = vpack.c.b16 %v474, %v470
    %v863 = vpack.c.b16 %v479, %v475
    %v864 = vpack.c.b16 %v480, %v476
    %v865 = vpack.c.b16 %v481, %v477
    %v866 = vpack.c.b16 %v482, %v478
    %v867 = vpack.c.b16 %v487, %v483
    %v868 = vpack.c.b16 %v488, %v484
    %v869 = vpack.c.b16 %v489, %v485
    %v870 = vpack.c.b16 %v490, %v486
    %v871 = vpack.c.b16 %v495, %v491
    %v872 = vpack.c.b16 %v496, %v492
    %v873 = vpack.c.b16 %v497, %v493
    %v874 = vpack.c.b16 %v498, %v494
    %v875 = vpack.c.b16 %v503, %v499
    %v876 = vpack.c.b16 %v504, %v500
    %v877 = vpack.c.b16 %v505, %v501
    %v878 = vpack.c.b16 %v506, %v502
    %v879 = vpack.c.b16 %v511, %v507
    %v880 = vpack.c.b16 %v512, %v508
    %v881 = vpack.c.b16 %v513, %v509
    %v882 = vpack.c.b16 %v514, %v510
    %v883 = vpack.c.b16 %v519, %v515
    %v884 = vpack.c.b16 %v520, %v516
    %v885 = vpack.c.b16 %v521, %v517
    %v886 = vpack.c.b16 %v522, %v518
    %v887 = vpack.c.b16 %v527, %v523
    %v888 = vpack.c.b16 %v528, %v524
    %v889 = vpack.c.b16 %v529, %v525
    %v890 = vpack.c.b16 %v530, %v526
    %v891 = vpack.c.b16 %v535, %v531
    %v892 = vpack.c.b16 %v536, %v532
    %v893 = vpack.c.b16 %v537, %v533
    %v894 = vpack.c.b16 %v538, %v534
    %v895 = vpack.c.b16 %v543, %v539
    %v896 = vpack.c.b16 %v544, %v540
    %v897 = vpack.c.b16 %v545, %v541
    %v898 = vpack.c.b16 %v546, %v542
    %v899 = vpack.c.b16 %v551, %v547
    %v900 = vpack.c.b16 %v552, %v548
    %v901 = vpack.c.b16 %v553, %v549
    %v902 = vpack.c.b16 %v554, %v550
    %v903 = vpack.c.b16 %v559, %v555
    %v904 = vpack.c.b16 %v560, %v556
    %v905 = vpack.c.b16 %v561, %v557
    %v906 = vpack.c.b16 %v562, %v558
    %v907 = vpack.c.b16 %v567, %v563
    %v908 = vpack.c.b16 %v568, %v564
    %v909 = vpack.c.b16 %v569, %v565
    %v910 = vpack.c.b16 %v570, %v566
    %v911 = vpack.c.b16 %v575, %v571
    %v912 = vpack.c.b16 %v576, %v572
    %v913 = vpack.c.b16 %v577, %v573
    %v914 = vpack.c.b16 %v578, %v574
    %v915 = vpack.c.b16 %v583, %v579
    %v916 = vpack.c.b16 %v584, %v580
    %v917 = vpack.c.b16 %v585, %v581
    %v918 = vpack.c.b16 %v586, %v582
    %v919 = vpack.c.b16 %v591, %v587
    %v920 = vpack.c.b16 %v592, %v588
    %v921 = vpack.c.b16 %v593, %v589
    %v922 = vpack.c.b16 %v594, %v590
    %v923 = vpack.c.b16 %v599, %v595
    %v924 = vpack.c.b16 %v600, %v596
    %v925 = vpack.c.b16 %v601, %v597
    %v926 = vpack.c.b16 %v602, %v598
    %v927 = vpack.c.b16 %v607, %v603
    %v928 = vpack.c.b16 %v608, %v604
    %v929 = vpack.c.b16 %v609, %v605
    %v930 = vpack.c.b16 %v610, %v606
    %v931 = vpack.c.b16 %v615, %v611
    %v932 = vpack.c.b16 %v616, %v612
    %v933 = vpack.c.b16 %v617, %v613
    %v934 = vpack.c.b16 %v618, %v614
    %v935 = vpack.c.b16 %v623, %v619
    %v936 = vpack.c.b16 %v624, %v620
    %v937 = vpack.c.b16 %v625, %v621
    %v938 = vpack.c.b16 %v626, %v622
    %v939 = vpack.c.b16 %v631, %v627
    %v940 = vpack.c.b16 %v632, %v628
    %v941 = vpack.c.b16 %v633, %v629
    %v942 = vpack.c.b16 %v634, %v630
    %v943 = vpack.c.b16 %v639, %v635
    %v944 = vpack.c.b16 %v640, %v636
    %v945 = vpack.c.b16 %v641, %v637
    %v946 = vpack.c.b16 %v642, %v638
    %v947 = vpack.c.b16 %v647, %v643
    %v948 = vpack.c.b16 %v648, %v644
    %v949 = vpack.c.b16 %v649, %v645
    %v950 = vpack.c.b16 %v650, %v646
    %v951 = vpack.c.b16 %v655, %v651
    %v952 = vpack.c.b16 %v656, %v652
    %v953 = vpack.c.b16 %v657, %v653
    %v954 = vpack.c.b16 %v658, %v654
    %v955 = vpack.c.b16 %v663, %v659
    %v956 = vpack.c.b16 %v664, %v660
    %v957 = vpack.c.b16 %v665, %v661
    %v958 = vpack.c.b16 %v666, %v662
    %v959 = vpack.c.b16 %v671, %v667
    %v960 = vpack.c.b16 %v672, %v668
    %v961 = vpack.c.b16 %v673, %v669
    %v962 = vpack.c.b16 %v674, %v670
    %v963 = vpack.c.b16 %v679, %v675
    %v964 = vpack.c.b16 %v680, %v676
    %v965 = vpack.c.b16 %v681, %v677
    %v966 = vpack.c.b16 %v682, %v678
    %v967 = vpack.c.b16 %v687, %v683
    %v968 = vpack.c.b16 %v688, %v684
    %v969 = vpack.c.b16 %v689, %v685
    %v970 = vpack.c.b16 %v690, %v686
    %v971 = vpack.c.b16 %v695, %v691
    %v972 = vpack.c.b16 %v696, %v692
    %v973 = vpack.c.b16 %v697, %v693
    %v974 = vpack.c.b16 %v698, %v694
    %v975 = vpack.c.b16 %v703, %v699
    %v976 = vpack.c.b16 %v704, %v700
    %v977 = vpack.c.b16 %v705, %v701
    %v978 = vpack.c.b16 %v706, %v702
    %v979 = vpack.c.b16 %v711, %v707
    %v980 = vpack.c.b16 %v712, %v708
    %v981 = vpack.c.b16 %v713, %v709
    %v982 = vpack.c.b16 %v714, %v710
    %v983 = vpack.c.b16 %v719, %v715
    %v984 = vpack.c.b16 %v720, %v716
    %v985 = vpack.c.b16 %v721, %v717
    %v986 = vpack.c.b16 %v722, %v718
    %v987 = vpack.c.b16 %v727, %v723
    %v988 = vpack.c.b16 %v728, %v724
    %v989 = vpack.c.b16 %v729, %v725
    %v990 = vpack.c.b16 %v730, %v726
    %v991 = vpack.c.b16 %v735, %v731
    %v992 = vpack.c.b16 %v736, %v732
    %v993 = vpack.c.b16 %v737, %v733
    %v994 = vpack.c.b16 %v738, %v734
    %v995 = vpack.c.b16 %v743, %v739
    %v996 = vpack.c.b16 %v744, %v740
    %v997 = vpack.c.b16 %v745, %v741
    %v998 = vpack.c.b16 %v746, %v742
    %v999 = vpack.c.b16 %v751, %v747
    %v1000 = vpack.c.b16 %v752, %v748
    %v1001 = vpack.c.b16 %v753, %v749
    %v1002 = vpack.c.b16 %v754, %v750
    %v1003 = vpack.c.b16 %v759, %v755
    %v1004 = vpack.c.b16 %v760, %v756
    %v1005 = vpack.c.b16 %v761, %v757
    %v1006 = vpack.c.b16 %v762, %v758
    %v1007 = vpack.c.b16 %v767, %v763
    %v1008 = vpack.c.b16 %v768, %v764
    %v1009 = vpack.c.b16 %v769, %v765
    %v1010 = vpack.c.b16 %v770, %v766
    %v1011 = vpack.c.b16 %v775, %v771
    %v1012 = vpack.c.b16 %v776, %v772
    %v1013 = vpack.c.b16 %v777, %v773
    %v1014 = vpack.c.b16 %v778, %v774
    %v1015 = vpack.c.b16 %v783, %v779
    %v1016 = vpack.c.b16 %v784, %v780
    %v1017 = vpack.c.b16 %v785, %v781
    %v1018 = vpack.c.b16 %v786, %v782
    %v1019 = vpack.c.b16 %v791, %v787
    %v1020 = vpack.c.b16 %v792, %v788
    %v1021 = vpack.c.b16 %v793, %v789
    %v1022 = vpack.c.b16 %v794, %v790
    %v1023 = vpack.c.b16 %v799, %v795
    %v1024 = vpack.c.b16 %v800, %v796
    %v1025 = vpack.c.b16 %v801, %v797
    %v1026 = vpack.c.b16 %v802, %v798
    %v1027 = vpack.c.b16 %v807, %v803
    %v1028 = vpack.c.b16 %v808, %v804
    %v1029 = vpack.c.b16 %v809, %v805
    %v1030 = vpack.c.b16 %v810, %v806
    %v1031 = vpack.c.b16 %v815, %v811
    %v1032 = vpack.c.b16 %v816, %v812
    %v1033 = vpack.c.b16 %v817, %v813
    %v1034 = vpack.c.b16 %v818, %v814
    %v1035 = vpack.c.b16 %v823, %v819
    %v1036 = vpack.c.b16 %v824, %v820
    %v1037 = vpack.c.b16 %v825, %v821
    %v1038 = vpack.c.b16 %v826, %v822
    %v1039 = vpack.c.b16 %v831, %v827
    %v1040 = vpack.c.b16 %v832, %v828
    %v1041 = vpack.c.b16 %v833, %v829
    %v1042 = vpack.c.b16 %v834, %v830
    %v1043 = vpack.c.b16 %v839, %v835
    %v1044 = vpack.c.b16 %v840, %v836
    %v1045 = vpack.c.b16 %v841, %v837
    %v1046 = vpack.c.b16 %v842, %v838
    %v1047 = vpack.c.b16 %v847, %v843
    %v1048 = vpack.c.b16 %v848, %v844
    %v1049 = vpack.c.b16 %v849, %v845
    %v1050 = vpack.c.b16 %v850, %v846
    %v1051 = vpack.c.b16 %v855, %v851
    %v1052 = vpack.c.b16 %v856, %v852
    %v1053 = vpack.c.b16 %v857, %v853
    %v1054 = vpack.c.b16 %v858, %v854
    %vm1251 = vcmask 130048
    %v1253 = vsel %vm1251, %v64, 0
    %1255 = vmatpush.bf16.msra.mxu0 %v887
    %1256 = vmatpush.bf16.msra.mxu0 %v883
    %1257 = vmatpush.bf16.msra.mxu0 %v879
    %1258 = vmatpush.bf16.msra.mxu0 %v875
    %1259 = vmatpush.bf16.msra.mxu0 %v871
    %1260 = vmatpush.bf16.msra.mxu0 %v867
    %1261 = vmatpush.bf16.msra.mxu0 %v863
    %1262 = vmatpush.bf16.msra.mxu0 %v859
    %1263 = vmatmul.bf16.gmra.mxu0 %v58
    %v1264 = vpop.f32.mrf.mxu0
    %v1265 = vadd.f32 %v263, %v1264
    %v1266 = vpop.f32.mrf.mxu0
    %1267 = vdwg.mxu0
    %1268 = vmatpush.bf16.msra.mxu0 %v919
    %1269 = vmatpush.bf16.msra.mxu0 %v915
    %1270 = vmatpush.bf16.msra.mxu0 %v911
    %1271 = vmatpush.bf16.msra.mxu0 %v907
    %1272 = vmatpush.bf16.msra.mxu0 %v903
    %1273 = vmatpush.bf16.msra.mxu0 %v899
    %1274 = vmatpush.bf16.msra.mxu0 %v895
    %1275 = vmatpush.bf16.msra.mxu0 %v891
    %1276 = vmatmul.bf16.gmra.mxu0 %v59
    %v1277 = vpop.f32.mrf.mxu0
    %v1278 = vadd.f32 %v1265, %v1277
    %v1279 = vpop.f32.mrf.mxu0
    %1280 = vdwg.mxu0
    %1281 = vmatpush.bf16.msra.mxu0 %v951
    %1282 = vmatpush.bf16.msra.mxu0 %v947
    %1283 = vmatpush.bf16.msra.mxu0 %v943
    %1284 = vmatpush.bf16.msra.mxu0 %v939
    %1285 = vmatpush.bf16.msra.mxu0 %v935
    %1286 = vmatpush.bf16.msra.mxu0 %v931
    %1287 = vmatpush.bf16.msra.mxu0 %v927
    %1288 = vmatpush.bf16.msra.mxu0 %v923
    %1289 = vmatmul.bf16.gmra.mxu0 %v60
    %v1290 = vpop.f32.mrf.mxu0
    %v1291 = vadd.f32 %v1278, %v1290
    %v1292 = vpop.f32.mrf.mxu0
    %1293 = vdwg.mxu0
    %1294 = vmatpush.bf16.msra.mxu0 %v983
    %1295 = vmatpush.bf16.msra.mxu0 %v979
    %1296 = vmatpush.bf16.msra.mxu0 %v975
    %1297 = vmatpush.bf16.msra.mxu0 %v971
    %1298 = vmatpush.bf16.msra.mxu0 %v967
    %1299 = vmatpush.bf16.msra.mxu0 %v963
    %1300 = vmatpush.bf16.msra.mxu0 %v959
    %1301 = vmatpush.bf16.msra.mxu0 %v955
    %1302 = vmatmul.bf16.gmra.mxu0 %v61
    %v1303 = vpop.f32.mrf.mxu0
    %v1304 = vadd.f32 %v1291, %v1303
    %v1305 = vpop.f32.mrf.mxu0
    %1306 = vdwg.mxu0
    %1307 = vmatpush.bf16.msra.mxu0 %v1015
    %1308 = vmatpush.bf16.msra.mxu0 %v1011
    %1309 = vmatpush.bf16.msra.mxu0 %v1007
    %1310 = vmatpush.bf16.msra.mxu0 %v1003
    %1311 = vmatpush.bf16.msra.mxu0 %v999
    %1312 = vmatpush.bf16.msra.mxu0 %v995
    %1313 = vmatpush.bf16.msra.mxu0 %v991
    %1314 = vmatpush.bf16.msra.mxu0 %v987
    %1315 = vmatmul.bf16.gmra.mxu0 %v62
    %v1316 = vpop.f32.mrf.mxu0
    %v1317 = vadd.f32 %v1304, %v1316
    %v1318 = vpop.f32.mrf.mxu0
    %1319 = vdwg.mxu0
    %1320 = vmatpush.bf16.msra.mxu0 %v1047
    %1321 = vmatpush.bf16.msra.mxu0 %v1043
    %1322 = vmatpush.bf16.msra.mxu0 %v1039
    %1323 = vmatpush.bf16.msra.mxu0 %v1035
    %1324 = vmatpush.bf16.msra.mxu0 %v1031
    %1325 = vmatpush.bf16.msra.mxu0 %v1027
    %1326 = vmatpush.bf16.msra.mxu0 %v1023
    %1327 = vmatpush.bf16.msra.mxu0 %v1019
    %1328 = vmatmul.bf16.gmra.mxu0 %v63
    %v1329 = vpop.f32.mrf.mxu0
    %v1330 = vadd.f32 %v1317, %v1329
    %v1331 = vpop.f32.mrf.mxu0
    %1332 = vdwg.mxu0
    %1333 = vmatpush.bf16.msra.mxu0 0
    %1334 = vmatpush.bf16.msra.mxu0 0
    %1335 = vmatpush.bf16.msra.mxu0 0
    %1336 = vmatpush.bf16.msra.mxu0 0
    %1337 = vmatpush.bf16.msra.mxu0 0
    %1338 = vmatpush.bf16.msra.mxu0 0
    %1339 = vmatpush.bf16.msra.mxu0 0
    %1340 = vmatpush.bf16.msra.mxu0 %v1051
    %1341 = vmatmul.bf16.gmra.mxu0 %v1253
    %v1342 = vpop.f32.mrf.mxu0
    %v1343 = vadd.f32 %v1330, %v1342
    %v1344 = vpop.f32.mrf.mxu0
    %1345 = vdwg.mxu0
    %1346 = vmatpush.bf16.msra.mxu0 %v888
    %1347 = vmatpush.bf16.msra.mxu0 %v884
    %1348 = vmatpush.bf16.msra.mxu0 %v880
    %1349 = vmatpush.bf16.msra.mxu0 %v876
    %1350 = vmatpush.bf16.msra.mxu0 %v872
    %1351 = vmatpush.bf16.msra.mxu0 %v868
    %1352 = vmatpush.bf16.msra.mxu0 %v864
    %1353 = vmatpush.bf16.msra.mxu0 %v860
    %1354 = vmatmul.bf16.gmra.mxu0 %v58
    %v1355 = vpop.f32.mrf.mxu0
    %v1356 = vadd.f32 %v264, %v1355
    %v1357 = vpop.f32.mrf.mxu0
    %1358 = vdwg.mxu0
    %1359 = vmatpush.bf16.msra.mxu0 %v920
    %1360 = vmatpush.bf16.msra.mxu0 %v916
    %1361 = vmatpush.bf16.msra.mxu0 %v912
    %1362 = vmatpush.bf16.msra.mxu0 %v908
    %1363 = vmatpush.bf16.msra.mxu0 %v904
    %1364 = vmatpush.bf16.msra.mxu0 %v900
    %1365 = vmatpush.bf16.msra.mxu0 %v896
    %1366 = vmatpush.bf16.msra.mxu0 %v892
    %1367 = vmatmul.bf16.gmra.mxu0 %v59
    %v1368 = vpop.f32.mrf.mxu0
    %v1369 = vadd.f32 %v1356, %v1368
    %v1370 = vpop.f32.mrf.mxu0
    %1371 = vdwg.mxu0
    %1372 = vmatpush.bf16.msra.mxu0 %v952
    %1373 = vmatpush.bf16.msra.mxu0 %v948
    %1374 = vmatpush.bf16.msra.mxu0 %v944
    %1375 = vmatpush.bf16.msra.mxu0 %v940
    %1376 = vmatpush.bf16.msra.mxu0 %v936
    %1377 = vmatpush.bf16.msra.mxu0 %v932
    %1378 = vmatpush.bf16.msra.mxu0 %v928
    %1379 = vmatpush.bf16.msra.mxu0 %v924
    %1380 = vmatmul.bf16.gmra.mxu0 %v60
    %v1381 = vpop.f32.mrf.mxu0
    %v1382 = vadd.f32 %v1369, %v1381
    %v1383 = vpop.f32.mrf.mxu0
    %1384 = vdwg.mxu0
    %1385 = vmatpush.bf16.msra.mxu0 %v984
    %1386 = vmatpush.bf16.msra.mxu0 %v980
    %1387 = vmatpush.bf16.msra.mxu0 %v976
    %1388 = vmatpush.bf16.msra.mxu0 %v972
    %1389 = vmatpush.bf16.msra.mxu0 %v968
    %1390 = vmatpush.bf16.msra.mxu0 %v964
    %1391 = vmatpush.bf16.msra.mxu0 %v960
    %1392 = vmatpush.bf16.msra.mxu0 %v956
    %1393 = vmatmul.bf16.gmra.mxu0 %v61
    %v1394 = vpop.f32.mrf.mxu0
    %v1395 = vadd.f32 %v1382, %v1394
    %v1396 = vpop.f32.mrf.mxu0
    %1397 = vdwg.mxu0
    %1398 = vmatpush.bf16.msra.mxu0 %v1016
    %1399 = vmatpush.bf16.msra.mxu0 %v1012
    %1400 = vmatpush.bf16.msra.mxu0 %v1008
    %1401 = vmatpush.bf16.msra.mxu0 %v1004
    %1402 = vmatpush.bf16.msra.mxu0 %v1000
    %1403 = vmatpush.bf16.msra.mxu0 %v996
    %1404 = vmatpush.bf16.msra.mxu0 %v992
    %1405 = vmatpush.bf16.msra.mxu0 %v988
    %1406 = vmatmul.bf16.gmra.mxu0 %v62
    %v1407 = vpop.f32.mrf.mxu0
    %v1408 = vadd.f32 %v1395, %v1407
    %v1409 = vpop.f32.mrf.mxu0
    %1410 = vdwg.mxu0
    %1411 = vmatpush.bf16.msra.mxu0 %v1048
    %1412 = vmatpush.bf16.msra.mxu0 %v1044
    %1413 = vmatpush.bf16.msra.mxu0 %v1040
    %1414 = vmatpush.bf16.msra.mxu0 %v1036
    %1415 = vmatpush.bf16.msra.mxu0 %v1032
    %1416 = vmatpush.bf16.msra.mxu0 %v1028
    %1417 = vmatpush.bf16.msra.mxu0 %v1024
    %1418 = vmatpush.bf16.msra.mxu0 %v1020
    %1419 = vmatmul.bf16.gmra.mxu0 %v63
    %v1420 = vpop.f32.mrf.mxu0
    %v1421 = vadd.f32 %v1408, %v1420
    %v1422 = vpop.f32.mrf.mxu0
    %1423 = vdwg.mxu0
    %1424 = vmatpush.bf16.msra.mxu0 0
    %1425 = vmatpush.bf16.msra.mxu0 0
    %1426 = vmatpush.bf16.msra.mxu0 0
    %1427 = vmatpush.bf16.msra.mxu0 0
    %1428 = vmatpush.bf16.msra.mxu0 0
    %1429 = vmatpush.bf16.msra.mxu0 0
    %1430 = vmatpush.bf16.msra.mxu0 0
    %1431 = vmatpush.bf16.msra.mxu0 %v1052
    %1432 = vmatmul.bf16.gmra.mxu0 %v1253
    %v1433 = vpop.f32.mrf.mxu0
    %v1434 = vadd.f32 %v1421, %v1433
    %v1435 = vpop.f32.mrf.mxu0
    %1436 = vdwg.mxu0
    %1437 = vmatpush.bf16.msra.mxu0 %v889
    %1438 = vmatpush.bf16.msra.mxu0 %v885
    %1439 = vmatpush.bf16.msra.mxu0 %v881
    %1440 = vmatpush.bf16.msra.mxu0 %v877
    %1441 = vmatpush.bf16.msra.mxu0 %v873
    %1442 = vmatpush.bf16.msra.mxu0 %v869
    %1443 = vmatpush.bf16.msra.mxu0 %v865
    %1444 = vmatpush.bf16.msra.mxu0 %v861
    %1445 = vmatmul.bf16.gmra.mxu0 %v58
    %v1446 = vpop.f32.mrf.mxu0
    %v1447 = vadd.f32 %v265, %v1446
    %v1448 = vpop.f32.mrf.mxu0
    %1449 = vdwg.mxu0
    %1450 = vmatpush.bf16.msra.mxu0 %v921
    %1451 = vmatpush.bf16.msra.mxu0 %v917
    %1452 = vmatpush.bf16.msra.mxu0 %v913
    %1453 = vmatpush.bf16.msra.mxu0 %v909
    %1454 = vmatpush.bf16.msra.mxu0 %v905
    %1455 = vmatpush.bf16.msra.mxu0 %v901
    %1456 = vmatpush.bf16.msra.mxu0 %v897
    %1457 = vmatpush.bf16.msra.mxu0 %v893
    %1458 = vmatmul.bf16.gmra.mxu0 %v59
    %v1459 = vpop.f32.mrf.mxu0
    %v1460 = vadd.f32 %v1447, %v1459
    %v1461 = vpop.f32.mrf.mxu0
    %1462 = vdwg.mxu0
    %1463 = vmatpush.bf16.msra.mxu0 %v953
    %1464 = vmatpush.bf16.msra.mxu0 %v949
    %1465 = vmatpush.bf16.msra.mxu0 %v945
    %1466 = vmatpush.bf16.msra.mxu0 %v941
    %1467 = vmatpush.bf16.msra.mxu0 %v937
    %1468 = vmatpush.bf16.msra.mxu0 %v933
    %1469 = vmatpush.bf16.msra.mxu0 %v929
    %1470 = vmatpush.bf16.msra.mxu0 %v925
    %1471 = vmatmul.bf16.gmra.mxu0 %v60
    %v1472 = vpop.f32.mrf.mxu0
    %v1473 = vadd.f32 %v1460, %v1472
    %v1474 = vpop.f32.mrf.mxu0
    %1475 = vdwg.mxu0
    %1476 = vmatpush.bf16.msra.mxu0 %v985
    %1477 = vmatpush.bf16.msra.mxu0 %v981
    %1478 = vmatpush.bf16.msra.mxu0 %v977
    %1479 = vmatpush.bf16.msra.mxu0 %v973
    %1480 = vmatpush.bf16.msra.mxu0 %v969
    %1481 = vmatpush.bf16.msra.mxu0 %v965
    %1482 = vmatpush.bf16.msra.mxu0 %v961
    %1483 = vmatpush.bf16.msra.mxu0 %v957
    %1484 = vmatmul.bf16.gmra.mxu0 %v61
    %v1485 = vpop.f32.mrf.mxu0
    %v1486 = vadd.f32 %v1473, %v1485
    %v1487 = vpop.f32.mrf.mxu0
    %1488 = vdwg.mxu0
    %1489 = vmatpush.bf16.msra.mxu0 %v1017
    %1490 = vmatpush.bf16.msra.mxu0 %v1013
    %1491 = vmatpush.bf16.msra.mxu0 %v1009
    %1492 = vmatpush.bf16.msra.mxu0 %v1005
    %1493 = vmatpush.bf16.msra.mxu0 %v1001
    %1494 = vmatpush.bf16.msra.mxu0 %v997
    %1495 = vmatpush.bf16.msra.mxu0 %v993
    %1496 = vmatpush.bf16.msra.mxu0 %v989
    %1497 = vmatmul.bf16.gmra.mxu0 %v62
    %v1498 = vpop.f32.mrf.mxu0
    %v1499 = vadd.f32 %v1486, %v1498
    %v1500 = vpop.f32.mrf.mxu0
    %1501 = vdwg.mxu0
    %1502 = vmatpush.bf16.msra.mxu0 %v1049
    %1503 = vmatpush.bf16.msra.mxu0 %v1045
    %1504 = vmatpush.bf16.msra.mxu0 %v1041
    %1505 = vmatpush.bf16.msra.mxu0 %v1037
    %1506 = vmatpush.bf16.msra.mxu0 %v1033
    %1507 = vmatpush.bf16.msra.mxu0 %v1029
    %1508 = vmatpush.bf16.msra.mxu0 %v1025
    %1509 = vmatpush.bf16.msra.mxu0 %v1021
    %1510 = vmatmul.bf16.gmra.mxu0 %v63
    %v1511 = vpop.f32.mrf.mxu0
    %v1512 = vadd.f32 %v1499, %v1511
    %v1513 = vpop.f32.mrf.mxu0
    %1514 = vdwg.mxu0
    %1515 = vmatpush.bf16.msra.mxu0 0
    %1516 = vmatpush.bf16.msra.mxu0 0
    %1517 = vmatpush.bf16.msra.mxu0 0
    %1518 = vmatpush.bf16.msra.mxu0 0
    %1519 = vmatpush.bf16.msra.mxu0 0
    %1520 = vmatpush.bf16.msra.mxu0 0
    %1521 = vmatpush.bf16.msra.mxu0 0
    %1522 = vmatpush.bf16.msra.mxu0 %v1053
    %1523 = vmatmul.bf16.gmra.mxu0 %v1253
    %v1524 = vpop.f32.mrf.mxu0
    %v1525 = vadd.f32 %v1512, %v1524
    %v1526 = vpop.f32.mrf.mxu0
    %1527 = vdwg.mxu0
    %1528 = vmatpush.bf16.msra.mxu0 %v890
    %1529 = vmatpush.bf16.msra.mxu0 %v886
    %1530 = vmatpush.bf16.msra.mxu0 %v882
    %1531 = vmatpush.bf16.msra.mxu0 %v878
    %1532 = vmatpush.bf16.msra.mxu0 %v874
    %1533 = vmatpush.bf16.msra.mxu0 %v870
    %1534 = vmatpush.bf16.msra.mxu0 %v866
    %1535 = vmatpush.bf16.msra.mxu0 %v862
    %1536 = vmatmul.bf16.gmra.mxu0 %v58
    %v1537 = vpop.f32.mrf.mxu0
    %v1538 = vadd.f32 %v266, %v1537
    %v1539 = vpop.f32.mrf.mxu0
    %1540 = vdwg.mxu0
    %1541 = vmatpush.bf16.msra.mxu0 %v922
    %1542 = vmatpush.bf16.msra.mxu0 %v918
    %1543 = vmatpush.bf16.msra.mxu0 %v914
    %1544 = vmatpush.bf16.msra.mxu0 %v910
    %1545 = vmatpush.bf16.msra.mxu0 %v906
    %1546 = vmatpush.bf16.msra.mxu0 %v902
    %1547 = vmatpush.bf16.msra.mxu0 %v898
    %1548 = vmatpush.bf16.msra.mxu0 %v894
    %1549 = vmatmul.bf16.gmra.mxu0 %v59
    %v1550 = vpop.f32.mrf.mxu0
    %v1551 = vadd.f32 %v1538, %v1550
    %v1552 = vpop.f32.mrf.mxu0
    %1553 = vdwg.mxu0
    %1554 = vmatpush.bf16.msra.mxu0 %v954
    %1555 = vmatpush.bf16.msra.mxu0 %v950
    %1556 = vmatpush.bf16.msra.mxu0 %v946
    %1557 = vmatpush.bf16.msra.mxu0 %v942
    %1558 = vmatpush.bf16.msra.mxu0 %v938
    %1559 = vmatpush.bf16.msra.mxu0 %v934
    %1560 = vmatpush.bf16.msra.mxu0 %v930
    %1561 = vmatpush.bf16.msra.mxu0 %v926
    %1562 = vmatmul.bf16.gmra.mxu0 %v60
    %v1563 = vpop.f32.mrf.mxu0
    %v1564 = vadd.f32 %v1551, %v1563
    %v1565 = vpop.f32.mrf.mxu0
    %1566 = vdwg.mxu0
    %1567 = vmatpush.bf16.msra.mxu0 %v986
    %1568 = vmatpush.bf16.msra.mxu0 %v982
    %1569 = vmatpush.bf16.msra.mxu0 %v978
    %1570 = vmatpush.bf16.msra.mxu0 %v974
    %1571 = vmatpush.bf16.msra.mxu0 %v970
    %1572 = vmatpush.bf16.msra.mxu0 %v966
    %1573 = vmatpush.bf16.msra.mxu0 %v962
    %1574 = vmatpush.bf16.msra.mxu0 %v958
    %1575 = vmatmul.bf16.gmra.mxu0 %v61
    %v1576 = vpop.f32.mrf.mxu0
    %v1577 = vadd.f32 %v1564, %v1576
    %v1578 = vpop.f32.mrf.mxu0
    %1579 = vdwg.mxu0
    %1580 = vmatpush.bf16.msra.mxu0 %v1018
    %1581 = vmatpush.bf16.msra.mxu0 %v1014
    %1582 = vmatpush.bf16.msra.mxu0 %v1010
    %1583 = vmatpush.bf16.msra.mxu0 %v1006
    %1584 = vmatpush.bf16.msra.mxu0 %v1002
    %1585 = vmatpush.bf16.msra.mxu0 %v998
    %1586 = vmatpush.bf16.msra.mxu0 %v994
    %1587 = vmatpush.bf16.msra.mxu0 %v990
    %1588 = vmatmul.bf16.gmra.mxu0 %v62
    %v1589 = vpop.f32.mrf.mxu0
    %v1590 = vadd.f32 %v1577, %v1589
    %v1591 = vpop.f32.mrf.mxu0
    %1592 = vdwg.mxu0
    %1593 = vmatpush.bf16.msra.mxu0 %v1050
    %1594 = vmatpush.bf16.msra.mxu0 %v1046
    %1595 = vmatpush.bf16.msra.mxu0 %v1042
    %1596 = vmatpush.bf16.msra.mxu0 %v1038
    %1597 = vmatpush.bf16.msra.mxu0 %v1034
    %1598 = vmatpush.bf16.msra.mxu0 %v1030
    %1599 = vmatpush.bf16.msra.mxu0 %v1026
    %1600 = vmatpush.bf16.msra.mxu0 %v1022
    %1601 = vmatmul.bf16.gmra.mxu0 %v63
    %v1602 = vpop.f32.mrf.mxu0
    %v1603 = vadd.f32 %v1590, %v1602
    %v1604 = vpop.f32.mrf.mxu0
    %1605 = vdwg.mxu0
    %1606 = vmatpush.bf16.msra.mxu0 0
    %1607 = vmatpush.bf16.msra.mxu0 0
    %1608 = vmatpush.bf16.msra.mxu0 0
    %1609 = vmatpush.bf16.msra.mxu0 0
    %1610 = vmatpush.bf16.msra.mxu0 0
    %1611 = vmatpush.bf16.msra.mxu0 0
    %1612 = vmatpush.bf16.msra.mxu0 0
    %1613 = vmatpush.bf16.msra.mxu0 %v1054
    %1614 = vmatmul.bf16.gmra.mxu0 %v1253
    %v1615 = vpop.f32.mrf.mxu0
    %v1616 = vadd.f32 %v1603, %v1615
    %v1617 = vpop.f32.mrf.mxu0
    %1618 = vdwg.mxu0
    %vm1619 = vcmp.gt.f32.partialorder %v1343, 0.0
    %vm1620 = vcmp.gt.f32.partialorder %v1434, 0.0
    %vm1621 = vcmp.gt.f32.partialorder %v1525, 0.0
    %vm1622 = vcmp.gt.f32.partialorder %v1616, 0.0
    %v1623 = vmul.f32 %v1343, 0.2
    %v1624 = vmul.f32 %v1434, 0.2
    %v1625 = vmul.f32 %v1525, 0.2
    %v1626 = vmul.f32 %v1616, 0.2
    %v1627 = vsel %vm1619, %v1343, %v1623
    %v1628 = vsel %vm1620, %v1434, %v1624
    %v1629 = vsel %vm1621, %v1525, %v1625
    %v1630 = vsel %vm1622, %v1616, %v1626
    %v1631 = vpack.c.bf16 %v1627, %v1627
    %v1632 = vpack.c.bf16 %v1628, %v1628
    %v1633 = vpack.c.bf16 %v1629, %v1629
    %v1634 = vpack.c.bf16 %v1630, %v1630
    %v1635 = vld [vmem:[%s4] sm:$0xff]
    %v1636 = vld [vmem:[%s4 + $0x8] sm:$0xff]
    %v1637 = vld [vmem:[%s4 + $0x10] sm:$0xff]
    %v1638 = vld [vmem:[%s4 + $0x18] sm:$0xff]
    %v1639 = vld [vmem:[%s4 + $0x20] sm:$0xff]
    %v1640 = vld [vmem:[%s4 + $0x28] sm:$0xff]
    %v1641 = vld [vmem:[%s4 + $0x30] sm:$0xff]
    %v1642 = vld [vmem:[%s4 + $0x38] sm:$0xff]
    %v1643 = vld [vmem:[%s4 + $0x40] sm:$0xff]
    %v1644 = vld [vmem:[%s4 + $0x48] sm:$0xff]
    %v1645 = vld [vmem:[%s4 + $0x50] sm:$0xff]
    %v1646 = vld [vmem:[%s4 + $0x58] sm:$0xff]
    %v1647 = vld [vmem:[%s4 + $0x60] sm:$0xff]
    %v1648 = vld [vmem:[%s4 + $0x68] sm:$0xff]
    %v1649 = vld [vmem:[%s4 + $0x70] sm:$0xff]
    %v1650 = vld [vmem:[%s4 + $0x78] sm:$0xff]
    %v1651 = vld [vmem:[%s4 + $0x80] sm:$0xff]
    %v1652 = vld [vmem:[%s4 + $0x88] sm:$0xff]
    %v1653 = vld [vmem:[%s4 + $0x90] sm:$0xff]
    %v1654 = vld [vmem:[%s4 + $0x98] sm:$0xff]
    %v1655 = vld [vmem:[%s4 + $0xa0] sm:$0xff]
    %v1656 = vld [vmem:[%s4 + $0xa8] sm:$0xff]
    %v1657 = vld [vmem:[%s4 + $0xb0] sm:$0xff]
    %v1658 = vld [vmem:[%s4 + $0xb8] sm:$0xff]
    %v1659 = vld [vmem:[%s4 + $0xc0] sm:$0xff]
    %v1660 = vld [vmem:[%s4 + $0xc8] sm:$0xff]
    %v1661 = vld [vmem:[%s4 + $0xd0] sm:$0xff]
    %v1662 = vld [vmem:[%s4 + $0xd8] sm:$0xff]
    %v1663 = vld [vmem:[%s4 + $0xe0] sm:$0xff]
    %v1664 = vld [vmem:[%s4 + $0xe8] sm:$0xff]
    %v1665 = vld [vmem:[%s4 + $0xf0] sm:$0xff]
    %v1666 = vld [vmem:[%s4 + $0xf8] sm:$0xff]
    %v1667 = vld [vmem:[%s4 + $0x100] sm:$0xff]
    %v1668 = vld [vmem:[%s4 + $0x108] sm:$0xff]
    %v1669 = vld [vmem:[%s4 + $0x110] sm:$0xff]
    %v1670 = vld [vmem:[%s4 + $0x118] sm:$0xff]
    %v1671 = vld [vmem:[%s4 + $0x120] sm:$0xff]
    %v1672 = vld [vmem:[%s4 + $0x128] sm:$0xff]
    %v1673 = vld [vmem:[%s4 + $0x130] sm:$0xff]
    %v1674 = vld [vmem:[%s4 + $0x138] sm:$0xff]
    %v1675 = vld [vmem:[%s4 + $0x140] sm:$0xff]
    %v1676 = vld [vmem:[%s4 + $0x148] sm:$0xff]
    %v1677 = vld [vmem:[%s4 + $0x150] sm:$0xff]
    %v1678 = vld [vmem:[%s4 + $0x158] sm:$0xff]
    %v1679 = vld [vmem:[%s4 + $0x160] sm:$0xff]
    %v1680 = vld [vmem:[%s4 + $0x168] sm:$0xff]
    %v1681 = vld [vmem:[%s4 + $0x170] sm:$0xff]
    %v1682 = vld [vmem:[%s4 + $0x178] sm:$0xff]
    %v1683 = vld [vmem:[%s4 + $0x180] sm:$0xff]
    %v1684 = vld [vmem:[%s4 + $0x188] sm:$0xff]
    %v1685 = vld [vmem:[%s4 + $0x190] sm:$0xff]
    %v1686 = vld [vmem:[%s4 + $0x198] sm:$0xff]
    %v1687 = vld [vmem:[%s4 + $0x1a0] sm:$0xff]
    %v1688 = vld [vmem:[%s4 + $0x1a8] sm:$0xff]
    %v1689 = vld [vmem:[%s4 + $0x1b0] sm:$0xff]
    %v1690 = vld [vmem:[%s4 + $0x1b8] sm:$0xff]
    %v1691 = vld [vmem:[%s4 + $0x1c0] sm:$0xff]
    %v1692 = vld [vmem:[%s4 + $0x1c8] sm:$0xff]
    %v1693 = vld [vmem:[%s4 + $0x1d0] sm:$0xff]
    %v1694 = vld [vmem:[%s4 + $0x1d8] sm:$0xff]
    %v1695 = vld [vmem:[%s4 + $0x1e0] sm:$0xff]
    %v1696 = vld [vmem:[%s4 + $0x1e8] sm:$0xff]
    %v1697 = vld [vmem:[%s4 + $0x1f0] sm:$0xff]
    %v1698 = vld [vmem:[%s4 + $0x1f8] sm:$0xff]
    %v1699 = vld [vmem:[%s5] sm:$0x3]
    %v1701 = vperm.slane %v1699, 0
    %v1702 = vperm.slane %v1699, 1
    %v1769 = vunpack.c.l.b16 %v1635
    %v1770 = vunpack.c.h.b16 %v1635
    %v1771 = vunpack.c.l.b16 %v1636
    %v1772 = vunpack.c.h.b16 %v1636
    %v1773 = vunpack.c.l.b16 %v1637
    %v1774 = vunpack.c.h.b16 %v1637
    %v1775 = vunpack.c.l.b16 %v1638
    %v1776 = vunpack.c.h.b16 %v1638
    %v1777 = vunpack.c.l.b16 %v1639
    %v1778 = vunpack.c.h.b16 %v1639
    %v1779 = vunpack.c.l.b16 %v1640
    %v1780 = vunpack.c.h.b16 %v1640
    %v1781 = vunpack.c.l.b16 %v1641
    %v1782 = vunpack.c.h.b16 %v1641
    %v1783 = vunpack.c.l.b16 %v1642
    %v1784 = vunpack.c.h.b16 %v1642
    %v1785 = vunpack.c.l.b16 %v1643
    %v1786 = vunpack.c.h.b16 %v1643
    %v1787 = vunpack.c.l.b16 %v1644
    %v1788 = vunpack.c.h.b16 %v1644
    %v1789 = vunpack.c.l.b16 %v1645
    %v1790 = vunpack.c.h.b16 %v1645
    %v1791 = vunpack.c.l.b16 %v1646
    %v1792 = vunpack.c.h.b16 %v1646
    %v1793 = vunpack.c.l.b16 %v1647
    %v1794 = vunpack.c.h.b16 %v1647
    %v1795 = vunpack.c.l.b16 %v1648
    %v1796 = vunpack.c.h.b16 %v1648
    %v1797 = vunpack.c.l.b16 %v1649
    %v1798 = vunpack.c.h.b16 %v1649
    %v1799 = vunpack.c.l.b16 %v1650
    %v1800 = vunpack.c.h.b16 %v1650
    %v1801 = vunpack.c.l.b16 %v1651
    %v1802 = vunpack.c.h.b16 %v1651
    %v1803 = vunpack.c.l.b16 %v1652
    %v1804 = vunpack.c.h.b16 %v1652
    %v1805 = vunpack.c.l.b16 %v1653
    %v1806 = vunpack.c.h.b16 %v1653
    %v1807 = vunpack.c.l.b16 %v1654
    %v1808 = vunpack.c.h.b16 %v1654
    %v1809 = vunpack.c.l.b16 %v1655
    %v1810 = vunpack.c.h.b16 %v1655
    %v1811 = vunpack.c.l.b16 %v1656
    %v1812 = vunpack.c.h.b16 %v1656
    %v1813 = vunpack.c.l.b16 %v1657
    %v1814 = vunpack.c.h.b16 %v1657
    %v1815 = vunpack.c.l.b16 %v1658
    %v1816 = vunpack.c.h.b16 %v1658
    %v1817 = vunpack.c.l.b16 %v1659
    %v1818 = vunpack.c.h.b16 %v1659
    %v1819 = vunpack.c.l.b16 %v1660
    %v1820 = vunpack.c.h.b16 %v1660
    %v1821 = vunpack.c.l.b16 %v1661
    %v1822 = vunpack.c.h.b16 %v1661
    %v1823 = vunpack.c.l.b16 %v1662
    %v1824 = vunpack.c.h.b16 %v1662
    %v1825 = vunpack.c.l.b16 %v1663
    %v1826 = vunpack.c.h.b16 %v1663
    %v1827 = vunpack.c.l.b16 %v1664
    %v1828 = vunpack.c.h.b16 %v1664
    %v1829 = vunpack.c.l.b16 %v1665
    %v1830 = vunpack.c.h.b16 %v1665
    %v1831 = vunpack.c.l.b16 %v1666
    %v1832 = vunpack.c.h.b16 %v1666
    %v1833 = vunpack.c.l.b16 %v1667
    %v1834 = vunpack.c.h.b16 %v1667
    %v1835 = vunpack.c.l.b16 %v1668
    %v1836 = vunpack.c.h.b16 %v1668
    %v1837 = vunpack.c.l.b16 %v1669
    %v1838 = vunpack.c.h.b16 %v1669
    %v1839 = vunpack.c.l.b16 %v1670
    %v1840 = vunpack.c.h.b16 %v1670
    %v1841 = vunpack.c.l.b16 %v1671
    %v1842 = vunpack.c.h.b16 %v1671
    %v1843 = vunpack.c.l.b16 %v1672
    %v1844 = vunpack.c.h.b16 %v1672
    %v1845 = vunpack.c.l.b16 %v1673
    %v1846 = vunpack.c.h.b16 %v1673
    %v1847 = vunpack.c.l.b16 %v1674
    %v1848 = vunpack.c.h.b16 %v1674
    %v1849 = vunpack.c.l.b16 %v1675
    %v1850 = vunpack.c.h.b16 %v1675
    %v1851 = vunpack.c.l.b16 %v1676
    %v1852 = vunpack.c.h.b16 %v1676
    %v1853 = vunpack.c.l.b16 %v1677
    %v1854 = vunpack.c.h.b16 %v1677
    %v1855 = vunpack.c.l.b16 %v1678
    %v1856 = vunpack.c.h.b16 %v1678
    %v1857 = vunpack.c.l.b16 %v1679
    %v1858 = vunpack.c.h.b16 %v1679
    %v1859 = vunpack.c.l.b16 %v1680
    %v1860 = vunpack.c.h.b16 %v1680
    %v1861 = vunpack.c.l.b16 %v1681
    %v1862 = vunpack.c.h.b16 %v1681
    %v1863 = vunpack.c.l.b16 %v1682
    %v1864 = vunpack.c.h.b16 %v1682
    %v1865 = vunpack.c.l.b16 %v1683
    %v1866 = vunpack.c.h.b16 %v1683
    %v1867 = vunpack.c.l.b16 %v1684
    %v1868 = vunpack.c.h.b16 %v1684
    %v1869 = vunpack.c.l.b16 %v1685
    %v1870 = vunpack.c.h.b16 %v1685
    %v1871 = vunpack.c.l.b16 %v1686
    %v1872 = vunpack.c.h.b16 %v1686
    %v1873 = vunpack.c.l.b16 %v1687
    %v1874 = vunpack.c.h.b16 %v1687
    %v1875 = vunpack.c.l.b16 %v1688
    %v1876 = vunpack.c.h.b16 %v1688
    %v1877 = vunpack.c.l.b16 %v1689
    %v1878 = vunpack.c.h.b16 %v1689
    %v1879 = vunpack.c.l.b16 %v1690
    %v1880 = vunpack.c.h.b16 %v1690
    %v1881 = vunpack.c.l.b16 %v1691
    %v1882 = vunpack.c.h.b16 %v1691
    %v1883 = vunpack.c.l.b16 %v1692
    %v1884 = vunpack.c.h.b16 %v1692
    %v1885 = vunpack.c.l.b16 %v1693
    %v1886 = vunpack.c.h.b16 %v1693
    %v1887 = vunpack.c.l.b16 %v1694
    %v1888 = vunpack.c.h.b16 %v1694
    %v1889 = vunpack.c.l.b16 %v1695
    %v1890 = vunpack.c.h.b16 %v1695
    %v1891 = vunpack.c.l.b16 %v1696
    %v1892 = vunpack.c.h.b16 %v1696
    %v1893 = vunpack.c.l.b16 %v1697
    %v1894 = vunpack.c.h.b16 %v1697
    %v1895 = vunpack.c.l.b16 %v1698
    %v1896 = vunpack.c.h.b16 %v1698
    %v1897 = vpack.c.b16 %v1771, %v1769
    %v1898 = vpack.c.b16 %v1772, %v1770
    %v1899 = vpack.c.b16 %v1775, %v1773
    %v1900 = vpack.c.b16 %v1776, %v1774
    %v1901 = vpack.c.b16 %v1779, %v1777
    %v1902 = vpack.c.b16 %v1780, %v1778
    %v1903 = vpack.c.b16 %v1783, %v1781
    %v1904 = vpack.c.b16 %v1784, %v1782
    %v1905 = vpack.c.b16 %v1787, %v1785
    %v1906 = vpack.c.b16 %v1788, %v1786
    %v1907 = vpack.c.b16 %v1791, %v1789
    %v1908 = vpack.c.b16 %v1792, %v1790
    %v1909 = vpack.c.b16 %v1795, %v1793
    %v1910 = vpack.c.b16 %v1796, %v1794
    %v1911 = vpack.c.b16 %v1799, %v1797
    %v1912 = vpack.c.b16 %v1800, %v1798
    %v1913 = vpack.c.b16 %v1803, %v1801
    %v1914 = vpack.c.b16 %v1804, %v1802
    %v1915 = vpack.c.b16 %v1807, %v1805
    %v1916 = vpack.c.b16 %v1808, %v1806
    %v1917 = vpack.c.b16 %v1811, %v1809
    %v1918 = vpack.c.b16 %v1812, %v1810
    %v1919 = vpack.c.b16 %v1815, %v1813
    %v1920 = vpack.c.b16 %v1816, %v1814
    %v1921 = vpack.c.b16 %v1819, %v1817
    %v1922 = vpack.c.b16 %v1820, %v1818
    %v1923 = vpack.c.b16 %v1823, %v1821
    %v1924 = vpack.c.b16 %v1824, %v1822
    %v1925 = vpack.c.b16 %v1827, %v1825
    %v1926 = vpack.c.b16 %v1828, %v1826
    %v1927 = vpack.c.b16 %v1831, %v1829
    %v1928 = vpack.c.b16 %v1832, %v1830
    %v1929 = vpack.c.b16 %v1835, %v1833
    %v1930 = vpack.c.b16 %v1836, %v1834
    %v1931 = vpack.c.b16 %v1839, %v1837
    %v1932 = vpack.c.b16 %v1840, %v1838
    %v1933 = vpack.c.b16 %v1843, %v1841
    %v1934 = vpack.c.b16 %v1844, %v1842
    %v1935 = vpack.c.b16 %v1847, %v1845
    %v1936 = vpack.c.b16 %v1848, %v1846
    %v1937 = vpack.c.b16 %v1851, %v1849
    %v1938 = vpack.c.b16 %v1852, %v1850
    %v1939 = vpack.c.b16 %v1855, %v1853
    %v1940 = vpack.c.b16 %v1856, %v1854
    %v1941 = vpack.c.b16 %v1859, %v1857
    %v1942 = vpack.c.b16 %v1860, %v1858
    %v1943 = vpack.c.b16 %v1863, %v1861
    %v1944 = vpack.c.b16 %v1864, %v1862
    %v1945 = vpack.c.b16 %v1867, %v1865
    %v1946 = vpack.c.b16 %v1868, %v1866
    %v1947 = vpack.c.b16 %v1871, %v1869
    %v1948 = vpack.c.b16 %v1872, %v1870
    %v1949 = vpack.c.b16 %v1875, %v1873
    %v1950 = vpack.c.b16 %v1876, %v1874
    %v1951 = vpack.c.b16 %v1879, %v1877
    %v1952 = vpack.c.b16 %v1880, %v1878
    %v1953 = vpack.c.b16 %v1883, %v1881
    %v1954 = vpack.c.b16 %v1884, %v1882
    %v1955 = vpack.c.b16 %v1887, %v1885
    %v1956 = vpack.c.b16 %v1888, %v1886
    %v1957 = vpack.c.b16 %v1891, %v1889
    %v1958 = vpack.c.b16 %v1892, %v1890
    %v1959 = vpack.c.b16 %v1895, %v1893
    %v1960 = vpack.c.b16 %v1896, %v1894
    %2025 = vmatpush.bf16.msra.mxu0 %v1911
    %2026 = vmatpush.bf16.msra.mxu0 %v1909
    %2027 = vmatpush.bf16.msra.mxu0 %v1907
    %2028 = vmatpush.bf16.msra.mxu0 %v1905
    %2029 = vmatpush.bf16.msra.mxu0 %v1903
    %2030 = vmatpush.bf16.msra.mxu0 %v1901
    %2031 = vmatpush.bf16.msra.mxu0 %v1899
    %2032 = vmatpush.bf16.msra.mxu0 %v1897
    %2033 = vmatmul.bf16.gmra.mxu0 %v1631
    %v2034 = vpop.f32.mrf.mxu0
    %v2035 = vadd.f32 %v1701, %v2034
    %v2036 = vpop.f32.mrf.mxu0
    %2037 = vdwg.mxu0
    %2038 = vmatpush.bf16.msra.mxu0 %v1927
    %2039 = vmatpush.bf16.msra.mxu0 %v1925
    %2040 = vmatpush.bf16.msra.mxu0 %v1923
    %2041 = vmatpush.bf16.msra.mxu0 %v1921
    %2042 = vmatpush.bf16.msra.mxu0 %v1919
    %2043 = vmatpush.bf16.msra.mxu0 %v1917
    %2044 = vmatpush.bf16.msra.mxu0 %v1915
    %2045 = vmatpush.bf16.msra.mxu0 %v1913
    %2046 = vmatmul.bf16.gmra.mxu0 %v1632
    %v2047 = vpop.f32.mrf.mxu0
    %v2048 = vadd.f32 %v2035, %v2047
    %v2049 = vpop.f32.mrf.mxu0
    %2050 = vdwg.mxu0
    %2051 = vmatpush.bf16.msra.mxu0 %v1943
    %2052 = vmatpush.bf16.msra.mxu0 %v1941
    %2053 = vmatpush.bf16.msra.mxu0 %v1939
    %2054 = vmatpush.bf16.msra.mxu0 %v1937
    %2055 = vmatpush.bf16.msra.mxu0 %v1935
    %2056 = vmatpush.bf16.msra.mxu0 %v1933
    %2057 = vmatpush.bf16.msra.mxu0 %v1931
    %2058 = vmatpush.bf16.msra.mxu0 %v1929
    %2059 = vmatmul.bf16.gmra.mxu0 %v1633
    %v2060 = vpop.f32.mrf.mxu0
    %v2061 = vadd.f32 %v2048, %v2060
    %v2062 = vpop.f32.mrf.mxu0
    %2063 = vdwg.mxu0
    %2064 = vmatpush.bf16.msra.mxu0 %v1959
    %2065 = vmatpush.bf16.msra.mxu0 %v1957
    %2066 = vmatpush.bf16.msra.mxu0 %v1955
    %2067 = vmatpush.bf16.msra.mxu0 %v1953
    %2068 = vmatpush.bf16.msra.mxu0 %v1951
    %2069 = vmatpush.bf16.msra.mxu0 %v1949
    %2070 = vmatpush.bf16.msra.mxu0 %v1947
    %2071 = vmatpush.bf16.msra.mxu0 %v1945
    %2072 = vmatmul.bf16.gmra.mxu0 %v1634
    %v2073 = vpop.f32.mrf.mxu0
    %v2074 = vadd.f32 %v2061, %v2073
    %v2075 = vpop.f32.mrf.mxu0
    %2076 = vdwg.mxu0
    %2077 = vmatpush.bf16.msra.mxu0 %v1912
    %2078 = vmatpush.bf16.msra.mxu0 %v1910
    %2079 = vmatpush.bf16.msra.mxu0 %v1908
    %2080 = vmatpush.bf16.msra.mxu0 %v1906
    %2081 = vmatpush.bf16.msra.mxu0 %v1904
    %2082 = vmatpush.bf16.msra.mxu0 %v1902
    %2083 = vmatpush.bf16.msra.mxu0 %v1900
    %2084 = vmatpush.bf16.msra.mxu0 %v1898
    %2085 = vmatmul.bf16.gmra.mxu0 %v1631
    %v2086 = vpop.f32.mrf.mxu0
    %v2087 = vadd.f32 %v1702, %v2086
    %v2088 = vpop.f32.mrf.mxu0
    %2089 = vdwg.mxu0
    %2090 = vmatpush.bf16.msra.mxu0 %v1928
    %2091 = vmatpush.bf16.msra.mxu0 %v1926
    %2092 = vmatpush.bf16.msra.mxu0 %v1924
    %2093 = vmatpush.bf16.msra.mxu0 %v1922
    %2094 = vmatpush.bf16.msra.mxu0 %v1920
    %2095 = vmatpush.bf16.msra.mxu0 %v1918
    %2096 = vmatpush.bf16.msra.mxu0 %v1916
    %2097 = vmatpush.bf16.msra.mxu0 %v1914
    %2098 = vmatmul.bf16.gmra.mxu0 %v1632
    %v2099 = vpop.f32.mrf.mxu0
    %v2100 = vadd.f32 %v2087, %v2099
    %v2101 = vpop.f32.mrf.mxu0
    %2102 = vdwg.mxu0
    %2103 = vmatpush.bf16.msra.mxu0 %v1944
    %2104 = vmatpush.bf16.msra.mxu0 %v1942
    %2105 = vmatpush.bf16.msra.mxu0 %v1940
    %2106 = vmatpush.bf16.msra.mxu0 %v1938
    %2107 = vmatpush.bf16.msra.mxu0 %v1936
    %2108 = vmatpush.bf16.msra.mxu0 %v1934
    %2109 = vmatpush.bf16.msra.mxu0 %v1932
    %2110 = vmatpush.bf16.msra.mxu0 %v1930
    %2111 = vmatmul.bf16.gmra.mxu0 %v1633
    %v2112 = vpop.f32.mrf.mxu0
    %v2113 = vadd.f32 %v2100, %v2112
    %v2114 = vpop.f32.mrf.mxu0
    %2115 = vdwg.mxu0
    %2116 = vmatpush.bf16.msra.mxu0 %v1960
    %2117 = vmatpush.bf16.msra.mxu0 %v1958
    %2118 = vmatpush.bf16.msra.mxu0 %v1956
    %2119 = vmatpush.bf16.msra.mxu0 %v1954
    %2120 = vmatpush.bf16.msra.mxu0 %v1952
    %2121 = vmatpush.bf16.msra.mxu0 %v1950
    %2122 = vmatpush.bf16.msra.mxu0 %v1948
    %2123 = vmatpush.bf16.msra.mxu0 %v1946
    %2124 = vmatmul.bf16.gmra.mxu0 %v1634
    %v2125 = vpop.f32.mrf.mxu0
    %v2126 = vadd.f32 %v2113, %v2125
    %v2127 = vpop.f32.mrf.mxu0
    %2128 = vdwg.mxu0
    %vm2129 = vcmp.gt.f32.partialorder %v2074, 0.0
    %vm2130 = vcmp.gt.f32.partialorder %v2126, 0.0
    %v2131 = vmul.f32 %v2074, 0.2
    %v2132 = vmul.f32 %v2126, 0.2
    %v2133 = vsel %vm2129, %v2074, %v2131
    %v2134 = vsel %vm2130, %v2126, %v2132
    %v2135 = vpack.c.bf16 %v2133, %v2133
    %v2136 = vpack.c.bf16 %v2134, %v2134
    %v2137 = vld [vmem:[%s6] sm:$0xf]
    %v2138 = vld [vmem:[%s6 + $0x4] sm:$0xf]
    %v2139 = vld [vmem:[%s6 + $0x8] sm:$0xf]
    %v2140 = vld [vmem:[%s6 + $0xc] sm:$0xf]
    %v2141 = vld [vmem:[%s6 + $0x10] sm:$0xf]
    %v2142 = vld [vmem:[%s6 + $0x14] sm:$0xf]
    %v2143 = vld [vmem:[%s6 + $0x18] sm:$0xf]
    %v2144 = vld [vmem:[%s6 + $0x1c] sm:$0xf]
    %v2145 = vld [vmem:[%s6 + $0x20] sm:$0xf]
    %v2146 = vld [vmem:[%s6 + $0x24] sm:$0xf]
    %v2147 = vld [vmem:[%s6 + $0x28] sm:$0xf]
    %v2148 = vld [vmem:[%s6 + $0x2c] sm:$0xf]
    %v2149 = vld [vmem:[%s6 + $0x30] sm:$0xf]
    %v2150 = vld [vmem:[%s6 + $0x34] sm:$0xf]
    %v2151 = vld [vmem:[%s6 + $0x38] sm:$0xf]
    %v2152 = vld [vmem:[%s6 + $0x3c] sm:$0xf]
    %v2153 = vld [vmem:[%s6 + $0x40] sm:$0xf]
    %v2154 = vld [vmem:[%s6 + $0x44] sm:$0xf]
    %v2155 = vld [vmem:[%s6 + $0x48] sm:$0xf]
    %v2156 = vld [vmem:[%s6 + $0x4c] sm:$0xf]
    %v2157 = vld [vmem:[%s6 + $0x50] sm:$0xf]
    %v2158 = vld [vmem:[%s6 + $0x54] sm:$0xf]
    %v2159 = vld [vmem:[%s6 + $0x58] sm:$0xf]
    %v2160 = vld [vmem:[%s6 + $0x5c] sm:$0xf]
    %v2161 = vld [vmem:[%s6 + $0x60] sm:$0xf]
    %v2162 = vld [vmem:[%s6 + $0x64] sm:$0xf]
    %v2163 = vld [vmem:[%s6 + $0x68] sm:$0xf]
    %v2164 = vld [vmem:[%s6 + $0x6c] sm:$0xf]
    %v2165 = vld [vmem:[%s6 + $0x70] sm:$0xf]
    %v2166 = vld [vmem:[%s6 + $0x74] sm:$0xf]
    %v2167 = vld [vmem:[%s6 + $0x78] sm:$0xf]
    %v2168 = vld [vmem:[%s6 + $0x7c] sm:$0xf]
    %v2169 = vld [vmem:[%s7] sm:$0x1]
    %v2171 = vperm.slane %v2169, 0
    %v2205 = vunpack.c.l.b16 %v2137
    %v2206 = vunpack.c.l.b16 %v2138
    %v2207 = vunpack.c.l.b16 %v2139
    %v2208 = vunpack.c.l.b16 %v2140
    %v2209 = vunpack.c.l.b16 %v2141
    %v2210 = vunpack.c.l.b16 %v2142
    %v2211 = vunpack.c.l.b16 %v2143
    %v2212 = vunpack.c.l.b16 %v2144
    %v2213 = vunpack.c.l.b16 %v2145
    %v2214 = vunpack.c.l.b16 %v2146
    %v2215 = vunpack.c.l.b16 %v2147
    %v2216 = vunpack.c.l.b16 %v2148
    %v2217 = vunpack.c.l.b16 %v2149
    %v2218 = vunpack.c.l.b16 %v2150
    %v2219 = vunpack.c.l.b16 %v2151
    %v2220 = vunpack.c.l.b16 %v2152
    %v2221 = vunpack.c.l.b16 %v2153
    %v2222 = vunpack.c.l.b16 %v2154
    %v2223 = vunpack.c.l.b16 %v2155
    %v2224 = vunpack.c.l.b16 %v2156
    %v2225 = vunpack.c.l.b16 %v2157
    %v2226 = vunpack.c.l.b16 %v2158
    %v2227 = vunpack.c.l.b16 %v2159
    %v2228 = vunpack.c.l.b16 %v2160
    %v2229 = vunpack.c.l.b16 %v2161
    %v2230 = vunpack.c.l.b16 %v2162
    %v2231 = vunpack.c.l.b16 %v2163
    %v2232 = vunpack.c.l.b16 %v2164
    %v2233 = vunpack.c.l.b16 %v2165
    %v2234 = vunpack.c.l.b16 %v2166
    %v2235 = vunpack.c.l.b16 %v2167
    %v2236 = vunpack.c.l.b16 %v2168
    %v2237 = vpack.c.b16 %v2206, %v2205
    %v2238 = vpack.c.b16 %v2208, %v2207
    %v2239 = vpack.c.b16 %v2210, %v2209
    %v2240 = vpack.c.b16 %v2212, %v2211
    %v2241 = vpack.c.b16 %v2214, %v2213
    %v2242 = vpack.c.b16 %v2216, %v2215
    %v2243 = vpack.c.b16 %v2218, %v2217
    %v2244 = vpack.c.b16 %v2220, %v2219
    %v2245 = vpack.c.b16 %v2222, %v2221
    %v2246 = vpack.c.b16 %v2224, %v2223
    %v2247 = vpack.c.b16 %v2226, %v2225
    %v2248 = vpack.c.b16 %v2228, %v2227
    %v2249 = vpack.c.b16 %v2230, %v2229
    %v2250 = vpack.c.b16 %v2232, %v2231
    %v2251 = vpack.c.b16 %v2234, %v2233
    %v2252 = vpack.c.b16 %v2236, %v2235
    %2269 = vmatpush.bf16.msra.mxu0 %v2244
    %2270 = vmatpush.bf16.msra.mxu0 %v2243
    %2271 = vmatpush.bf16.msra.mxu0 %v2242
    %2272 = vmatpush.bf16.msra.mxu0 %v2241
    %2273 = vmatpush.bf16.msra.mxu0 %v2240
    %2274 = vmatpush.bf16.msra.mxu0 %v2239
    %2275 = vmatpush.bf16.msra.mxu0 %v2238
    %2276 = vmatpush.bf16.msra.mxu0 %v2237
    %2277 = vmatmul.bf16.gmra.mxu0 %v2135
    %v2278 = vpop.f32.mrf.mxu0
    %v2279 = vadd.f32 %v2171, %v2278
    %v2280 = vpop.f32.mrf.mxu0
    %2281 = vdwg.mxu0
    %2282 = vmatpush.bf16.msra.mxu0 %v2252
    %2283 = vmatpush.bf16.msra.mxu0 %v2251
    %2284 = vmatpush.bf16.msra.mxu0 %v2250
    %2285 = vmatpush.bf16.msra.mxu0 %v2249
    %2286 = vmatpush.bf16.msra.mxu0 %v2248
    %2287 = vmatpush.bf16.msra.mxu0 %v2247
    %2288 = vmatpush.bf16.msra.mxu0 %v2246
    %2289 = vmatpush.bf16.msra.mxu0 %v2245
    %2290 = vmatmul.bf16.gmra.mxu0 %v2136
    %v2291 = vpop.f32.mrf.mxu0
    %v2292 = vadd.f32 %v2279, %v2291
    %v2293 = vpop.f32.mrf.mxu0
    %2294 = vdwg.mxu0
    %v2295 = vld [vmem:[%s1] sm:$0xff]
    %2297 = vrot.lane.b32.xlu0 %v2295, 2
    %v2298 = vpop.permute.xlu0 %2297
    %v2300 = vmul.f32 %v2292, %v2298
    %2302 = vrot.lane.b32.xlu0 %v2300, 126
    %v2303 = vpop.permute.xlu0 %2302
    %v2305 = vadd.f32 %v2292, %v2303
    %v2306 = vld [vmem:[%s8] ss:$2 sm:$0x3]
    %2308 = vset.pattern.permute.xlu0 0
    %2309 = vperm.xlu0 %2308, %v2305
    %v2310 = vpop.permute.xlu0 %2309
    %v2313 = vperm.slane %v2306, 0
    %v2314 = vperm.slane %v2306, 1
    %v2317 = vmul.f32 %v2310, %v2313
    %v2318 = vmul.f32 %v2310, %v2314
    %s2319 = scalar_lea.vmem %s8, 1
    %v2320 = vld [vmem:[%s2319] ss:$2 sm:$0x3]
    %2321 = vset.pattern.permute.xlu0 1
    %2322 = vperm.xlu0 %2321, %v2305
    %v2323 = vpop.permute.xlu0 %2322
    %v2326 = vperm.slane %v2320, 0
    %v2327 = vperm.slane %v2320, 1
    %v2330 = vmul.f32 %v2323, %v2326
    %v2331 = vmul.f32 %v2323, %v2327
    %v2332 = vadd.f32 %v2317, %v2330
    %v2333 = vadd.f32 %v2318, %v2331
    %v2334 = vld [vmem:[%s9] sm:$0x3]
    %v2336 = vperm.slane %v2334, 0
    %v2337 = vperm.slane %v2334, 1
    %v2340 = vadd.f32 %v2332, %v2336
    %v2341 = vadd.f32 %v2333, %v2337
    %vm2342 = vcmp.gt.f32.partialorder %v2340, 0.0
    %vm2343 = vcmp.gt.f32.partialorder %v2341, 0.0
    %v2344 = vmul.f32 %v2340, 0.2
    %v2345 = vmul.f32 %v2341, 0.2
    %v2346 = vsel %vm2342, %v2340, %v2344
    %v2347 = vsel %vm2343, %v2341, %v2345
    %v2348 = vpack.c.bf16 %v2346, %v2346
    %v2349 = vpack.c.bf16 %v2347, %v2347
    %v2350 = vld [vmem:[%s10] sm:$0xff]
    %v2351 = vld [vmem:[%s10 + $0x8] sm:$0xff]
    %v2352 = vld [vmem:[%s10 + $0x10] sm:$0xff]
    %v2353 = vld [vmem:[%s10 + $0x18] sm:$0xff]
    %v2354 = vld [vmem:[%s10 + $0x20] sm:$0xff]
    %v2355 = vld [vmem:[%s10 + $0x28] sm:$0xff]
    %v2356 = vld [vmem:[%s10 + $0x30] sm:$0xff]
    %v2357 = vld [vmem:[%s10 + $0x38] sm:$0xff]
    %v2358 = vld [vmem:[%s10 + $0x40] sm:$0xff]
    %v2359 = vld [vmem:[%s10 + $0x48] sm:$0xff]
    %v2360 = vld [vmem:[%s10 + $0x50] sm:$0xff]
    %v2361 = vld [vmem:[%s10 + $0x58] sm:$0xff]
    %v2362 = vld [vmem:[%s10 + $0x60] sm:$0xff]
    %v2363 = vld [vmem:[%s10 + $0x68] sm:$0xff]
    %v2364 = vld [vmem:[%s10 + $0x70] sm:$0xff]
    %v2365 = vld [vmem:[%s10 + $0x78] sm:$0xff]
    %v2366 = vld [vmem:[%s10 + $0x80] sm:$0xff]
    %v2367 = vld [vmem:[%s10 + $0x88] sm:$0xff]
    %v2368 = vld [vmem:[%s10 + $0x90] sm:$0xff]
    %v2369 = vld [vmem:[%s10 + $0x98] sm:$0xff]
    %v2370 = vld [vmem:[%s10 + $0xa0] sm:$0xff]
    %v2371 = vld [vmem:[%s10 + $0xa8] sm:$0xff]
    %v2372 = vld [vmem:[%s10 + $0xb0] sm:$0xff]
    %v2373 = vld [vmem:[%s10 + $0xb8] sm:$0xff]
    %v2374 = vld [vmem:[%s10 + $0xc0] sm:$0xff]
    %v2375 = vld [vmem:[%s10 + $0xc8] sm:$0xff]
    %v2376 = vld [vmem:[%s10 + $0xd0] sm:$0xff]
    %v2377 = vld [vmem:[%s10 + $0xd8] sm:$0xff]
    %v2378 = vld [vmem:[%s10 + $0xe0] sm:$0xff]
    %v2379 = vld [vmem:[%s10 + $0xe8] sm:$0xff]
    %v2380 = vld [vmem:[%s10 + $0xf0] sm:$0xff]
    %v2381 = vld [vmem:[%s10 + $0xf8] sm:$0xff]
    %v2382 = vld [vmem:[%s10 + $0x100] sm:$0xff]
    %v2383 = vld [vmem:[%s10 + $0x108] sm:$0xff]
    %v2384 = vld [vmem:[%s10 + $0x110] sm:$0xff]
    %v2385 = vld [vmem:[%s10 + $0x118] sm:$0xff]
    %v2386 = vld [vmem:[%s10 + $0x120] sm:$0xff]
    %v2387 = vld [vmem:[%s10 + $0x128] sm:$0xff]
    %v2388 = vld [vmem:[%s10 + $0x130] sm:$0xff]
    %v2389 = vld [vmem:[%s10 + $0x138] sm:$0xff]
    %v2390 = vld [vmem:[%s10 + $0x140] sm:$0xff]
    %v2391 = vld [vmem:[%s10 + $0x148] sm:$0xff]
    %v2392 = vld [vmem:[%s10 + $0x150] sm:$0xff]
    %v2393 = vld [vmem:[%s10 + $0x158] sm:$0xff]
    %v2394 = vld [vmem:[%s10 + $0x160] sm:$0xff]
    %v2395 = vld [vmem:[%s10 + $0x168] sm:$0xff]
    %v2396 = vld [vmem:[%s10 + $0x170] sm:$0xff]
    %v2397 = vld [vmem:[%s10 + $0x178] sm:$0xff]
    %v2398 = vld [vmem:[%s10 + $0x180] sm:$0xff]
    %v2399 = vld [vmem:[%s10 + $0x188] sm:$0xff]
    %v2400 = vld [vmem:[%s10 + $0x190] sm:$0xff]
    %v2401 = vld [vmem:[%s10 + $0x198] sm:$0xff]
    %v2402 = vld [vmem:[%s10 + $0x1a0] sm:$0xff]
    %v2403 = vld [vmem:[%s10 + $0x1a8] sm:$0xff]
    %v2404 = vld [vmem:[%s10 + $0x1b0] sm:$0xff]
    %v2405 = vld [vmem:[%s10 + $0x1b8] sm:$0xff]
    %v2406 = vld [vmem:[%s10 + $0x1c0] sm:$0xff]
    %v2407 = vld [vmem:[%s10 + $0x1c8] sm:$0xff]
    %v2408 = vld [vmem:[%s10 + $0x1d0] sm:$0xff]
    %v2409 = vld [vmem:[%s10 + $0x1d8] sm:$0xff]
    %v2410 = vld [vmem:[%s10 + $0x1e0] sm:$0xff]
    %v2411 = vld [vmem:[%s10 + $0x1e8] sm:$0xff]
    %v2412 = vld [vmem:[%s10 + $0x1f0] sm:$0xff]
    %v2413 = vld [vmem:[%s10 + $0x1f8] sm:$0xff]
    %v2414 = vld [vmem:[%s11] sm:$0xf]
    %v2416 = vperm.slane %v2414, 0
    %v2417 = vperm.slane %v2414, 1
    %v2418 = vperm.slane %v2414, 2
    %v2419 = vperm.slane %v2414, 3
    %v2488 = vunpack.c.l.b16 %v2350
    %v2489 = vunpack.c.h.b16 %v2350
    %v2490 = vunpack.c.l.b16 %v2351
    %v2491 = vunpack.c.h.b16 %v2351
    %v2492 = vunpack.c.l.b16 %v2352
    %v2493 = vunpack.c.h.b16 %v2352
    %v2494 = vunpack.c.l.b16 %v2353
    %v2495 = vunpack.c.h.b16 %v2353
    %v2496 = vunpack.c.l.b16 %v2354
    %v2497 = vunpack.c.h.b16 %v2354
    %v2498 = vunpack.c.l.b16 %v2355
    %v2499 = vunpack.c.h.b16 %v2355
    %v2500 = vunpack.c.l.b16 %v2356
    %v2501 = vunpack.c.h.b16 %v2356
    %v2502 = vunpack.c.l.b16 %v2357
    %v2503 = vunpack.c.h.b16 %v2357
    %v2504 = vunpack.c.l.b16 %v2358
    %v2505 = vunpack.c.h.b16 %v2358
    %v2506 = vunpack.c.l.b16 %v2359
    %v2507 = vunpack.c.h.b16 %v2359
    %v2508 = vunpack.c.l.b16 %v2360
    %v2509 = vunpack.c.h.b16 %v2360
    %v2510 = vunpack.c.l.b16 %v2361
    %v2511 = vunpack.c.h.b16 %v2361
    %v2512 = vunpack.c.l.b16 %v2362
    %v2513 = vunpack.c.h.b16 %v2362
    %v2514 = vunpack.c.l.b16 %v2363
    %v2515 = vunpack.c.h.b16 %v2363
    %v2516 = vunpack.c.l.b16 %v2364
    %v2517 = vunpack.c.h.b16 %v2364
    %v2518 = vunpack.c.l.b16 %v2365
    %v2519 = vunpack.c.h.b16 %v2365
    %v2520 = vunpack.c.l.b16 %v2366
    %v2521 = vunpack.c.h.b16 %v2366
    %v2522 = vunpack.c.l.b16 %v2367
    %v2523 = vunpack.c.h.b16 %v2367
    %v2524 = vunpack.c.l.b16 %v2368
    %v2525 = vunpack.c.h.b16 %v2368
    %v2526 = vunpack.c.l.b16 %v2369
    %v2527 = vunpack.c.h.b16 %v2369
    %v2528 = vunpack.c.l.b16 %v2370
    %v2529 = vunpack.c.h.b16 %v2370
    %v2530 = vunpack.c.l.b16 %v2371
    %v2531 = vunpack.c.h.b16 %v2371
    %v2532 = vunpack.c.l.b16 %v2372
    %v2533 = vunpack.c.h.b16 %v2372
    %v2534 = vunpack.c.l.b16 %v2373
    %v2535 = vunpack.c.h.b16 %v2373
    %v2536 = vunpack.c.l.b16 %v2374
    %v2537 = vunpack.c.h.b16 %v2374
    %v2538 = vunpack.c.l.b16 %v2375
    %v2539 = vunpack.c.h.b16 %v2375
    %v2540 = vunpack.c.l.b16 %v2376
    %v2541 = vunpack.c.h.b16 %v2376
    %v2542 = vunpack.c.l.b16 %v2377
    %v2543 = vunpack.c.h.b16 %v2377
    %v2544 = vunpack.c.l.b16 %v2378
    %v2545 = vunpack.c.h.b16 %v2378
    %v2546 = vunpack.c.l.b16 %v2379
    %v2547 = vunpack.c.h.b16 %v2379
    %v2548 = vunpack.c.l.b16 %v2380
    %v2549 = vunpack.c.h.b16 %v2380
    %v2550 = vunpack.c.l.b16 %v2381
    %v2551 = vunpack.c.h.b16 %v2381
    %v2552 = vunpack.c.l.b16 %v2382
    %v2553 = vunpack.c.h.b16 %v2382
    %v2554 = vunpack.c.l.b16 %v2383
    %v2555 = vunpack.c.h.b16 %v2383
    %v2556 = vunpack.c.l.b16 %v2384
    %v2557 = vunpack.c.h.b16 %v2384
    %v2558 = vunpack.c.l.b16 %v2385
    %v2559 = vunpack.c.h.b16 %v2385
    %v2560 = vunpack.c.l.b16 %v2386
    %v2561 = vunpack.c.h.b16 %v2386
    %v2562 = vunpack.c.l.b16 %v2387
    %v2563 = vunpack.c.h.b16 %v2387
    %v2564 = vunpack.c.l.b16 %v2388
    %v2565 = vunpack.c.h.b16 %v2388
    %v2566 = vunpack.c.l.b16 %v2389
    %v2567 = vunpack.c.h.b16 %v2389
    %v2568 = vunpack.c.l.b16 %v2390
    %v2569 = vunpack.c.h.b16 %v2390
    %v2570 = vunpack.c.l.b16 %v2391
    %v2571 = vunpack.c.h.b16 %v2391
    %v2572 = vunpack.c.l.b16 %v2392
    %v2573 = vunpack.c.h.b16 %v2392
    %v2574 = vunpack.c.l.b16 %v2393
    %v2575 = vunpack.c.h.b16 %v2393
    %v2576 = vunpack.c.l.b16 %v2394
    %v2577 = vunpack.c.h.b16 %v2394
    %v2578 = vunpack.c.l.b16 %v2395
    %v2579 = vunpack.c.h.b16 %v2395
    %v2580 = vunpack.c.l.b16 %v2396
    %v2581 = vunpack.c.h.b16 %v2396
    %v2582 = vunpack.c.l.b16 %v2397
    %v2583 = vunpack.c.h.b16 %v2397
    %v2584 = vunpack.c.l.b16 %v2398
    %v2585 = vunpack.c.h.b16 %v2398
    %v2586 = vunpack.c.l.b16 %v2399
    %v2587 = vunpack.c.h.b16 %v2399
    %v2588 = vunpack.c.l.b16 %v2400
    %v2589 = vunpack.c.h.b16 %v2400
    %v2590 = vunpack.c.l.b16 %v2401
    %v2591 = vunpack.c.h.b16 %v2401
    %v2592 = vunpack.c.l.b16 %v2402
    %v2593 = vunpack.c.h.b16 %v2402
    %v2594 = vunpack.c.l.b16 %v2403
    %v2595 = vunpack.c.h.b16 %v2403
    %v2596 = vunpack.c.l.b16 %v2404
    %v2597 = vunpack.c.h.b16 %v2404
    %v2598 = vunpack.c.l.b16 %v2405
    %v2599 = vunpack.c.h.b16 %v2405
    %v2600 = vunpack.c.l.b16 %v2406
    %v2601 = vunpack.c.h.b16 %v2406
    %v2602 = vunpack.c.l.b16 %v2407
    %v2603 = vunpack.c.h.b16 %v2407
    %v2604 = vunpack.c.l.b16 %v2408
    %v2605 = vunpack.c.h.b16 %v2408
    %v2606 = vunpack.c.l.b16 %v2409
    %v2607 = vunpack.c.h.b16 %v2409
    %v2608 = vunpack.c.l.b16 %v2410
    %v2609 = vunpack.c.h.b16 %v2410
    %v2610 = vunpack.c.l.b16 %v2411
    %v2611 = vunpack.c.h.b16 %v2411
    %v2612 = vunpack.c.l.b16 %v2412
    %v2613 = vunpack.c.h.b16 %v2412
    %v2614 = vunpack.c.l.b16 %v2413
    %v2615 = vunpack.c.h.b16 %v2413
    %v2616 = vpack.c.b16 %v2492, %v2488
    %v2617 = vpack.c.b16 %v2493, %v2489
    %v2618 = vpack.c.b16 %v2494, %v2490
    %v2619 = vpack.c.b16 %v2495, %v2491
    %v2620 = vpack.c.b16 %v2500, %v2496
    %v2621 = vpack.c.b16 %v2501, %v2497
    %v2622 = vpack.c.b16 %v2502, %v2498
    %v2623 = vpack.c.b16 %v2503, %v2499
    %v2624 = vpack.c.b16 %v2508, %v2504
    %v2625 = vpack.c.b16 %v2509, %v2505
    %v2626 = vpack.c.b16 %v2510, %v2506
    %v2627 = vpack.c.b16 %v2511, %v2507
    %v2628 = vpack.c.b16 %v2516, %v2512
    %v2629 = vpack.c.b16 %v2517, %v2513
    %v2630 = vpack.c.b16 %v2518, %v2514
    %v2631 = vpack.c.b16 %v2519, %v2515
    %v2632 = vpack.c.b16 %v2524, %v2520
    %v2633 = vpack.c.b16 %v2525, %v2521
    %v2634 = vpack.c.b16 %v2526, %v2522
    %v2635 = vpack.c.b16 %v2527, %v2523
    %v2636 = vpack.c.b16 %v2532, %v2528
    %v2637 = vpack.c.b16 %v2533, %v2529
    %v2638 = vpack.c.b16 %v2534, %v2530
    %v2639 = vpack.c.b16 %v2535, %v2531
    %v2640 = vpack.c.b16 %v2540, %v2536
    %v2641 = vpack.c.b16 %v2541, %v2537
    %v2642 = vpack.c.b16 %v2542, %v2538
    %v2643 = vpack.c.b16 %v2543, %v2539
    %v2644 = vpack.c.b16 %v2548, %v2544
    %v2645 = vpack.c.b16 %v2549, %v2545
    %v2646 = vpack.c.b16 %v2550, %v2546
    %v2647 = vpack.c.b16 %v2551, %v2547
    %v2648 = vpack.c.b16 %v2556, %v2552
    %v2649 = vpack.c.b16 %v2557, %v2553
    %v2650 = vpack.c.b16 %v2558, %v2554
    %v2651 = vpack.c.b16 %v2559, %v2555
    %v2652 = vpack.c.b16 %v2564, %v2560
    %v2653 = vpack.c.b16 %v2565, %v2561
    %v2654 = vpack.c.b16 %v2566, %v2562
    %v2655 = vpack.c.b16 %v2567, %v2563
    %v2656 = vpack.c.b16 %v2572, %v2568
    %v2657 = vpack.c.b16 %v2573, %v2569
    %v2658 = vpack.c.b16 %v2574, %v2570
    %v2659 = vpack.c.b16 %v2575, %v2571
    %v2660 = vpack.c.b16 %v2580, %v2576
    %v2661 = vpack.c.b16 %v2581, %v2577
    %v2662 = vpack.c.b16 %v2582, %v2578
    %v2663 = vpack.c.b16 %v2583, %v2579
    %v2664 = vpack.c.b16 %v2588, %v2584
    %v2665 = vpack.c.b16 %v2589, %v2585
    %v2666 = vpack.c.b16 %v2590, %v2586
    %v2667 = vpack.c.b16 %v2591, %v2587
    %v2668 = vpack.c.b16 %v2596, %v2592
    %v2669 = vpack.c.b16 %v2597, %v2593
    %v2670 = vpack.c.b16 %v2598, %v2594
    %v2671 = vpack.c.b16 %v2599, %v2595
    %v2672 = vpack.c.b16 %v2604, %v2600
    %v2673 = vpack.c.b16 %v2605, %v2601
    %v2674 = vpack.c.b16 %v2606, %v2602
    %v2675 = vpack.c.b16 %v2607, %v2603
    %v2676 = vpack.c.b16 %v2612, %v2608
    %v2677 = vpack.c.b16 %v2613, %v2609
    %v2678 = vpack.c.b16 %v2614, %v2610
    %v2679 = vpack.c.b16 %v2615, %v2611
    %2744 = vmatpush.bf16.msra.mxu0 %v2644
    %2745 = vmatpush.bf16.msra.mxu0 %v2640
    %2746 = vmatpush.bf16.msra.mxu0 %v2636
    %2747 = vmatpush.bf16.msra.mxu0 %v2632
    %2748 = vmatpush.bf16.msra.mxu0 %v2628
    %2749 = vmatpush.bf16.msra.mxu0 %v2624
    %2750 = vmatpush.bf16.msra.mxu0 %v2620
    %2751 = vmatpush.bf16.msra.mxu0 %v2616
    %2752 = vmatmul.bf16.gmra.mxu0 %v2348
    %v2753 = vpop.f32.mrf.mxu0
    %v2754 = vadd.f32 %v2416, %v2753
    %v2755 = vpop.f32.mrf.mxu0
    %2756 = vdwg.mxu0
    %2757 = vmatpush.bf16.msra.mxu0 %v2676
    %2758 = vmatpush.bf16.msra.mxu0 %v2672
    %2759 = vmatpush.bf16.msra.mxu0 %v2668
    %2760 = vmatpush.bf16.msra.mxu0 %v2664
    %2761 = vmatpush.bf16.msra.mxu0 %v2660
    %2762 = vmatpush.bf16.msra.mxu0 %v2656
    %2763 = vmatpush.bf16.msra.mxu0 %v2652
    %2764 = vmatpush.bf16.msra.mxu0 %v2648
    %2765 = vmatmul.bf16.gmra.mxu0 %v2349
    %v2766 = vpop.f32.mrf.mxu0
    %v2767 = vadd.f32 %v2754, %v2766
    %v2768 = vpop.f32.mrf.mxu0
    %2769 = vdwg.mxu0
    %2770 = vmatpush.bf16.msra.mxu0 %v2645
    %2771 = vmatpush.bf16.msra.mxu0 %v2641
    %2772 = vmatpush.bf16.msra.mxu0 %v2637
    %2773 = vmatpush.bf16.msra.mxu0 %v2633
    %2774 = vmatpush.bf16.msra.mxu0 %v2629
    %2775 = vmatpush.bf16.msra.mxu0 %v2625
    %2776 = vmatpush.bf16.msra.mxu0 %v2621
    %2777 = vmatpush.bf16.msra.mxu0 %v2617
    %2778 = vmatmul.bf16.gmra.mxu0 %v2348
    %v2779 = vpop.f32.mrf.mxu0
    %v2780 = vadd.f32 %v2417, %v2779
    %v2781 = vpop.f32.mrf.mxu0
    %2782 = vdwg.mxu0
    %2783 = vmatpush.bf16.msra.mxu0 %v2677
    %2784 = vmatpush.bf16.msra.mxu0 %v2673
    %2785 = vmatpush.bf16.msra.mxu0 %v2669
    %2786 = vmatpush.bf16.msra.mxu0 %v2665
    %2787 = vmatpush.bf16.msra.mxu0 %v2661
    %2788 = vmatpush.bf16.msra.mxu0 %v2657
    %2789 = vmatpush.bf16.msra.mxu0 %v2653
    %2790 = vmatpush.bf16.msra.mxu0 %v2649
    %2791 = vmatmul.bf16.gmra.mxu0 %v2349
    %v2792 = vpop.f32.mrf.mxu0
    %v2793 = vadd.f32 %v2780, %v2792
    %v2794 = vpop.f32.mrf.mxu0
    %2795 = vdwg.mxu0
    %2796 = vmatpush.bf16.msra.mxu0 %v2646
    %2797 = vmatpush.bf16.msra.mxu0 %v2642
    %2798 = vmatpush.bf16.msra.mxu0 %v2638
    %2799 = vmatpush.bf16.msra.mxu0 %v2634
    %2800 = vmatpush.bf16.msra.mxu0 %v2630
    %2801 = vmatpush.bf16.msra.mxu0 %v2626
    %2802 = vmatpush.bf16.msra.mxu0 %v2622
    %2803 = vmatpush.bf16.msra.mxu0 %v2618
    %2804 = vmatmul.bf16.gmra.mxu0 %v2348
    %v2805 = vpop.f32.mrf.mxu0
    %v2806 = vadd.f32 %v2418, %v2805
    %v2807 = vpop.f32.mrf.mxu0
    %2808 = vdwg.mxu0
    %2809 = vmatpush.bf16.msra.mxu0 %v2678
    %2810 = vmatpush.bf16.msra.mxu0 %v2674
    %2811 = vmatpush.bf16.msra.mxu0 %v2670
    %2812 = vmatpush.bf16.msra.mxu0 %v2666
    %2813 = vmatpush.bf16.msra.mxu0 %v2662
    %2814 = vmatpush.bf16.msra.mxu0 %v2658
    %2815 = vmatpush.bf16.msra.mxu0 %v2654
    %2816 = vmatpush.bf16.msra.mxu0 %v2650
    %2817 = vmatmul.bf16.gmra.mxu0 %v2349
    %v2818 = vpop.f32.mrf.mxu0
    %v2819 = vadd.f32 %v2806, %v2818
    %v2820 = vpop.f32.mrf.mxu0
    %2821 = vdwg.mxu0
    %2822 = vmatpush.bf16.msra.mxu0 %v2647
    %2823 = vmatpush.bf16.msra.mxu0 %v2643
    %2824 = vmatpush.bf16.msra.mxu0 %v2639
    %2825 = vmatpush.bf16.msra.mxu0 %v2635
    %2826 = vmatpush.bf16.msra.mxu0 %v2631
    %2827 = vmatpush.bf16.msra.mxu0 %v2627
    %2828 = vmatpush.bf16.msra.mxu0 %v2623
    %2829 = vmatpush.bf16.msra.mxu0 %v2619
    %2830 = vmatmul.bf16.gmra.mxu0 %v2348
    %v2831 = vpop.f32.mrf.mxu0
    %v2832 = vadd.f32 %v2419, %v2831
    %v2833 = vpop.f32.mrf.mxu0
    %2834 = vdwg.mxu0
    %2835 = vmatpush.bf16.msra.mxu0 %v2679
    %2836 = vmatpush.bf16.msra.mxu0 %v2675
    %2837 = vmatpush.bf16.msra.mxu0 %v2671
    %2838 = vmatpush.bf16.msra.mxu0 %v2667
    %2839 = vmatpush.bf16.msra.mxu0 %v2663
    %2840 = vmatpush.bf16.msra.mxu0 %v2659
    %2841 = vmatpush.bf16.msra.mxu0 %v2655
    %2842 = vmatpush.bf16.msra.mxu0 %v2651
    %2843 = vmatmul.bf16.gmra.mxu0 %v2349
    %v2844 = vpop.f32.mrf.mxu0
    %v2845 = vadd.f32 %v2832, %v2844
    %v2846 = vpop.f32.mrf.mxu0
    %2847 = vdwg.mxu0
    %vm2848 = vcmp.gt.f32.partialorder %v2767, 0.0
    %vm2849 = vcmp.gt.f32.partialorder %v2793, 0.0
    %vm2850 = vcmp.gt.f32.partialorder %v2819, 0.0
    %vm2851 = vcmp.gt.f32.partialorder %v2845, 0.0
    %v2852 = vmul.f32 %v2767, 0.2
    %v2853 = vmul.f32 %v2793, 0.2
    %v2854 = vmul.f32 %v2819, 0.2
    %v2855 = vmul.f32 %v2845, 0.2
    %v2856 = vsel %vm2848, %v2767, %v2852
    %v2857 = vsel %vm2849, %v2793, %v2853
    %v2858 = vsel %vm2850, %v2819, %v2854
    %v2859 = vsel %vm2851, %v2845, %v2855
    %v2860 = vpack.c.bf16 %v2856, %v2856
    %v2861 = vpack.c.bf16 %v2857, %v2857
    %v2862 = vpack.c.bf16 %v2858, %v2858
    %v2863 = vpack.c.bf16 %v2859, %v2859
    %v2864 = vld [vmem:[%s12] sm:$0xff]
    %v2865 = vld [vmem:[%s12 + $0x8] sm:$0xff]
    %v2866 = vld [vmem:[%s12 + $0x10] sm:$0xff]
    %v2867 = vld [vmem:[%s12 + $0x18] sm:$0xf]
    %v2868 = vld [vmem:[%s12 + $0x1c] sm:$0xff]
    %v2869 = vld [vmem:[%s12 + $0x24] sm:$0xff]
    %v2870 = vld [vmem:[%s12 + $0x2c] sm:$0xff]
    %v2871 = vld [vmem:[%s12 + $0x34] sm:$0xf]
    %v2872 = vld [vmem:[%s12 + $0x38] sm:$0xff]
    %v2873 = vld [vmem:[%s12 + $0x40] sm:$0xff]
    %v2874 = vld [vmem:[%s12 + $0x48] sm:$0xff]
    %v2875 = vld [vmem:[%s12 + $0x50] sm:$0xf]
    %v2876 = vld [vmem:[%s12 + $0x54] sm:$0xff]
    %v2877 = vld [vmem:[%s12 + $0x5c] sm:$0xff]
    %v2878 = vld [vmem:[%s12 + $0x64] sm:$0xff]
    %v2879 = vld [vmem:[%s12 + $0x6c] sm:$0xf]
    %v2880 = vld [vmem:[%s12 + $0x70] sm:$0xff]
    %v2881 = vld [vmem:[%s12 + $0x78] sm:$0xff]
    %v2882 = vld [vmem:[%s12 + $0x80] sm:$0xff]
    %v2883 = vld [vmem:[%s12 + $0x88] sm:$0xf]
    %v2884 = vld [vmem:[%s12 + $0x8c] sm:$0xff]
    %v2885 = vld [vmem:[%s12 + $0x94] sm:$0xff]
    %v2886 = vld [vmem:[%s12 + $0x9c] sm:$0xff]
    %v2887 = vld [vmem:[%s12 + $0xa4] sm:$0xf]
    %v2888 = vld [vmem:[%s12 + $0xa8] sm:$0xff]
    %v2889 = vld [vmem:[%s12 + $0xb0] sm:$0xff]
    %v2890 = vld [vmem:[%s12 + $0xb8] sm:$0xff]
    %v2891 = vld [vmem:[%s12 + $0xc0] sm:$0xf]
    %v2892 = vld [vmem:[%s12 + $0xc4] sm:$0xff]
    %v2893 = vld [vmem:[%s12 + $0xcc] sm:$0xff]
    %v2894 = vld [vmem:[%s12 + $0xd4] sm:$0xff]
    %v2895 = vld [vmem:[%s12 + $0xdc] sm:$0xf]
    %v2896 = vld [vmem:[%s12 + $0xe0] sm:$0xff]
    %v2897 = vld [vmem:[%s12 + $0xe8] sm:$0xff]
    %v2898 = vld [vmem:[%s12 + $0xf0] sm:$0xff]
    %v2899 = vld [vmem:[%s12 + $0xf8] sm:$0xf]
    %v2900 = vld [vmem:[%s12 + $0xfc] sm:$0xff]
    %v2901 = vld [vmem:[%s12 + $0x104] sm:$0xff]
    %v2902 = vld [vmem:[%s12 + $0x10c] sm:$0xff]
    %v2903 = vld [vmem:[%s12 + $0x114] sm:$0xf]
    %v2904 = vld [vmem:[%s12 + $0x118] sm:$0xff]
    %v2905 = vld [vmem:[%s12 + $0x120] sm:$0xff]
    %v2906 = vld [vmem:[%s12 + $0x128] sm:$0xff]
    %v2907 = vld [vmem:[%s12 + $0x130] sm:$0xf]
    %v2908 = vld [vmem:[%s12 + $0x134] sm:$0xff]
    %v2909 = vld [vmem:[%s12 + $0x13c] sm:$0xff]
    %v2910 = vld [vmem:[%s12 + $0x144] sm:$0xff]
    %v2911 = vld [vmem:[%s12 + $0x14c] sm:$0xf]
    %v2912 = vld [vmem:[%s12 + $0x150] sm:$0xff]
    %v2913 = vld [vmem:[%s12 + $0x158] sm:$0xff]
    %v2914 = vld [vmem:[%s12 + $0x160] sm:$0xff]
    %v2915 = vld [vmem:[%s12 + $0x168] sm:$0xf]
    %v2916 = vld [vmem:[%s12 + $0x16c] sm:$0xff]
    %v2917 = vld [vmem:[%s12 + $0x174] sm:$0xff]
    %v2918 = vld [vmem:[%s12 + $0x17c] sm:$0xff]
    %v2919 = vld [vmem:[%s12 + $0x184] sm:$0xf]
    %v2920 = vld [vmem:[%s12 + $0x188] sm:$0xff]
    %v2921 = vld [vmem:[%s12 + $0x190] sm:$0xff]
    %v2922 = vld [vmem:[%s12 + $0x198] sm:$0xff]
    %v2923 = vld [vmem:[%s12 + $0x1a0] sm:$0xf]
    %v2924 = vld [vmem:[%s12 + $0x1a4] sm:$0xff]
    %v2925 = vld [vmem:[%s12 + $0x1ac] sm:$0xff]
    %v2926 = vld [vmem:[%s12 + $0x1b4] sm:$0xff]
    %v2927 = vld [vmem:[%s12 + $0x1bc] sm:$0xf]
    %v2928 = vld [vmem:[%s12 + $0x1c0] sm:$0xff]
    %v2929 = vld [vmem:[%s12 + $0x1c8] sm:$0xff]
    %v2930 = vld [vmem:[%s12 + $0x1d0] sm:$0xff]
    %v2931 = vld [vmem:[%s12 + $0x1d8] sm:$0xf]
    %v2932 = vld [vmem:[%s12 + $0x1dc] sm:$0xff]
    %v2933 = vld [vmem:[%s12 + $0x1e4] sm:$0xff]
    %v2934 = vld [vmem:[%s12 + $0x1ec] sm:$0xff]
    %v2935 = vld [vmem:[%s12 + $0x1f4] sm:$0xf]
    %v2936 = vld [vmem:[%s12 + $0x1f8] sm:$0xff]
    %v2937 = vld [vmem:[%s12 + $0x200] sm:$0xff]
    %v2938 = vld [vmem:[%s12 + $0x208] sm:$0xff]
    %v2939 = vld [vmem:[%s12 + $0x210] sm:$0xf]
    %v2940 = vld [vmem:[%s12 + $0x214] sm:$0xff]
    %v2941 = vld [vmem:[%s12 + $0x21c] sm:$0xff]
    %v2942 = vld [vmem:[%s12 + $0x224] sm:$0xff]
    %v2943 = vld [vmem:[%s12 + $0x22c] sm:$0xf]
    %v2944 = vld [vmem:[%s12 + $0x230] sm:$0xff]
    %v2945 = vld [vmem:[%s12 + $0x238] sm:$0xff]
    %v2946 = vld [vmem:[%s12 + $0x240] sm:$0xff]
    %v2947 = vld [vmem:[%s12 + $0x248] sm:$0xf]
    %v2948 = vld [vmem:[%s12 + $0x24c] sm:$0xff]
    %v2949 = vld [vmem:[%s12 + $0x254] sm:$0xff]
    %v2950 = vld [vmem:[%s12 + $0x25c] sm:$0xff]
    %v2951 = vld [vmem:[%s12 + $0x264] sm:$0xf]
    %v2952 = vld [vmem:[%s12 + $0x268] sm:$0xff]
    %v2953 = vld [vmem:[%s12 + $0x270] sm:$0xff]
    %v2954 = vld [vmem:[%s12 + $0x278] sm:$0xff]
    %v2955 = vld [vmem:[%s12 + $0x280] sm:$0xf]
    %v2956 = vld [vmem:[%s12 + $0x284] sm:$0xff]
    %v2957 = vld [vmem:[%s12 + $0x28c] sm:$0xff]
    %v2958 = vld [vmem:[%s12 + $0x294] sm:$0xff]
    %v2959 = vld [vmem:[%s12 + $0x29c] sm:$0xf]
    %v2960 = vld [vmem:[%s12 + $0x2a0] sm:$0xff]
    %v2961 = vld [vmem:[%s12 + $0x2a8] sm:$0xff]
    %v2962 = vld [vmem:[%s12 + $0x2b0] sm:$0xff]
    %v2963 = vld [vmem:[%s12 + $0x2b8] sm:$0xf]
    %v2964 = vld [vmem:[%s12 + $0x2bc] sm:$0xff]
    %v2965 = vld [vmem:[%s12 + $0x2c4] sm:$0xff]
    %v2966 = vld [vmem:[%s12 + $0x2cc] sm:$0xff]
    %v2967 = vld [vmem:[%s12 + $0x2d4] sm:$0xf]
    %v2968 = vld [vmem:[%s12 + $0x2d8] sm:$0xff]
    %v2969 = vld [vmem:[%s12 + $0x2e0] sm:$0xff]
    %v2970 = vld [vmem:[%s12 + $0x2e8] sm:$0xff]
    %v2971 = vld [vmem:[%s12 + $0x2f0] sm:$0xf]
    %v2972 = vld [vmem:[%s12 + $0x2f4] sm:$0xff]
    %v2973 = vld [vmem:[%s12 + $0x2fc] sm:$0xff]
    %v2974 = vld [vmem:[%s12 + $0x304] sm:$0xff]
    %v2975 = vld [vmem:[%s12 + $0x30c] sm:$0xf]
    %v2976 = vld [vmem:[%s12 + $0x310] sm:$0xff]
    %v2977 = vld [vmem:[%s12 + $0x318] sm:$0xff]
    %v2978 = vld [vmem:[%s12 + $0x320] sm:$0xff]
    %v2979 = vld [vmem:[%s12 + $0x328] sm:$0xf]
    %v2980 = vld [vmem:[%s12 + $0x32c] sm:$0xff]
    %v2981 = vld [vmem:[%s12 + $0x334] sm:$0xff]
    %v2982 = vld [vmem:[%s12 + $0x33c] sm:$0xff]
    %v2983 = vld [vmem:[%s12 + $0x344] sm:$0xf]
    %v2984 = vld [vmem:[%s12 + $0x348] sm:$0xff]
    %v2985 = vld [vmem:[%s12 + $0x350] sm:$0xff]
    %v2986 = vld [vmem:[%s12 + $0x358] sm:$0xff]
    %v2987 = vld [vmem:[%s12 + $0x360] sm:$0xf]
    %v2988 = vld [vmem:[%s12 + $0x364] sm:$0xff]
    %v2989 = vld [vmem:[%s12 + $0x36c] sm:$0xff]
    %v2990 = vld [vmem:[%s12 + $0x374] sm:$0xff]
    %v2991 = vld [vmem:[%s12 + $0x37c] sm:$0xf]
    %v2992 = vld [vmem:[%s12 + $0x380] sm:$0xff]
    %v2993 = vld [vmem:[%s12 + $0x388] sm:$0xff]
    %v2994 = vld [vmem:[%s12 + $0x390] sm:$0xff]
    %v2995 = vld [vmem:[%s12 + $0x398] sm:$0xf]
    %v2996 = vld [vmem:[%s12 + $0x39c] sm:$0xff]
    %v2997 = vld [vmem:[%s12 + $0x3a4] sm:$0xff]
    %v2998 = vld [vmem:[%s12 + $0x3ac] sm:$0xff]
    %v2999 = vld [vmem:[%s12 + $0x3b4] sm:$0xf]
    %v3000 = vld [vmem:[%s12 + $0x3b8] sm:$0xff]
    %v3001 = vld [vmem:[%s12 + $0x3c0] sm:$0xff]
    %v3002 = vld [vmem:[%s12 + $0x3c8] sm:$0xff]
    %v3003 = vld [vmem:[%s12 + $0x3d0] sm:$0xf]
    %v3004 = vld [vmem:[%s12 + $0x3d4] sm:$0xff]
    %v3005 = vld [vmem:[%s12 + $0x3dc] sm:$0xff]
    %v3006 = vld [vmem:[%s12 + $0x3e4] sm:$0xff]
    %v3007 = vld [vmem:[%s12 + $0x3ec] sm:$0xf]
    %v3008 = vld [vmem:[%s12 + $0x3f0] sm:$0xff]
    %v3009 = vld [vmem:[%s12 + $0x3f8] sm:$0xff]
    %v3010 = vld [vmem:[%s12 + $0x400] sm:$0xff]
    %v3011 = vld [vmem:[%s12 + $0x408] sm:$0xf]
    %v3012 = vld [vmem:[%s12 + $0x40c] sm:$0xff]
    %v3013 = vld [vmem:[%s12 + $0x414] sm:$0xff]
    %v3014 = vld [vmem:[%s12 + $0x41c] sm:$0xff]
    %v3015 = vld [vmem:[%s12 + $0x424] sm:$0xf]
    %v3016 = vld [vmem:[%s12 + $0x428] sm:$0xff]
    %v3017 = vld [vmem:[%s12 + $0x430] sm:$0xff]
    %v3018 = vld [vmem:[%s12 + $0x438] sm:$0xff]
    %v3019 = vld [vmem:[%s12 + $0x440] sm:$0xf]
    %v3020 = vld [vmem:[%s12 + $0x444] sm:$0xff]
    %v3021 = vld [vmem:[%s12 + $0x44c] sm:$0xff]
    %v3022 = vld [vmem:[%s12 + $0x454] sm:$0xff]
    %v3023 = vld [vmem:[%s12 + $0x45c] sm:$0xf]
    %v3024 = vld [vmem:[%s12 + $0x460] sm:$0xff]
    %v3025 = vld [vmem:[%s12 + $0x468] sm:$0xff]
    %v3026 = vld [vmem:[%s12 + $0x470] sm:$0xff]
    %v3027 = vld [vmem:[%s12 + $0x478] sm:$0xf]
    %v3028 = vld [vmem:[%s12 + $0x47c] sm:$0xff]
    %v3029 = vld [vmem:[%s12 + $0x484] sm:$0xff]
    %v3030 = vld [vmem:[%s12 + $0x48c] sm:$0xff]
    %v3031 = vld [vmem:[%s12 + $0x494] sm:$0xf]
    %v3032 = vld [vmem:[%s12 + $0x498] sm:$0xff]
    %v3033 = vld [vmem:[%s12 + $0x4a0] sm:$0xff]
    %v3034 = vld [vmem:[%s12 + $0x4a8] sm:$0xff]
    %v3035 = vld [vmem:[%s12 + $0x4b0] sm:$0xf]
    %v3036 = vld [vmem:[%s12 + $0x4b4] sm:$0xff]
    %v3037 = vld [vmem:[%s12 + $0x4bc] sm:$0xff]
    %v3038 = vld [vmem:[%s12 + $0x4c4] sm:$0xff]
    %v3039 = vld [vmem:[%s12 + $0x4cc] sm:$0xf]
    %v3040 = vld [vmem:[%s12 + $0x4d0] sm:$0xff]
    %v3041 = vld [vmem:[%s12 + $0x4d8] sm:$0xff]
    %v3042 = vld [vmem:[%s12 + $0x4e0] sm:$0xff]
    %v3043 = vld [vmem:[%s12 + $0x4e8] sm:$0xf]
    %v3044 = vld [vmem:[%s12 + $0x4ec] sm:$0xff]
    %v3045 = vld [vmem:[%s12 + $0x4f4] sm:$0xff]
    %v3046 = vld [vmem:[%s12 + $0x4fc] sm:$0xff]
    %v3047 = vld [vmem:[%s12 + $0x504] sm:$0xf]
    %v3048 = vld [vmem:[%s12 + $0x508] sm:$0xff]
    %v3049 = vld [vmem:[%s12 + $0x510] sm:$0xff]
    %v3050 = vld [vmem:[%s12 + $0x518] sm:$0xff]
    %v3051 = vld [vmem:[%s12 + $0x520] sm:$0xf]
    %v3052 = vld [vmem:[%s12 + $0x524] sm:$0xff]
    %v3053 = vld [vmem:[%s12 + $0x52c] sm:$0xff]
    %v3054 = vld [vmem:[%s12 + $0x534] sm:$0xff]
    %v3055 = vld [vmem:[%s12 + $0x53c] sm:$0xf]
    %v3056 = vld [vmem:[%s12 + $0x540] sm:$0xff]
    %v3057 = vld [vmem:[%s12 + $0x548] sm:$0xff]
    %v3058 = vld [vmem:[%s12 + $0x550] sm:$0xff]
    %v3059 = vld [vmem:[%s12 + $0x558] sm:$0xf]
    %v3060 = vld [vmem:[%s12 + $0x55c] sm:$0xff]
    %v3061 = vld [vmem:[%s12 + $0x564] sm:$0xff]
    %v3062 = vld [vmem:[%s12 + $0x56c] sm:$0xff]
    %v3063 = vld [vmem:[%s12 + $0x574] sm:$0xf]
    %v3064 = vld [vmem:[%s12 + $0x578] sm:$0xff]
    %v3065 = vld [vmem:[%s12 + $0x580] sm:$0xff]
    %v3066 = vld [vmem:[%s12 + $0x588] sm:$0xff]
    %v3067 = vld [vmem:[%s12 + $0x590] sm:$0xf]
    %v3068 = vld [vmem:[%s12 + $0x594] sm:$0xff]
    %v3069 = vld [vmem:[%s12 + $0x59c] sm:$0xff]
    %v3070 = vld [vmem:[%s12 + $0x5a4] sm:$0xff]
    %v3071 = vld [vmem:[%s12 + $0x5ac] sm:$0xf]
    %v3072 = vld [vmem:[%s12 + $0x5b0] sm:$0xff]
    %v3073 = vld [vmem:[%s12 + $0x5b8] sm:$0xff]
    %v3074 = vld [vmem:[%s12 + $0x5c0] sm:$0xff]
    %v3075 = vld [vmem:[%s12 + $0x5c8] sm:$0xf]
    %v3076 = vld [vmem:[%s12 + $0x5cc] sm:$0xff]
    %v3077 = vld [vmem:[%s12 + $0x5d4] sm:$0xff]
    %v3078 = vld [vmem:[%s12 + $0x5dc] sm:$0xff]
    %v3079 = vld [vmem:[%s12 + $0x5e4] sm:$0xf]
    %v3080 = vld [vmem:[%s12 + $0x5e8] sm:$0xff]
    %v3081 = vld [vmem:[%s12 + $0x5f0] sm:$0xff]
    %v3082 = vld [vmem:[%s12 + $0x5f8] sm:$0xff]
    %v3083 = vld [vmem:[%s12 + $0x600] sm:$0xf]
    %v3084 = vld [vmem:[%s12 + $0x604] sm:$0xff]
    %v3085 = vld [vmem:[%s12 + $0x60c] sm:$0xff]
    %v3086 = vld [vmem:[%s12 + $0x614] sm:$0xff]
    %v3087 = vld [vmem:[%s12 + $0x61c] sm:$0xf]
    %v3088 = vld [vmem:[%s12 + $0x620] sm:$0xff]
    %v3089 = vld [vmem:[%s12 + $0x628] sm:$0xff]
    %v3090 = vld [vmem:[%s12 + $0x630] sm:$0xff]
    %v3091 = vld [vmem:[%s12 + $0x638] sm:$0xf]
    %v3092 = vld [vmem:[%s12 + $0x63c] sm:$0xff]
    %v3093 = vld [vmem:[%s12 + $0x644] sm:$0xff]
    %v3094 = vld [vmem:[%s12 + $0x64c] sm:$0xff]
    %v3095 = vld [vmem:[%s12 + $0x654] sm:$0xf]
    %v3096 = vld [vmem:[%s12 + $0x658] sm:$0xff]
    %v3097 = vld [vmem:[%s12 + $0x660] sm:$0xff]
    %v3098 = vld [vmem:[%s12 + $0x668] sm:$0xff]
    %v3099 = vld [vmem:[%s12 + $0x670] sm:$0xf]
    %v3100 = vld [vmem:[%s12 + $0x674] sm:$0xff]
    %v3101 = vld [vmem:[%s12 + $0x67c] sm:$0xff]
    %v3102 = vld [vmem:[%s12 + $0x684] sm:$0xff]
    %v3103 = vld [vmem:[%s12 + $0x68c] sm:$0xf]
    %v3104 = vld [vmem:[%s12 + $0x690] sm:$0xff]
    %v3105 = vld [vmem:[%s12 + $0x698] sm:$0xff]
    %v3106 = vld [vmem:[%s12 + $0x6a0] sm:$0xff]
    %v3107 = vld [vmem:[%s12 + $0x6a8] sm:$0xf]
    %v3108 = vld [vmem:[%s12 + $0x6ac] sm:$0xff]
    %v3109 = vld [vmem:[%s12 + $0x6b4] sm:$0xff]
    %v3110 = vld [vmem:[%s12 + $0x6bc] sm:$0xff]
    %v3111 = vld [vmem:[%s12 + $0x6c4] sm:$0xf]
    %v3112 = vld [vmem:[%s12 + $0x6c8] sm:$0xff]
    %v3113 = vld [vmem:[%s12 + $0x6d0] sm:$0xff]
    %v3114 = vld [vmem:[%s12 + $0x6d8] sm:$0xff]
    %v3115 = vld [vmem:[%s12 + $0x6e0] sm:$0xf]
    %v3116 = vld [vmem:[%s12 + $0x6e4] sm:$0xff]
    %v3117 = vld [vmem:[%s12 + $0x6ec] sm:$0xff]
    %v3118 = vld [vmem:[%s12 + $0x6f4] sm:$0xff]
    %v3119 = vld [vmem:[%s12 + $0x6fc] sm:$0xf]
    %v3120 = vld [vmem:[%s13] sm:$0x7f]
    %v3122 = vperm.slane %v3120, 0
    %v3123 = vperm.slane %v3120, 1
    %v3124 = vperm.slane %v3120, 2
    %v3125 = vperm.slane %v3120, 3
    %v3126 = vperm.slane %v3120, 4
    %v3127 = vperm.slane %v3120, 5
    %v3128 = vperm.slane %v3120, 6
    %v3392 = vunpack.c.l.b16 %v2864
    %v3393 = vunpack.c.h.b16 %v2864
    %v3394 = vunpack.c.l.b16 %v2865
    %v3395 = vunpack.c.h.b16 %v2865
    %v3396 = vunpack.c.l.b16 %v2866
    %v3397 = vunpack.c.h.b16 %v2866
    %v3398 = vunpack.c.l.b16 %v2867
    %v3399 = vunpack.c.l.b16 %v2868
    %v3400 = vunpack.c.h.b16 %v2868
    %v3401 = vunpack.c.l.b16 %v2869
    %v3402 = vunpack.c.h.b16 %v2869
    %v3403 = vunpack.c.l.b16 %v2870
    %v3404 = vunpack.c.h.b16 %v2870
    %v3405 = vunpack.c.l.b16 %v2871
    %v3406 = vunpack.c.l.b16 %v2872
    %v3407 = vunpack.c.h.b16 %v2872
    %v3408 = vunpack.c.l.b16 %v2873
    %v3409 = vunpack.c.h.b16 %v2873
    %v3410 = vunpack.c.l.b16 %v2874
    %v3411 = vunpack.c.h.b16 %v2874
    %v3412 = vunpack.c.l.b16 %v2875
    %v3413 = vunpack.c.l.b16 %v2876
    %v3414 = vunpack.c.h.b16 %v2876
    %v3415 = vunpack.c.l.b16 %v2877
    %v3416 = vunpack.c.h.b16 %v2877
    %v3417 = vunpack.c.l.b16 %v2878
    %v3418 = vunpack.c.h.b16 %v2878
    %v3419 = vunpack.c.l.b16 %v2879
    %v3420 = vunpack.c.l.b16 %v2880
    %v3421 = vunpack.c.h.b16 %v2880
    %v3422 = vunpack.c.l.b16 %v2881
    %v3423 = vunpack.c.h.b16 %v2881
    %v3424 = vunpack.c.l.b16 %v2882
    %v3425 = vunpack.c.h.b16 %v2882
    %v3426 = vunpack.c.l.b16 %v2883
    %v3427 = vunpack.c.l.b16 %v2884
    %v3428 = vunpack.c.h.b16 %v2884
    %v3429 = vunpack.c.l.b16 %v2885
    %v3430 = vunpack.c.h.b16 %v2885
    %v3431 = vunpack.c.l.b16 %v2886
    %v3432 = vunpack.c.h.b16 %v2886
    %v3433 = vunpack.c.l.b16 %v2887
    %v3434 = vunpack.c.l.b16 %v2888
    %v3435 = vunpack.c.h.b16 %v2888
    %v3436 = vunpack.c.l.b16 %v2889
    %v3437 = vunpack.c.h.b16 %v2889
    %v3438 = vunpack.c.l.b16 %v2890
    %v3439 = vunpack.c.h.b16 %v2890
    %v3440 = vunpack.c.l.b16 %v2891
    %v3441 = vunpack.c.l.b16 %v2892
    %v3442 = vunpack.c.h.b16 %v2892
    %v3443 = vunpack.c.l.b16 %v2893
    %v3444 = vunpack.c.h.b16 %v2893
    %v3445 = vunpack.c.l.b16 %v2894
    %v3446 = vunpack.c.h.b16 %v2894
    %v3447 = vunpack.c.l.b16 %v2895
    %v3448 = vunpack.c.l.b16 %v2896
    %v3449 = vunpack.c.h.b16 %v2896
    %v3450 = vunpack.c.l.b16 %v2897
    %v3451 = vunpack.c.h.b16 %v2897
    %v3452 = vunpack.c.l.b16 %v2898
    %v3453 = vunpack.c.h.b16 %v2898
    %v3454 = vunpack.c.l.b16 %v2899
    %v3455 = vunpack.c.l.b16 %v2900
    %v3456 = vunpack.c.h.b16 %v2900
    %v3457 = vunpack.c.l.b16 %v2901
    %v3458 = vunpack.c.h.b16 %v2901
    %v3459 = vunpack.c.l.b16 %v2902
    %v3460 = vunpack.c.h.b16 %v2902
    %v3461 = vunpack.c.l.b16 %v2903
    %v3462 = vunpack.c.l.b16 %v2904
    %v3463 = vunpack.c.h.b16 %v2904
    %v3464 = vunpack.c.l.b16 %v2905
    %v3465 = vunpack.c.h.b16 %v2905
    %v3466 = vunpack.c.l.b16 %v2906
    %v3467 = vunpack.c.h.b16 %v2906
    %v3468 = vunpack.c.l.b16 %v2907
    %v3469 = vunpack.c.l.b16 %v2908
    %v3470 = vunpack.c.h.b16 %v2908
    %v3471 = vunpack.c.l.b16 %v2909
    %v3472 = vunpack.c.h.b16 %v2909
    %v3473 = vunpack.c.l.b16 %v2910
    %v3474 = vunpack.c.h.b16 %v2910
    %v3475 = vunpack.c.l.b16 %v2911
    %v3476 = vunpack.c.l.b16 %v2912
    %v3477 = vunpack.c.h.b16 %v2912
    %v3478 = vunpack.c.l.b16 %v2913
    %v3479 = vunpack.c.h.b16 %v2913
    %v3480 = vunpack.c.l.b16 %v2914
    %v3481 = vunpack.c.h.b16 %v2914
    %v3482 = vunpack.c.l.b16 %v2915
    %v3483 = vunpack.c.l.b16 %v2916
    %v3484 = vunpack.c.h.b16 %v2916
    %v3485 = vunpack.c.l.b16 %v2917
    %v3486 = vunpack.c.h.b16 %v2917
    %v3487 = vunpack.c.l.b16 %v2918
    %v3488 = vunpack.c.h.b16 %v2918
    %v3489 = vunpack.c.l.b16 %v2919
    %v3490 = vunpack.c.l.b16 %v2920
    %v3491 = vunpack.c.h.b16 %v2920
    %v3492 = vunpack.c.l.b16 %v2921
    %v3493 = vunpack.c.h.b16 %v2921
    %v3494 = vunpack.c.l.b16 %v2922
    %v3495 = vunpack.c.h.b16 %v2922
    %v3496 = vunpack.c.l.b16 %v2923
    %v3497 = vunpack.c.l.b16 %v2924
    %v3498 = vunpack.c.h.b16 %v2924
    %v3499 = vunpack.c.l.b16 %v2925
    %v3500 = vunpack.c.h.b16 %v2925
    %v3501 = vunpack.c.l.b16 %v2926
    %v3502 = vunpack.c.h.b16 %v2926
    %v3503 = vunpack.c.l.b16 %v2927
    %v3504 = vunpack.c.l.b16 %v2928
    %v3505 = vunpack.c.h.b16 %v2928
    %v3506 = vunpack.c.l.b16 %v2929
    %v3507 = vunpack.c.h.b16 %v2929
    %v3508 = vunpack.c.l.b16 %v2930
    %v3509 = vunpack.c.h.b16 %v2930
    %v3510 = vunpack.c.l.b16 %v2931
    %v3511 = vunpack.c.l.b16 %v2932
    %v3512 = vunpack.c.h.b16 %v2932
    %v3513 = vunpack.c.l.b16 %v2933
    %v3514 = vunpack.c.h.b16 %v2933
    %v3515 = vunpack.c.l.b16 %v2934
    %v3516 = vunpack.c.h.b16 %v2934
    %v3517 = vunpack.c.l.b16 %v2935
    %v3518 = vunpack.c.l.b16 %v2936
    %v3519 = vunpack.c.h.b16 %v2936
    %v3520 = vunpack.c.l.b16 %v2937
    %v3521 = vunpack.c.h.b16 %v2937
    %v3522 = vunpack.c.l.b16 %v2938
    %v3523 = vunpack.c.h.b16 %v2938
    %v3524 = vunpack.c.l.b16 %v2939
    %v3525 = vunpack.c.l.b16 %v2940
    %v3526 = vunpack.c.h.b16 %v2940
    %v3527 = vunpack.c.l.b16 %v2941
    %v3528 = vunpack.c.h.b16 %v2941
    %v3529 = vunpack.c.l.b16 %v2942
    %v3530 = vunpack.c.h.b16 %v2942
    %v3531 = vunpack.c.l.b16 %v2943
    %v3532 = vunpack.c.l.b16 %v2944
    %v3533 = vunpack.c.h.b16 %v2944
    %v3534 = vunpack.c.l.b16 %v2945
    %v3535 = vunpack.c.h.b16 %v2945
    %v3536 = vunpack.c.l.b16 %v2946
    %v3537 = vunpack.c.h.b16 %v2946
    %v3538 = vunpack.c.l.b16 %v2947
    %v3539 = vunpack.c.l.b16 %v2948
    %v3540 = vunpack.c.h.b16 %v2948
    %v3541 = vunpack.c.l.b16 %v2949
    %v3542 = vunpack.c.h.b16 %v2949
    %v3543 = vunpack.c.l.b16 %v2950
    %v3544 = vunpack.c.h.b16 %v2950
    %v3545 = vunpack.c.l.b16 %v2951
    %v3546 = vunpack.c.l.b16 %v2952
    %v3547 = vunpack.c.h.b16 %v2952
    %v3548 = vunpack.c.l.b16 %v2953
    %v3549 = vunpack.c.h.b16 %v2953
    %v3550 = vunpack.c.l.b16 %v2954
    %v3551 = vunpack.c.h.b16 %v2954
    %v3552 = vunpack.c.l.b16 %v2955
    %v3553 = vunpack.c.l.b16 %v2956
    %v3554 = vunpack.c.h.b16 %v2956
    %v3555 = vunpack.c.l.b16 %v2957
    %v3556 = vunpack.c.h.b16 %v2957
    %v3557 = vunpack.c.l.b16 %v2958
    %v3558 = vunpack.c.h.b16 %v2958
    %v3559 = vunpack.c.l.b16 %v2959
    %v3560 = vunpack.c.l.b16 %v2960
    %v3561 = vunpack.c.h.b16 %v2960
    %v3562 = vunpack.c.l.b16 %v2961
    %v3563 = vunpack.c.h.b16 %v2961
    %v3564 = vunpack.c.l.b16 %v2962
    %v3565 = vunpack.c.h.b16 %v2962
    %v3566 = vunpack.c.l.b16 %v2963
    %v3567 = vunpack.c.l.b16 %v2964
    %v3568 = vunpack.c.h.b16 %v2964
    %v3569 = vunpack.c.l.b16 %v2965
    %v3570 = vunpack.c.h.b16 %v2965
    %v3571 = vunpack.c.l.b16 %v2966
    %v3572 = vunpack.c.h.b16 %v2966
    %v3573 = vunpack.c.l.b16 %v2967
    %v3574 = vunpack.c.l.b16 %v2968
    %v3575 = vunpack.c.h.b16 %v2968
    %v3576 = vunpack.c.l.b16 %v2969
    %v3577 = vunpack.c.h.b16 %v2969
    %v3578 = vunpack.c.l.b16 %v2970
    %v3579 = vunpack.c.h.b16 %v2970
    %v3580 = vunpack.c.l.b16 %v2971
    %v3581 = vunpack.c.l.b16 %v2972
    %v3582 = vunpack.c.h.b16 %v2972
    %v3583 = vunpack.c.l.b16 %v2973
    %v3584 = vunpack.c.h.b16 %v2973
    %v3585 = vunpack.c.l.b16 %v2974
    %v3586 = vunpack.c.h.b16 %v2974
    %v3587 = vunpack.c.l.b16 %v2975
    %v3588 = vunpack.c.l.b16 %v2976
    %v3589 = vunpack.c.h.b16 %v2976
    %v3590 = vunpack.c.l.b16 %v2977
    %v3591 = vunpack.c.h.b16 %v2977
    %v3592 = vunpack.c.l.b16 %v2978
    %v3593 = vunpack.c.h.b16 %v2978
    %v3594 = vunpack.c.l.b16 %v2979
    %v3595 = vunpack.c.l.b16 %v2980
    %v3596 = vunpack.c.h.b16 %v2980
    %v3597 = vunpack.c.l.b16 %v2981
    %v3598 = vunpack.c.h.b16 %v2981
    %v3599 = vunpack.c.l.b16 %v2982
    %v3600 = vunpack.c.h.b16 %v2982
    %v3601 = vunpack.c.l.b16 %v2983
    %v3602 = vunpack.c.l.b16 %v2984
    %v3603 = vunpack.c.h.b16 %v2984
    %v3604 = vunpack.c.l.b16 %v2985
    %v3605 = vunpack.c.h.b16 %v2985
    %v3606 = vunpack.c.l.b16 %v2986
    %v3607 = vunpack.c.h.b16 %v2986
    %v3608 = vunpack.c.l.b16 %v2987
    %v3609 = vunpack.c.l.b16 %v2988
    %v3610 = vunpack.c.h.b16 %v2988
    %v3611 = vunpack.c.l.b16 %v2989
    %v3612 = vunpack.c.h.b16 %v2989
    %v3613 = vunpack.c.l.b16 %v2990
    %v3614 = vunpack.c.h.b16 %v2990
    %v3615 = vunpack.c.l.b16 %v2991
    %v3616 = vunpack.c.l.b16 %v2992
    %v3617 = vunpack.c.h.b16 %v2992
    %v3618 = vunpack.c.l.b16 %v2993
    %v3619 = vunpack.c.h.b16 %v2993
    %v3620 = vunpack.c.l.b16 %v2994
    %v3621 = vunpack.c.h.b16 %v2994
    %v3622 = vunpack.c.l.b16 %v2995
    %v3623 = vunpack.c.l.b16 %v2996
    %v3624 = vunpack.c.h.b16 %v2996
    %v3625 = vunpack.c.l.b16 %v2997
    %v3626 = vunpack.c.h.b16 %v2997
    %v3627 = vunpack.c.l.b16 %v2998
    %v3628 = vunpack.c.h.b16 %v2998
    %v3629 = vunpack.c.l.b16 %v2999
    %v3630 = vunpack.c.l.b16 %v3000
    %v3631 = vunpack.c.h.b16 %v3000
    %v3632 = vunpack.c.l.b16 %v3001
    %v3633 = vunpack.c.h.b16 %v3001
    %v3634 = vunpack.c.l.b16 %v3002
    %v3635 = vunpack.c.h.b16 %v3002
    %v3636 = vunpack.c.l.b16 %v3003
    %v3637 = vunpack.c.l.b16 %v3004
    %v3638 = vunpack.c.h.b16 %v3004
    %v3639 = vunpack.c.l.b16 %v3005
    %v3640 = vunpack.c.h.b16 %v3005
    %v3641 = vunpack.c.l.b16 %v3006
    %v3642 = vunpack.c.h.b16 %v3006
    %v3643 = vunpack.c.l.b16 %v3007
    %v3644 = vunpack.c.l.b16 %v3008
    %v3645 = vunpack.c.h.b16 %v3008
    %v3646 = vunpack.c.l.b16 %v3009
    %v3647 = vunpack.c.h.b16 %v3009
    %v3648 = vunpack.c.l.b16 %v3010
    %v3649 = vunpack.c.h.b16 %v3010
    %v3650 = vunpack.c.l.b16 %v3011
    %v3651 = vunpack.c.l.b16 %v3012
    %v3652 = vunpack.c.h.b16 %v3012
    %v3653 = vunpack.c.l.b16 %v3013
    %v3654 = vunpack.c.h.b16 %v3013
    %v3655 = vunpack.c.l.b16 %v3014
    %v3656 = vunpack.c.h.b16 %v3014
    %v3657 = vunpack.c.l.b16 %v3015
    %v3658 = vunpack.c.l.b16 %v3016
    %v3659 = vunpack.c.h.b16 %v3016
    %v3660 = vunpack.c.l.b16 %v3017
    %v3661 = vunpack.c.h.b16 %v3017
    %v3662 = vunpack.c.l.b16 %v3018
    %v3663 = vunpack.c.h.b16 %v3018
    %v3664 = vunpack.c.l.b16 %v3019
    %v3665 = vunpack.c.l.b16 %v3020
    %v3666 = vunpack.c.h.b16 %v3020
    %v3667 = vunpack.c.l.b16 %v3021
    %v3668 = vunpack.c.h.b16 %v3021
    %v3669 = vunpack.c.l.b16 %v3022
    %v3670 = vunpack.c.h.b16 %v3022
    %v3671 = vunpack.c.l.b16 %v3023
    %v3672 = vunpack.c.l.b16 %v3024
    %v3673 = vunpack.c.h.b16 %v3024
    %v3674 = vunpack.c.l.b16 %v3025
    %v3675 = vunpack.c.h.b16 %v3025
    %v3676 = vunpack.c.l.b16 %v3026
    %v3677 = vunpack.c.h.b16 %v3026
    %v3678 = vunpack.c.l.b16 %v3027
    %v3679 = vunpack.c.l.b16 %v3028
    %v3680 = vunpack.c.h.b16 %v3028
    %v3681 = vunpack.c.l.b16 %v3029
    %v3682 = vunpack.c.h.b16 %v3029
    %v3683 = vunpack.c.l.b16 %v3030
    %v3684 = vunpack.c.h.b16 %v3030
    %v3685 = vunpack.c.l.b16 %v3031
    %v3686 = vunpack.c.l.b16 %v3032
    %v3687 = vunpack.c.h.b16 %v3032
    %v3688 = vunpack.c.l.b16 %v3033
    %v3689 = vunpack.c.h.b16 %v3033
    %v3690 = vunpack.c.l.b16 %v3034
    %v3691 = vunpack.c.h.b16 %v3034
    %v3692 = vunpack.c.l.b16 %v3035
    %v3693 = vunpack.c.l.b16 %v3036
    %v3694 = vunpack.c.h.b16 %v3036
    %v3695 = vunpack.c.l.b16 %v3037
    %v3696 = vunpack.c.h.b16 %v3037
    %v3697 = vunpack.c.l.b16 %v3038
    %v3698 = vunpack.c.h.b16 %v3038
    %v3699 = vunpack.c.l.b16 %v3039
    %v3700 = vunpack.c.l.b16 %v3040
    %v3701 = vunpack.c.h.b16 %v3040
    %v3702 = vunpack.c.l.b16 %v3041
    %v3703 = vunpack.c.h.b16 %v3041
    %v3704 = vunpack.c.l.b16 %v3042
    %v3705 = vunpack.c.h.b16 %v3042
    %v3706 = vunpack.c.l.b16 %v3043
    %v3707 = vunpack.c.l.b16 %v3044
    %v3708 = vunpack.c.h.b16 %v3044
    %v3709 = vunpack.c.l.b16 %v3045
    %v3710 = vunpack.c.h.b16 %v3045
    %v3711 = vunpack.c.l.b16 %v3046
    %v3712 = vunpack.c.h.b16 %v3046
    %v3713 = vunpack.c.l.b16 %v3047
    %v3714 = vunpack.c.l.b16 %v3048
    %v3715 = vunpack.c.h.b16 %v3048
    %v3716 = vunpack.c.l.b16 %v3049
    %v3717 = vunpack.c.h.b16 %v3049
    %v3718 = vunpack.c.l.b16 %v3050
    %v3719 = vunpack.c.h.b16 %v3050
    %v3720 = vunpack.c.l.b16 %v3051
    %v3721 = vunpack.c.l.b16 %v3052
    %v3722 = vunpack.c.h.b16 %v3052
    %v3723 = vunpack.c.l.b16 %v3053
    %v3724 = vunpack.c.h.b16 %v3053
    %v3725 = vunpack.c.l.b16 %v3054
    %v3726 = vunpack.c.h.b16 %v3054
    %v3727 = vunpack.c.l.b16 %v3055
    %v3728 = vunpack.c.l.b16 %v3056
    %v3729 = vunpack.c.h.b16 %v3056
    %v3730 = vunpack.c.l.b16 %v3057
    %v3731 = vunpack.c.h.b16 %v3057
    %v3732 = vunpack.c.l.b16 %v3058
    %v3733 = vunpack.c.h.b16 %v3058
    %v3734 = vunpack.c.l.b16 %v3059
    %v3735 = vunpack.c.l.b16 %v3060
    %v3736 = vunpack.c.h.b16 %v3060
    %v3737 = vunpack.c.l.b16 %v3061
    %v3738 = vunpack.c.h.b16 %v3061
    %v3739 = vunpack.c.l.b16 %v3062
    %v3740 = vunpack.c.h.b16 %v3062
    %v3741 = vunpack.c.l.b16 %v3063
    %v3742 = vunpack.c.l.b16 %v3064
    %v3743 = vunpack.c.h.b16 %v3064
    %v3744 = vunpack.c.l.b16 %v3065
    %v3745 = vunpack.c.h.b16 %v3065
    %v3746 = vunpack.c.l.b16 %v3066
    %v3747 = vunpack.c.h.b16 %v3066
    %v3748 = vunpack.c.l.b16 %v3067
    %v3749 = vunpack.c.l.b16 %v3068
    %v3750 = vunpack.c.h.b16 %v3068
    %v3751 = vunpack.c.l.b16 %v3069
    %v3752 = vunpack.c.h.b16 %v3069
    %v3753 = vunpack.c.l.b16 %v3070
    %v3754 = vunpack.c.h.b16 %v3070
    %v3755 = vunpack.c.l.b16 %v3071
    %v3756 = vunpack.c.l.b16 %v3072
    %v3757 = vunpack.c.h.b16 %v3072
    %v3758 = vunpack.c.l.b16 %v3073
    %v3759 = vunpack.c.h.b16 %v3073
    %v3760 = vunpack.c.l.b16 %v3074
    %v3761 = vunpack.c.h.b16 %v3074
    %v3762 = vunpack.c.l.b16 %v3075
    %v3763 = vunpack.c.l.b16 %v3076
    %v3764 = vunpack.c.h.b16 %v3076
    %v3765 = vunpack.c.l.b16 %v3077
    %v3766 = vunpack.c.h.b16 %v3077
    %v3767 = vunpack.c.l.b16 %v3078
    %v3768 = vunpack.c.h.b16 %v3078
    %v3769 = vunpack.c.l.b16 %v3079
    %v3770 = vunpack.c.l.b16 %v3080
    %v3771 = vunpack.c.h.b16 %v3080
    %v3772 = vunpack.c.l.b16 %v3081
    %v3773 = vunpack.c.h.b16 %v3081
    %v3774 = vunpack.c.l.b16 %v3082
    %v3775 = vunpack.c.h.b16 %v3082
    %v3776 = vunpack.c.l.b16 %v3083
    %v3777 = vunpack.c.l.b16 %v3084
    %v3778 = vunpack.c.h.b16 %v3084
    %v3779 = vunpack.c.l.b16 %v3085
    %v3780 = vunpack.c.h.b16 %v3085
    %v3781 = vunpack.c.l.b16 %v3086
    %v3782 = vunpack.c.h.b16 %v3086
    %v3783 = vunpack.c.l.b16 %v3087
    %v3784 = vunpack.c.l.b16 %v3088
    %v3785 = vunpack.c.h.b16 %v3088
    %v3786 = vunpack.c.l.b16 %v3089
    %v3787 = vunpack.c.h.b16 %v3089
    %v3788 = vunpack.c.l.b16 %v3090
    %v3789 = vunpack.c.h.b16 %v3090
    %v3790 = vunpack.c.l.b16 %v3091
    %v3791 = vunpack.c.l.b16 %v3092
    %v3792 = vunpack.c.h.b16 %v3092
    %v3793 = vunpack.c.l.b16 %v3093
    %v3794 = vunpack.c.h.b16 %v3093
    %v3795 = vunpack.c.l.b16 %v3094
    %v3796 = vunpack.c.h.b16 %v3094
    %v3797 = vunpack.c.l.b16 %v3095
    %v3798 = vunpack.c.l.b16 %v3096
    %v3799 = vunpack.c.h.b16 %v3096
    %v3800 = vunpack.c.l.b16 %v3097
    %v3801 = vunpack.c.h.b16 %v3097
    %v3802 = vunpack.c.l.b16 %v3098
    %v3803 = vunpack.c.h.b16 %v3098
    %v3804 = vunpack.c.l.b16 %v3099
    %v3805 = vunpack.c.l.b16 %v3100
    %v3806 = vunpack.c.h.b16 %v3100
    %v3807 = vunpack.c.l.b16 %v3101
    %v3808 = vunpack.c.h.b16 %v3101
    %v3809 = vunpack.c.l.b16 %v3102
    %v3810 = vunpack.c.h.b16 %v3102
    %v3811 = vunpack.c.l.b16 %v3103
    %v3812 = vunpack.c.l.b16 %v3104
    %v3813 = vunpack.c.h.b16 %v3104
    %v3814 = vunpack.c.l.b16 %v3105
    %v3815 = vunpack.c.h.b16 %v3105
    %v3816 = vunpack.c.l.b16 %v3106
    %v3817 = vunpack.c.h.b16 %v3106
    %v3818 = vunpack.c.l.b16 %v3107
    %v3819 = vunpack.c.l.b16 %v3108
    %v3820 = vunpack.c.h.b16 %v3108
    %v3821 = vunpack.c.l.b16 %v3109
    %v3822 = vunpack.c.h.b16 %v3109
    %v3823 = vunpack.c.l.b16 %v3110
    %v3824 = vunpack.c.h.b16 %v3110
    %v3825 = vunpack.c.l.b16 %v3111
    %v3826 = vunpack.c.l.b16 %v3112
    %v3827 = vunpack.c.h.b16 %v3112
    %v3828 = vunpack.c.l.b16 %v3113
    %v3829 = vunpack.c.h.b16 %v3113
    %v3830 = vunpack.c.l.b16 %v3114
    %v3831 = vunpack.c.h.b16 %v3114
    %v3832 = vunpack.c.l.b16 %v3115
    %v3833 = vunpack.c.l.b16 %v3116
    %v3834 = vunpack.c.h.b16 %v3116
    %v3835 = vunpack.c.l.b16 %v3117
    %v3836 = vunpack.c.h.b16 %v3117
    %v3837 = vunpack.c.l.b16 %v3118
    %v3838 = vunpack.c.h.b16 %v3118
    %v3839 = vunpack.c.l.b16 %v3119
    %v3840 = vpack.c.b16 %v3399, %v3392
    %v3841 = vpack.c.b16 %v3400, %v3393
    %v3842 = vpack.c.b16 %v3401, %v3394
    %v3843 = vpack.c.b16 %v3402, %v3395
    %v3844 = vpack.c.b16 %v3403, %v3396
    %v3845 = vpack.c.b16 %v3404, %v3397
    %v3846 = vpack.c.b16 %v3405, %v3398
    %v3847 = vpack.c.b16 %v3413, %v3406
    %v3848 = vpack.c.b16 %v3414, %v3407
    %v3849 = vpack.c.b16 %v3415, %v3408
    %v3850 = vpack.c.b16 %v3416, %v3409
    %v3851 = vpack.c.b16 %v3417, %v3410
    %v3852 = vpack.c.b16 %v3418, %v3411
    %v3853 = vpack.c.b16 %v3419, %v3412
    %v3854 = vpack.c.b16 %v3427, %v3420
    %v3855 = vpack.c.b16 %v3428, %v3421
    %v3856 = vpack.c.b16 %v3429, %v3422
    %v3857 = vpack.c.b16 %v3430, %v3423
    %v3858 = vpack.c.b16 %v3431, %v3424
    %v3859 = vpack.c.b16 %v3432, %v3425
    %v3860 = vpack.c.b16 %v3433, %v3426
    %v3861 = vpack.c.b16 %v3441, %v3434
    %v3862 = vpack.c.b16 %v3442, %v3435
    %v3863 = vpack.c.b16 %v3443, %v3436
    %v3864 = vpack.c.b16 %v3444, %v3437
    %v3865 = vpack.c.b16 %v3445, %v3438
    %v3866 = vpack.c.b16 %v3446, %v3439
    %v3867 = vpack.c.b16 %v3447, %v3440
    %v3868 = vpack.c.b16 %v3455, %v3448
    %v3869 = vpack.c.b16 %v3456, %v3449
    %v3870 = vpack.c.b16 %v3457, %v3450
    %v3871 = vpack.c.b16 %v3458, %v3451
    %v3872 = vpack.c.b16 %v3459, %v3452
    %v3873 = vpack.c.b16 %v3460, %v3453
    %v3874 = vpack.c.b16 %v3461, %v3454
    %v3875 = vpack.c.b16 %v3469, %v3462
    %v3876 = vpack.c.b16 %v3470, %v3463
    %v3877 = vpack.c.b16 %v3471, %v3464
    %v3878 = vpack.c.b16 %v3472, %v3465
    %v3879 = vpack.c.b16 %v3473, %v3466
    %v3880 = vpack.c.b16 %v3474, %v3467
    %v3881 = vpack.c.b16 %v3475, %v3468
    %v3882 = vpack.c.b16 %v3483, %v3476
    %v3883 = vpack.c.b16 %v3484, %v3477
    %v3884 = vpack.c.b16 %v3485, %v3478
    %v3885 = vpack.c.b16 %v3486, %v3479
    %v3886 = vpack.c.b16 %v3487, %v3480
    %v3887 = vpack.c.b16 %v3488, %v3481
    %v3888 = vpack.c.b16 %v3489, %v3482
    %v3889 = vpack.c.b16 %v3497, %v3490
    %v3890 = vpack.c.b16 %v3498, %v3491
    %v3891 = vpack.c.b16 %v3499, %v3492
    %v3892 = vpack.c.b16 %v3500, %v3493
    %v3893 = vpack.c.b16 %v3501, %v3494
    %v3894 = vpack.c.b16 %v3502, %v3495
    %v3895 = vpack.c.b16 %v3503, %v3496
    %v3896 = vpack.c.b16 %v3511, %v3504
    %v3897 = vpack.c.b16 %v3512, %v3505
    %v3898 = vpack.c.b16 %v3513, %v3506
    %v3899 = vpack.c.b16 %v3514, %v3507
    %v3900 = vpack.c.b16 %v3515, %v3508
    %v3901 = vpack.c.b16 %v3516, %v3509
    %v3902 = vpack.c.b16 %v3517, %v3510
    %v3903 = vpack.c.b16 %v3525, %v3518
    %v3904 = vpack.c.b16 %v3526, %v3519
    %v3905 = vpack.c.b16 %v3527, %v3520
    %v3906 = vpack.c.b16 %v3528, %v3521
    %v3907 = vpack.c.b16 %v3529, %v3522
    %v3908 = vpack.c.b16 %v3530, %v3523
    %v3909 = vpack.c.b16 %v3531, %v3524
    %v3910 = vpack.c.b16 %v3539, %v3532
    %v3911 = vpack.c.b16 %v3540, %v3533
    %v3912 = vpack.c.b16 %v3541, %v3534
    %v3913 = vpack.c.b16 %v3542, %v3535
    %v3914 = vpack.c.b16 %v3543, %v3536
    %v3915 = vpack.c.b16 %v3544, %v3537
    %v3916 = vpack.c.b16 %v3545, %v3538
    %v3917 = vpack.c.b16 %v3553, %v3546
    %v3918 = vpack.c.b16 %v3554, %v3547
    %v3919 = vpack.c.b16 %v3555, %v3548
    %v3920 = vpack.c.b16 %v3556, %v3549
    %v3921 = vpack.c.b16 %v3557, %v3550
    %v3922 = vpack.c.b16 %v3558, %v3551
    %v3923 = vpack.c.b16 %v3559, %v3552
    %v3924 = vpack.c.b16 %v3567, %v3560
    %v3925 = vpack.c.b16 %v3568, %v3561
    %v3926 = vpack.c.b16 %v3569, %v3562
    %v3927 = vpack.c.b16 %v3570, %v3563
    %v3928 = vpack.c.b16 %v3571, %v3564
    %v3929 = vpack.c.b16 %v3572, %v3565
    %v3930 = vpack.c.b16 %v3573, %v3566
    %v3931 = vpack.c.b16 %v3581, %v3574
    %v3932 = vpack.c.b16 %v3582, %v3575
    %v3933 = vpack.c.b16 %v3583, %v3576
    %v3934 = vpack.c.b16 %v3584, %v3577
    %v3935 = vpack.c.b16 %v3585, %v3578
    %v3936 = vpack.c.b16 %v3586, %v3579
    %v3937 = vpack.c.b16 %v3587, %v3580
    %v3938 = vpack.c.b16 %v3595, %v3588
    %v3939 = vpack.c.b16 %v3596, %v3589
    %v3940 = vpack.c.b16 %v3597, %v3590
    %v3941 = vpack.c.b16 %v3598, %v3591
    %v3942 = vpack.c.b16 %v3599, %v3592
    %v3943 = vpack.c.b16 %v3600, %v3593
    %v3944 = vpack.c.b16 %v3601, %v3594
    %v3945 = vpack.c.b16 %v3609, %v3602
    %v3946 = vpack.c.b16 %v3610, %v3603
    %v3947 = vpack.c.b16 %v3611, %v3604
    %v3948 = vpack.c.b16 %v3612, %v3605
    %v3949 = vpack.c.b16 %v3613, %v3606
    %v3950 = vpack.c.b16 %v3614, %v3607
    %v3951 = vpack.c.b16 %v3615, %v3608
    %v3952 = vpack.c.b16 %v3623, %v3616
    %v3953 = vpack.c.b16 %v3624, %v3617
    %v3954 = vpack.c.b16 %v3625, %v3618
    %v3955 = vpack.c.b16 %v3626, %v3619
    %v3956 = vpack.c.b16 %v3627, %v3620
    %v3957 = vpack.c.b16 %v3628, %v3621
    %v3958 = vpack.c.b16 %v3629, %v3622
    %v3959 = vpack.c.b16 %v3637, %v3630
    %v3960 = vpack.c.b16 %v3638, %v3631
    %v3961 = vpack.c.b16 %v3639, %v3632
    %v3962 = vpack.c.b16 %v3640, %v3633
    %v3963 = vpack.c.b16 %v3641, %v3634
    %v3964 = vpack.c.b16 %v3642, %v3635
    %v3965 = vpack.c.b16 %v3643, %v3636
    %v3966 = vpack.c.b16 %v3651, %v3644
    %v3967 = vpack.c.b16 %v3652, %v3645
    %v3968 = vpack.c.b16 %v3653, %v3646
    %v3969 = vpack.c.b16 %v3654, %v3647
    %v3970 = vpack.c.b16 %v3655, %v3648
    %v3971 = vpack.c.b16 %v3656, %v3649
    %v3972 = vpack.c.b16 %v3657, %v3650
    %v3973 = vpack.c.b16 %v3665, %v3658
    %v3974 = vpack.c.b16 %v3666, %v3659
    %v3975 = vpack.c.b16 %v3667, %v3660
    %v3976 = vpack.c.b16 %v3668, %v3661
    %v3977 = vpack.c.b16 %v3669, %v3662
    %v3978 = vpack.c.b16 %v3670, %v3663
    %v3979 = vpack.c.b16 %v3671, %v3664
    %v3980 = vpack.c.b16 %v3679, %v3672
    %v3981 = vpack.c.b16 %v3680, %v3673
    %v3982 = vpack.c.b16 %v3681, %v3674
    %v3983 = vpack.c.b16 %v3682, %v3675
    %v3984 = vpack.c.b16 %v3683, %v3676
    %v3985 = vpack.c.b16 %v3684, %v3677
    %v3986 = vpack.c.b16 %v3685, %v3678
    %v3987 = vpack.c.b16 %v3693, %v3686
    %v3988 = vpack.c.b16 %v3694, %v3687
    %v3989 = vpack.c.b16 %v3695, %v3688
    %v3990 = vpack.c.b16 %v3696, %v3689
    %v3991 = vpack.c.b16 %v3697, %v3690
    %v3992 = vpack.c.b16 %v3698, %v3691
    %v3993 = vpack.c.b16 %v3699, %v3692
    %v3994 = vpack.c.b16 %v3707, %v3700
    %v3995 = vpack.c.b16 %v3708, %v3701
    %v3996 = vpack.c.b16 %v3709, %v3702
    %v3997 = vpack.c.b16 %v3710, %v3703
    %v3998 = vpack.c.b16 %v3711, %v3704
    %v3999 = vpack.c.b16 %v3712, %v3705
    %v4000 = vpack.c.b16 %v3713, %v3706
    %v4001 = vpack.c.b16 %v3721, %v3714
    %v4002 = vpack.c.b16 %v3722, %v3715
    %v4003 = vpack.c.b16 %v3723, %v3716
    %v4004 = vpack.c.b16 %v3724, %v3717
    %v4005 = vpack.c.b16 %v3725, %v3718
    %v4006 = vpack.c.b16 %v3726, %v3719
    %v4007 = vpack.c.b16 %v3727, %v3720
    %v4008 = vpack.c.b16 %v3735, %v3728
    %v4009 = vpack.c.b16 %v3736, %v3729
    %v4010 = vpack.c.b16 %v3737, %v3730
    %v4011 = vpack.c.b16 %v3738, %v3731
    %v4012 = vpack.c.b16 %v3739, %v3732
    %v4013 = vpack.c.b16 %v3740, %v3733
    %v4014 = vpack.c.b16 %v3741, %v3734
    %v4015 = vpack.c.b16 %v3749, %v3742
    %v4016 = vpack.c.b16 %v3750, %v3743
    %v4017 = vpack.c.b16 %v3751, %v3744
    %v4018 = vpack.c.b16 %v3752, %v3745
    %v4019 = vpack.c.b16 %v3753, %v3746
    %v4020 = vpack.c.b16 %v3754, %v3747
    %v4021 = vpack.c.b16 %v3755, %v3748
    %v4022 = vpack.c.b16 %v3763, %v3756
    %v4023 = vpack.c.b16 %v3764, %v3757
    %v4024 = vpack.c.b16 %v3765, %v3758
    %v4025 = vpack.c.b16 %v3766, %v3759
    %v4026 = vpack.c.b16 %v3767, %v3760
    %v4027 = vpack.c.b16 %v3768, %v3761
    %v4028 = vpack.c.b16 %v3769, %v3762
    %v4029 = vpack.c.b16 %v3777, %v3770
    %v4030 = vpack.c.b16 %v3778, %v3771
    %v4031 = vpack.c.b16 %v3779, %v3772
    %v4032 = vpack.c.b16 %v3780, %v3773
    %v4033 = vpack.c.b16 %v3781, %v3774
    %v4034 = vpack.c.b16 %v3782, %v3775
    %v4035 = vpack.c.b16 %v3783, %v3776
    %v4036 = vpack.c.b16 %v3791, %v3784
    %v4037 = vpack.c.b16 %v3792, %v3785
    %v4038 = vpack.c.b16 %v3793, %v3786
    %v4039 = vpack.c.b16 %v3794, %v3787
    %v4040 = vpack.c.b16 %v3795, %v3788
    %v4041 = vpack.c.b16 %v3796, %v3789
    %v4042 = vpack.c.b16 %v3797, %v3790
    %v4043 = vpack.c.b16 %v3805, %v3798
    %v4044 = vpack.c.b16 %v3806, %v3799
    %v4045 = vpack.c.b16 %v3807, %v3800
    %v4046 = vpack.c.b16 %v3808, %v3801
    %v4047 = vpack.c.b16 %v3809, %v3802
    %v4048 = vpack.c.b16 %v3810, %v3803
    %v4049 = vpack.c.b16 %v3811, %v3804
    %v4050 = vpack.c.b16 %v3819, %v3812
    %v4051 = vpack.c.b16 %v3820, %v3813
    %v4052 = vpack.c.b16 %v3821, %v3814
    %v4053 = vpack.c.b16 %v3822, %v3815
    %v4054 = vpack.c.b16 %v3823, %v3816
    %v4055 = vpack.c.b16 %v3824, %v3817
    %v4056 = vpack.c.b16 %v3825, %v3818
    %v4057 = vpack.c.b16 %v3833, %v3826
    %v4058 = vpack.c.b16 %v3834, %v3827
    %v4059 = vpack.c.b16 %v3835, %v3828
    %v4060 = vpack.c.b16 %v3836, %v3829
    %v4061 = vpack.c.b16 %v3837, %v3830
    %v4062 = vpack.c.b16 %v3838, %v3831
    %v4063 = vpack.c.b16 %v3839, %v3832
    %4288 = vmatpush.bf16.msra.mxu0 %v3889
    %4289 = vmatpush.bf16.msra.mxu0 %v3882
    %4290 = vmatpush.bf16.msra.mxu0 %v3875
    %4291 = vmatpush.bf16.msra.mxu0 %v3868
    %4292 = vmatpush.bf16.msra.mxu0 %v3861
    %4293 = vmatpush.bf16.msra.mxu0 %v3854
    %4294 = vmatpush.bf16.msra.mxu0 %v3847
    %4295 = vmatpush.bf16.msra.mxu0 %v3840
    %4296 = vmatmul.bf16.gmra.mxu0 %v2860
    %v4297 = vpop.f32.mrf.mxu0
    %v4298 = vadd.f32 %v3122, %v4297
    %v4299 = vpop.f32.mrf.mxu0
    %4300 = vdwg.mxu0
    %4301 = vmatpush.bf16.msra.mxu0 %v3945
    %4302 = vmatpush.bf16.msra.mxu0 %v3938
    %4303 = vmatpush.bf16.msra.mxu0 %v3931
    %4304 = vmatpush.bf16.msra.mxu0 %v3924
    %4305 = vmatpush.bf16.msra.mxu0 %v3917
    %4306 = vmatpush.bf16.msra.mxu0 %v3910
    %4307 = vmatpush.bf16.msra.mxu0 %v3903
    %4308 = vmatpush.bf16.msra.mxu0 %v3896
    %4309 = vmatmul.bf16.gmra.mxu0 %v2861
    %v4310 = vpop.f32.mrf.mxu0
    %v4311 = vadd.f32 %v4298, %v4310
    %v4312 = vpop.f32.mrf.mxu0
    %4313 = vdwg.mxu0
    %4314 = vmatpush.bf16.msra.mxu0 %v4001
    %4315 = vmatpush.bf16.msra.mxu0 %v3994
    %4316 = vmatpush.bf16.msra.mxu0 %v3987
    %4317 = vmatpush.bf16.msra.mxu0 %v3980
    %4318 = vmatpush.bf16.msra.mxu0 %v3973
    %4319 = vmatpush.bf16.msra.mxu0 %v3966
    %4320 = vmatpush.bf16.msra.mxu0 %v3959
    %4321 = vmatpush.bf16.msra.mxu0 %v3952
    %4322 = vmatmul.bf16.gmra.mxu0 %v2862
    %v4323 = vpop.f32.mrf.mxu0
    %v4324 = vadd.f32 %v4311, %v4323
    %v4325 = vpop.f32.mrf.mxu0
    %4326 = vdwg.mxu0
    %4327 = vmatpush.bf16.msra.mxu0 %v4057
    %4328 = vmatpush.bf16.msra.mxu0 %v4050
    %4329 = vmatpush.bf16.msra.mxu0 %v4043
    %4330 = vmatpush.bf16.msra.mxu0 %v4036
    %4331 = vmatpush.bf16.msra.mxu0 %v4029
    %4332 = vmatpush.bf16.msra.mxu0 %v4022
    %4333 = vmatpush.bf16.msra.mxu0 %v4015
    %4334 = vmatpush.bf16.msra.mxu0 %v4008
    %4335 = vmatmul.bf16.gmra.mxu0 %v2863
    %v4336 = vpop.f32.mrf.mxu0
    %v4337 = vadd.f32 %v4324, %v4336
    %v4338 = vpop.f32.mrf.mxu0
    %4339 = vdwg.mxu0
    %4340 = vmatpush.bf16.msra.mxu0 %v3890
    %4341 = vmatpush.bf16.msra.mxu0 %v3883
    %4342 = vmatpush.bf16.msra.mxu0 %v3876
    %4343 = vmatpush.bf16.msra.mxu0 %v3869
    %4344 = vmatpush.bf16.msra.mxu0 %v3862
    %4345 = vmatpush.bf16.msra.mxu0 %v3855
    %4346 = vmatpush.bf16.msra.mxu0 %v3848
    %4347 = vmatpush.bf16.msra.mxu0 %v3841
    %4348 = vmatmul.bf16.gmra.mxu0 %v2860
    %v4349 = vpop.f32.mrf.mxu0
    %v4350 = vadd.f32 %v3123, %v4349
    %v4351 = vpop.f32.mrf.mxu0
    %4352 = vdwg.mxu0
    %4353 = vmatpush.bf16.msra.mxu0 %v3946
    %4354 = vmatpush.bf16.msra.mxu0 %v3939
    %4355 = vmatpush.bf16.msra.mxu0 %v3932
    %4356 = vmatpush.bf16.msra.mxu0 %v3925
    %4357 = vmatpush.bf16.msra.mxu0 %v3918
    %4358 = vmatpush.bf16.msra.mxu0 %v3911
    %4359 = vmatpush.bf16.msra.mxu0 %v3904
    %4360 = vmatpush.bf16.msra.mxu0 %v3897
    %4361 = vmatmul.bf16.gmra.mxu0 %v2861
    %v4362 = vpop.f32.mrf.mxu0
    %v4363 = vadd.f32 %v4350, %v4362
    %v4364 = vpop.f32.mrf.mxu0
    %4365 = vdwg.mxu0
    %4366 = vmatpush.bf16.msra.mxu0 %v4002
    %4367 = vmatpush.bf16.msra.mxu0 %v3995
    %4368 = vmatpush.bf16.msra.mxu0 %v3988
    %4369 = vmatpush.bf16.msra.mxu0 %v3981
    %4370 = vmatpush.bf16.msra.mxu0 %v3974
    %4371 = vmatpush.bf16.msra.mxu0 %v3967
    %4372 = vmatpush.bf16.msra.mxu0 %v3960
    %4373 = vmatpush.bf16.msra.mxu0 %v3953
    %4374 = vmatmul.bf16.gmra.mxu0 %v2862
    %v4375 = vpop.f32.mrf.mxu0
    %v4376 = vadd.f32 %v4363, %v4375
    %v4377 = vpop.f32.mrf.mxu0
    %4378 = vdwg.mxu0
    %4379 = vmatpush.bf16.msra.mxu0 %v4058
    %4380 = vmatpush.bf16.msra.mxu0 %v4051
    %4381 = vmatpush.bf16.msra.mxu0 %v4044
    %4382 = vmatpush.bf16.msra.mxu0 %v4037
    %4383 = vmatpush.bf16.msra.mxu0 %v4030
    %4384 = vmatpush.bf16.msra.mxu0 %v4023
    %4385 = vmatpush.bf16.msra.mxu0 %v4016
    %4386 = vmatpush.bf16.msra.mxu0 %v4009
    %4387 = vmatmul.bf16.gmra.mxu0 %v2863
    %v4388 = vpop.f32.mrf.mxu0
    %v4389 = vadd.f32 %v4376, %v4388
    %v4390 = vpop.f32.mrf.mxu0
    %4391 = vdwg.mxu0
    %4392 = vmatpush.bf16.msra.mxu0 %v3891
    %4393 = vmatpush.bf16.msra.mxu0 %v3884
    %4394 = vmatpush.bf16.msra.mxu0 %v3877
    %4395 = vmatpush.bf16.msra.mxu0 %v3870
    %4396 = vmatpush.bf16.msra.mxu0 %v3863
    %4397 = vmatpush.bf16.msra.mxu0 %v3856
    %4398 = vmatpush.bf16.msra.mxu0 %v3849
    %4399 = vmatpush.bf16.msra.mxu0 %v3842
    %4400 = vmatmul.bf16.gmra.mxu0 %v2860
    %v4401 = vpop.f32.mrf.mxu0
    %v4402 = vadd.f32 %v3124, %v4401
    %v4403 = vpop.f32.mrf.mxu0
    %4404 = vdwg.mxu0
    %4405 = vmatpush.bf16.msra.mxu0 %v3947
    %4406 = vmatpush.bf16.msra.mxu0 %v3940
    %4407 = vmatpush.bf16.msra.mxu0 %v3933
    %4408 = vmatpush.bf16.msra.mxu0 %v3926
    %4409 = vmatpush.bf16.msra.mxu0 %v3919
    %4410 = vmatpush.bf16.msra.mxu0 %v3912
    %4411 = vmatpush.bf16.msra.mxu0 %v3905
    %4412 = vmatpush.bf16.msra.mxu0 %v3898
    %4413 = vmatmul.bf16.gmra.mxu0 %v2861
    %v4414 = vpop.f32.mrf.mxu0
    %v4415 = vadd.f32 %v4402, %v4414
    %v4416 = vpop.f32.mrf.mxu0
    %4417 = vdwg.mxu0
    %4418 = vmatpush.bf16.msra.mxu0 %v4003
    %4419 = vmatpush.bf16.msra.mxu0 %v3996
    %4420 = vmatpush.bf16.msra.mxu0 %v3989
    %4421 = vmatpush.bf16.msra.mxu0 %v3982
    %4422 = vmatpush.bf16.msra.mxu0 %v3975
    %4423 = vmatpush.bf16.msra.mxu0 %v3968
    %4424 = vmatpush.bf16.msra.mxu0 %v3961
    %4425 = vmatpush.bf16.msra.mxu0 %v3954
    %4426 = vmatmul.bf16.gmra.mxu0 %v2862
    %v4427 = vpop.f32.mrf.mxu0
    %v4428 = vadd.f32 %v4415, %v4427
    %v4429 = vpop.f32.mrf.mxu0
    %4430 = vdwg.mxu0
    %4431 = vmatpush.bf16.msra.mxu0 %v4059
    %4432 = vmatpush.bf16.msra.mxu0 %v4052
    %4433 = vmatpush.bf16.msra.mxu0 %v4045
    %4434 = vmatpush.bf16.msra.mxu0 %v4038
    %4435 = vmatpush.bf16.msra.mxu0 %v4031
    %4436 = vmatpush.bf16.msra.mxu0 %v4024
    %4437 = vmatpush.bf16.msra.mxu0 %v4017
    %4438 = vmatpush.bf16.msra.mxu0 %v4010
    %4439 = vmatmul.bf16.gmra.mxu0 %v2863
    %v4440 = vpop.f32.mrf.mxu0
    %v4441 = vadd.f32 %v4428, %v4440
    %v4442 = vpop.f32.mrf.mxu0
    %4443 = vdwg.mxu0
    %4444 = vmatpush.bf16.msra.mxu0 %v3892
    %4445 = vmatpush.bf16.msra.mxu0 %v3885
    %4446 = vmatpush.bf16.msra.mxu0 %v3878
    %4447 = vmatpush.bf16.msra.mxu0 %v3871
    %4448 = vmatpush.bf16.msra.mxu0 %v3864
    %4449 = vmatpush.bf16.msra.mxu0 %v3857
    %4450 = vmatpush.bf16.msra.mxu0 %v3850
    %4451 = vmatpush.bf16.msra.mxu0 %v3843
    %4452 = vmatmul.bf16.gmra.mxu0 %v2860
    %v4453 = vpop.f32.mrf.mxu0
    %v4454 = vadd.f32 %v3125, %v4453
    %v4455 = vpop.f32.mrf.mxu0
    %4456 = vdwg.mxu0
    %4457 = vmatpush.bf16.msra.mxu0 %v3948
    %4458 = vmatpush.bf16.msra.mxu0 %v3941
    %4459 = vmatpush.bf16.msra.mxu0 %v3934
    %4460 = vmatpush.bf16.msra.mxu0 %v3927
    %4461 = vmatpush.bf16.msra.mxu0 %v3920
    %4462 = vmatpush.bf16.msra.mxu0 %v3913
    %4463 = vmatpush.bf16.msra.mxu0 %v3906
    %4464 = vmatpush.bf16.msra.mxu0 %v3899
    %4465 = vmatmul.bf16.gmra.mxu0 %v2861
    %v4466 = vpop.f32.mrf.mxu0
    %v4467 = vadd.f32 %v4454, %v4466
    %v4468 = vpop.f32.mrf.mxu0
    %4469 = vdwg.mxu0
    %4470 = vmatpush.bf16.msra.mxu0 %v4004
    %4471 = vmatpush.bf16.msra.mxu0 %v3997
    %4472 = vmatpush.bf16.msra.mxu0 %v3990
    %4473 = vmatpush.bf16.msra.mxu0 %v3983
    %4474 = vmatpush.bf16.msra.mxu0 %v3976
    %4475 = vmatpush.bf16.msra.mxu0 %v3969
    %4476 = vmatpush.bf16.msra.mxu0 %v3962
    %4477 = vmatpush.bf16.msra.mxu0 %v3955
    %4478 = vmatmul.bf16.gmra.mxu0 %v2862
    %v4479 = vpop.f32.mrf.mxu0
    %v4480 = vadd.f32 %v4467, %v4479
    %v4481 = vpop.f32.mrf.mxu0
    %4482 = vdwg.mxu0
    %4483 = vmatpush.bf16.msra.mxu0 %v4060
    %4484 = vmatpush.bf16.msra.mxu0 %v4053
    %4485 = vmatpush.bf16.msra.mxu0 %v4046
    %4486 = vmatpush.bf16.msra.mxu0 %v4039
    %4487 = vmatpush.bf16.msra.mxu0 %v4032
    %4488 = vmatpush.bf16.msra.mxu0 %v4025
    %4489 = vmatpush.bf16.msra.mxu0 %v4018
    %4490 = vmatpush.bf16.msra.mxu0 %v4011
    %4491 = vmatmul.bf16.gmra.mxu0 %v2863
    %v4492 = vpop.f32.mrf.mxu0
    %v4493 = vadd.f32 %v4480, %v4492
    %v4494 = vpop.f32.mrf.mxu0
    %4495 = vdwg.mxu0
    %4496 = vmatpush.bf16.msra.mxu0 %v3893
    %4497 = vmatpush.bf16.msra.mxu0 %v3886
    %4498 = vmatpush.bf16.msra.mxu0 %v3879
    %4499 = vmatpush.bf16.msra.mxu0 %v3872
    %4500 = vmatpush.bf16.msra.mxu0 %v3865
    %4501 = vmatpush.bf16.msra.mxu0 %v3858
    %4502 = vmatpush.bf16.msra.mxu0 %v3851
    %4503 = vmatpush.bf16.msra.mxu0 %v3844
    %4504 = vmatmul.bf16.gmra.mxu0 %v2860
    %v4505 = vpop.f32.mrf.mxu0
    %v4506 = vadd.f32 %v3126, %v4505
    %v4507 = vpop.f32.mrf.mxu0
    %4508 = vdwg.mxu0
    %4509 = vmatpush.bf16.msra.mxu0 %v3949
    %4510 = vmatpush.bf16.msra.mxu0 %v3942
    %4511 = vmatpush.bf16.msra.mxu0 %v3935
    %4512 = vmatpush.bf16.msra.mxu0 %v3928
    %4513 = vmatpush.bf16.msra.mxu0 %v3921
    %4514 = vmatpush.bf16.msra.mxu0 %v3914
    %4515 = vmatpush.bf16.msra.mxu0 %v3907
    %4516 = vmatpush.bf16.msra.mxu0 %v3900
    %4517 = vmatmul.bf16.gmra.mxu0 %v2861
    %v4518 = vpop.f32.mrf.mxu0
    %v4519 = vadd.f32 %v4506, %v4518
    %v4520 = vpop.f32.mrf.mxu0
    %4521 = vdwg.mxu0
    %4522 = vmatpush.bf16.msra.mxu0 %v4005
    %4523 = vmatpush.bf16.msra.mxu0 %v3998
    %4524 = vmatpush.bf16.msra.mxu0 %v3991
    %4525 = vmatpush.bf16.msra.mxu0 %v3984
    %4526 = vmatpush.bf16.msra.mxu0 %v3977
    %4527 = vmatpush.bf16.msra.mxu0 %v3970
    %4528 = vmatpush.bf16.msra.mxu0 %v3963
    %4529 = vmatpush.bf16.msra.mxu0 %v3956
    %4530 = vmatmul.bf16.gmra.mxu0 %v2862
    %v4531 = vpop.f32.mrf.mxu0
    %v4532 = vadd.f32 %v4519, %v4531
    %v4533 = vpop.f32.mrf.mxu0
    %4534 = vdwg.mxu0
    %4535 = vmatpush.bf16.msra.mxu0 %v4061
    %4536 = vmatpush.bf16.msra.mxu0 %v4054
    %4537 = vmatpush.bf16.msra.mxu0 %v4047
    %4538 = vmatpush.bf16.msra.mxu0 %v4040
    %4539 = vmatpush.bf16.msra.mxu0 %v4033
    %4540 = vmatpush.bf16.msra.mxu0 %v4026
    %4541 = vmatpush.bf16.msra.mxu0 %v4019
    %4542 = vmatpush.bf16.msra.mxu0 %v4012
    %4543 = vmatmul.bf16.gmra.mxu0 %v2863
    %v4544 = vpop.f32.mrf.mxu0
    %v4545 = vadd.f32 %v4532, %v4544
    %v4546 = vpop.f32.mrf.mxu0
    %4547 = vdwg.mxu0
    %4548 = vmatpush.bf16.msra.mxu0 %v3894
    %4549 = vmatpush.bf16.msra.mxu0 %v3887
    %4550 = vmatpush.bf16.msra.mxu0 %v3880
    %4551 = vmatpush.bf16.msra.mxu0 %v3873
    %4552 = vmatpush.bf16.msra.mxu0 %v3866
    %4553 = vmatpush.bf16.msra.mxu0 %v3859
    %4554 = vmatpush.bf16.msra.mxu0 %v3852
    %4555 = vmatpush.bf16.msra.mxu0 %v3845
    %4556 = vmatmul.bf16.gmra.mxu0 %v2860
    %v4557 = vpop.f32.mrf.mxu0
    %v4558 = vadd.f32 %v3127, %v4557
    %v4559 = vpop.f32.mrf.mxu0
    %4560 = vdwg.mxu0
    %4561 = vmatpush.bf16.msra.mxu0 %v3950
    %4562 = vmatpush.bf16.msra.mxu0 %v3943
    %4563 = vmatpush.bf16.msra.mxu0 %v3936
    %4564 = vmatpush.bf16.msra.mxu0 %v3929
    %4565 = vmatpush.bf16.msra.mxu0 %v3922
    %4566 = vmatpush.bf16.msra.mxu0 %v3915
    %4567 = vmatpush.bf16.msra.mxu0 %v3908
    %4568 = vmatpush.bf16.msra.mxu0 %v3901
    %4569 = vmatmul.bf16.gmra.mxu0 %v2861
    %v4570 = vpop.f32.mrf.mxu0
    %v4571 = vadd.f32 %v4558, %v4570
    %v4572 = vpop.f32.mrf.mxu0
    %4573 = vdwg.mxu0
    %4574 = vmatpush.bf16.msra.mxu0 %v4006
    %4575 = vmatpush.bf16.msra.mxu0 %v3999
    %4576 = vmatpush.bf16.msra.mxu0 %v3992
    %4577 = vmatpush.bf16.msra.mxu0 %v3985
    %4578 = vmatpush.bf16.msra.mxu0 %v3978
    %4579 = vmatpush.bf16.msra.mxu0 %v3971
    %4580 = vmatpush.bf16.msra.mxu0 %v3964
    %4581 = vmatpush.bf16.msra.mxu0 %v3957
    %4582 = vmatmul.bf16.gmra.mxu0 %v2862
    %v4583 = vpop.f32.mrf.mxu0
    %v4584 = vadd.f32 %v4571, %v4583
    %v4585 = vpop.f32.mrf.mxu0
    %4586 = vdwg.mxu0
    %4587 = vmatpush.bf16.msra.mxu0 %v4062
    %4588 = vmatpush.bf16.msra.mxu0 %v4055
    %4589 = vmatpush.bf16.msra.mxu0 %v4048
    %4590 = vmatpush.bf16.msra.mxu0 %v4041
    %4591 = vmatpush.bf16.msra.mxu0 %v4034
    %4592 = vmatpush.bf16.msra.mxu0 %v4027
    %4593 = vmatpush.bf16.msra.mxu0 %v4020
    %4594 = vmatpush.bf16.msra.mxu0 %v4013
    %4595 = vmatmul.bf16.gmra.mxu0 %v2863
    %v4596 = vpop.f32.mrf.mxu0
    %v4597 = vadd.f32 %v4584, %v4596
    %v4598 = vpop.f32.mrf.mxu0
    %4599 = vdwg.mxu0
    %4600 = vmatpush.bf16.msra.mxu0 %v3895
    %4601 = vmatpush.bf16.msra.mxu0 %v3888
    %4602 = vmatpush.bf16.msra.mxu0 %v3881
    %4603 = vmatpush.bf16.msra.mxu0 %v3874
    %4604 = vmatpush.bf16.msra.mxu0 %v3867
    %4605 = vmatpush.bf16.msra.mxu0 %v3860
    %4606 = vmatpush.bf16.msra.mxu0 %v3853
    %4607 = vmatpush.bf16.msra.mxu0 %v3846
    %4608 = vmatmul.bf16.gmra.mxu0 %v2860
    %v4609 = vpop.f32.mrf.mxu0
    %v4610 = vadd.f32 %v3128, %v4609
    %v4611 = vpop.f32.mrf.mxu0
    %4612 = vdwg.mxu0
    %4613 = vmatpush.bf16.msra.mxu0 %v3951
    %4614 = vmatpush.bf16.msra.mxu0 %v3944
    %4615 = vmatpush.bf16.msra.mxu0 %v3937
    %4616 = vmatpush.bf16.msra.mxu0 %v3930
    %4617 = vmatpush.bf16.msra.mxu0 %v3923
    %4618 = vmatpush.bf16.msra.mxu0 %v3916
    %4619 = vmatpush.bf16.msra.mxu0 %v3909
    %4620 = vmatpush.bf16.msra.mxu0 %v3902
    %4621 = vmatmul.bf16.gmra.mxu0 %v2861
    %v4622 = vpop.f32.mrf.mxu0
    %v4623 = vadd.f32 %v4610, %v4622
    %v4624 = vpop.f32.mrf.mxu0
    %4625 = vdwg.mxu0
    %4626 = vmatpush.bf16.msra.mxu0 %v4007
    %4627 = vmatpush.bf16.msra.mxu0 %v4000
    %4628 = vmatpush.bf16.msra.mxu0 %v3993
    %4629 = vmatpush.bf16.msra.mxu0 %v3986
    %4630 = vmatpush.bf16.msra.mxu0 %v3979
    %4631 = vmatpush.bf16.msra.mxu0 %v3972
    %4632 = vmatpush.bf16.msra.mxu0 %v3965
    %4633 = vmatpush.bf16.msra.mxu0 %v3958
    %4634 = vmatmul.bf16.gmra.mxu0 %v2862
    %v4635 = vpop.f32.mrf.mxu0
    %v4636 = vadd.f32 %v4623, %v4635
    %v4637 = vpop.f32.mrf.mxu0
    %4638 = vdwg.mxu0
    %4639 = vmatpush.bf16.msra.mxu0 %v4063
    %4640 = vmatpush.bf16.msra.mxu0 %v4056
    %4641 = vmatpush.bf16.msra.mxu0 %v4049
    %4642 = vmatpush.bf16.msra.mxu0 %v4042
    %4643 = vmatpush.bf16.msra.mxu0 %v4035
    %4644 = vmatpush.bf16.msra.mxu0 %v4028
    %4645 = vmatpush.bf16.msra.mxu0 %v4021
    %4646 = vmatpush.bf16.msra.mxu0 %v4014
    %4647 = vmatmul.bf16.gmra.mxu0 %v2863
    %v4648 = vpop.f32.mrf.mxu0
    %v4649 = vadd.f32 %v4636, %v4648
    %v4650 = vpop.f32.mrf.mxu0
    %4651 = vdwg.mxu0
    %v4652 = vsub.f32 0.0, %v4337
    %v4653 = vsub.f32 0.0, %v4389
    %v4654 = vsub.f32 0.0, %v4441
    %v4655 = vsub.f32 0.0, %v4493
    %v4656 = vsub.f32 0.0, %v4545
    %v4657 = vsub.f32 0.0, %v4597
    %v4658 = vsub.f32 0.0, %v4649
    %v4659 = vmul.f32 %v4652, 1.442695
    %v4660 = vpow.pop %v4659
    %v4661 = vmul.f32 %v4653, 1.442695
    %v4662 = vpow.pop %v4661
    %v4663 = vmul.f32 %v4654, 1.442695
    %v4664 = vpow.pop %v4663
    %v4665 = vmul.f32 %v4655, 1.442695
    %v4666 = vpow.pop %v4665
    %v4667 = vmul.f32 %v4656, 1.442695
    %v4668 = vpow.pop %v4667
    %v4669 = vmul.f32 %v4657, 1.442695
    %v4670 = vpow.pop %v4669
    %v4671 = vmul.f32 %v4658, 1.442695
    %v4672 = vpow.pop %v4671
    %v4673 = vadd.f32 %v4660, 1.0
    %v4674 = vadd.f32 %v4662, 1.0
    %v4675 = vadd.f32 %v4664, 1.0
    %v4676 = vadd.f32 %v4666, 1.0
    %v4677 = vadd.f32 %v4668, 1.0
    %v4678 = vadd.f32 %v4670, 1.0
    %v4679 = vadd.f32 %v4672, 1.0
    %v4680 = vrcp.pop %v4673
    %v4681 = vrcp.pop %v4674
    %v4682 = vrcp.pop %v4675
    %v4683 = vrcp.pop %v4676
    %v4684 = vrcp.pop %v4677
    %v4685 = vrcp.pop %v4678
    %v4686 = vrcp.pop %v4679
    %4687 = vst [vmem:[#allocation2] sm:$0xff] %v4680
    %4688 = vst [vmem:[#allocation2 + $0x8] sm:$0xff] %v4681
    %4689 = vst [vmem:[#allocation2 + $0x10] sm:$0xff] %v4682
    %4690 = vst [vmem:[#allocation2 + $0x18] sm:$0xff] %v4683
    %4691 = vst [vmem:[#allocation2 + $0x20] sm:$0xff] %v4684
    %4692 = vst [vmem:[#allocation2 + $0x28] sm:$0xff] %v4685
    %4693 = vst.msk [vmem:[#allocation2 + $0x30] sm:$0xff] %vm1251, %v4686
    %vm4694 = vcmask 31744
    %4695 = vst.msk [vmem:[%s15] sm:$0xff] %vm4694, %v2292
    // Predicated region
    $region58: #{vae_forward.1} parent=1 // pred_check
      _
    $region59: #{vae_forward.1} parent=1 // pred_check_branch
      %4697 = sbr.rel (0) target = $region61
    $region60: #{vae_forward.1} parent=1 // pred_region
      %4699 = vsyncadd [#allocation3], 0
      %s4701 = sshll.u32 [#allocation2], 4
      %s4702 = int_to_ptr.vmem [resolvable:$true] %s4701
      %s4703 = sshll.u32 %s14, 4
      %s4704 = int_to_ptr.hbm [resolvable:$true] %s4703
      %4706 = dma.vmem_to_hbm [thread:$0]  %s4702, 896, %s4704, [#allocation3]
    $region61: #{vae_forward.1} parent=1 // pred_fallthru
      _
    // Predicated region
    $region62: #{vae_forward.1} parent=1 // pred_check
      _
    $region63: #{vae_forward.1} parent=1 // pred_check_branch
      %4708 = sbr.rel (0) target = $region65
    $region64: #{vae_forward.1} parent=1 // pred_region
      _
    $region65: #{vae_forward.1} parent=1 // pred_fallthru
      _
    // Predicated region
    $region66: #{vae_forward.1} parent=1 // pred_check
      _
    $region67: #{vae_forward.1} parent=1 // pred_check_branch
      %4710 = sbr.rel (0) target = $region69
    $region68: #{vae_forward.1} parent=1 // pred_region
      %4712 = dma.done [#allocation3], 896
    $region69: #{vae_forward.1} parent=1 // pred_fallthru
      _
    // Predicated region
    $region70: #{vae_forward.1} parent=1 // pred_check
      _
    $region71: #{vae_forward.1} parent=1 // pred_check_branch
      %4714 = sbr.rel (0) target = $region73
    $region72: #{vae_forward.1} parent=1 // pred_region
      _
    $region73: #{vae_forward.1} parent=1 // pred_fallthru
      _
    %4715 = vsyncpa [#allocation3], 1

// kernel: vae_forward.1
$region0: #{vae_forward.1}
  #allocation0 [shape = 'u32[]', space=smem, size = 0x4, offset = 0x4, fixed_abs, tag = 'smem constant byte address 0x4 - core index']
  #allocation1 [shape = 'u32[72,128]{1,0:T(1,128)}', space=vmem, size = 0x9000, scoped, tag = 'internal scratch']
  %s0 = inlined_call_operand.vmem [shape: f32[8,784], index: 0, kind: input, shape index: {}]
  %s1 = inlined_call_operand.vmem [shape: f32[8,2], index: 1, kind: input, shape index: {}]
  %s2 = inlined_call_operand.vmem [shape: bf16[784,512], index: 2, kind: input, shape index: {}]
  %s3 = inlined_call_operand.vmem [shape: f32[1,512], index: 3, kind: input, shape index: {}]
  %s4 = inlined_call_operand.vmem [shape: bf16[512,256], index: 4, kind: input, shape index: {}]
  %s5 = inlined_call_operand.vmem [shape: f32[1,256], index: 5, kind: input, shape index: {}]
  %s6 = inlined_call_operand.vmem [shape: bf16[256,4], index: 6, kind: input, shape index: {}]
  %s7 = inlined_call_operand.vmem [shape: f32[1,4], index: 7, kind: input, shape index: {}]
  %s8 = inlined_call_operand.vmem [shape: f32[2,256], index: 8, kind: input, shape index: {}]
  %s9 = inlined_call_operand.vmem [shape: f32[1,256], index: 9, kind: input, shape index: {}]
  %s10 = inlined_call_operand.vmem [shape: bf16[256,512], index: 10, kind: input, shape index: {}]
  %s11 = inlined_call_operand.vmem [shape: f32[1,512], index: 11, kind: input, shape index: {}]
  %s12 = inlined_call_operand.vmem [shape: bf16[512,784], index: 12, kind: input, shape index: {}]
  %s13 = inlined_call_operand.vmem [shape: f32[1,784], index: 13, kind: input, shape index: {}]
  %s14 = inlined_call_operand.hbm [shape: f32[8,784], index: 14, kind: output, shape index: {0}]
  %s15 = inlined_call_operand.vmem [shape: f32[8,4], index: 15, kind: output, shape index: {1}]
  %16 = xla_tuple %s14, %s15
  %s17 = sld [smem:[#allocation0]]
  $region74: #{vae_forward.1} parent=0
    _
  %s19 = ssub.s32 1, %s17
  %s20 = scalar_select 0, %s19, %s17
  $region1: #{vae_forward.1} parent=0
    #allocation2 [shape = 'u8[28672]{0}', space=vmem, size = 0x7000, scoped, tag = 'output window, operand 0, single buffered']
    #allocation3 [shape = 's32[1]{0}', space=sflag, size = 0x4, scoped, tag = 'scoped memory for vae_forward.1']
    %21 = vsyncpa [#allocation3], 0
    // Predicated region
    $region2: #{vae_forward.1} parent=1 // pred_check
      _
    $region3: #{vae_forward.1} parent=1 // pred_check_branch
      %23 = sbr.rel (0) target = $region5
    $region4: #{vae_forward.1} parent=1 // pred_region
      _
    $region5: #{vae_forward.1} parent=1 // pred_fallthru
      _
    // Predicated region
    $region6: #{vae_forward.1} parent=1 // pred_check
      _
    $region7: #{vae_forward.1} parent=1 // pred_check_branch
      %25 = sbr.rel (0) target = $region9
    $region8: #{vae_forward.1} parent=1 // pred_region
      _
    $region9: #{vae_forward.1} parent=1 // pred_fallthru
      _
    // Predicated region
    $region10: #{vae_forward.1} parent=1 // pred_check
      _
    $region11: #{vae_forward.1} parent=1 // pred_check_branch
      %27 = sbr.rel (0) target = $region13
    $region12: #{vae_forward.1} parent=1 // pred_region
      _
    $region13: #{vae_forward.1} parent=1 // pred_fallthru
      _
    // Predicated region
    $region14: #{vae_forward.1} parent=1 // pred_check
      _
    $region15: #{vae_forward.1} parent=1 // pred_check_branch
      %29 = sbr.rel (0) target = $region17
    $region16: #{vae_forward.1} parent=1 // pred_region
      _
    $region17: #{vae_forward.1} parent=1 // pred_fallthru
      _
    // Predicated region
    $region18: #{vae_forward.1} parent=1 // pred_check
      _
    $region19: #{vae_forward.1} parent=1 // pred_check_branch
      %31 = sbr.rel (0) target = $region21
    $region20: #{vae_forward.1} parent=1 // pred_region
      _
    $region21: #{vae_forward.1} parent=1 // pred_fallthru
      _
    // Predicated region
    $region22: #{vae_forward.1} parent=1 // pred_check
      _
    $region23: #{vae_forward.1} parent=1 // pred_check_branch
      %33 = sbr.rel (0) target = $region25
    $region24: #{vae_forward.1} parent=1 // pred_region
      _
    $region25: #{vae_forward.1} parent=1 // pred_fallthru
      _
    // Predicated region
    $region26: #{vae_forward.1} parent=1 // pred_check
      _
    $region27: #{vae_forward.1} parent=1 // pred_check_branch
      %35 = sbr.rel (0) target = $region29
    $region28: #{vae_forward.1} parent=1 // pred_region
      _
    $region29: #{vae_forward.1} parent=1 // pred_fallthru
      _
    // Predicated region
    $region30: #{vae_forward.1} parent=1 // pred_check
      _
    $region31: #{vae_forward.1} parent=1 // pred_check_branch
      %37 = sbr.rel (0) target = $region33
    $region32: #{vae_forward.1} parent=1 // pred_region
      _
    $region33: #{vae_forward.1} parent=1 // pred_fallthru
      _
    // Predicated region
    $region34: #{vae_forward.1} parent=1 // pred_check
      _
    $region35: #{vae_forward.1} parent=1 // pred_check_branch
      %39 = sbr.rel (0) target = $region37
    $region36: #{vae_forward.1} parent=1 // pred_region
      _
    $region37: #{vae_forward.1} parent=1 // pred_fallthru
      _
    // Predicated region
    $region38: #{vae_forward.1} parent=1 // pred_check
      _
    $region39: #{vae_forward.1} parent=1 // pred_check_branch
      %41 = sbr.rel (0) target = $region41
    $region40: #{vae_forward.1} parent=1 // pred_region
      _
    $region41: #{vae_forward.1} parent=1 // pred_fallthru
      _
    // Predicated region
    $region42: #{vae_forward.1} parent=1 // pred_check
      _
    $region43: #{vae_forward.1} parent=1 // pred_check_branch
      %43 = sbr.rel (0) target = $region45
    $region44: #{vae_forward.1} parent=1 // pred_region
      _
    $region45: #{vae_forward.1} parent=1 // pred_fallthru
      _
    // Predicated region
    $region46: #{vae_forward.1} parent=1 // pred_check
      _
    $region47: #{vae_forward.1} parent=1 // pred_check_branch
      %45 = sbr.rel (0) target = $region49
    $region48: #{vae_forward.1} parent=1 // pred_region
      _
    $region49: #{vae_forward.1} parent=1 // pred_fallthru
      _
    // Predicated region
    $region50: #{vae_forward.1} parent=1 // pred_check
      _
    $region51: #{vae_forward.1} parent=1 // pred_check_branch
      %47 = sbr.rel (0) target = $region53
    $region52: #{vae_forward.1} parent=1 // pred_region
      _
    $region53: #{vae_forward.1} parent=1 // pred_fallthru
      _
    // Predicated region
    $region54: #{vae_forward.1} parent=1 // pred_check
      _
    $region55: #{vae_forward.1} parent=1 // pred_check_branch
      %49 = sbr.rel (0) target = $region57
    $region56: #{vae_forward.1} parent=1 // pred_region
      _
    $region57: #{vae_forward.1} parent=1 // pred_fallthru
      _
    %v51 = vld [vmem:[%s0] sm:$0xff]
    %v52 = vld [vmem:[%s0 + $0x8] sm:$0xff]
    %v53 = vld [vmem:[%s0 + $0x10] sm:$0xff]
    %v54 = vld [vmem:[%s0 + $0x18] sm:$0xff]
    %v55 = vld [vmem:[%s0 + $0x20] sm:$0xff]
    %v56 = vld [vmem:[%s0 + $0x28] sm:$0xff]
    %v57 = vld [vmem:[%s0 + $0x30] sm:$0xff]
    %v58 = vpack.c.bf16 %v51, %v51
    %v59 = vpack.c.bf16 %v52, %v52
    %v60 = vpack.c.bf16 %v53, %v53
    %v61 = vpack.c.bf16 %v54, %v54
    %v62 = vpack.c.bf16 %v55, %v55
    %v63 = vpack.c.bf16 %v56, %v56
    %v64 = vpack.c.bf16 %v57, %v57
    %v65 = vld [vmem:[%s2] sm:$0xff]
    %v66 = vld [vmem:[%s2 + $0x8] sm:$0xff]
    %v67 = vld [vmem:[%s2 + $0x10] sm:$0xff]
    %v68 = vld [vmem:[%s2 + $0x18] sm:$0xff]
    %v69 = vld [vmem:[%s2 + $0x20] sm:$0xff]
    %v70 = vld [vmem:[%s2 + $0x28] sm:$0xff]
    %v71 = vld [vmem:[%s2 + $0x30] sm:$0xff]
    %v72 = vld [vmem:[%s2 + $0x38] sm:$0xff]
    %v73 = vld [vmem:[%s2 + $0x40] sm:$0xff]
    %v74 = vld [vmem:[%s2 + $0x48] sm:$0xff]
    %v75 = vld [vmem:[%s2 + $0x50] sm:$0xff]
    %v76 = vld [vmem:[%s2 + $0x58] sm:$0xff]
    %v77 = vld [vmem:[%s2 + $0x60] sm:$0xff]
    %v78 = vld [vmem:[%s2 + $0x68] sm:$0xff]
    %v79 = vld [vmem:[%s2 + $0x70] sm:$0xff]
    %v80 = vld [vmem:[%s2 + $0x78] sm:$0xff]
    %v81 = vld [vmem:[%s2 + $0x80] sm:$0xff]
    %v82 = vld [vmem:[%s2 + $0x88] sm:$0xff]
    %v83 = vld [vmem:[%s2 + $0x90] sm:$0xff]
    %v84 = vld [vmem:[%s2 + $0x98] sm:$0xff]
    %v85 = vld [vmem:[%s2 + $0xa0] sm:$0xff]
    %v86 = vld [vmem:[%s2 + $0xa8] sm:$0xff]
    %v87 = vld [vmem:[%s2 + $0xb0] sm:$0xff]
    %v88 = vld [vmem:[%s2 + $0xb8] sm:$0xff]
    %v89 = vld [vmem:[%s2 + $0xc0] sm:$0xff]
    %v90 = vld [vmem:[%s2 + $0xc8] sm:$0xff]
    %v91 = vld [vmem:[%s2 + $0xd0] sm:$0xff]
    %v92 = vld [vmem:[%s2 + $0xd8] sm:$0xff]
    %v93 = vld [vmem:[%s2 + $0xe0] sm:$0xff]
    %v94 = vld [vmem:[%s2 + $0xe8] sm:$0xff]
    %v95 = vld [vmem:[%s2 + $0xf0] sm:$0xff]
    %v96 = vld [vmem:[%s2 + $0xf8] sm:$0xff]
    %v97 = vld [vmem:[%s2 + $0x100] sm:$0xff]
    %v98 = vld [vmem:[%s2 + $0x108] sm:$0xff]
    %v99 = vld [vmem:[%s2 + $0x110] sm:$0xff]
    %v100 = vld [vmem:[%s2 + $0x118] sm:$0xff]
    %v101 = vld [vmem:[%s2 + $0x120] sm:$0xff]
    %v102 = vld [vmem:[%s2 + $0x128] sm:$0xff]
    %v103 = vld [vmem:[%s2 + $0x130] sm:$0xff]
    %v104 = vld [vmem:[%s2 + $0x138] sm:$0xff]
    %v105 = vld [vmem:[%s2 + $0x140] sm:$0xff]
    %v106 = vld [vmem:[%s2 + $0x148] sm:$0xff]
    %v107 = vld [vmem:[%s2 + $0x150] sm:$0xff]
    %v108 = vld [vmem:[%s2 + $0x158] sm:$0xff]
    %v109 = vld [vmem:[%s2 + $0x160] sm:$0xff]
    %v110 = vld [vmem:[%s2 + $0x168] sm:$0xff]
    %v111 = vld [vmem:[%s2 + $0x170] sm:$0xff]
    %v112 = vld [vmem:[%s2 + $0x178] sm:$0xff]
    %v113 = vld [vmem:[%s2 + $0x180] sm:$0xff]
    %v114 = vld [vmem:[%s2 + $0x188] sm:$0xff]
    %v115 = vld [vmem:[%s2 + $0x190] sm:$0xff]
    %v116 = vld [vmem:[%s2 + $0x198] sm:$0xff]
    %v117 = vld [vmem:[%s2 + $0x1a0] sm:$0xff]
    %v118 = vld [vmem:[%s2 + $0x1a8] sm:$0xff]
    %v119 = vld [vmem:[%s2 + $0x1b0] sm:$0xff]
    %v120 = vld [vmem:[%s2 + $0x1b8] sm:$0xff]
    %v121 = vld [vmem:[%s2 + $0x1c0] sm:$0xff]
    %v122 = vld [vmem:[%s2 + $0x1c8] sm:$0xff]
    %v123 = vld [vmem:[%s2 + $0x1d0] sm:$0xff]
    %v124 = vld [vmem:[%s2 + $0x1d8] sm:$0xff]
    %v125 = vld [vmem:[%s2 + $0x1e0] sm:$0xff]
    %v126 = vld [vmem:[%s2 + $0x1e8] sm:$0xff]
    %v127 = vld [vmem:[%s2 + $0x1f0] sm:$0xff]
    %v128 = vld [vmem:[%s2 + $0x1f8] sm:$0xff]
    %v129 = vld [vmem:[%s2 + $0x200] sm:$0xff]
    %v130 = vld [vmem:[%s2 + $0x208] sm:$0xff]
    %v131 = vld [vmem:[%s2 + $0x210] sm:$0xff]
    %v132 = vld [vmem:[%s2 + $0x218] sm:$0xff]
    %v133 = vld [vmem:[%s2 + $0x220] sm:$0xff]
    %v134 = vld [vmem:[%s2 + $0x228] sm:$0xff]
    %v135 = vld [vmem:[%s2 + $0x230] sm:$0xff]
    %v136 = vld [vmem:[%s2 + $0x238] sm:$0xff]
    %v137 = vld [vmem:[%s2 + $0x240] sm:$0xff]
    %v138 = vld [vmem:[%s2 + $0x248] sm:$0xff]
    %v139 = vld [vmem:[%s2 + $0x250] sm:$0xff]
    %v140 = vld [vmem:[%s2 + $0x258] sm:$0xff]
    %v141 = vld [vmem:[%s2 + $0x260] sm:$0xff]
    %v142 = vld [vmem:[%s2 + $0x268] sm:$0xff]
    %v143 = vld [vmem:[%s2 + $0x270] sm:$0xff]
    %v144 = vld [vmem:[%s2 + $0x278] sm:$0xff]
    %v145 = vld [vmem:[%s2 + $0x280] sm:$0xff]
    %v146 = vld [vmem:[%s2 + $0x288] sm:$0xff]
    %v147 = vld [vmem:[%s2 + $0x290] sm:$0xff]
    %v148 = vld [vmem:[%s2 + $0x298] sm:$0xff]
    %v149 = vld [vmem:[%s2 + $0x2a0] sm:$0xff]
    %v150 = vld [vmem:[%s2 + $0x2a8] sm:$0xff]
    %v151 = vld [vmem:[%s2 + $0x2b0] sm:$0xff]
    %v152 = vld [vmem:[%s2 + $0x2b8] sm:$0xff]
    %v153 = vld [vmem:[%s2 + $0x2c0] sm:$0xff]
    %v154 = vld [vmem:[%s2 + $0x2c8] sm:$0xff]
    %v155 = vld [vmem:[%s2 + $0x2d0] sm:$0xff]
    %v156 = vld [vmem:[%s2 + $0x2d8] sm:$0xff]
    %v157 = vld [vmem:[%s2 + $0x2e0] sm:$0xff]
    %v158 = vld [vmem:[%s2 + $0x2e8] sm:$0xff]
    %v159 = vld [vmem:[%s2 + $0x2f0] sm:$0xff]
    %v160 = vld [vmem:[%s2 + $0x2f8] sm:$0xff]
    %v161 = vld [vmem:[%s2 + $0x300] sm:$0xff]
    %v162 = vld [vmem:[%s2 + $0x308] sm:$0xff]
    %v163 = vld [vmem:[%s2 + $0x310] sm:$0xff]
    %v164 = vld [vmem:[%s2 + $0x318] sm:$0xff]
    %v165 = vld [vmem:[%s2 + $0x320] sm:$0xff]
    %v166 = vld [vmem:[%s2 + $0x328] sm:$0xff]
    %v167 = vld [vmem:[%s2 + $0x330] sm:$0xff]
    %v168 = vld [vmem:[%s2 + $0x338] sm:$0xff]
    %v169 = vld [vmem:[%s2 + $0x340] sm:$0xff]
    %v170 = vld [vmem:[%s2 + $0x348] sm:$0xff]
    %v171 = vld [vmem:[%s2 + $0x350] sm:$0xff]
    %v172 = vld [vmem:[%s2 + $0x358] sm:$0xff]
    %v173 = vld [vmem:[%s2 + $0x360] sm:$0xff]
    %v174 = vld [vmem:[%s2 + $0x368] sm:$0xff]
    %v175 = vld [vmem:[%s2 + $0x370] sm:$0xff]
    %v176 = vld [vmem:[%s2 + $0x378] sm:$0xff]
    %v177 = vld [vmem:[%s2 + $0x380] sm:$0xff]
    %v178 = vld [vmem:[%s2 + $0x388] sm:$0xff]
    %v179 = vld [vmem:[%s2 + $0x390] sm:$0xff]
    %v180 = vld [vmem:[%s2 + $0x398] sm:$0xff]
    %v181 = vld [vmem:[%s2 + $0x3a0] sm:$0xff]
    %v182 = vld [vmem:[%s2 + $0x3a8] sm:$0xff]
    %v183 = vld [vmem:[%s2 + $0x3b0] sm:$0xff]
    %v184 = vld [vmem:[%s2 + $0x3b8] sm:$0xff]
    %v185 = vld [vmem:[%s2 + $0x3c0] sm:$0xff]
    %v186 = vld [vmem:[%s2 + $0x3c8] sm:$0xff]
    %v187 = vld [vmem:[%s2 + $0x3d0] sm:$0xff]
    %v188 = vld [vmem:[%s2 + $0x3d8] sm:$0xff]
    %v189 = vld [vmem:[%s2 + $0x3e0] sm:$0xff]
    %v190 = vld [vmem:[%s2 + $0x3e8] sm:$0xff]
    %v191 = vld [vmem:[%s2 + $0x3f0] sm:$0xff]
    %v192 = vld [vmem:[%s2 + $0x3f8] sm:$0xff]
    %v193 = vld [vmem:[%s2 + $0x400] sm:$0xff]
    %v194 = vld [vmem:[%s2 + $0x408] sm:$0xff]
    %v195 = vld [vmem:[%s2 + $0x410] sm:$0xff]
    %v196 = vld [vmem:[%s2 + $0x418] sm:$0xff]
    %v197 = vld [vmem:[%s2 + $0x420] sm:$0xff]
    %v198 = vld [vmem:[%s2 + $0x428] sm:$0xff]
    %v199 = vld [vmem:[%s2 + $0x430] sm:$0xff]
    %v200 = vld [vmem:[%s2 + $0x438] sm:$0xff]
    %v201 = vld [vmem:[%s2 + $0x440] sm:$0xff]
    %v202 = vld [vmem:[%s2 + $0x448] sm:$0xff]
    %v203 = vld [vmem:[%s2 + $0x450] sm:$0xff]
    %v204 = vld [vmem:[%s2 + $0x458] sm:$0xff]
    %v205 = vld [vmem:[%s2 + $0x460] sm:$0xff]
    %v206 = vld [vmem:[%s2 + $0x468] sm:$0xff]
    %v207 = vld [vmem:[%s2 + $0x470] sm:$0xff]
    %v208 = vld [vmem:[%s2 + $0x478] sm:$0xff]
    %v209 = vld [vmem:[%s2 + $0x480] sm:$0xff]
    %v210 = vld [vmem:[%s2 + $0x488] sm:$0xff]
    %v211 = vld [vmem:[%s2 + $0x490] sm:$0xff]
    %v212 = vld [vmem:[%s2 + $0x498] sm:$0xff]
    %v213 = vld [vmem:[%s2 + $0x4a0] sm:$0xff]
    %v214 = vld [vmem:[%s2 + $0x4a8] sm:$0xff]
    %v215 = vld [vmem:[%s2 + $0x4b0] sm:$0xff]
    %v216 = vld [vmem:[%s2 + $0x4b8] sm:$0xff]
    %v217 = vld [vmem:[%s2 + $0x4c0] sm:$0xff]
    %v218 = vld [vmem:[%s2 + $0x4c8] sm:$0xff]
    %v219 = vld [vmem:[%s2 + $0x4d0] sm:$0xff]
    %v220 = vld [vmem:[%s2 + $0x4d8] sm:$0xff]
    %v221 = vld [vmem:[%s2 + $0x4e0] sm:$0xff]
    %v222 = vld [vmem:[%s2 + $0x4e8] sm:$0xff]
    %v223 = vld [vmem:[%s2 + $0x4f0] sm:$0xff]
    %v224 = vld [vmem:[%s2 + $0x4f8] sm:$0xff]
    %v225 = vld [vmem:[%s2 + $0x500] sm:$0xff]
    %v226 = vld [vmem:[%s2 + $0x508] sm:$0xff]
    %v227 = vld [vmem:[%s2 + $0x510] sm:$0xff]
    %v228 = vld [vmem:[%s2 + $0x518] sm:$0xff]
    %v229 = vld [vmem:[%s2 + $0x520] sm:$0xff]
    %v230 = vld [vmem:[%s2 + $0x528] sm:$0xff]
    %v231 = vld [vmem:[%s2 + $0x530] sm:$0xff]
    %v232 = vld [vmem:[%s2 + $0x538] sm:$0xff]
    %v233 = vld [vmem:[%s2 + $0x540] sm:$0xff]
    %v234 = vld [vmem:[%s2 + $0x548] sm:$0xff]
    %v235 = vld [vmem:[%s2 + $0x550] sm:$0xff]
    %v236 = vld [vmem:[%s2 + $0x558] sm:$0xff]
    %v237 = vld [vmem:[%s2 + $0x560] sm:$0xff]
    %v238 = vld [vmem:[%s2 + $0x568] sm:$0xff]
    %v239 = vld [vmem:[%s2 + $0x570] sm:$0xff]
    %v240 = vld [vmem:[%s2 + $0x578] sm:$0xff]
    %v241 = vld [vmem:[%s2 + $0x580] sm:$0xff]
    %v242 = vld [vmem:[%s2 + $0x588] sm:$0xff]
    %v243 = vld [vmem:[%s2 + $0x590] sm:$0xff]
    %v244 = vld [vmem:[%s2 + $0x598] sm:$0xff]
    %v245 = vld [vmem:[%s2 + $0x5a0] sm:$0xff]
    %v246 = vld [vmem:[%s2 + $0x5a8] sm:$0xff]
    %v247 = vld [vmem:[%s2 + $0x5b0] sm:$0xff]
    %v248 = vld [vmem:[%s2 + $0x5b8] sm:$0xff]
    %v249 = vld [vmem:[%s2 + $0x5c0] sm:$0xff]
    %v250 = vld [vmem:[%s2 + $0x5c8] sm:$0xff]
    %v251 = vld [vmem:[%s2 + $0x5d0] sm:$0xff]
    %v252 = vld [vmem:[%s2 + $0x5d8] sm:$0xff]
    %v253 = vld [vmem:[%s2 + $0x5e0] sm:$0xff]
    %v254 = vld [vmem:[%s2 + $0x5e8] sm:$0xff]
    %v255 = vld [vmem:[%s2 + $0x5f0] sm:$0xff]
    %v256 = vld [vmem:[%s2 + $0x5f8] sm:$0xff]
    %v257 = vld [vmem:[%s2 + $0x600] sm:$0xff]
    %v258 = vld [vmem:[%s2 + $0x608] sm:$0xff]
    %v259 = vld [vmem:[%s2 + $0x610] sm:$0xff]
    %v260 = vld [vmem:[%s2 + $0x618] sm:$0xff]
    %v261 = vld [vmem:[%s3] sm:$0xf]
    %v263 = vperm.slane %v261, 0
    %v264 = vperm.slane %v261, 1
    %v265 = vperm.slane %v261, 2
    %v266 = vperm.slane %v261, 3
    %v467 = vunpack.c.l.b16 %v65
    %v468 = vunpack.c.h.b16 %v65
    %v469 = vunpack.c.l.b16 %v66
    %v470 = vunpack.c.h.b16 %v66
    %v471 = vunpack.c.l.b16 %v67
    %v472 = vunpack.c.h.b16 %v67
    %v473 = vunpack.c.l.b16 %v68
    %v474 = vunpack.c.h.b16 %v68
    %v475 = vunpack.c.l.b16 %v69
    %v476 = vunpack.c.h.b16 %v69
    %v477 = vunpack.c.l.b16 %v70
    %v478 = vunpack.c.h.b16 %v70
    %v479 = vunpack.c.l.b16 %v71
    %v480 = vunpack.c.h.b16 %v71
    %v481 = vunpack.c.l.b16 %v72
    %v482 = vunpack.c.h.b16 %v72
    %v483 = vunpack.c.l.b16 %v73
    %v484 = vunpack.c.h.b16 %v73
    %v485 = vunpack.c.l.b16 %v74
    %v486 = vunpack.c.h.b16 %v74
    %v487 = vunpack.c.l.b16 %v75
    %v488 = vunpack.c.h.b16 %v75
    %v489 = vunpack.c.l.b16 %v76
    %v490 = vunpack.c.h.b16 %v76
    %v491 = vunpack.c.l.b16 %v77
    %v492 = vunpack.c.h.b16 %v77
    %v493 = vunpack.c.l.b16 %v78
    %v494 = vunpack.c.h.b16 %v78
    %v495 = vunpack.c.l.b16 %v79
    %v496 = vunpack.c.h.b16 %v79
    %v497 = vunpack.c.l.b16 %v80
    %v498 = vunpack.c.h.b16 %v80
    %v499 = vunpack.c.l.b16 %v81
    %v500 = vunpack.c.h.b16 %v81
    %v501 = vunpack.c.l.b16 %v82
    %v502 = vunpack.c.h.b16 %v82
    %v503 = vunpack.c.l.b16 %v83
    %v504 = vunpack.c.h.b16 %v83
    %v505 = vunpack.c.l.b16 %v84
    %v506 = vunpack.c.h.b16 %v84
    %v507 = vunpack.c.l.b16 %v85
    %v508 = vunpack.c.h.b16 %v85
    %v509 = vunpack.c.l.b16 %v86
    %v510 = vunpack.c.h.b16 %v86
    %v511 = vunpack.c.l.b16 %v87
    %v512 = vunpack.c.h.b16 %v87
    %v513 = vunpack.c.l.b16 %v88
    %v514 = vunpack.c.h.b16 %v88
    %v515 = vunpack.c.l.b16 %v89
    %v516 = vunpack.c.h.b16 %v89
    %v517 = vunpack.c.l.b16 %v90
    %v518 = vunpack.c.h.b16 %v90
    %v519 = vunpack.c.l.b16 %v91
    %v520 = vunpack.c.h.b16 %v91
    %v521 = vunpack.c.l.b16 %v92
    %v522 = vunpack.c.h.b16 %v92
    %v523 = vunpack.c.l.b16 %v93
    %v524 = vunpack.c.h.b16 %v93
    %v525 = vunpack.c.l.b16 %v94
    %v526 = vunpack.c.h.b16 %v94
    %v527 = vunpack.c.l.b16 %v95
    %v528 = vunpack.c.h.b16 %v95
    %v529 = vunpack.c.l.b16 %v96
    %v530 = vunpack.c.h.b16 %v96
    %v531 = vunpack.c.l.b16 %v97
    %v532 = vunpack.c.h.b16 %v97
    %v533 = vunpack.c.l.b16 %v98
    %v534 = vunpack.c.h.b16 %v98
    %v535 = vunpack.c.l.b16 %v99
    %v536 = vunpack.c.h.b16 %v99
    %v537 = vunpack.c.l.b16 %v100
    %v538 = vunpack.c.h.b16 %v100
    %v539 = vunpack.c.l.b16 %v101
    %v540 = vunpack.c.h.b16 %v101
    %v541 = vunpack.c.l.b16 %v102
    %v542 = vunpack.c.h.b16 %v102
    %v543 = vunpack.c.l.b16 %v103
    %v544 = vunpack.c.h.b16 %v103
    %v545 = vunpack.c.l.b16 %v104
    %v546 = vunpack.c.h.b16 %v104
    %v547 = vunpack.c.l.b16 %v105
    %v548 = vunpack.c.h.b16 %v105
    %v549 = vunpack.c.l.b16 %v106
    %v550 = vunpack.c.h.b16 %v106
    %v551 = vunpack.c.l.b16 %v107
    %v552 = vunpack.c.h.b16 %v107
    %v553 = vunpack.c.l.b16 %v108
    %v554 = vunpack.c.h.b16 %v108
    %v555 = vunpack.c.l.b16 %v109
    %v556 = vunpack.c.h.b16 %v109
    %v557 = vunpack.c.l.b16 %v110
    %v558 = vunpack.c.h.b16 %v110
    %v559 = vunpack.c.l.b16 %v111
    %v560 = vunpack.c.h.b16 %v111
    %v561 = vunpack.c.l.b16 %v112
    %v562 = vunpack.c.h.b16 %v112
    %v563 = vunpack.c.l.b16 %v113
    %v564 = vunpack.c.h.b16 %v113
    %v565 = vunpack.c.l.b16 %v114
    %v566 = vunpack.c.h.b16 %v114
    %v567 = vunpack.c.l.b16 %v115
    %v568 = vunpack.c.h.b16 %v115
    %v569 = vunpack.c.l.b16 %v116
    %v570 = vunpack.c.h.b16 %v116
    %v571 = vunpack.c.l.b16 %v117
    %v572 = vunpack.c.h.b16 %v117
    %v573 = vunpack.c.l.b16 %v118
    %v574 = vunpack.c.h.b16 %v118
    %v575 = vunpack.c.l.b16 %v119
    %v576 = vunpack.c.h.b16 %v119
    %v577 = vunpack.c.l.b16 %v120
    %v578 = vunpack.c.h.b16 %v120
    %v579 = vunpack.c.l.b16 %v121
    %v580 = vunpack.c.h.b16 %v121
    %v581 = vunpack.c.l.b16 %v122
    %v582 = vunpack.c.h.b16 %v122
    %v583 = vunpack.c.l.b16 %v123
    %v584 = vunpack.c.h.b16 %v123
    %v585 = vunpack.c.l.b16 %v124
    %v586 = vunpack.c.h.b16 %v124
    %v587 = vunpack.c.l.b16 %v125
    %v588 = vunpack.c.h.b16 %v125
    %v589 = vunpack.c.l.b16 %v126
    %v590 = vunpack.c.h.b16 %v126
    %v591 = vunpack.c.l.b16 %v127
    %v592 = vunpack.c.h.b16 %v127
    %v593 = vunpack.c.l.b16 %v128
    %v594 = vunpack.c.h.b16 %v128
    %v595 = vunpack.c.l.b16 %v129
    %v596 = vunpack.c.h.b16 %v129
    %v597 = vunpack.c.l.b16 %v130
    %v598 = vunpack.c.h.b16 %v130
    %v599 = vunpack.c.l.b16 %v131
    %v600 = vunpack.c.h.b16 %v131
    %v601 = vunpack.c.l.b16 %v132
    %v602 = vunpack.c.h.b16 %v132
    %v603 = vunpack.c.l.b16 %v133
    %v604 = vunpack.c.h.b16 %v133
    %v605 = vunpack.c.l.b16 %v134
    %v606 = vunpack.c.h.b16 %v134
    %v607 = vunpack.c.l.b16 %v135
    %v608 = vunpack.c.h.b16 %v135
    %v609 = vunpack.c.l.b16 %v136
    %v610 = vunpack.c.h.b16 %v136
    %v611 = vunpack.c.l.b16 %v137
    %v612 = vunpack.c.h.b16 %v137
    %v613 = vunpack.c.l.b16 %v138
    %v614 = vunpack.c.h.b16 %v138
    %v615 = vunpack.c.l.b16 %v139
    %v616 = vunpack.c.h.b16 %v139
    %v617 = vunpack.c.l.b16 %v140
    %v618 = vunpack.c.h.b16 %v140
    %v619 = vunpack.c.l.b16 %v141
    %v620 = vunpack.c.h.b16 %v141
    %v621 = vunpack.c.l.b16 %v142
    %v622 = vunpack.c.h.b16 %v142
    %v623 = vunpack.c.l.b16 %v143
    %v624 = vunpack.c.h.b16 %v143
    %v625 = vunpack.c.l.b16 %v144
    %v626 = vunpack.c.h.b16 %v144
    %v627 = vunpack.c.l.b16 %v145
    %v628 = vunpack.c.h.b16 %v145
    %v629 = vunpack.c.l.b16 %v146
    %v630 = vunpack.c.h.b16 %v146
    %v631 = vunpack.c.l.b16 %v147
    %v632 = vunpack.c.h.b16 %v147
    %v633 = vunpack.c.l.b16 %v148
    %v634 = vunpack.c.h.b16 %v148
    %v635 = vunpack.c.l.b16 %v149
    %v636 = vunpack.c.h.b16 %v149
    %v637 = vunpack.c.l.b16 %v150
    %v638 = vunpack.c.h.b16 %v150
    %v639 = vunpack.c.l.b16 %v151
    %v640 = vunpack.c.h.b16 %v151
    %v641 = vunpack.c.l.b16 %v152
    %v642 = vunpack.c.h.b16 %v152
    %v643 = vunpack.c.l.b16 %v153
    %v644 = vunpack.c.h.b16 %v153
    %v645 = vunpack.c.l.b16 %v154
    %v646 = vunpack.c.h.b16 %v154
    %v647 = vunpack.c.l.b16 %v155
    %v648 = vunpack.c.h.b16 %v155
    %v649 = vunpack.c.l.b16 %v156
    %v650 = vunpack.c.h.b16 %v156
    %v651 = vunpack.c.l.b16 %v157
    %v652 = vunpack.c.h.b16 %v157
    %v653 = vunpack.c.l.b16 %v158
    %v654 = vunpack.c.h.b16 %v158
    %v655 = vunpack.c.l.b16 %v159
    %v656 = vunpack.c.h.b16 %v159
    %v657 = vunpack.c.l.b16 %v160
    %v658 = vunpack.c.h.b16 %v160
    %v659 = vunpack.c.l.b16 %v161
    %v660 = vunpack.c.h.b16 %v161
    %v661 = vunpack.c.l.b16 %v162
    %v662 = vunpack.c.h.b16 %v162
    %v663 = vunpack.c.l.b16 %v163
    %v664 = vunpack.c.h.b16 %v163
    %v665 = vunpack.c.l.b16 %v164
    %v666 = vunpack.c.h.b16 %v164
    %v667 = vunpack.c.l.b16 %v165
    %v668 = vunpack.c.h.b16 %v165
    %v669 = vunpack.c.l.b16 %v166
    %v670 = vunpack.c.h.b16 %v166
    %v671 = vunpack.c.l.b16 %v167
    %v672 = vunpack.c.h.b16 %v167
    %v673 = vunpack.c.l.b16 %v168
    %v674 = vunpack.c.h.b16 %v168
    %v675 = vunpack.c.l.b16 %v169
    %v676 = vunpack.c.h.b16 %v169
    %v677 = vunpack.c.l.b16 %v170
    %v678 = vunpack.c.h.b16 %v170
    %v679 = vunpack.c.l.b16 %v171
    %v680 = vunpack.c.h.b16 %v171
    %v681 = vunpack.c.l.b16 %v172
    %v682 = vunpack.c.h.b16 %v172
    %v683 = vunpack.c.l.b16 %v173
    %v684 = vunpack.c.h.b16 %v173
    %v685 = vunpack.c.l.b16 %v174
    %v686 = vunpack.c.h.b16 %v174
    %v687 = vunpack.c.l.b16 %v175
    %v688 = vunpack.c.h.b16 %v175
    %v689 = vunpack.c.l.b16 %v176
    %v690 = vunpack.c.h.b16 %v176
    %v691 = vunpack.c.l.b16 %v177
    %v692 = vunpack.c.h.b16 %v177
    %v693 = vunpack.c.l.b16 %v178
    %v694 = vunpack.c.h.b16 %v178
    %v695 = vunpack.c.l.b16 %v179
    %v696 = vunpack.c.h.b16 %v179
    %v697 = vunpack.c.l.b16 %v180
    %v698 = vunpack.c.h.b16 %v180
    %v699 = vunpack.c.l.b16 %v181
    %v700 = vunpack.c.h.b16 %v181
    %v701 = vunpack.c.l.b16 %v182
    %v702 = vunpack.c.h.b16 %v182
    %v703 = vunpack.c.l.b16 %v183
    %v704 = vunpack.c.h.b16 %v183
    %v705 = vunpack.c.l.b16 %v184
    %v706 = vunpack.c.h.b16 %v184
    %v707 = vunpack.c.l.b16 %v185
    %v708 = vunpack.c.h.b16 %v185
    %v709 = vunpack.c.l.b16 %v186
    %v710 = vunpack.c.h.b16 %v186
    %v711 = vunpack.c.l.b16 %v187
    %v712 = vunpack.c.h.b16 %v187
    %v713 = vunpack.c.l.b16 %v188
    %v714 = vunpack.c.h.b16 %v188
    %v715 = vunpack.c.l.b16 %v189
    %v716 = vunpack.c.h.b16 %v189
    %v717 = vunpack.c.l.b16 %v190
    %v718 = vunpack.c.h.b16 %v190
    %v719 = vunpack.c.l.b16 %v191
    %v720 = vunpack.c.h.b16 %v191
    %v721 = vunpack.c.l.b16 %v192
    %v722 = vunpack.c.h.b16 %v192
    %v723 = vunpack.c.l.b16 %v193
    %v724 = vunpack.c.h.b16 %v193
    %v725 = vunpack.c.l.b16 %v194
    %v726 = vunpack.c.h.b16 %v194
    %v727 = vunpack.c.l.b16 %v195
    %v728 = vunpack.c.h.b16 %v195
    %v729 = vunpack.c.l.b16 %v196
    %v730 = vunpack.c.h.b16 %v196
    %v731 = vunpack.c.l.b16 %v197
    %v732 = vunpack.c.h.b16 %v197
    %v733 = vunpack.c.l.b16 %v198
    %v734 = vunpack.c.h.b16 %v198
    %v735 = vunpack.c.l.b16 %v199
    %v736 = vunpack.c.h.b16 %v199
    %v737 = vunpack.c.l.b16 %v200
    %v738 = vunpack.c.h.b16 %v200
    %v739 = vunpack.c.l.b16 %v201
    %v740 = vunpack.c.h.b16 %v201
    %v741 = vunpack.c.l.b16 %v202
    %v742 = vunpack.c.h.b16 %v202
    %v743 = vunpack.c.l.b16 %v203
    %v744 = vunpack.c.h.b16 %v203
    %v745 = vunpack.c.l.b16 %v204
    %v746 = vunpack.c.h.b16 %v204
    %v747 = vunpack.c.l.b16 %v205
    %v748 = vunpack.c.h.b16 %v205
    %v749 = vunpack.c.l.b16 %v206
    %v750 = vunpack.c.h.b16 %v206
    %v751 = vunpack.c.l.b16 %v207
    %v752 = vunpack.c.h.b16 %v207
    %v753 = vunpack.c.l.b16 %v208
    %v754 = vunpack.c.h.b16 %v208
    %v755 = vunpack.c.l.b16 %v209
    %v756 = vunpack.c.h.b16 %v209
    %v757 = vunpack.c.l.b16 %v210
    %v758 = vunpack.c.h.b16 %v210
    %v759 = vunpack.c.l.b16 %v211
    %v760 = vunpack.c.h.b16 %v211
    %v761 = vunpack.c.l.b16 %v212
    %v762 = vunpack.c.h.b16 %v212
    %v763 = vunpack.c.l.b16 %v213
    %v764 = vunpack.c.h.b16 %v213
    %v765 = vunpack.c.l.b16 %v214
    %v766 = vunpack.c.h.b16 %v214
    %v767 = vunpack.c.l.b16 %v215
    %v768 = vunpack.c.h.b16 %v215
    %v769 = vunpack.c.l.b16 %v216
    %v770 = vunpack.c.h.b16 %v216
    %v771 = vunpack.c.l.b16 %v217
    %v772 = vunpack.c.h.b16 %v217
    %v773 = vunpack.c.l.b16 %v218
    %v774 = vunpack.c.h.b16 %v218
    %v775 = vunpack.c.l.b16 %v219
    %v776 = vunpack.c.h.b16 %v219
    %v777 = vunpack.c.l.b16 %v220
    %v778 = vunpack.c.h.b16 %v220
    %v779 = vunpack.c.l.b16 %v221
    %v780 = vunpack.c.h.b16 %v221
    %v781 = vunpack.c.l.b16 %v222
    %v782 = vunpack.c.h.b16 %v222
    %v783 = vunpack.c.l.b16 %v223
    %v784 = vunpack.c.h.b16 %v223
    %v785 = vunpack.c.l.b16 %v224
    %v786 = vunpack.c.h.b16 %v224
    %v787 = vunpack.c.l.b16 %v225
    %v788 = vunpack.c.h.b16 %v225
    %v789 = vunpack.c.l.b16 %v226
    %v790 = vunpack.c.h.b16 %v226
    %v791 = vunpack.c.l.b16 %v227
    %v792 = vunpack.c.h.b16 %v227
    %v793 = vunpack.c.l.b16 %v228
    %v794 = vunpack.c.h.b16 %v228
    %v795 = vunpack.c.l.b16 %v229
    %v796 = vunpack.c.h.b16 %v229
    %v797 = vunpack.c.l.b16 %v230
    %v798 = vunpack.c.h.b16 %v230
    %v799 = vunpack.c.l.b16 %v231
    %v800 = vunpack.c.h.b16 %v231
    %v801 = vunpack.c.l.b16 %v232
    %v802 = vunpack.c.h.b16 %v232
    %v803 = vunpack.c.l.b16 %v233
    %v804 = vunpack.c.h.b16 %v233
    %v805 = vunpack.c.l.b16 %v234
    %v806 = vunpack.c.h.b16 %v234
    %v807 = vunpack.c.l.b16 %v235
    %v808 = vunpack.c.h.b16 %v235
    %v809 = vunpack.c.l.b16 %v236
    %v810 = vunpack.c.h.b16 %v236
    %v811 = vunpack.c.l.b16 %v237
    %v812 = vunpack.c.h.b16 %v237
    %v813 = vunpack.c.l.b16 %v238
    %v814 = vunpack.c.h.b16 %v238
    %v815 = vunpack.c.l.b16 %v239
    %v816 = vunpack.c.h.b16 %v239
    %v817 = vunpack.c.l.b16 %v240
    %v818 = vunpack.c.h.b16 %v240
    %v819 = vunpack.c.l.b16 %v241
    %v820 = vunpack.c.h.b16 %v241
    %v821 = vunpack.c.l.b16 %v242
    %v822 = vunpack.c.h.b16 %v242
    %v823 = vunpack.c.l.b16 %v243
    %v824 = vunpack.c.h.b16 %v243
    %v825 = vunpack.c.l.b16 %v244
    %v826 = vunpack.c.h.b16 %v244
    %v827 = vunpack.c.l.b16 %v245
    %v828 = vunpack.c.h.b16 %v245
    %v829 = vunpack.c.l.b16 %v246
    %v830 = vunpack.c.h.b16 %v246
    %v831 = vunpack.c.l.b16 %v247
    %v832 = vunpack.c.h.b16 %v247
    %v833 = vunpack.c.l.b16 %v248
    %v834 = vunpack.c.h.b16 %v248
    %v835 = vunpack.c.l.b16 %v249
    %v836 = vunpack.c.h.b16 %v249
    %v837 = vunpack.c.l.b16 %v250
    %v838 = vunpack.c.h.b16 %v250
    %v839 = vunpack.c.l.b16 %v251
    %v840 = vunpack.c.h.b16 %v251
    %v841 = vunpack.c.l.b16 %v252
    %v842 = vunpack.c.h.b16 %v252
    %v843 = vunpack.c.l.b16 %v253
    %v844 = vunpack.c.h.b16 %v253
    %v845 = vunpack.c.l.b16 %v254
    %v846 = vunpack.c.h.b16 %v254
    %v847 = vunpack.c.l.b16 %v255
    %v848 = vunpack.c.h.b16 %v255
    %v849 = vunpack.c.l.b16 %v256
    %v850 = vunpack.c.h.b16 %v256
    %v851 = vunpack.c.l.b16 %v257
    %v852 = vunpack.c.h.b16 %v257
    %v853 = vunpack.c.l.b16 %v258
    %v854 = vunpack.c.h.b16 %v258
    %v855 = vunpack.c.l.b16 %v259
    %v856 = vunpack.c.h.b16 %v259
    %v857 = vunpack.c.l.b16 %v260
    %v858 = vunpack.c.h.b16 %v260
    %v859 = vpack.c.b16 %v471, %v467
    %v860 = vpack.c.b16 %v472, %v468
    %v861 = vpack.c.b16 %v473, %v469
    %v862 = vpack.c.b16 %v474, %v470
    %v863 = vpack.c.b16 %v479, %v475
    %v864 = vpack.c.b16 %v480, %v476
    %v865 = vpack.c.b16 %v481, %v477
    %v866 = vpack.c.b16 %v482, %v478
    %v867 = vpack.c.b16 %v487, %v483
    %v868 = vpack.c.b16 %v488, %v484
    %v869 = vpack.c.b16 %v489, %v485
    %v870 = vpack.c.b16 %v490, %v486
    %v871 = vpack.c.b16 %v495, %v491
    %v872 = vpack.c.b16 %v496, %v492
    %v873 = vpack.c.b16 %v497, %v493
    %v874 = vpack.c.b16 %v498, %v494
    %v875 = vpack.c.b16 %v503, %v499
    %v876 = vpack.c.b16 %v504, %v500
    %v877 = vpack.c.b16 %v505, %v501
    %v878 = vpack.c.b16 %v506, %v502
    %v879 = vpack.c.b16 %v511, %v507
    %v880 = vpack.c.b16 %v512, %v508
    %v881 = vpack.c.b16 %v513, %v509
    %v882 = vpack.c.b16 %v514, %v510
    %v883 = vpack.c.b16 %v519, %v515
    %v884 = vpack.c.b16 %v520, %v516
    %v885 = vpack.c.b16 %v521, %v517
    %v886 = vpack.c.b16 %v522, %v518
    %v887 = vpack.c.b16 %v527, %v523
    %v888 = vpack.c.b16 %v528, %v524
    %v889 = vpack.c.b16 %v529, %v525
    %v890 = vpack.c.b16 %v530, %v526
    %v891 = vpack.c.b16 %v535, %v531
    %v892 = vpack.c.b16 %v536, %v532
    %v893 = vpack.c.b16 %v537, %v533
    %v894 = vpack.c.b16 %v538, %v534
    %v895 = vpack.c.b16 %v543, %v539
    %v896 = vpack.c.b16 %v544, %v540
    %v897 = vpack.c.b16 %v545, %v541
    %v898 = vpack.c.b16 %v546, %v542
    %v899 = vpack.c.b16 %v551, %v547
    %v900 = vpack.c.b16 %v552, %v548
    %v901 = vpack.c.b16 %v553, %v549
    %v902 = vpack.c.b16 %v554, %v550
    %v903 = vpack.c.b16 %v559, %v555
    %v904 = vpack.c.b16 %v560, %v556
    %v905 = vpack.c.b16 %v561, %v557
    %v906 = vpack.c.b16 %v562, %v558
    %v907 = vpack.c.b16 %v567, %v563
    %v908 = vpack.c.b16 %v568, %v564
    %v909 = vpack.c.b16 %v569, %v565
    %v910 = vpack.c.b16 %v570, %v566
    %v911 = vpack.c.b16 %v575, %v571
    %v912 = vpack.c.b16 %v576, %v572
    %v913 = vpack.c.b16 %v577, %v573
    %v914 = vpack.c.b16 %v578, %v574
    %v915 = vpack.c.b16 %v583, %v579
    %v916 = vpack.c.b16 %v584, %v580
    %v917 = vpack.c.b16 %v585, %v581
    %v918 = vpack.c.b16 %v586, %v582
    %v919 = vpack.c.b16 %v591, %v587
    %v920 = vpack.c.b16 %v592, %v588
    %v921 = vpack.c.b16 %v593, %v589
    %v922 = vpack.c.b16 %v594, %v590
    %v923 = vpack.c.b16 %v599, %v595
    %v924 = vpack.c.b16 %v600, %v596
    %v925 = vpack.c.b16 %v601, %v597
    %v926 = vpack.c.b16 %v602, %v598
    %v927 = vpack.c.b16 %v607, %v603
    %v928 = vpack.c.b16 %v608, %v604
    %v929 = vpack.c.b16 %v609, %v605
    %v930 = vpack.c.b16 %v610, %v606
    %v931 = vpack.c.b16 %v615, %v611
    %v932 = vpack.c.b16 %v616, %v612
    %v933 = vpack.c.b16 %v617, %v613
    %v934 = vpack.c.b16 %v618, %v614
    %v935 = vpack.c.b16 %v623, %v619
    %v936 = vpack.c.b16 %v624, %v620
    %v937 = vpack.c.b16 %v625, %v621
    %v938 = vpack.c.b16 %v626, %v622
    %v939 = vpack.c.b16 %v631, %v627
    %v940 = vpack.c.b16 %v632, %v628
    %v941 = vpack.c.b16 %v633, %v629
    %v942 = vpack.c.b16 %v634, %v630
    %v943 = vpack.c.b16 %v639, %v635
    %v944 = vpack.c.b16 %v640, %v636
    %v945 = vpack.c.b16 %v641, %v637
    %v946 = vpack.c.b16 %v642, %v638
    %v947 = vpack.c.b16 %v647, %v643
    %v948 = vpack.c.b16 %v648, %v644
    %v949 = vpack.c.b16 %v649, %v645
    %v950 = vpack.c.b16 %v650, %v646
    %v951 = vpack.c.b16 %v655, %v651
    %v952 = vpack.c.b16 %v656, %v652
    %v953 = vpack.c.b16 %v657, %v653
    %v954 = vpack.c.b16 %v658, %v654
    %v955 = vpack.c.b16 %v663, %v659
    %v956 = vpack.c.b16 %v664, %v660
    %v957 = vpack.c.b16 %v665, %v661
    %v958 = vpack.c.b16 %v666, %v662
    %v959 = vpack.c.b16 %v671, %v667
    %v960 = vpack.c.b16 %v672, %v668
    %v961 = vpack.c.b16 %v673, %v669
    %v962 = vpack.c.b16 %v674, %v670
    %v963 = vpack.c.b16 %v679, %v675
    %v964 = vpack.c.b16 %v680, %v676
    %v965 = vpack.c.b16 %v681, %v677
    %v966 = vpack.c.b16 %v682, %v678
    %v967 = vpack.c.b16 %v687, %v683
    %v968 = vpack.c.b16 %v688, %v684
    %v969 = vpack.c.b16 %v689, %v685
    %v970 = vpack.c.b16 %v690, %v686
    %v971 = vpack.c.b16 %v695, %v691
    %v972 = vpack.c.b16 %v696, %v692
    %v973 = vpack.c.b16 %v697, %v693
    %v974 = vpack.c.b16 %v698, %v694
    %v975 = vpack.c.b16 %v703, %v699
    %v976 = vpack.c.b16 %v704, %v700
    %v977 = vpack.c.b16 %v705, %v701
    %v978 = vpack.c.b16 %v706, %v702
    %v979 = vpack.c.b16 %v711, %v707
    %v980 = vpack.c.b16 %v712, %v708
    %v981 = vpack.c.b16 %v713, %v709
    %v982 = vpack.c.b16 %v714, %v710
    %v983 = vpack.c.b16 %v719, %v715
    %v984 = vpack.c.b16 %v720, %v716
    %v985 = vpack.c.b16 %v721, %v717
    %v986 = vpack.c.b16 %v722, %v718
    %v987 = vpack.c.b16 %v727, %v723
    %v988 = vpack.c.b16 %v728, %v724
    %v989 = vpack.c.b16 %v729, %v725
    %v990 = vpack.c.b16 %v730, %v726
    %v991 = vpack.c.b16 %v735, %v731
    %v992 = vpack.c.b16 %v736, %v732
    %v993 = vpack.c.b16 %v737, %v733
    %v994 = vpack.c.b16 %v738, %v734
    %v995 = vpack.c.b16 %v743, %v739
    %v996 = vpack.c.b16 %v744, %v740
    %v997 = vpack.c.b16 %v745, %v741
    %v998 = vpack.c.b16 %v746, %v742
    %v999 = vpack.c.b16 %v751, %v747
    %v1000 = vpack.c.b16 %v752, %v748
    %v1001 = vpack.c.b16 %v753, %v749
    %v1002 = vpack.c.b16 %v754, %v750
    %v1003 = vpack.c.b16 %v759, %v755
    %v1004 = vpack.c.b16 %v760, %v756
    %v1005 = vpack.c.b16 %v761, %v757
    %v1006 = vpack.c.b16 %v762, %v758
    %v1007 = vpack.c.b16 %v767, %v763
    %v1008 = vpack.c.b16 %v768, %v764
    %v1009 = vpack.c.b16 %v769, %v765
    %v1010 = vpack.c.b16 %v770, %v766
    %v1011 = vpack.c.b16 %v775, %v771
    %v1012 = vpack.c.b16 %v776, %v772
    %v1013 = vpack.c.b16 %v777, %v773
    %v1014 = vpack.c.b16 %v778, %v774
    %v1015 = vpack.c.b16 %v783, %v779
    %v1016 = vpack.c.b16 %v784, %v780
    %v1017 = vpack.c.b16 %v785, %v781
    %v1018 = vpack.c.b16 %v786, %v782
    %v1019 = vpack.c.b16 %v791, %v787
    %v1020 = vpack.c.b16 %v792, %v788
    %v1021 = vpack.c.b16 %v793, %v789
    %v1022 = vpack.c.b16 %v794, %v790
    %v1023 = vpack.c.b16 %v799, %v795
    %v1024 = vpack.c.b16 %v800, %v796
    %v1025 = vpack.c.b16 %v801, %v797
    %v1026 = vpack.c.b16 %v802, %v798
    %v1027 = vpack.c.b16 %v807, %v803
    %v1028 = vpack.c.b16 %v808, %v804
    %v1029 = vpack.c.b16 %v809, %v805
    %v1030 = vpack.c.b16 %v810, %v806
    %v1031 = vpack.c.b16 %v815, %v811
    %v1032 = vpack.c.b16 %v816, %v812
    %v1033 = vpack.c.b16 %v817, %v813
    %v1034 = vpack.c.b16 %v818, %v814
    %v1035 = vpack.c.b16 %v823, %v819
    %v1036 = vpack.c.b16 %v824, %v820
    %v1037 = vpack.c.b16 %v825, %v821
    %v1038 = vpack.c.b16 %v826, %v822
    %v1039 = vpack.c.b16 %v831, %v827
    %v1040 = vpack.c.b16 %v832, %v828
    %v1041 = vpack.c.b16 %v833, %v829
    %v1042 = vpack.c.b16 %v834, %v830
    %v1043 = vpack.c.b16 %v839, %v835
    %v1044 = vpack.c.b16 %v840, %v836
    %v1045 = vpack.c.b16 %v841, %v837
    %v1046 = vpack.c.b16 %v842, %v838
    %v1047 = vpack.c.b16 %v847, %v843
    %v1048 = vpack.c.b16 %v848, %v844
    %v1049 = vpack.c.b16 %v849, %v845
    %v1050 = vpack.c.b16 %v850, %v846
    %v1051 = vpack.c.b16 %v855, %v851
    %v1052 = vpack.c.b16 %v856, %v852
    %v1053 = vpack.c.b16 %v857, %v853
    %v1054 = vpack.c.b16 %v858, %v854
    %vm1251 = vcmask 130048
    %v1253 = vsel %vm1251, %v64, 0
    %1255 = vmatpush.bf16.msra.mxu0 %v887
    %1256 = vmatpush.bf16.msra.mxu0 %v883
    %1257 = vmatpush.bf16.msra.mxu0 %v879
    %1258 = vmatpush.bf16.msra.mxu0 %v875
    %1259 = vmatpush.bf16.msra.mxu0 %v871
    %1260 = vmatpush.bf16.msra.mxu0 %v867
    %1261 = vmatpush.bf16.msra.mxu0 %v863
    %1262 = vmatpush.bf16.msra.mxu0 %v859
    %1263 = vmatmul.bf16.gmra.mxu0 %v58
    %v1264 = vpop.f32.mrf.mxu0
    %v1265 = vadd.f32 %v263, %v1264
    %v1266 = vpop.f32.mrf.mxu0
    %1267 = vdwg.mxu0
    %1268 = vmatpush.bf16.msra.mxu0 %v919
    %1269 = vmatpush.bf16.msra.mxu0 %v915
    %1270 = vmatpush.bf16.msra.mxu0 %v911
    %1271 = vmatpush.bf16.msra.mxu0 %v907
    %1272 = vmatpush.bf16.msra.mxu0 %v903
    %1273 = vmatpush.bf16.msra.mxu0 %v899
    %1274 = vmatpush.bf16.msra.mxu0 %v895
    %1275 = vmatpush.bf16.msra.mxu0 %v891
    %1276 = vmatmul.bf16.gmra.mxu0 %v59
    %v1277 = vpop.f32.mrf.mxu0
    %v1278 = vadd.f32 %v1265, %v1277
    %v1279 = vpop.f32.mrf.mxu0
    %1280 = vdwg.mxu0
    %1281 = vmatpush.bf16.msra.mxu0 %v951
    %1282 = vmatpush.bf16.msra.mxu0 %v947
    %1283 = vmatpush.bf16.msra.mxu0 %v943
    %1284 = vmatpush.bf16.msra.mxu0 %v939
    %1285 = vmatpush.bf16.msra.mxu0 %v935
    %1286 = vmatpush.bf16.msra.mxu0 %v931
    %1287 = vmatpush.bf16.msra.mxu0 %v927
    %1288 = vmatpush.bf16.msra.mxu0 %v923
    %1289 = vmatmul.bf16.gmra.mxu0 %v60
    %v1290 = vpop.f32.mrf.mxu0
    %v1291 = vadd.f32 %v1278, %v1290
    %v1292 = vpop.f32.mrf.mxu0
    %1293 = vdwg.mxu0
    %1294 = vmatpush.bf16.msra.mxu0 %v983
    %1295 = vmatpush.bf16.msra.mxu0 %v979
    %1296 = vmatpush.bf16.msra.mxu0 %v975
    %1297 = vmatpush.bf16.msra.mxu0 %v971
    %1298 = vmatpush.bf16.msra.mxu0 %v967
    %1299 = vmatpush.bf16.msra.mxu0 %v963
    %1300 = vmatpush.bf16.msra.mxu0 %v959
    %1301 = vmatpush.bf16.msra.mxu0 %v955
    %1302 = vmatmul.bf16.gmra.mxu0 %v61
    %v1303 = vpop.f32.mrf.mxu0
    %v1304 = vadd.f32 %v1291, %v1303
    %v1305 = vpop.f32.mrf.mxu0
    %1306 = vdwg.mxu0
    %1307 = vmatpush.bf16.msra.mxu0 %v1015
    %1308 = vmatpush.bf16.msra.mxu0 %v1011
    %1309 = vmatpush.bf16.msra.mxu0 %v1007
    %1310 = vmatpush.bf16.msra.mxu0 %v1003
    %1311 = vmatpush.bf16.msra.mxu0 %v999
    %1312 = vmatpush.bf16.msra.mxu0 %v995
    %1313 = vmatpush.bf16.msra.mxu0 %v991
    %1314 = vmatpush.bf16.msra.mxu0 %v987
    %1315 = vmatmul.bf16.gmra.mxu0 %v62
    %v1316 = vpop.f32.mrf.mxu0
    %v1317 = vadd.f32 %v1304, %v1316
    %v1318 = vpop.f32.mrf.mxu0
    %1319 = vdwg.mxu0
    %1320 = vmatpush.bf16.msra.mxu0 %v1047
    %1321 = vmatpush.bf16.msra.mxu0 %v1043
    %1322 = vmatpush.bf16.msra.mxu0 %v1039
    %1323 = vmatpush.bf16.msra.mxu0 %v1035
    %1324 = vmatpush.bf16.msra.mxu0 %v1031
    %1325 = vmatpush.bf16.msra.mxu0 %v1027
    %1326 = vmatpush.bf16.msra.mxu0 %v1023
    %1327 = vmatpush.bf16.msra.mxu0 %v1019
    %1328 = vmatmul.bf16.gmra.mxu0 %v63
    %v1329 = vpop.f32.mrf.mxu0
    %v1330 = vadd.f32 %v1317, %v1329
    %v1331 = vpop.f32.mrf.mxu0
    %1332 = vdwg.mxu0
    %1333 = vmatpush.bf16.msra.mxu0 0
    %1334 = vmatpush.bf16.msra.mxu0 0
    %1335 = vmatpush.bf16.msra.mxu0 0
    %1336 = vmatpush.bf16.msra.mxu0 0
    %1337 = vmatpush.bf16.msra.mxu0 0
    %1338 = vmatpush.bf16.msra.mxu0 0
    %1339 = vmatpush.bf16.msra.mxu0 0
    %1340 = vmatpush.bf16.msra.mxu0 %v1051
    %1341 = vmatmul.bf16.gmra.mxu0 %v1253
    %v1342 = vpop.f32.mrf.mxu0
    %v1343 = vadd.f32 %v1330, %v1342
    %v1344 = vpop.f32.mrf.mxu0
    %1345 = vdwg.mxu0
    %1346 = vmatpush.bf16.msra.mxu0 %v888
    %1347 = vmatpush.bf16.msra.mxu0 %v884
    %1348 = vmatpush.bf16.msra.mxu0 %v880
    %1349 = vmatpush.bf16.msra.mxu0 %v876
    %1350 = vmatpush.bf16.msra.mxu0 %v872
    %1351 = vmatpush.bf16.msra.mxu0 %v868
    %1352 = vmatpush.bf16.msra.mxu0 %v864
    %1353 = vmatpush.bf16.msra.mxu0 %v860
    %1354 = vmatmul.bf16.gmra.mxu0 %v58
    %v1355 = vpop.f32.mrf.mxu0
    %v1356 = vadd.f32 %v264, %v1355
    %v1357 = vpop.f32.mrf.mxu0
    %1358 = vdwg.mxu0
    %1359 = vmatpush.bf16.msra.mxu0 %v920
    %1360 = vmatpush.bf16.msra.mxu0 %v916
    %1361 = vmatpush.bf16.msra.mxu0 %v912
    %1362 = vmatpush.bf16.msra.mxu0 %v908
    %1363 = vmatpush.bf16.msra.mxu0 %v904
    %1364 = vmatpush.bf16.msra.mxu0 %v900
    %1365 = vmatpush.bf16.msra.mxu0 %v896
    %1366 = vmatpush.bf16.msra.mxu0 %v892
    %1367 = vmatmul.bf16.gmra.mxu0 %v59
    %v1368 = vpop.f32.mrf.mxu0
    %v1369 = vadd.f32 %v1356, %v1368
    %v1370 = vpop.f32.mrf.mxu0
    %1371 = vdwg.mxu0
    %1372 = vmatpush.bf16.msra.mxu0 %v952
    %1373 = vmatpush.bf16.msra.mxu0 %v948
    %1374 = vmatpush.bf16.msra.mxu0 %v944
    %1375 = vmatpush.bf16.msra.mxu0 %v940
    %1376 = vmatpush.bf16.msra.mxu0 %v936
    %1377 = vmatpush.bf16.msra.mxu0 %v932
    %1378 = vmatpush.bf16.msra.mxu0 %v928
    %1379 = vmatpush.bf16.msra.mxu0 %v924
    %1380 = vmatmul.bf16.gmra.mxu0 %v60
    %v1381 = vpop.f32.mrf.mxu0
    %v1382 = vadd.f32 %v1369, %v1381
    %v1383 = vpop.f32.mrf.mxu0
    %1384 = vdwg.mxu0
    %1385 = vmatpush.bf16.msra.mxu0 %v984
    %1386 = vmatpush.bf16.msra.mxu0 %v980
    %1387 = vmatpush.bf16.msra.mxu0 %v976
    %1388 = vmatpush.bf16.msra.mxu0 %v972
    %1389 = vmatpush.bf16.msra.mxu0 %v968
    %1390 = vmatpush.bf16.msra.mxu0 %v964
    %1391 = vmatpush.bf16.msra.mxu0 %v960
    %1392 = vmatpush.bf16.msra.mxu0 %v956
    %1393 = vmatmul.bf16.gmra.mxu0 %v61
    %v1394 = vpop.f32.mrf.mxu0
    %v1395 = vadd.f32 %v1382, %v1394
    %v1396 = vpop.f32.mrf.mxu0
    %1397 = vdwg.mxu0
    %1398 = vmatpush.bf16.msra.mxu0 %v1016
    %1399 = vmatpush.bf16.msra.mxu0 %v1012
    %1400 = vmatpush.bf16.msra.mxu0 %v1008
    %1401 = vmatpush.bf16.msra.mxu0 %v1004
    %1402 = vmatpush.bf16.msra.mxu0 %v1000
    %1403 = vmatpush.bf16.msra.mxu0 %v996
    %1404 = vmatpush.bf16.msra.mxu0 %v992
    %1405 = vmatpush.bf16.msra.mxu0 %v988
    %1406 = vmatmul.bf16.gmra.mxu0 %v62
    %v1407 = vpop.f32.mrf.mxu0
    %v1408 = vadd.f32 %v1395, %v1407
    %v1409 = vpop.f32.mrf.mxu0
    %1410 = vdwg.mxu0
    %1411 = vmatpush.bf16.msra.mxu0 %v1048
    %1412 = vmatpush.bf16.msra.mxu0 %v1044
    %1413 = vmatpush.bf16.msra.mxu0 %v1040
    %1414 = vmatpush.bf16.msra.mxu0 %v1036
    %1415 = vmatpush.bf16.msra.mxu0 %v1032
    %1416 = vmatpush.bf16.msra.mxu0 %v1028
    %1417 = vmatpush.bf16.msra.mxu0 %v1024
    %1418 = vmatpush.bf16.msra.mxu0 %v1020
    %1419 = vmatmul.bf16.gmra.mxu0 %v63
    %v1420 = vpop.f32.mrf.mxu0
    %v1421 = vadd.f32 %v1408, %v1420
    %v1422 = vpop.f32.mrf.mxu0
    %1423 = vdwg.mxu0
    %1424 = vmatpush.bf16.msra.mxu0 0
    %1425 = vmatpush.bf16.msra.mxu0 0
    %1426 = vmatpush.bf16.msra.mxu0 0
    %1427 = vmatpush.bf16.msra.mxu0 0
    %1428 = vmatpush.bf16.msra.mxu0 0
    %1429 = vmatpush.bf16.msra.mxu0 0
    %1430 = vmatpush.bf16.msra.mxu0 0
    %1431 = vmatpush.bf16.msra.mxu0 %v1052
    %1432 = vmatmul.bf16.gmra.mxu0 %v1253
    %v1433 = vpop.f32.mrf.mxu0
    %v1434 = vadd.f32 %v1421, %v1433
    %v1435 = vpop.f32.mrf.mxu0
    %1436 = vdwg.mxu0
    %1437 = vmatpush.bf16.msra.mxu0 %v889
    %1438 = vmatpush.bf16.msra.mxu0 %v885
    %1439 = vmatpush.bf16.msra.mxu0 %v881
    %1440 = vmatpush.bf16.msra.mxu0 %v877
    %1441 = vmatpush.bf16.msra.mxu0 %v873
    %1442 = vmatpush.bf16.msra.mxu0 %v869
    %1443 = vmatpush.bf16.msra.mxu0 %v865
    %1444 = vmatpush.bf16.msra.mxu0 %v861
    %1445 = vmatmul.bf16.gmra.mxu0 %v58
    %v1446 = vpop.f32.mrf.mxu0
    %v1447 = vadd.f32 %v265, %v1446
    %v1448 = vpop.f32.mrf.mxu0
    %1449 = vdwg.mxu0
    %1450 = vmatpush.bf16.msra.mxu0 %v921
    %1451 = vmatpush.bf16.msra.mxu0 %v917
    %1452 = vmatpush.bf16.msra.mxu0 %v913
    %1453 = vmatpush.bf16.msra.mxu0 %v909
    %1454 = vmatpush.bf16.msra.mxu0 %v905
    %1455 = vmatpush.bf16.msra.mxu0 %v901
    %1456 = vmatpush.bf16.msra.mxu0 %v897
    %1457 = vmatpush.bf16.msra.mxu0 %v893
    %1458 = vmatmul.bf16.gmra.mxu0 %v59
    %v1459 = vpop.f32.mrf.mxu0
    %v1460 = vadd.f32 %v1447, %v1459
    %v1461 = vpop.f32.mrf.mxu0
    %1462 = vdwg.mxu0
    %1463 = vmatpush.bf16.msra.mxu0 %v953
    %1464 = vmatpush.bf16.msra.mxu0 %v949
    %1465 = vmatpush.bf16.msra.mxu0 %v945
    %1466 = vmatpush.bf16.msra.mxu0 %v941
    %1467 = vmatpush.bf16.msra.mxu0 %v937
    %1468 = vmatpush.bf16.msra.mxu0 %v933
    %1469 = vmatpush.bf16.msra.mxu0 %v929
    %1470 = vmatpush.bf16.msra.mxu0 %v925
    %1471 = vmatmul.bf16.gmra.mxu0 %v60
    %v1472 = vpop.f32.mrf.mxu0
    %v1473 = vadd.f32 %v1460, %v1472
    %v1474 = vpop.f32.mrf.mxu0
    %1475 = vdwg.mxu0
    %1476 = vmatpush.bf16.msra.mxu0 %v985
    %1477 = vmatpush.bf16.msra.mxu0 %v981
    %1478 = vmatpush.bf16.msra.mxu0 %v977
    %1479 = vmatpush.bf16.msra.mxu0 %v973
    %1480 = vmatpush.bf16.msra.mxu0 %v969
    %1481 = vmatpush.bf16.msra.mxu0 %v965
    %1482 = vmatpush.bf16.msra.mxu0 %v961
    %1483 = vmatpush.bf16.msra.mxu0 %v957
    %1484 = vmatmul.bf16.gmra.mxu0 %v61
    %v1485 = vpop.f32.mrf.mxu0
    %v1486 = vadd.f32 %v1473, %v1485
    %v1487 = vpop.f32.mrf.mxu0
    %1488 = vdwg.mxu0
    %1489 = vmatpush.bf16.msra.mxu0 %v1017
    %1490 = vmatpush.bf16.msra.mxu0 %v1013
    %1491 = vmatpush.bf16.msra.mxu0 %v1009
    %1492 = vmatpush.bf16.msra.mxu0 %v1005
    %1493 = vmatpush.bf16.msra.mxu0 %v1001
    %1494 = vmatpush.bf16.msra.mxu0 %v997
    %1495 = vmatpush.bf16.msra.mxu0 %v993
    %1496 = vmatpush.bf16.msra.mxu0 %v989
    %1497 = vmatmul.bf16.gmra.mxu0 %v62
    %v1498 = vpop.f32.mrf.mxu0
    %v1499 = vadd.f32 %v1486, %v1498
    %v1500 = vpop.f32.mrf.mxu0
    %1501 = vdwg.mxu0
    %1502 = vmatpush.bf16.msra.mxu0 %v1049
    %1503 = vmatpush.bf16.msra.mxu0 %v1045
    %1504 = vmatpush.bf16.msra.mxu0 %v1041
    %1505 = vmatpush.bf16.msra.mxu0 %v1037
    %1506 = vmatpush.bf16.msra.mxu0 %v1033
    %1507 = vmatpush.bf16.msra.mxu0 %v1029
    %1508 = vmatpush.bf16.msra.mxu0 %v1025
    %1509 = vmatpush.bf16.msra.mxu0 %v1021
    %1510 = vmatmul.bf16.gmra.mxu0 %v63
    %v1511 = vpop.f32.mrf.mxu0
    %v1512 = vadd.f32 %v1499, %v1511
    %v1513 = vpop.f32.mrf.mxu0
    %1514 = vdwg.mxu0
    %1515 = vmatpush.bf16.msra.mxu0 0
    %1516 = vmatpush.bf16.msra.mxu0 0
    %1517 = vmatpush.bf16.msra.mxu0 0
    %1518 = vmatpush.bf16.msra.mxu0 0
    %1519 = vmatpush.bf16.msra.mxu0 0
    %1520 = vmatpush.bf16.msra.mxu0 0
    %1521 = vmatpush.bf16.msra.mxu0 0
    %1522 = vmatpush.bf16.msra.mxu0 %v1053
    %1523 = vmatmul.bf16.gmra.mxu0 %v1253
    %v1524 = vpop.f32.mrf.mxu0
    %v1525 = vadd.f32 %v1512, %v1524
    %v1526 = vpop.f32.mrf.mxu0
    %1527 = vdwg.mxu0
    %1528 = vmatpush.bf16.msra.mxu0 %v890
    %1529 = vmatpush.bf16.msra.mxu0 %v886
    %1530 = vmatpush.bf16.msra.mxu0 %v882
    %1531 = vmatpush.bf16.msra.mxu0 %v878
    %1532 = vmatpush.bf16.msra.mxu0 %v874
    %1533 = vmatpush.bf16.msra.mxu0 %v870
    %1534 = vmatpush.bf16.msra.mxu0 %v866
    %1535 = vmatpush.bf16.msra.mxu0 %v862
    %1536 = vmatmul.bf16.gmra.mxu0 %v58
    %v1537 = vpop.f32.mrf.mxu0
    %v1538 = vadd.f32 %v266, %v1537
    %v1539 = vpop.f32.mrf.mxu0
    %1540 = vdwg.mxu0
    %1541 = vmatpush.bf16.msra.mxu0 %v922
    %1542 = vmatpush.bf16.msra.mxu0 %v918
    %1543 = vmatpush.bf16.msra.mxu0 %v914
    %1544 = vmatpush.bf16.msra.mxu0 %v910
    %1545 = vmatpush.bf16.msra.mxu0 %v906
    %1546 = vmatpush.bf16.msra.mxu0 %v902
    %1547 = vmatpush.bf16.msra.mxu0 %v898
    %1548 = vmatpush.bf16.msra.mxu0 %v894
    %1549 = vmatmul.bf16.gmra.mxu0 %v59
    %v1550 = vpop.f32.mrf.mxu0
    %v1551 = vadd.f32 %v1538, %v1550
    %v1552 = vpop.f32.mrf.mxu0
    %1553 = vdwg.mxu0
    %1554 = vmatpush.bf16.msra.mxu0 %v954
    %1555 = vmatpush.bf16.msra.mxu0 %v950
    %1556 = vmatpush.bf16.msra.mxu0 %v946
    %1557 = vmatpush.bf16.msra.mxu0 %v942
    %1558 = vmatpush.bf16.msra.mxu0 %v938
    %1559 = vmatpush.bf16.msra.mxu0 %v934
    %1560 = vmatpush.bf16.msra.mxu0 %v930
    %1561 = vmatpush.bf16.msra.mxu0 %v926
    %1562 = vmatmul.bf16.gmra.mxu0 %v60
    %v1563 = vpop.f32.mrf.mxu0
    %v1564 = vadd.f32 %v1551, %v1563
    %v1565 = vpop.f32.mrf.mxu0
    %1566 = vdwg.mxu0
    %1567 = vmatpush.bf16.msra.mxu0 %v986
    %1568 = vmatpush.bf16.msra.mxu0 %v982
    %1569 = vmatpush.bf16.msra.mxu0 %v978
    %1570 = vmatpush.bf16.msra.mxu0 %v974
    %1571 = vmatpush.bf16.msra.mxu0 %v970
    %1572 = vmatpush.bf16.msra.mxu0 %v966
    %1573 = vmatpush.bf16.msra.mxu0 %v962
    %1574 = vmatpush.bf16.msra.mxu0 %v958
    %1575 = vmatmul.bf16.gmra.mxu0 %v61
    %v1576 = vpop.f32.mrf.mxu0
    %v1577 = vadd.f32 %v1564, %v1576
    %v1578 = vpop.f32.mrf.mxu0
    %1579 = vdwg.mxu0
    %1580 = vmatpush.bf16.msra.mxu0 %v1018
    %1581 = vmatpush.bf16.msra.mxu0 %v1014
    %1582 = vmatpush.bf16.msra.mxu0 %v1010
    %1583 = vmatpush.bf16.msra.mxu0 %v1006
    %1584 = vmatpush.bf16.msra.mxu0 %v1002
    %1585 = vmatpush.bf16.msra.mxu0 %v998
    %1586 = vmatpush.bf16.msra.mxu0 %v994
    %1587 = vmatpush.bf16.msra.mxu0 %v990
    %1588 = vmatmul.bf16.gmra.mxu0 %v62
    %v1589 = vpop.f32.mrf.mxu0
    %v1590 = vadd.f32 %v1577, %v1589
    %v1591 = vpop.f32.mrf.mxu0
    %1592 = vdwg.mxu0
    %1593 = vmatpush.bf16.msra.mxu0 %v1050
    %1594 = vmatpush.bf16.msra.mxu0 %v1046
    %1595 = vmatpush.bf16.msra.mxu0 %v1042
    %1596 = vmatpush.bf16.msra.mxu0 %v1038
    %1597 = vmatpush.bf16.msra.mxu0 %v1034
    %1598 = vmatpush.bf16.msra.mxu0 %v1030
    %1599 = vmatpush.bf16.msra.mxu0 %v1026
    %1600 = vmatpush.bf16.msra.mxu0 %v1022
    %1601 = vmatmul.bf16.gmra.mxu0 %v63
    %v1602 = vpop.f32.mrf.mxu0
    %v1603 = vadd.f32 %v1590, %v1602
    %v1604 = vpop.f32.mrf.mxu0
    %1605 = vdwg.mxu0
    %1606 = vmatpush.bf16.msra.mxu0 0
    %1607 = vmatpush.bf16.msra.mxu0 0
    %1608 = vmatpush.bf16.msra.mxu0 0
    %1609 = vmatpush.bf16.msra.mxu0 0
    %1610 = vmatpush.bf16.msra.mxu0 0
    %1611 = vmatpush.bf16.msra.mxu0 0
    %1612 = vmatpush.bf16.msra.mxu0 0
    %1613 = vmatpush.bf16.msra.mxu0 %v1054
    %1614 = vmatmul.bf16.gmra.mxu0 %v1253
    %v1615 = vpop.f32.mrf.mxu0
    %v1616 = vadd.f32 %v1603, %v1615
    %v1617 = vpop.f32.mrf.mxu0
    %1618 = vdwg.mxu0
    %vm1619 = vcmp.gt.f32.partialorder %v1343, 0.0
    %vm1620 = vcmp.gt.f32.partialorder %v1434, 0.0
    %vm1621 = vcmp.gt.f32.partialorder %v1525, 0.0
    %vm1622 = vcmp.gt.f32.partialorder %v1616, 0.0
    %v1623 = vmul.f32 %v1343, 0.2
    %v1624 = vmul.f32 %v1434, 0.2
    %v1625 = vmul.f32 %v1525, 0.2
    %v1626 = vmul.f32 %v1616, 0.2
    %v1627 = vsel %vm1619, %v1343, %v1623
    %v1628 = vsel %vm1620, %v1434, %v1624
    %v1629 = vsel %vm1621, %v1525, %v1625
    %v1630 = vsel %vm1622, %v1616, %v1626
    %v1631 = vpack.c.bf16 %v1627, %v1627
    %v1632 = vpack.c.bf16 %v1628, %v1628
    %v1633 = vpack.c.bf16 %v1629, %v1629
    %v1634 = vpack.c.bf16 %v1630, %v1630
    %v1635 = vld [vmem:[%s4] sm:$0xff]
    %v1636 = vld [vmem:[%s4 + $0x8] sm:$0xff]
    %v1637 = vld [vmem:[%s4 + $0x10] sm:$0xff]
    %v1638 = vld [vmem:[%s4 + $0x18] sm:$0xff]
    %v1639 = vld [vmem:[%s4 + $0x20] sm:$0xff]
    %v1640 = vld [vmem:[%s4 + $0x28] sm:$0xff]
    %v1641 = vld [vmem:[%s4 + $0x30] sm:$0xff]
    %v1642 = vld [vmem:[%s4 + $0x38] sm:$0xff]
    %v1643 = vld [vmem:[%s4 + $0x40] sm:$0xff]
    %v1644 = vld [vmem:[%s4 + $0x48] sm:$0xff]
    %v1645 = vld [vmem:[%s4 + $0x50] sm:$0xff]
    %v1646 = vld [vmem:[%s4 + $0x58] sm:$0xff]
    %v1647 = vld [vmem:[%s4 + $0x60] sm:$0xff]
    %v1648 = vld [vmem:[%s4 + $0x68] sm:$0xff]
    %v1649 = vld [vmem:[%s4 + $0x70] sm:$0xff]
    %v1650 = vld [vmem:[%s4 + $0x78] sm:$0xff]
    %v1651 = vld [vmem:[%s4 + $0x80] sm:$0xff]
    %v1652 = vld [vmem:[%s4 + $0x88] sm:$0xff]
    %v1653 = vld [vmem:[%s4 + $0x90] sm:$0xff]
    %v1654 = vld [vmem:[%s4 + $0x98] sm:$0xff]
    %v1655 = vld [vmem:[%s4 + $0xa0] sm:$0xff]
    %v1656 = vld [vmem:[%s4 + $0xa8] sm:$0xff]
    %v1657 = vld [vmem:[%s4 + $0xb0] sm:$0xff]
    %v1658 = vld [vmem:[%s4 + $0xb8] sm:$0xff]
    %v1659 = vld [vmem:[%s4 + $0xc0] sm:$0xff]
    %v1660 = vld [vmem:[%s4 + $0xc8] sm:$0xff]
    %v1661 = vld [vmem:[%s4 + $0xd0] sm:$0xff]
    %v1662 = vld [vmem:[%s4 + $0xd8] sm:$0xff]
    %v1663 = vld [vmem:[%s4 + $0xe0] sm:$0xff]
    %v1664 = vld [vmem:[%s4 + $0xe8] sm:$0xff]
    %v1665 = vld [vmem:[%s4 + $0xf0] sm:$0xff]
    %v1666 = vld [vmem:[%s4 + $0xf8] sm:$0xff]
    %v1667 = vld [vmem:[%s4 + $0x100] sm:$0xff]
    %v1668 = vld [vmem:[%s4 + $0x108] sm:$0xff]
    %v1669 = vld [vmem:[%s4 + $0x110] sm:$0xff]
    %v1670 = vld [vmem:[%s4 + $0x118] sm:$0xff]
    %v1671 = vld [vmem:[%s4 + $0x120] sm:$0xff]
    %v1672 = vld [vmem:[%s4 + $0x128] sm:$0xff]
    %v1673 = vld [vmem:[%s4 + $0x130] sm:$0xff]
    %v1674 = vld [vmem:[%s4 + $0x138] sm:$0xff]
    %v1675 = vld [vmem:[%s4 + $0x140] sm:$0xff]
    %v1676 = vld [vmem:[%s4 + $0x148] sm:$0xff]
    %v1677 = vld [vmem:[%s4 + $0x150] sm:$0xff]
    %v1678 = vld [vmem:[%s4 + $0x158] sm:$0xff]
    %v1679 = vld [vmem:[%s4 + $0x160] sm:$0xff]
    %v1680 = vld [vmem:[%s4 + $0x168] sm:$0xff]
    %v1681 = vld [vmem:[%s4 + $0x170] sm:$0xff]
    %v1682 = vld [vmem:[%s4 + $0x178] sm:$0xff]
    %v1683 = vld [vmem:[%s4 + $0x180] sm:$0xff]
    %v1684 = vld [vmem:[%s4 + $0x188] sm:$0xff]
    %v1685 = vld [vmem:[%s4 + $0x190] sm:$0xff]
    %v1686 = vld [vmem:[%s4 + $0x198] sm:$0xff]
    %v1687 = vld [vmem:[%s4 + $0x1a0] sm:$0xff]
    %v1688 = vld [vmem:[%s4 + $0x1a8] sm:$0xff]
    %v1689 = vld [vmem:[%s4 + $0x1b0] sm:$0xff]
    %v1690 = vld [vmem:[%s4 + $0x1b8] sm:$0xff]
    %v1691 = vld [vmem:[%s4 + $0x1c0] sm:$0xff]
    %v1692 = vld [vmem:[%s4 + $0x1c8] sm:$0xff]
    %v1693 = vld [vmem:[%s4 + $0x1d0] sm:$0xff]
    %v1694 = vld [vmem:[%s4 + $0x1d8] sm:$0xff]
    %v1695 = vld [vmem:[%s4 + $0x1e0] sm:$0xff]
    %v1696 = vld [vmem:[%s4 + $0x1e8] sm:$0xff]
    %v1697 = vld [vmem:[%s4 + $0x1f0] sm:$0xff]
    %v1698 = vld [vmem:[%s4 + $0x1f8] sm:$0xff]
    %v1699 = vld [vmem:[%s5] sm:$0x3]
    %v1701 = vperm.slane %v1699, 0
    %v1702 = vperm.slane %v1699, 1
    %v1769 = vunpack.c.l.b16 %v1635
    %v1770 = vunpack.c.h.b16 %v1635
    %v1771 = vunpack.c.l.b16 %v1636
    %v1772 = vunpack.c.h.b16 %v1636
    %v1773 = vunpack.c.l.b16 %v1637
    %v1774 = vunpack.c.h.b16 %v1637
    %v1775 = vunpack.c.l.b16 %v1638
    %v1776 = vunpack.c.h.b16 %v1638
    %v1777 = vunpack.c.l.b16 %v1639
    %v1778 = vunpack.c.h.b16 %v1639
    %v1779 = vunpack.c.l.b16 %v1640
    %v1780 = vunpack.c.h.b16 %v1640
    %v1781 = vunpack.c.l.b16 %v1641
    %v1782 = vunpack.c.h.b16 %v1641
    %v1783 = vunpack.c.l.b16 %v1642
    %v1784 = vunpack.c.h.b16 %v1642
    %v1785 = vunpack.c.l.b16 %v1643
    %v1786 = vunpack.c.h.b16 %v1643
    %v1787 = vunpack.c.l.b16 %v1644
    %v1788 = vunpack.c.h.b16 %v1644
    %v1789 = vunpack.c.l.b16 %v1645
    %v1790 = vunpack.c.h.b16 %v1645
    %v1791 = vunpack.c.l.b16 %v1646
    %v1792 = vunpack.c.h.b16 %v1646
    %v1793 = vunpack.c.l.b16 %v1647
    %v1794 = vunpack.c.h.b16 %v1647
    %v1795 = vunpack.c.l.b16 %v1648
    %v1796 = vunpack.c.h.b16 %v1648
    %v1797 = vunpack.c.l.b16 %v1649
    %v1798 = vunpack.c.h.b16 %v1649
    %v1799 = vunpack.c.l.b16 %v1650
    %v1800 = vunpack.c.h.b16 %v1650
    %v1801 = vunpack.c.l.b16 %v1651
    %v1802 = vunpack.c.h.b16 %v1651
    %v1803 = vunpack.c.l.b16 %v1652
    %v1804 = vunpack.c.h.b16 %v1652
    %v1805 = vunpack.c.l.b16 %v1653
    %v1806 = vunpack.c.h.b16 %v1653
    %v1807 = vunpack.c.l.b16 %v1654
    %v1808 = vunpack.c.h.b16 %v1654
    %v1809 = vunpack.c.l.b16 %v1655
    %v1810 = vunpack.c.h.b16 %v1655
    %v1811 = vunpack.c.l.b16 %v1656
    %v1812 = vunpack.c.h.b16 %v1656
    %v1813 = vunpack.c.l.b16 %v1657
    %v1814 = vunpack.c.h.b16 %v1657
    %v1815 = vunpack.c.l.b16 %v1658
    %v1816 = vunpack.c.h.b16 %v1658
    %v1817 = vunpack.c.l.b16 %v1659
    %v1818 = vunpack.c.h.b16 %v1659
    %v1819 = vunpack.c.l.b16 %v1660
    %v1820 = vunpack.c.h.b16 %v1660
    %v1821 = vunpack.c.l.b16 %v1661
    %v1822 = vunpack.c.h.b16 %v1661
    %v1823 = vunpack.c.l.b16 %v1662
    %v1824 = vunpack.c.h.b16 %v1662
    %v1825 = vunpack.c.l.b16 %v1663
    %v1826 = vunpack.c.h.b16 %v1663
    %v1827 = vunpack.c.l.b16 %v1664
    %v1828 = vunpack.c.h.b16 %v1664
    %v1829 = vunpack.c.l.b16 %v1665
    %v1830 = vunpack.c.h.b16 %v1665
    %v1831 = vunpack.c.l.b16 %v1666
    %v1832 = vunpack.c.h.b16 %v1666
    %v1833 = vunpack.c.l.b16 %v1667
    %v1834 = vunpack.c.h.b16 %v1667
    %v1835 = vunpack.c.l.b16 %v1668
    %v1836 = vunpack.c.h.b16 %v1668
    %v1837 = vunpack.c.l.b16 %v1669
    %v1838 = vunpack.c.h.b16 %v1669
    %v1839 = vunpack.c.l.b16 %v1670
    %v1840 = vunpack.c.h.b16 %v1670
    %v1841 = vunpack.c.l.b16 %v1671
    %v1842 = vunpack.c.h.b16 %v1671
    %v1843 = vunpack.c.l.b16 %v1672
    %v1844 = vunpack.c.h.b16 %v1672
    %v1845 = vunpack.c.l.b16 %v1673
    %v1846 = vunpack.c.h.b16 %v1673
    %v1847 = vunpack.c.l.b16 %v1674
    %v1848 = vunpack.c.h.b16 %v1674
    %v1849 = vunpack.c.l.b16 %v1675
    %v1850 = vunpack.c.h.b16 %v1675
    %v1851 = vunpack.c.l.b16 %v1676
    %v1852 = vunpack.c.h.b16 %v1676
    %v1853 = vunpack.c.l.b16 %v1677
    %v1854 = vunpack.c.h.b16 %v1677
    %v1855 = vunpack.c.l.b16 %v1678
    %v1856 = vunpack.c.h.b16 %v1678
    %v1857 = vunpack.c.l.b16 %v1679
    %v1858 = vunpack.c.h.b16 %v1679
    %v1859 = vunpack.c.l.b16 %v1680
    %v1860 = vunpack.c.h.b16 %v1680
    %v1861 = vunpack.c.l.b16 %v1681
    %v1862 = vunpack.c.h.b16 %v1681
    %v1863 = vunpack.c.l.b16 %v1682
    %v1864 = vunpack.c.h.b16 %v1682
    %v1865 = vunpack.c.l.b16 %v1683
    %v1866 = vunpack.c.h.b16 %v1683
    %v1867 = vunpack.c.l.b16 %v1684
    %v1868 = vunpack.c.h.b16 %v1684
    %v1869 = vunpack.c.l.b16 %v1685
    %v1870 = vunpack.c.h.b16 %v1685
    %v1871 = vunpack.c.l.b16 %v1686
    %v1872 = vunpack.c.h.b16 %v1686
    %v1873 = vunpack.c.l.b16 %v1687
    %v1874 = vunpack.c.h.b16 %v1687
    %v1875 = vunpack.c.l.b16 %v1688
    %v1876 = vunpack.c.h.b16 %v1688
    %v1877 = vunpack.c.l.b16 %v1689
    %v1878 = vunpack.c.h.b16 %v1689
    %v1879 = vunpack.c.l.b16 %v1690
    %v1880 = vunpack.c.h.b16 %v1690
    %v1881 = vunpack.c.l.b16 %v1691
    %v1882 = vunpack.c.h.b16 %v1691
    %v1883 = vunpack.c.l.b16 %v1692
    %v1884 = vunpack.c.h.b16 %v1692
    %v1885 = vunpack.c.l.b16 %v1693
    %v1886 = vunpack.c.h.b16 %v1693
    %v1887 = vunpack.c.l.b16 %v1694
    %v1888 = vunpack.c.h.b16 %v1694
    %v1889 = vunpack.c.l.b16 %v1695
    %v1890 = vunpack.c.h.b16 %v1695
    %v1891 = vunpack.c.l.b16 %v1696
    %v1892 = vunpack.c.h.b16 %v1696
    %v1893 = vunpack.c.l.b16 %v1697
    %v1894 = vunpack.c.h.b16 %v1697
    %v1895 = vunpack.c.l.b16 %v1698
    %v1896 = vunpack.c.h.b16 %v1698
    %v1897 = vpack.c.b16 %v1771, %v1769
    %v1898 = vpack.c.b16 %v1772, %v1770
    %v1899 = vpack.c.b16 %v1775, %v1773
    %v1900 = vpack.c.b16 %v1776, %v1774
    %v1901 = vpack.c.b16 %v1779, %v1777
    %v1902 = vpack.c.b16 %v1780, %v1778
    %v1903 = vpack.c.b16 %v1783, %v1781
    %v1904 = vpack.c.b16 %v1784, %v1782
    %v1905 = vpack.c.b16 %v1787, %v1785
    %v1906 = vpack.c.b16 %v1788, %v1786
    %v1907 = vpack.c.b16 %v1791, %v1789
    %v1908 = vpack.c.b16 %v1792, %v1790
    %v1909 = vpack.c.b16 %v1795, %v1793
    %v1910 = vpack.c.b16 %v1796, %v1794
    %v1911 = vpack.c.b16 %v1799, %v1797
    %v1912 = vpack.c.b16 %v1800, %v1798
    %v1913 = vpack.c.b16 %v1803, %v1801
    %v1914 = vpack.c.b16 %v1804, %v1802
    %v1915 = vpack.c.b16 %v1807, %v1805
    %v1916 = vpack.c.b16 %v1808, %v1806
    %v1917 = vpack.c.b16 %v1811, %v1809
    %v1918 = vpack.c.b16 %v1812, %v1810
    %v1919 = vpack.c.b16 %v1815, %v1813
    %v1920 = vpack.c.b16 %v1816, %v1814
    %v1921 = vpack.c.b16 %v1819, %v1817
    %v1922 = vpack.c.b16 %v1820, %v1818
    %v1923 = vpack.c.b16 %v1823, %v1821
    %v1924 = vpack.c.b16 %v1824, %v1822
    %v1925 = vpack.c.b16 %v1827, %v1825
    %v1926 = vpack.c.b16 %v1828, %v1826
    %v1927 = vpack.c.b16 %v1831, %v1829
    %v1928 = vpack.c.b16 %v1832, %v1830
    %v1929 = vpack.c.b16 %v1835, %v1833
    %v1930 = vpack.c.b16 %v1836, %v1834
    %v1931 = vpack.c.b16 %v1839, %v1837
    %v1932 = vpack.c.b16 %v1840, %v1838
    %v1933 = vpack.c.b16 %v1843, %v1841
    %v1934 = vpack.c.b16 %v1844, %v1842
    %v1935 = vpack.c.b16 %v1847, %v1845
    %v1936 = vpack.c.b16 %v1848, %v1846
    %v1937 = vpack.c.b16 %v1851, %v1849
    %v1938 = vpack.c.b16 %v1852, %v1850
    %v1939 = vpack.c.b16 %v1855, %v1853
    %v1940 = vpack.c.b16 %v1856, %v1854
    %v1941 = vpack.c.b16 %v1859, %v1857
    %v1942 = vpack.c.b16 %v1860, %v1858
    %v1943 = vpack.c.b16 %v1863, %v1861
    %v1944 = vpack.c.b16 %v1864, %v1862
    %v1945 = vpack.c.b16 %v1867, %v1865
    %v1946 = vpack.c.b16 %v1868, %v1866
    %v1947 = vpack.c.b16 %v1871, %v1869
    %v1948 = vpack.c.b16 %v1872, %v1870
    %v1949 = vpack.c.b16 %v1875, %v1873
    %v1950 = vpack.c.b16 %v1876, %v1874
    %v1951 = vpack.c.b16 %v1879, %v1877
    %v1952 = vpack.c.b16 %v1880, %v1878
    %v1953 = vpack.c.b16 %v1883, %v1881
    %v1954 = vpack.c.b16 %v1884, %v1882
    %v1955 = vpack.c.b16 %v1887, %v1885
    %v1956 = vpack.c.b16 %v1888, %v1886
    %v1957 = vpack.c.b16 %v1891, %v1889
    %v1958 = vpack.c.b16 %v1892, %v1890
    %v1959 = vpack.c.b16 %v1895, %v1893
    %v1960 = vpack.c.b16 %v1896, %v1894
    %2025 = vmatpush.bf16.msra.mxu0 %v1911
    %2026 = vmatpush.bf16.msra.mxu0 %v1909
    %2027 = vmatpush.bf16.msra.mxu0 %v1907
    %2028 = vmatpush.bf16.msra.mxu0 %v1905
    %2029 = vmatpush.bf16.msra.mxu0 %v1903
    %2030 = vmatpush.bf16.msra.mxu0 %v1901
    %2031 = vmatpush.bf16.msra.mxu0 %v1899
    %2032 = vmatpush.bf16.msra.mxu0 %v1897
    %2033 = vmatmul.bf16.gmra.mxu0 %v1631
    %v2034 = vpop.f32.mrf.mxu0
    %v2035 = vadd.f32 %v1701, %v2034
    %v2036 = vpop.f32.mrf.mxu0
    %2037 = vdwg.mxu0
    %2038 = vmatpush.bf16.msra.mxu0 %v1927
    %2039 = vmatpush.bf16.msra.mxu0 %v1925
    %2040 = vmatpush.bf16.msra.mxu0 %v1923
    %2041 = vmatpush.bf16.msra.mxu0 %v1921
    %2042 = vmatpush.bf16.msra.mxu0 %v1919
    %2043 = vmatpush.bf16.msra.mxu0 %v1917
    %2044 = vmatpush.bf16.msra.mxu0 %v1915
    %2045 = vmatpush.bf16.msra.mxu0 %v1913
    %2046 = vmatmul.bf16.gmra.mxu0 %v1632
    %v2047 = vpop.f32.mrf.mxu0
    %v2048 = vadd.f32 %v2035, %v2047
    %v2049 = vpop.f32.mrf.mxu0
    %2050 = vdwg.mxu0
    %2051 = vmatpush.bf16.msra.mxu0 %v1943
    %2052 = vmatpush.bf16.msra.mxu0 %v1941
    %2053 = vmatpush.bf16.msra.mxu0 %v1939
    %2054 = vmatpush.bf16.msra.mxu0 %v1937
    %2055 = vmatpush.bf16.msra.mxu0 %v1935
    %2056 = vmatpush.bf16.msra.mxu0 %v1933
    %2057 = vmatpush.bf16.msra.mxu0 %v1931
    %2058 = vmatpush.bf16.msra.mxu0 %v1929
    %2059 = vmatmul.bf16.gmra.mxu0 %v1633
    %v2060 = vpop.f32.mrf.mxu0
    %v2061 = vadd.f32 %v2048, %v2060
    %v2062 = vpop.f32.mrf.mxu0
    %2063 = vdwg.mxu0
    %2064 = vmatpush.bf16.msra.mxu0 %v1959
    %2065 = vmatpush.bf16.msra.mxu0 %v1957
    %2066 = vmatpush.bf16.msra.mxu0 %v1955
    %2067 = vmatpush.bf16.msra.mxu0 %v1953
    %2068 = vmatpush.bf16.msra.mxu0 %v1951
    %2069 = vmatpush.bf16.msra.mxu0 %v1949
    %2070 = vmatpush.bf16.msra.mxu0 %v1947
    %2071 = vmatpush.bf16.msra.mxu0 %v1945
    %2072 = vmatmul.bf16.gmra.mxu0 %v1634
    %v2073 = vpop.f32.mrf.mxu0
    %v2074 = vadd.f32 %v2061, %v2073
    %v2075 = vpop.f32.mrf.mxu0
    %2076 = vdwg.mxu0
    %2077 = vmatpush.bf16.msra.mxu0 %v1912
    %2078 = vmatpush.bf16.msra.mxu0 %v1910
    %2079 = vmatpush.bf16.msra.mxu0 %v1908
    %2080 = vmatpush.bf16.msra.mxu0 %v1906
    %2081 = vmatpush.bf16.msra.mxu0 %v1904
    %2082 = vmatpush.bf16.msra.mxu0 %v1902
    %2083 = vmatpush.bf16.msra.mxu0 %v1900
    %2084 = vmatpush.bf16.msra.mxu0 %v1898
    %2085 = vmatmul.bf16.gmra.mxu0 %v1631
    %v2086 = vpop.f32.mrf.mxu0
    %v2087 = vadd.f32 %v1702, %v2086
    %v2088 = vpop.f32.mrf.mxu0
    %2089 = vdwg.mxu0
    %2090 = vmatpush.bf16.msra.mxu0 %v1928
    %2091 = vmatpush.bf16.msra.mxu0 %v1926
    %2092 = vmatpush.bf16.msra.mxu0 %v1924
    %2093 = vmatpush.bf16.msra.mxu0 %v1922
    %2094 = vmatpush.bf16.msra.mxu0 %v1920
    %2095 = vmatpush.bf16.msra.mxu0 %v1918
    %2096 = vmatpush.bf16.msra.mxu0 %v1916
    %2097 = vmatpush.bf16.msra.mxu0 %v1914
    %2098 = vmatmul.bf16.gmra.mxu0 %v1632
    %v2099 = vpop.f32.mrf.mxu0
    %v2100 = vadd.f32 %v2087, %v2099
    %v2101 = vpop.f32.mrf.mxu0
    %2102 = vdwg.mxu0
    %2103 = vmatpush.bf16.msra.mxu0 %v1944
    %2104 = vmatpush.bf16.msra.mxu0 %v1942
    %2105 = vmatpush.bf16.msra.mxu0 %v1940
    %2106 = vmatpush.bf16.msra.mxu0 %v1938
    %2107 = vmatpush.bf16.msra.mxu0 %v1936
    %2108 = vmatpush.bf16.msra.mxu0 %v1934
    %2109 = vmatpush.bf16.msra.mxu0 %v1932
    %2110 = vmatpush.bf16.msra.mxu0 %v1930
    %2111 = vmatmul.bf16.gmra.mxu0 %v1633
    %v2112 = vpop.f32.mrf.mxu0
    %v2113 = vadd.f32 %v2100, %v2112
    %v2114 = vpop.f32.mrf.mxu0
    %2115 = vdwg.mxu0
    %2116 = vmatpush.bf16.msra.mxu0 %v1960
    %2117 = vmatpush.bf16.msra.mxu0 %v1958
    %2118 = vmatpush.bf16.msra.mxu0 %v1956
    %2119 = vmatpush.bf16.msra.mxu0 %v1954
    %2120 = vmatpush.bf16.msra.mxu0 %v1952
    %2121 = vmatpush.bf16.msra.mxu0 %v1950
    %2122 = vmatpush.bf16.msra.mxu0 %v1948
    %2123 = vmatpush.bf16.msra.mxu0 %v1946
    %2124 = vmatmul.bf16.gmra.mxu0 %v1634
    %v2125 = vpop.f32.mrf.mxu0
    %v2126 = vadd.f32 %v2113, %v2125
    %v2127 = vpop.f32.mrf.mxu0
    %2128 = vdwg.mxu0
    %vm2129 = vcmp.gt.f32.partialorder %v2074, 0.0
    %vm2130 = vcmp.gt.f32.partialorder %v2126, 0.0
    %v2131 = vmul.f32 %v2074, 0.2
    %v2132 = vmul.f32 %v2126, 0.2
    %v2133 = vsel %vm2129, %v2074, %v2131
    %v2134 = vsel %vm2130, %v2126, %v2132
    %v2135 = vpack.c.bf16 %v2133, %v2133
    %v2136 = vpack.c.bf16 %v2134, %v2134
    %v2137 = vld [vmem:[%s6] sm:$0xf]
    %v2138 = vld [vmem:[%s6 + $0x4] sm:$0xf]
    %v2139 = vld [vmem:[%s6 + $0x8] sm:$0xf]
    %v2140 = vld [vmem:[%s6 + $0xc] sm:$0xf]
    %v2141 = vld [vmem:[%s6 + $0x10] sm:$0xf]
    %v2142 = vld [vmem:[%s6 + $0x14] sm:$0xf]
    %v2143 = vld [vmem:[%s6 + $0x18] sm:$0xf]
    %v2144 = vld [vmem:[%s6 + $0x1c] sm:$0xf]
    %v2145 = vld [vmem:[%s6 + $0x20] sm:$0xf]
    %v2146 = vld [vmem:[%s6 + $0x24] sm:$0xf]
    %v2147 = vld [vmem:[%s6 + $0x28] sm:$0xf]
    %v2148 = vld [vmem:[%s6 + $0x2c] sm:$0xf]
    %v2149 = vld [vmem:[%s6 + $0x30] sm:$0xf]
    %v2150 = vld [vmem:[%s6 + $0x34] sm:$0xf]
    %v2151 = vld [vmem:[%s6 + $0x38] sm:$0xf]
    %v2152 = vld [vmem:[%s6 + $0x3c] sm:$0xf]
    %v2153 = vld [vmem:[%s6 + $0x40] sm:$0xf]
    %v2154 = vld [vmem:[%s6 + $0x44] sm:$0xf]
    %v2155 = vld [vmem:[%s6 + $0x48] sm:$0xf]
    %v2156 = vld [vmem:[%s6 + $0x4c] sm:$0xf]
    %v2157 = vld [vmem:[%s6 + $0x50] sm:$0xf]
    %v2158 = vld [vmem:[%s6 + $0x54] sm:$0xf]
    %v2159 = vld [vmem:[%s6 + $0x58] sm:$0xf]
    %v2160 = vld [vmem:[%s6 + $0x5c] sm:$0xf]
    %v2161 = vld [vmem:[%s6 + $0x60] sm:$0xf]
    %v2162 = vld [vmem:[%s6 + $0x64] sm:$0xf]
    %v2163 = vld [vmem:[%s6 + $0x68] sm:$0xf]
    %v2164 = vld [vmem:[%s6 + $0x6c] sm:$0xf]
    %v2165 = vld [vmem:[%s6 + $0x70] sm:$0xf]
    %v2166 = vld [vmem:[%s6 + $0x74] sm:$0xf]
    %v2167 = vld [vmem:[%s6 + $0x78] sm:$0xf]
    %v2168 = vld [vmem:[%s6 + $0x7c] sm:$0xf]
    %v2169 = vld [vmem:[%s7] sm:$0x1]
    %v2171 = vperm.slane %v2169, 0
    %v2205 = vunpack.c.l.b16 %v2137
    %v2206 = vunpack.c.l.b16 %v2138
    %v2207 = vunpack.c.l.b16 %v2139
    %v2208 = vunpack.c.l.b16 %v2140
    %v2209 = vunpack.c.l.b16 %v2141
    %v2210 = vunpack.c.l.b16 %v2142
    %v2211 = vunpack.c.l.b16 %v2143
    %v2212 = vunpack.c.l.b16 %v2144
    %v2213 = vunpack.c.l.b16 %v2145
    %v2214 = vunpack.c.l.b16 %v2146
    %v2215 = vunpack.c.l.b16 %v2147
    %v2216 = vunpack.c.l.b16 %v2148
    %v2217 = vunpack.c.l.b16 %v2149
    %v2218 = vunpack.c.l.b16 %v2150
    %v2219 = vunpack.c.l.b16 %v2151
    %v2220 = vunpack.c.l.b16 %v2152
    %v2221 = vunpack.c.l.b16 %v2153
    %v2222 = vunpack.c.l.b16 %v2154
    %v2223 = vunpack.c.l.b16 %v2155
    %v2224 = vunpack.c.l.b16 %v2156
    %v2225 = vunpack.c.l.b16 %v2157
    %v2226 = vunpack.c.l.b16 %v2158
    %v2227 = vunpack.c.l.b16 %v2159
    %v2228 = vunpack.c.l.b16 %v2160
    %v2229 = vunpack.c.l.b16 %v2161
    %v2230 = vunpack.c.l.b16 %v2162
    %v2231 = vunpack.c.l.b16 %v2163
    %v2232 = vunpack.c.l.b16 %v2164
    %v2233 = vunpack.c.l.b16 %v2165
    %v2234 = vunpack.c.l.b16 %v2166
    %v2235 = vunpack.c.l.b16 %v2167
    %v2236 = vunpack.c.l.b16 %v2168
    %v2237 = vpack.c.b16 %v2206, %v2205
    %v2238 = vpack.c.b16 %v2208, %v2207
    %v2239 = vpack.c.b16 %v2210, %v2209
    %v2240 = vpack.c.b16 %v2212, %v2211
    %v2241 = vpack.c.b16 %v2214, %v2213
    %v2242 = vpack.c.b16 %v2216, %v2215
    %v2243 = vpack.c.b16 %v2218, %v2217
    %v2244 = vpack.c.b16 %v2220, %v2219
    %v2245 = vpack.c.b16 %v2222, %v2221
    %v2246 = vpack.c.b16 %v2224, %v2223
    %v2247 = vpack.c.b16 %v2226, %v2225
    %v2248 = vpack.c.b16 %v2228, %v2227
    %v2249 = vpack.c.b16 %v2230, %v2229
    %v2250 = vpack.c.b16 %v2232, %v2231
    %v2251 = vpack.c.b16 %v2234, %v2233
    %v2252 = vpack.c.b16 %v2236, %v2235
    %2269 = vmatpush.bf16.msra.mxu0 %v2244
    %2270 = vmatpush.bf16.msra.mxu0 %v2243
    %2271 = vmatpush.bf16.msra.mxu0 %v2242
    %2272 = vmatpush.bf16.msra.mxu0 %v2241
    %2273 = vmatpush.bf16.msra.mxu0 %v2240
    %2274 = vmatpush.bf16.msra.mxu0 %v2239
    %2275 = vmatpush.bf16.msra.mxu0 %v2238
    %2276 = vmatpush.bf16.msra.mxu0 %v2237
    %2277 = vmatmul.bf16.gmra.mxu0 %v2135
    %v2278 = vpop.f32.mrf.mxu0
    %v2279 = vadd.f32 %v2171, %v2278
    %v2280 = vpop.f32.mrf.mxu0
    %2281 = vdwg.mxu0
    %2282 = vmatpush.bf16.msra.mxu0 %v2252
    %2283 = vmatpush.bf16.msra.mxu0 %v2251
    %2284 = vmatpush.bf16.msra.mxu0 %v2250
    %2285 = vmatpush.bf16.msra.mxu0 %v2249
    %2286 = vmatpush.bf16.msra.mxu0 %v2248
    %2287 = vmatpush.bf16.msra.mxu0 %v2247
    %2288 = vmatpush.bf16.msra.mxu0 %v2246
    %2289 = vmatpush.bf16.msra.mxu0 %v2245
    %2290 = vmatmul.bf16.gmra.mxu0 %v2136
    %v2291 = vpop.f32.mrf.mxu0
    %v2292 = vadd.f32 %v2279, %v2291
    %v2293 = vpop.f32.mrf.mxu0
    %2294 = vdwg.mxu0
    %v2295 = vld [vmem:[%s1] sm:$0xff]
    %2297 = vrot.lane.b32.xlu0 %v2295, 2
    %v2298 = vpop.permute.xlu0 %2297
    %v2300 = vmul.f32 %v2292, %v2298
    %2302 = vrot.lane.b32.xlu0 %v2300, 126
    %v2303 = vpop.permute.xlu0 %2302
    %v2305 = vadd.f32 %v2292, %v2303
    %v2306 = vld [vmem:[%s8] ss:$2 sm:$0x3]
    %2308 = vset.pattern.permute.xlu0 0
    %2309 = vperm.xlu0 %2308, %v2305
    %v2310 = vpop.permute.xlu0 %2309
    %v2313 = vperm.slane %v2306, 0
    %v2314 = vperm.slane %v2306, 1
    %v2317 = vmul.f32 %v2310, %v2313
    %v2318 = vmul.f32 %v2310, %v2314
    %s2319 = scalar_lea.vmem %s8, 1
    %v2320 = vld [vmem:[%s2319] ss:$2 sm:$0x3]
    %2321 = vset.pattern.permute.xlu0 1
    %2322 = vperm.xlu0 %2321, %v2305
    %v2323 = vpop.permute.xlu0 %2322
    %v2326 = vperm.slane %v2320, 0
    %v2327 = vperm.slane %v2320, 1
    %v2330 = vmul.f32 %v2323, %v2326
    %v2331 = vmul.f32 %v2323, %v2327
    %v2332 = vadd.f32 %v2317, %v2330
    %v2333 = vadd.f32 %v2318, %v2331
    %v2334 = vld [vmem:[%s9] sm:$0x3]
    %v2336 = vperm.slane %v2334, 0
    %v2337 = vperm.slane %v2334, 1
    %v2340 = vadd.f32 %v2332, %v2336
    %v2341 = vadd.f32 %v2333, %v2337
    %vm2342 = vcmp.gt.f32.partialorder %v2340, 0.0
    %vm2343 = vcmp.gt.f32.partialorder %v2341, 0.0
    %v2344 = vmul.f32 %v2340, 0.2
    %v2345 = vmul.f32 %v2341, 0.2
    %v2346 = vsel %vm2342, %v2340, %v2344
    %v2347 = vsel %vm2343, %v2341, %v2345
    %v2348 = vpack.c.bf16 %v2346, %v2346
    %v2349 = vpack.c.bf16 %v2347, %v2347
    %v2350 = vld [vmem:[%s10] sm:$0xff]
    %v2351 = vld [vmem:[%s10 + $0x8] sm:$0xff]
    %v2352 = vld [vmem:[%s10 + $0x10] sm:$0xff]
    %v2353 = vld [vmem:[%s10 + $0x18] sm:$0xff]
    %v2354 = vld [vmem:[%s10 + $0x20] sm:$0xff]
    %v2355 = vld [vmem:[%s10 + $0x28] sm:$0xff]
    %v2356 = vld [vmem:[%s10 + $0x30] sm:$0xff]
    %v2357 = vld [vmem:[%s10 + $0x38] sm:$0xff]
    %v2358 = vld [vmem:[%s10 + $0x40] sm:$0xff]
    %v2359 = vld [vmem:[%s10 + $0x48] sm:$0xff]
    %v2360 = vld [vmem:[%s10 + $0x50] sm:$0xff]
    %v2361 = vld [vmem:[%s10 + $0x58] sm:$0xff]
    %v2362 = vld [vmem:[%s10 + $0x60] sm:$0xff]
    %v2363 = vld [vmem:[%s10 + $0x68] sm:$0xff]
    %v2364 = vld [vmem:[%s10 + $0x70] sm:$0xff]
    %v2365 = vld [vmem:[%s10 + $0x78] sm:$0xff]
    %v2366 = vld [vmem:[%s10 + $0x80] sm:$0xff]
    %v2367 = vld [vmem:[%s10 + $0x88] sm:$0xff]
    %v2368 = vld [vmem:[%s10 + $0x90] sm:$0xff]
    %v2369 = vld [vmem:[%s10 + $0x98] sm:$0xff]
    %v2370 = vld [vmem:[%s10 + $0xa0] sm:$0xff]
    %v2371 = vld [vmem:[%s10 + $0xa8] sm:$0xff]
    %v2372 = vld [vmem:[%s10 + $0xb0] sm:$0xff]
    %v2373 = vld [vmem:[%s10 + $0xb8] sm:$0xff]
    %v2374 = vld [vmem:[%s10 + $0xc0] sm:$0xff]
    %v2375 = vld [vmem:[%s10 + $0xc8] sm:$0xff]
    %v2376 = vld [vmem:[%s10 + $0xd0] sm:$0xff]
    %v2377 = vld [vmem:[%s10 + $0xd8] sm:$0xff]
    %v2378 = vld [vmem:[%s10 + $0xe0] sm:$0xff]
    %v2379 = vld [vmem:[%s10 + $0xe8] sm:$0xff]
    %v2380 = vld [vmem:[%s10 + $0xf0] sm:$0xff]
    %v2381 = vld [vmem:[%s10 + $0xf8] sm:$0xff]
    %v2382 = vld [vmem:[%s10 + $0x100] sm:$0xff]
    %v2383 = vld [vmem:[%s10 + $0x108] sm:$0xff]
    %v2384 = vld [vmem:[%s10 + $0x110] sm:$0xff]
    %v2385 = vld [vmem:[%s10 + $0x118] sm:$0xff]
    %v2386 = vld [vmem:[%s10 + $0x120] sm:$0xff]
    %v2387 = vld [vmem:[%s10 + $0x128] sm:$0xff]
    %v2388 = vld [vmem:[%s10 + $0x130] sm:$0xff]
    %v2389 = vld [vmem:[%s10 + $0x138] sm:$0xff]
    %v2390 = vld [vmem:[%s10 + $0x140] sm:$0xff]
    %v2391 = vld [vmem:[%s10 + $0x148] sm:$0xff]
    %v2392 = vld [vmem:[%s10 + $0x150] sm:$0xff]
    %v2393 = vld [vmem:[%s10 + $0x158] sm:$0xff]
    %v2394 = vld [vmem:[%s10 + $0x160] sm:$0xff]
    %v2395 = vld [vmem:[%s10 + $0x168] sm:$0xff]
    %v2396 = vld [vmem:[%s10 + $0x170] sm:$0xff]
    %v2397 = vld [vmem:[%s10 + $0x178] sm:$0xff]
    %v2398 = vld [vmem:[%s10 + $0x180] sm:$0xff]
    %v2399 = vld [vmem:[%s10 + $0x188] sm:$0xff]
    %v2400 = vld [vmem:[%s10 + $0x190] sm:$0xff]
    %v2401 = vld [vmem:[%s10 + $0x198] sm:$0xff]
    %v2402 = vld [vmem:[%s10 + $0x1a0] sm:$0xff]
    %v2403 = vld [vmem:[%s10 + $0x1a8] sm:$0xff]
    %v2404 = vld [vmem:[%s10 + $0x1b0] sm:$0xff]
    %v2405 = vld [vmem:[%s10 + $0x1b8] sm:$0xff]
    %v2406 = vld [vmem:[%s10 + $0x1c0] sm:$0xff]
    %v2407 = vld [vmem:[%s10 + $0x1c8] sm:$0xff]
    %v2408 = vld [vmem:[%s10 + $0x1d0] sm:$0xff]
    %v2409 = vld [vmem:[%s10 + $0x1d8] sm:$0xff]
    %v2410 = vld [vmem:[%s10 + $0x1e0] sm:$0xff]
    %v2411 = vld [vmem:[%s10 + $0x1e8] sm:$0xff]
    %v2412 = vld [vmem:[%s10 + $0x1f0] sm:$0xff]
    %v2413 = vld [vmem:[%s10 + $0x1f8] sm:$0xff]
    %v2414 = vld [vmem:[%s11] sm:$0xf]
    %v2416 = vperm.slane %v2414, 0
    %v2417 = vperm.slane %v2414, 1
    %v2418 = vperm.slane %v2414, 2
    %v2419 = vperm.slane %v2414, 3
    %v2488 = vunpack.c.l.b16 %v2350
    %v2489 = vunpack.c.h.b16 %v2350
    %v2490 = vunpack.c.l.b16 %v2351
    %v2491 = vunpack.c.h.b16 %v2351
    %v2492 = vunpack.c.l.b16 %v2352
    %v2493 = vunpack.c.h.b16 %v2352
    %v2494 = vunpack.c.l.b16 %v2353
    %v2495 = vunpack.c.h.b16 %v2353
    %v2496 = vunpack.c.l.b16 %v2354
    %v2497 = vunpack.c.h.b16 %v2354
    %v2498 = vunpack.c.l.b16 %v2355
    %v2499 = vunpack.c.h.b16 %v2355
    %v2500 = vunpack.c.l.b16 %v2356
    %v2501 = vunpack.c.h.b16 %v2356
    %v2502 = vunpack.c.l.b16 %v2357
    %v2503 = vunpack.c.h.b16 %v2357
    %v2504 = vunpack.c.l.b16 %v2358
    %v2505 = vunpack.c.h.b16 %v2358
    %v2506 = vunpack.c.l.b16 %v2359
    %v2507 = vunpack.c.h.b16 %v2359
    %v2508 = vunpack.c.l.b16 %v2360
    %v2509 = vunpack.c.h.b16 %v2360
    %v2510 = vunpack.c.l.b16 %v2361
    %v2511 = vunpack.c.h.b16 %v2361
    %v2512 = vunpack.c.l.b16 %v2362
    %v2513 = vunpack.c.h.b16 %v2362
    %v2514 = vunpack.c.l.b16 %v2363
    %v2515 = vunpack.c.h.b16 %v2363
    %v2516 = vunpack.c.l.b16 %v2364
    %v2517 = vunpack.c.h.b16 %v2364
    %v2518 = vunpack.c.l.b16 %v2365
    %v2519 = vunpack.c.h.b16 %v2365
    %v2520 = vunpack.c.l.b16 %v2366
    %v2521 = vunpack.c.h.b16 %v2366
    %v2522 = vunpack.c.l.b16 %v2367
    %v2523 = vunpack.c.h.b16 %v2367
    %v2524 = vunpack.c.l.b16 %v2368
    %v2525 = vunpack.c.h.b16 %v2368
    %v2526 = vunpack.c.l.b16 %v2369
    %v2527 = vunpack.c.h.b16 %v2369
    %v2528 = vunpack.c.l.b16 %v2370
    %v2529 = vunpack.c.h.b16 %v2370
    %v2530 = vunpack.c.l.b16 %v2371
    %v2531 = vunpack.c.h.b16 %v2371
    %v2532 = vunpack.c.l.b16 %v2372
    %v2533 = vunpack.c.h.b16 %v2372
    %v2534 = vunpack.c.l.b16 %v2373
    %v2535 = vunpack.c.h.b16 %v2373
    %v2536 = vunpack.c.l.b16 %v2374
    %v2537 = vunpack.c.h.b16 %v2374
    %v2538 = vunpack.c.l.b16 %v2375
    %v2539 = vunpack.c.h.b16 %v2375
    %v2540 = vunpack.c.l.b16 %v2376
    %v2541 = vunpack.c.h.b16 %v2376
    %v2542 = vunpack.c.l.b16 %v2377
    %v2543 = vunpack.c.h.b16 %v2377
    %v2544 = vunpack.c.l.b16 %v2378
    %v2545 = vunpack.c.h.b16 %v2378
    %v2546 = vunpack.c.l.b16 %v2379
    %v2547 = vunpack.c.h.b16 %v2379
    %v2548 = vunpack.c.l.b16 %v2380
    %v2549 = vunpack.c.h.b16 %v2380
    %v2550 = vunpack.c.l.b16 %v2381
    %v2551 = vunpack.c.h.b16 %v2381
    %v2552 = vunpack.c.l.b16 %v2382
    %v2553 = vunpack.c.h.b16 %v2382
    %v2554 = vunpack.c.l.b16 %v2383
    %v2555 = vunpack.c.h.b16 %v2383
    %v2556 = vunpack.c.l.b16 %v2384
    %v2557 = vunpack.c.h.b16 %v2384
    %v2558 = vunpack.c.l.b16 %v2385
    %v2559 = vunpack.c.h.b16 %v2385
    %v2560 = vunpack.c.l.b16 %v2386
    %v2561 = vunpack.c.h.b16 %v2386
    %v2562 = vunpack.c.l.b16 %v2387
    %v2563 = vunpack.c.h.b16 %v2387
    %v2564 = vunpack.c.l.b16 %v2388
    %v2565 = vunpack.c.h.b16 %v2388
    %v2566 = vunpack.c.l.b16 %v2389
    %v2567 = vunpack.c.h.b16 %v2389
    %v2568 = vunpack.c.l.b16 %v2390
    %v2569 = vunpack.c.h.b16 %v2390
    %v2570 = vunpack.c.l.b16 %v2391
    %v2571 = vunpack.c.h.b16 %v2391
    %v2572 = vunpack.c.l.b16 %v2392
    %v2573 = vunpack.c.h.b16 %v2392
    %v2574 = vunpack.c.l.b16 %v2393
    %v2575 = vunpack.c.h.b16 %v2393
    %v2576 = vunpack.c.l.b16 %v2394
    %v2577 = vunpack.c.h.b16 %v2394
    %v2578 = vunpack.c.l.b16 %v2395
    %v2579 = vunpack.c.h.b16 %v2395
    %v2580 = vunpack.c.l.b16 %v2396
    %v2581 = vunpack.c.h.b16 %v2396
    %v2582 = vunpack.c.l.b16 %v2397
    %v2583 = vunpack.c.h.b16 %v2397
    %v2584 = vunpack.c.l.b16 %v2398
    %v2585 = vunpack.c.h.b16 %v2398
    %v2586 = vunpack.c.l.b16 %v2399
    %v2587 = vunpack.c.h.b16 %v2399
    %v2588 = vunpack.c.l.b16 %v2400
    %v2589 = vunpack.c.h.b16 %v2400
    %v2590 = vunpack.c.l.b16 %v2401
    %v2591 = vunpack.c.h.b16 %v2401
    %v2592 = vunpack.c.l.b16 %v2402
    %v2593 = vunpack.c.h.b16 %v2402
    %v2594 = vunpack.c.l.b16 %v2403
    %v2595 = vunpack.c.h.b16 %v2403
    %v2596 = vunpack.c.l.b16 %v2404
    %v2597 = vunpack.c.h.b16 %v2404
    %v2598 = vunpack.c.l.b16 %v2405
    %v2599 = vunpack.c.h.b16 %v2405
    %v2600 = vunpack.c.l.b16 %v2406
    %v2601 = vunpack.c.h.b16 %v2406
    %v2602 = vunpack.c.l.b16 %v2407
    %v2603 = vunpack.c.h.b16 %v2407
    %v2604 = vunpack.c.l.b16 %v2408
    %v2605 = vunpack.c.h.b16 %v2408
    %v2606 = vunpack.c.l.b16 %v2409
    %v2607 = vunpack.c.h.b16 %v2409
    %v2608 = vunpack.c.l.b16 %v2410
    %v2609 = vunpack.c.h.b16 %v2410
    %v2610 = vunpack.c.l.b16 %v2411
    %v2611 = vunpack.c.h.b16 %v2411
    %v2612 = vunpack.c.l.b16 %v2412
    %v2613 = vunpack.c.h.b16 %v2412
    %v2614 = vunpack.c.l.b16 %v2413
    %v2615 = vunpack.c.h.b16 %v2413
    %v2616 = vpack.c.b16 %v2492, %v2488
    %v2617 = vpack.c.b16 %v2493, %v2489
    %v2618 = vpack.c.b16 %v2494, %v2490
    %v2619 = vpack.c.b16 %v2495, %v2491
    %v2620 = vpack.c.b16 %v2500, %v2496
    %v2621 = vpack.c.b16 %v2501, %v2497
    %v2622 = vpack.c.b16 %v2502, %v2498
    %v2623 = vpack.c.b16 %v2503, %v2499
    %v2624 = vpack.c.b16 %v2508, %v2504
    %v2625 = vpack.c.b16 %v2509, %v2505
    %v2626 = vpack.c.b16 %v2510, %v2506
    %v2627 = vpack.c.b16 %v2511, %v2507
    %v2628 = vpack.c.b16 %v2516, %v2512
    %v2629 = vpack.c.b16 %v2517, %v2513
    %v2630 = vpack.c.b16 %v2518, %v2514
    %v2631 = vpack.c.b16 %v2519, %v2515
    %v2632 = vpack.c.b16 %v2524, %v2520
    %v2633 = vpack.c.b16 %v2525, %v2521
    %v2634 = vpack.c.b16 %v2526, %v2522
    %v2635 = vpack.c.b16 %v2527, %v2523
    %v2636 = vpack.c.b16 %v2532, %v2528
    %v2637 = vpack.c.b16 %v2533, %v2529
    %v2638 = vpack.c.b16 %v2534, %v2530
    %v2639 = vpack.c.b16 %v2535, %v2531
    %v2640 = vpack.c.b16 %v2540, %v2536
    %v2641 = vpack.c.b16 %v2541, %v2537
    %v2642 = vpack.c.b16 %v2542, %v2538
    %v2643 = vpack.c.b16 %v2543, %v2539
    %v2644 = vpack.c.b16 %v2548, %v2544
    %v2645 = vpack.c.b16 %v2549, %v2545
    %v2646 = vpack.c.b16 %v2550, %v2546
    %v2647 = vpack.c.b16 %v2551, %v2547
    %v2648 = vpack.c.b16 %v2556, %v2552
    %v2649 = vpack.c.b16 %v2557, %v2553
    %v2650 = vpack.c.b16 %v2558, %v2554
    %v2651 = vpack.c.b16 %v2559, %v2555
    %v2652 = vpack.c.b16 %v2564, %v2560
    %v2653 = vpack.c.b16 %v2565, %v2561
    %v2654 = vpack.c.b16 %v2566, %v2562
    %v2655 = vpack.c.b16 %v2567, %v2563
    %v2656 = vpack.c.b16 %v2572, %v2568
    %v2657 = vpack.c.b16 %v2573, %v2569
    %v2658 = vpack.c.b16 %v2574, %v2570
    %v2659 = vpack.c.b16 %v2575, %v2571
    %v2660 = vpack.c.b16 %v2580, %v2576
    %v2661 = vpack.c.b16 %v2581, %v2577
    %v2662 = vpack.c.b16 %v2582, %v2578
    %v2663 = vpack.c.b16 %v2583, %v2579
    %v2664 = vpack.c.b16 %v2588, %v2584
    %v2665 = vpack.c.b16 %v2589, %v2585
    %v2666 = vpack.c.b16 %v2590, %v2586
    %v2667 = vpack.c.b16 %v2591, %v2587
    %v2668 = vpack.c.b16 %v2596, %v2592
    %v2669 = vpack.c.b16 %v2597, %v2593
    %v2670 = vpack.c.b16 %v2598, %v2594
    %v2671 = vpack.c.b16 %v2599, %v2595
    %v2672 = vpack.c.b16 %v2604, %v2600
    %v2673 = vpack.c.b16 %v2605, %v2601
    %v2674 = vpack.c.b16 %v2606, %v2602
    %v2675 = vpack.c.b16 %v2607, %v2603
    %v2676 = vpack.c.b16 %v2612, %v2608
    %v2677 = vpack.c.b16 %v2613, %v2609
    %v2678 = vpack.c.b16 %v2614, %v2610
    %v2679 = vpack.c.b16 %v2615, %v2611
    %2744 = vmatpush.bf16.msra.mxu0 %v2644
    %2745 = vmatpush.bf16.msra.mxu0 %v2640
    %2746 = vmatpush.bf16.msra.mxu0 %v2636
    %2747 = vmatpush.bf16.msra.mxu0 %v2632
    %2748 = vmatpush.bf16.msra.mxu0 %v2628
    %2749 = vmatpush.bf16.msra.mxu0 %v2624
    %2750 = vmatpush.bf16.msra.mxu0 %v2620
    %2751 = vmatpush.bf16.msra.mxu0 %v2616
    %2752 = vmatmul.bf16.gmra.mxu0 %v2348
    %v2753 = vpop.f32.mrf.mxu0
    %v2754 = vadd.f32 %v2416, %v2753
    %v2755 = vpop.f32.mrf.mxu0
    %2756 = vdwg.mxu0
    %2757 = vmatpush.bf16.msra.mxu0 %v2676
    %2758 = vmatpush.bf16.msra.mxu0 %v2672
    %2759 = vmatpush.bf16.msra.mxu0 %v2668
    %2760 = vmatpush.bf16.msra.mxu0 %v2664
    %2761 = vmatpush.bf16.msra.mxu0 %v2660
    %2762 = vmatpush.bf16.msra.mxu0 %v2656
    %2763 = vmatpush.bf16.msra.mxu0 %v2652
    %2764 = vmatpush.bf16.msra.mxu0 %v2648
    %2765 = vmatmul.bf16.gmra.mxu0 %v2349
    %v2766 = vpop.f32.mrf.mxu0
    %v2767 = vadd.f32 %v2754, %v2766
    %v2768 = vpop.f32.mrf.mxu0
    %2769 = vdwg.mxu0
    %2770 = vmatpush.bf16.msra.mxu0 %v2645
    %2771 = vmatpush.bf16.msra.mxu0 %v2641
    %2772 = vmatpush.bf16.msra.mxu0 %v2637
    %2773 = vmatpush.bf16.msra.mxu0 %v2633
    %2774 = vmatpush.bf16.msra.mxu0 %v2629
    %2775 = vmatpush.bf16.msra.mxu0 %v2625
    %2776 = vmatpush.bf16.msra.mxu0 %v2621
    %2777 = vmatpush.bf16.msra.mxu0 %v2617
    %2778 = vmatmul.bf16.gmra.mxu0 %v2348
    %v2779 = vpop.f32.mrf.mxu0
    %v2780 = vadd.f32 %v2417, %v2779
    %v2781 = vpop.f32.mrf.mxu0
    %2782 = vdwg.mxu0
    %2783 = vmatpush.bf16.msra.mxu0 %v2677
    %2784 = vmatpush.bf16.msra.mxu0 %v2673
    %2785 = vmatpush.bf16.msra.mxu0 %v2669
    %2786 = vmatpush.bf16.msra.mxu0 %v2665
    %2787 = vmatpush.bf16.msra.mxu0 %v2661
    %2788 = vmatpush.bf16.msra.mxu0 %v2657
    %2789 = vmatpush.bf16.msra.mxu0 %v2653
    %2790 = vmatpush.bf16.msra.mxu0 %v2649
    %2791 = vmatmul.bf16.gmra.mxu0 %v2349
    %v2792 = vpop.f32.mrf.mxu0
    %v2793 = vadd.f32 %v2780, %v2792
    %v2794 = vpop.f32.mrf.mxu0
    %2795 = vdwg.mxu0
    %2796 = vmatpush.bf16.msra.mxu0 %v2646
    %2797 = vmatpush.bf16.msra.mxu0 %v2642
    %2798 = vmatpush.bf16.msra.mxu0 %v2638
    %2799 = vmatpush.bf16.msra.mxu0 %v2634
    %2800 = vmatpush.bf16.msra.mxu0 %v2630
    %2801 = vmatpush.bf16.msra.mxu0 %v2626
    %2802 = vmatpush.bf16.msra.mxu0 %v2622
    %2803 = vmatpush.bf16.msra.mxu0 %v2618
    %2804 = vmatmul.bf16.gmra.mxu0 %v2348
    %v2805 = vpop.f32.mrf.mxu0
    %v2806 = vadd.f32 %v2418, %v2805
    %v2807 = vpop.f32.mrf.mxu0
    %2808 = vdwg.mxu0
    %2809 = vmatpush.bf16.msra.mxu0 %v2678
    %2810 = vmatpush.bf16.msra.mxu0 %v2674
    %2811 = vmatpush.bf16.msra.mxu0 %v2670
    %2812 = vmatpush.bf16.msra.mxu0 %v2666
    %2813 = vmatpush.bf16.msra.mxu0 %v2662
    %2814 = vmatpush.bf16.msra.mxu0 %v2658
    %2815 = vmatpush.bf16.msra.mxu0 %v2654
    %2816 = vmatpush.bf16.msra.mxu0 %v2650
    %2817 = vmatmul.bf16.gmra.mxu0 %v2349
    %v2818 = vpop.f32.mrf.mxu0
    %v2819 = vadd.f32 %v2806, %v2818
    %v2820 = vpop.f32.mrf.mxu0
    %2821 = vdwg.mxu0
    %2822 = vmatpush.bf16.msra.mxu0 %v2647
    %2823 = vmatpush.bf16.msra.mxu0 %v2643
    %2824 = vmatpush.bf16.msra.mxu0 %v2639
    %2825 = vmatpush.bf16.msra.mxu0 %v2635
    %2826 = vmatpush.bf16.msra.mxu0 %v2631
    %2827 = vmatpush.bf16.msra.mxu0 %v2627
    %2828 = vmatpush.bf16.msra.mxu0 %v2623
    %2829 = vmatpush.bf16.msra.mxu0 %v2619
    %2830 = vmatmul.bf16.gmra.mxu0 %v2348
    %v2831 = vpop.f32.mrf.mxu0
    %v2832 = vadd.f32 %v2419, %v2831
    %v2833 = vpop.f32.mrf.mxu0
    %2834 = vdwg.mxu0
    %2835 = vmatpush.bf16.msra.mxu0 %v2679
    %2836 = vmatpush.bf16.msra.mxu0 %v2675
    %2837 = vmatpush.bf16.msra.mxu0 %v2671
    %2838 = vmatpush.bf16.msra.mxu0 %v2667
    %2839 = vmatpush.bf16.msra.mxu0 %v2663
    %2840 = vmatpush.bf16.msra.mxu0 %v2659
    %2841 = vmatpush.bf16.msra.mxu0 %v2655
    %2842 = vmatpush.bf16.msra.mxu0 %v2651
    %2843 = vmatmul.bf16.gmra.mxu0 %v2349
    %v2844 = vpop.f32.mrf.mxu0
    %v2845 = vadd.f32 %v2832, %v2844
    %v2846 = vpop.f32.mrf.mxu0
    %2847 = vdwg.mxu0
    %vm2848 = vcmp.gt.f32.partialorder %v2767, 0.0
    %vm2849 = vcmp.gt.f32.partialorder %v2793, 0.0
    %vm2850 = vcmp.gt.f32.partialorder %v2819, 0.0
    %vm2851 = vcmp.gt.f32.partialorder %v2845, 0.0
    %v2852 = vmul.f32 %v2767, 0.2
    %v2853 = vmul.f32 %v2793, 0.2
    %v2854 = vmul.f32 %v2819, 0.2
    %v2855 = vmul.f32 %v2845, 0.2
    %v2856 = vsel %vm2848, %v2767, %v2852
    %v2857 = vsel %vm2849, %v2793, %v2853
    %v2858 = vsel %vm2850, %v2819, %v2854
    %v2859 = vsel %vm2851, %v2845, %v2855
    %v2860 = vpack.c.bf16 %v2856, %v2856
    %v2861 = vpack.c.bf16 %v2857, %v2857
    %v2862 = vpack.c.bf16 %v2858, %v2858
    %v2863 = vpack.c.bf16 %v2859, %v2859
    %v2864 = vld [vmem:[%s12] sm:$0xff]
    %v2865 = vld [vmem:[%s12 + $0x8] sm:$0xff]
    %v2866 = vld [vmem:[%s12 + $0x10] sm:$0xff]
    %v2867 = vld [vmem:[%s12 + $0x18] sm:$0xf]
    %v2868 = vld [vmem:[%s12 + $0x1c] sm:$0xff]
    %v2869 = vld [vmem:[%s12 + $0x24] sm:$0xff]
    %v2870 = vld [vmem:[%s12 + $0x2c] sm:$0xff]
    %v2871 = vld [vmem:[%s12 + $0x34] sm:$0xf]
    %v2872 = vld [vmem:[%s12 + $0x38] sm:$0xff]
    %v2873 = vld [vmem:[%s12 + $0x40] sm:$0xff]
    %v2874 = vld [vmem:[%s12 + $0x48] sm:$0xff]
    %v2875 = vld [vmem:[%s12 + $0x50] sm:$0xf]
    %v2876 = vld [vmem:[%s12 + $0x54] sm:$0xff]
    %v2877 = vld [vmem:[%s12 + $0x5c] sm:$0xff]
    %v2878 = vld [vmem:[%s12 + $0x64] sm:$0xff]
    %v2879 = vld [vmem:[%s12 + $0x6c] sm:$0xf]
    %v2880 = vld [vmem:[%s12 + $0x70] sm:$0xff]
    %v2881 = vld [vmem:[%s12 + $0x78] sm:$0xff]
    %v2882 = vld [vmem:[%s12 + $0x80] sm:$0xff]
    %v2883 = vld [vmem:[%s12 + $0x88] sm:$0xf]
    %v2884 = vld [vmem:[%s12 + $0x8c] sm:$0xff]
    %v2885 = vld [vmem:[%s12 + $0x94] sm:$0xff]
    %v2886 = vld [vmem:[%s12 + $0x9c] sm:$0xff]
    %v2887 = vld [vmem:[%s12 + $0xa4] sm:$0xf]
    %v2888 = vld [vmem:[%s12 + $0xa8] sm:$0xff]
    %v2889 = vld [vmem:[%s12 + $0xb0] sm:$0xff]
    %v2890 = vld [vmem:[%s12 + $0xb8] sm:$0xff]
    %v2891 = vld [vmem:[%s12 + $0xc0] sm:$0xf]
    %v2892 = vld [vmem:[%s12 + $0xc4] sm:$0xff]
    %v2893 = vld [vmem:[%s12 + $0xcc] sm:$0xff]
    %v2894 = vld [vmem:[%s12 + $0xd4] sm:$0xff]
    %v2895 = vld [vmem:[%s12 + $0xdc] sm:$0xf]
    %v2896 = vld [vmem:[%s12 + $0xe0] sm:$0xff]
    %v2897 = vld [vmem:[%s12 + $0xe8] sm:$0xff]
    %v2898 = vld [vmem:[%s12 + $0xf0] sm:$0xff]
    %v2899 = vld [vmem:[%s12 + $0xf8] sm:$0xf]
    %v2900 = vld [vmem:[%s12 + $0xfc] sm:$0xff]
    %v2901 = vld [vmem:[%s12 + $0x104] sm:$0xff]
    %v2902 = vld [vmem:[%s12 + $0x10c] sm:$0xff]
    %v2903 = vld [vmem:[%s12 + $0x114] sm:$0xf]
    %v2904 = vld [vmem:[%s12 + $0x118] sm:$0xff]
    %v2905 = vld [vmem:[%s12 + $0x120] sm:$0xff]
    %v2906 = vld [vmem:[%s12 + $0x128] sm:$0xff]
    %v2907 = vld [vmem:[%s12 + $0x130] sm:$0xf]
    %v2908 = vld [vmem:[%s12 + $0x134] sm:$0xff]
    %v2909 = vld [vmem:[%s12 + $0x13c] sm:$0xff]
    %v2910 = vld [vmem:[%s12 + $0x144] sm:$0xff]
    %v2911 = vld [vmem:[%s12 + $0x14c] sm:$0xf]
    %v2912 = vld [vmem:[%s12 + $0x150] sm:$0xff]
    %v2913 = vld [vmem:[%s12 + $0x158] sm:$0xff]
    %v2914 = vld [vmem:[%s12 + $0x160] sm:$0xff]
    %v2915 = vld [vmem:[%s12 + $0x168] sm:$0xf]
    %v2916 = vld [vmem:[%s12 + $0x16c] sm:$0xff]
    %v2917 = vld [vmem:[%s12 + $0x174] sm:$0xff]
    %v2918 = vld [vmem:[%s12 + $0x17c] sm:$0xff]
    %v2919 = vld [vmem:[%s12 + $0x184] sm:$0xf]
    %v2920 = vld [vmem:[%s12 + $0x188] sm:$0xff]
    %v2921 = vld [vmem:[%s12 + $0x190] sm:$0xff]
    %v2922 = vld [vmem:[%s12 + $0x198] sm:$0xff]
    %v2923 = vld [vmem:[%s12 + $0x1a0] sm:$0xf]
    %v2924 = vld [vmem:[%s12 + $0x1a4] sm:$0xff]
    %v2925 = vld [vmem:[%s12 + $0x1ac] sm:$0xff]
    %v2926 = vld [vmem:[%s12 + $0x1b4] sm:$0xff]
    %v2927 = vld [vmem:[%s12 + $0x1bc] sm:$0xf]
    %v2928 = vld [vmem:[%s12 + $0x1c0] sm:$0xff]
    %v2929 = vld [vmem:[%s12 + $0x1c8] sm:$0xff]
    %v2930 = vld [vmem:[%s12 + $0x1d0] sm:$0xff]
    %v2931 = vld [vmem:[%s12 + $0x1d8] sm:$0xf]
    %v2932 = vld [vmem:[%s12 + $0x1dc] sm:$0xff]
    %v2933 = vld [vmem:[%s12 + $0x1e4] sm:$0xff]
    %v2934 = vld [vmem:[%s12 + $0x1ec] sm:$0xff]
    %v2935 = vld [vmem:[%s12 + $0x1f4] sm:$0xf]
    %v2936 = vld [vmem:[%s12 + $0x1f8] sm:$0xff]
    %v2937 = vld [vmem:[%s12 + $0x200] sm:$0xff]
    %v2938 = vld [vmem:[%s12 + $0x208] sm:$0xff]
    %v2939 = vld [vmem:[%s12 + $0x210] sm:$0xf]
    %v2940 = vld [vmem:[%s12 + $0x214] sm:$0xff]
    %v2941 = vld [vmem:[%s12 + $0x21c] sm:$0xff]
    %v2942 = vld [vmem:[%s12 + $0x224] sm:$0xff]
    %v2943 = vld [vmem:[%s12 + $0x22c] sm:$0xf]
    %v2944 = vld [vmem:[%s12 + $0x230] sm:$0xff]
    %v2945 = vld [vmem:[%s12 + $0x238] sm:$0xff]
    %v2946 = vld [vmem:[%s12 + $0x240] sm:$0xff]
    %v2947 = vld [vmem:[%s12 + $0x248] sm:$0xf]
    %v2948 = vld [vmem:[%s12 + $0x24c] sm:$0xff]
    %v2949 = vld [vmem:[%s12 + $0x254] sm:$0xff]
    %v2950 = vld [vmem:[%s12 + $0x25c] sm:$0xff]
    %v2951 = vld [vmem:[%s12 + $0x264] sm:$0xf]
    %v2952 = vld [vmem:[%s12 + $0x268] sm:$0xff]
    %v2953 = vld [vmem:[%s12 + $0x270] sm:$0xff]
    %v2954 = vld [vmem:[%s12 + $0x278] sm:$0xff]
    %v2955 = vld [vmem:[%s12 + $0x280] sm:$0xf]
    %v2956 = vld [vmem:[%s12 + $0x284] sm:$0xff]
    %v2957 = vld [vmem:[%s12 + $0x28c] sm:$0xff]
    %v2958 = vld [vmem:[%s12 + $0x294] sm:$0xff]
    %v2959 = vld [vmem:[%s12 + $0x29c] sm:$0xf]
    %v2960 = vld [vmem:[%s12 + $0x2a0] sm:$0xff]
    %v2961 = vld [vmem:[%s12 + $0x2a8] sm:$0xff]
    %v2962 = vld [vmem:[%s12 + $0x2b0] sm:$0xff]
    %v2963 = vld [vmem:[%s12 + $0x2b8] sm:$0xf]
    %v2964 = vld [vmem:[%s12 + $0x2bc] sm:$0xff]
    %v2965 = vld [vmem:[%s12 + $0x2c4] sm:$0xff]
    %v2966 = vld [vmem:[%s12 + $0x2cc] sm:$0xff]
    %v2967 = vld [vmem:[%s12 + $0x2d4] sm:$0xf]
    %v2968 = vld [vmem:[%s12 + $0x2d8] sm:$0xff]
    %v2969 = vld [vmem:[%s12 + $0x2e0] sm:$0xff]
    %v2970 = vld [vmem:[%s12 + $0x2e8] sm:$0xff]
    %v2971 = vld [vmem:[%s12 + $0x2f0] sm:$0xf]
    %v2972 = vld [vmem:[%s12 + $0x2f4] sm:$0xff]
    %v2973 = vld [vmem:[%s12 + $0x2fc] sm:$0xff]
    %v2974 = vld [vmem:[%s12 + $0x304] sm:$0xff]
    %v2975 = vld [vmem:[%s12 + $0x30c] sm:$0xf]
    %v2976 = vld [vmem:[%s12 + $0x310] sm:$0xff]
    %v2977 = vld [vmem:[%s12 + $0x318] sm:$0xff]
    %v2978 = vld [vmem:[%s12 + $0x320] sm:$0xff]
    %v2979 = vld [vmem:[%s12 + $0x328] sm:$0xf]
    %v2980 = vld [vmem:[%s12 + $0x32c] sm:$0xff]
    %v2981 = vld [vmem:[%s12 + $0x334] sm:$0xff]
    %v2982 = vld [vmem:[%s12 + $0x33c] sm:$0xff]
    %v2983 = vld [vmem:[%s12 + $0x344] sm:$0xf]
    %v2984 = vld [vmem:[%s12 + $0x348] sm:$0xff]
    %v2985 = vld [vmem:[%s12 + $0x350] sm:$0xff]
    %v2986 = vld [vmem:[%s12 + $0x358] sm:$0xff]
    %v2987 = vld [vmem:[%s12 + $0x360] sm:$0xf]
    %v2988 = vld [vmem:[%s12 + $0x364] sm:$0xff]
    %v2989 = vld [vmem:[%s12 + $0x36c] sm:$0xff]
    %v2990 = vld [vmem:[%s12 + $0x374] sm:$0xff]
    %v2991 = vld [vmem:[%s12 + $0x37c] sm:$0xf]
    %v2992 = vld [vmem:[%s12 + $0x380] sm:$0xff]
    %v2993 = vld [vmem:[%s12 + $0x388] sm:$0xff]
    %v2994 = vld [vmem:[%s12 + $0x390] sm:$0xff]
    %v2995 = vld [vmem:[%s12 + $0x398] sm:$0xf]
    %v2996 = vld [vmem:[%s12 + $0x39c] sm:$0xff]
    %v2997 = vld [vmem:[%s12 + $0x3a4] sm:$0xff]
    %v2998 = vld [vmem:[%s12 + $0x3ac] sm:$0xff]
    %v2999 = vld [vmem:[%s12 + $0x3b4] sm:$0xf]
    %v3000 = vld [vmem:[%s12 + $0x3b8] sm:$0xff]
    %v3001 = vld [vmem:[%s12 + $0x3c0] sm:$0xff]
    %v3002 = vld [vmem:[%s12 + $0x3c8] sm:$0xff]
    %v3003 = vld [vmem:[%s12 + $0x3d0] sm:$0xf]
    %v3004 = vld [vmem:[%s12 + $0x3d4] sm:$0xff]
    %v3005 = vld [vmem:[%s12 + $0x3dc] sm:$0xff]
    %v3006 = vld [vmem:[%s12 + $0x3e4] sm:$0xff]
    %v3007 = vld [vmem:[%s12 + $0x3ec] sm:$0xf]
    %v3008 = vld [vmem:[%s12 + $0x3f0] sm:$0xff]
    %v3009 = vld [vmem:[%s12 + $0x3f8] sm:$0xff]
    %v3010 = vld [vmem:[%s12 + $0x400] sm:$0xff]
    %v3011 = vld [vmem:[%s12 + $0x408] sm:$0xf]
    %v3012 = vld [vmem:[%s12 + $0x40c] sm:$0xff]
    %v3013 = vld [vmem:[%s12 + $0x414] sm:$0xff]
    %v3014 = vld [vmem:[%s12 + $0x41c] sm:$0xff]
    %v3015 = vld [vmem:[%s12 + $0x424] sm:$0xf]
    %v3016 = vld [vmem:[%s12 + $0x428] sm:$0xff]
    %v3017 = vld [vmem:[%s12 + $0x430] sm:$0xff]
    %v3018 = vld [vmem:[%s12 + $0x438] sm:$0xff]
    %v3019 = vld [vmem:[%s12 + $0x440] sm:$0xf]
    %v3020 = vld [vmem:[%s12 + $0x444] sm:$0xff]
    %v3021 = vld [vmem:[%s12 + $0x44c] sm:$0xff]
    %v3022 = vld [vmem:[%s12 + $0x454] sm:$0xff]
    %v3023 = vld [vmem:[%s12 + $0x45c] sm:$0xf]
    %v3024 = vld [vmem:[%s12 + $0x460] sm:$0xff]
    %v3025 = vld [vmem:[%s12 + $0x468] sm:$0xff]
    %v3026 = vld [vmem:[%s12 + $0x470] sm:$0xff]
    %v3027 = vld [vmem:[%s12 + $0x478] sm:$0xf]
    %v3028 = vld [vmem:[%s12 + $0x47c] sm:$0xff]
    %v3029 = vld [vmem:[%s12 + $0x484] sm:$0xff]
    %v3030 = vld [vmem:[%s12 + $0x48c] sm:$0xff]
    %v3031 = vld [vmem:[%s12 + $0x494] sm:$0xf]
    %v3032 = vld [vmem:[%s12 + $0x498] sm:$0xff]
    %v3033 = vld [vmem:[%s12 + $0x4a0] sm:$0xff]
    %v3034 = vld [vmem:[%s12 + $0x4a8] sm:$0xff]
    %v3035 = vld [vmem:[%s12 + $0x4b0] sm:$0xf]
    %v3036 = vld [vmem:[%s12 + $0x4b4] sm:$0xff]
    %v3037 = vld [vmem:[%s12 + $0x4bc] sm:$0xff]
    %v3038 = vld [vmem:[%s12 + $0x4c4] sm:$0xff]
    %v3039 = vld [vmem:[%s12 + $0x4cc] sm:$0xf]
    %v3040 = vld [vmem:[%s12 + $0x4d0] sm:$0xff]
    %v3041 = vld [vmem:[%s12 + $0x4d8] sm:$0xff]
    %v3042 = vld [vmem:[%s12 + $0x4e0] sm:$0xff]
    %v3043 = vld [vmem:[%s12 + $0x4e8] sm:$0xf]
    %v3044 = vld [vmem:[%s12 + $0x4ec] sm:$0xff]
    %v3045 = vld [vmem:[%s12 + $0x4f4] sm:$0xff]
    %v3046 = vld [vmem:[%s12 + $0x4fc] sm:$0xff]
    %v3047 = vld [vmem:[%s12 + $0x504] sm:$0xf]
    %v3048 = vld [vmem:[%s12 + $0x508] sm:$0xff]
    %v3049 = vld [vmem:[%s12 + $0x510] sm:$0xff]
    %v3050 = vld [vmem:[%s12 + $0x518] sm:$0xff]
    %v3051 = vld [vmem:[%s12 + $0x520] sm:$0xf]
    %v3052 = vld [vmem:[%s12 + $0x524] sm:$0xff]
    %v3053 = vld [vmem:[%s12 + $0x52c] sm:$0xff]
    %v3054 = vld [vmem:[%s12 + $0x534] sm:$0xff]
    %v3055 = vld [vmem:[%s12 + $0x53c] sm:$0xf]
    %v3056 = vld [vmem:[%s12 + $0x540] sm:$0xff]
    %v3057 = vld [vmem:[%s12 + $0x548] sm:$0xff]
    %v3058 = vld [vmem:[%s12 + $0x550] sm:$0xff]
    %v3059 = vld [vmem:[%s12 + $0x558] sm:$0xf]
    %v3060 = vld [vmem:[%s12 + $0x55c] sm:$0xff]
    %v3061 = vld [vmem:[%s12 + $0x564] sm:$0xff]
    %v3062 = vld [vmem:[%s12 + $0x56c] sm:$0xff]
    %v3063 = vld [vmem:[%s12 + $0x574] sm:$0xf]
    %v3064 = vld [vmem:[%s12 + $0x578] sm:$0xff]
    %v3065 = vld [vmem:[%s12 + $0x580] sm:$0xff]
    %v3066 = vld [vmem:[%s12 + $0x588] sm:$0xff]
    %v3067 = vld [vmem:[%s12 + $0x590] sm:$0xf]
    %v3068 = vld [vmem:[%s12 + $0x594] sm:$0xff]
    %v3069 = vld [vmem:[%s12 + $0x59c] sm:$0xff]
    %v3070 = vld [vmem:[%s12 + $0x5a4] sm:$0xff]
    %v3071 = vld [vmem:[%s12 + $0x5ac] sm:$0xf]
    %v3072 = vld [vmem:[%s12 + $0x5b0] sm:$0xff]
    %v3073 = vld [vmem:[%s12 + $0x5b8] sm:$0xff]
    %v3074 = vld [vmem:[%s12 + $0x5c0] sm:$0xff]
    %v3075 = vld [vmem:[%s12 + $0x5c8] sm:$0xf]
    %v3076 = vld [vmem:[%s12 + $0x5cc] sm:$0xff]
    %v3077 = vld [vmem:[%s12 + $0x5d4] sm:$0xff]
    %v3078 = vld [vmem:[%s12 + $0x5dc] sm:$0xff]
    %v3079 = vld [vmem:[%s12 + $0x5e4] sm:$0xf]
    %v3080 = vld [vmem:[%s12 + $0x5e8] sm:$0xff]
    %v3081 = vld [vmem:[%s12 + $0x5f0] sm:$0xff]
    %v3082 = vld [vmem:[%s12 + $0x5f8] sm:$0xff]
    %v3083 = vld [vmem:[%s12 + $0x600] sm:$0xf]
    %v3084 = vld [vmem:[%s12 + $0x604] sm:$0xff]
    %v3085 = vld [vmem:[%s12 + $0x60c] sm:$0xff]
    %v3086 = vld [vmem:[%s12 + $0x614] sm:$0xff]
    %v3087 = vld [vmem:[%s12 + $0x61c] sm:$0xf]
    %v3088 = vld [vmem:[%s12 + $0x620] sm:$0xff]
    %v3089 = vld [vmem:[%s12 + $0x628] sm:$0xff]
    %v3090 = vld [vmem:[%s12 + $0x630] sm:$0xff]
    %v3091 = vld [vmem:[%s12 + $0x638] sm:$0xf]
    %v3092 = vld [vmem:[%s12 + $0x63c] sm:$0xff]
    %v3093 = vld [vmem:[%s12 + $0x644] sm:$0xff]
    %v3094 = vld [vmem:[%s12 + $0x64c] sm:$0xff]
    %v3095 = vld [vmem:[%s12 + $0x654] sm:$0xf]
    %v3096 = vld [vmem:[%s12 + $0x658] sm:$0xff]
    %v3097 = vld [vmem:[%s12 + $0x660] sm:$0xff]
    %v3098 = vld [vmem:[%s12 + $0x668] sm:$0xff]
    %v3099 = vld [vmem:[%s12 + $0x670] sm:$0xf]
    %v3100 = vld [vmem:[%s12 + $0x674] sm:$0xff]
    %v3101 = vld [vmem:[%s12 + $0x67c] sm:$0xff]
    %v3102 = vld [vmem:[%s12 + $0x684] sm:$0xff]
    %v3103 = vld [vmem:[%s12 + $0x68c] sm:$0xf]
    %v3104 = vld [vmem:[%s12 + $0x690] sm:$0xff]
    %v3105 = vld [vmem:[%s12 + $0x698] sm:$0xff]
    %v3106 = vld [vmem:[%s12 + $0x6a0] sm:$0xff]
    %v3107 = vld [vmem:[%s12 + $0x6a8] sm:$0xf]
    %v3108 = vld [vmem:[%s12 + $0x6ac] sm:$0xff]
    %v3109 = vld [vmem:[%s12 + $0x6b4] sm:$0xff]
    %v3110 = vld [vmem:[%s12 + $0x6bc] sm:$0xff]
    %v3111 = vld [vmem:[%s12 + $0x6c4] sm:$0xf]
    %v3112 = vld [vmem:[%s12 + $0x6c8] sm:$0xff]
    %v3113 = vld [vmem:[%s12 + $0x6d0] sm:$0xff]
    %v3114 = vld [vmem:[%s12 + $0x6d8] sm:$0xff]
    %v3115 = vld [vmem:[%s12 + $0x6e0] sm:$0xf]
    %v3116 = vld [vmem:[%s12 + $0x6e4] sm:$0xff]
    %v3117 = vld [vmem:[%s12 + $0x6ec] sm:$0xff]
    %v3118 = vld [vmem:[%s12 + $0x6f4] sm:$0xff]
    %v3119 = vld [vmem:[%s12 + $0x6fc] sm:$0xf]
    %v3120 = vld [vmem:[%s13] sm:$0x7f]
    %v3122 = vperm.slane %v3120, 0
    %v3123 = vperm.slane %v3120, 1
    %v3124 = vperm.slane %v3120, 2
    %v3125 = vperm.slane %v3120, 3
    %v3126 = vperm.slane %v3120, 4
    %v3127 = vperm.slane %v3120, 5
    %v3128 = vperm.slane %v3120, 6
    %v3392 = vunpack.c.l.b16 %v2864
    %v3393 = vunpack.c.h.b16 %v2864
    %v3394 = vunpack.c.l.b16 %v2865
    %v3395 = vunpack.c.h.b16 %v2865
    %v3396 = vunpack.c.l.b16 %v2866
    %v3397 = vunpack.c.h.b16 %v2866
    %v3398 = vunpack.c.l.b16 %v2867
    %v3399 = vunpack.c.l.b16 %v2868
    %v3400 = vunpack.c.h.b16 %v2868
    %v3401 = vunpack.c.l.b16 %v2869
    %v3402 = vunpack.c.h.b16 %v2869
    %v3403 = vunpack.c.l.b16 %v2870
    %v3404 = vunpack.c.h.b16 %v2870
    %v3405 = vunpack.c.l.b16 %v2871
    %v3406 = vunpack.c.l.b16 %v2872
    %v3407 = vunpack.c.h.b16 %v2872
    %v3408 = vunpack.c.l.b16 %v2873
    %v3409 = vunpack.c.h.b16 %v2873
    %v3410 = vunpack.c.l.b16 %v2874
    %v3411 = vunpack.c.h.b16 %v2874
    %v3412 = vunpack.c.l.b16 %v2875
    %v3413 = vunpack.c.l.b16 %v2876
    %v3414 = vunpack.c.h.b16 %v2876
    %v3415 = vunpack.c.l.b16 %v2877
    %v3416 = vunpack.c.h.b16 %v2877
    %v3417 = vunpack.c.l.b16 %v2878
    %v3418 = vunpack.c.h.b16 %v2878
    %v3419 = vunpack.c.l.b16 %v2879
    %v3420 = vunpack.c.l.b16 %v2880
    %v3421 = vunpack.c.h.b16 %v2880
    %v3422 = vunpack.c.l.b16 %v2881
    %v3423 = vunpack.c.h.b16 %v2881
    %v3424 = vunpack.c.l.b16 %v2882
    %v3425 = vunpack.c.h.b16 %v2882
    %v3426 = vunpack.c.l.b16 %v2883
    %v3427 = vunpack.c.l.b16 %v2884
    %v3428 = vunpack.c.h.b16 %v2884
    %v3429 = vunpack.c.l.b16 %v2885
    %v3430 = vunpack.c.h.b16 %v2885
    %v3431 = vunpack.c.l.b16 %v2886
    %v3432 = vunpack.c.h.b16 %v2886
    %v3433 = vunpack.c.l.b16 %v2887
    %v3434 = vunpack.c.l.b16 %v2888
    %v3435 = vunpack.c.h.b16 %v2888
    %v3436 = vunpack.c.l.b16 %v2889
    %v3437 = vunpack.c.h.b16 %v2889
    %v3438 = vunpack.c.l.b16 %v2890
    %v3439 = vunpack.c.h.b16 %v2890
    %v3440 = vunpack.c.l.b16 %v2891
    %v3441 = vunpack.c.l.b16 %v2892
    %v3442 = vunpack.c.h.b16 %v2892
    %v3443 = vunpack.c.l.b16 %v2893
    %v3444 = vunpack.c.h.b16 %v2893
    %v3445 = vunpack.c.l.b16 %v2894
    %v3446 = vunpack.c.h.b16 %v2894
    %v3447 = vunpack.c.l.b16 %v2895
    %v3448 = vunpack.c.l.b16 %v2896
    %v3449 = vunpack.c.h.b16 %v2896
    %v3450 = vunpack.c.l.b16 %v2897
    %v3451 = vunpack.c.h.b16 %v2897
    %v3452 = vunpack.c.l.b16 %v2898
    %v3453 = vunpack.c.h.b16 %v2898
    %v3454 = vunpack.c.l.b16 %v2899
    %v3455 = vunpack.c.l.b16 %v2900
    %v3456 = vunpack.c.h.b16 %v2900
    %v3457 = vunpack.c.l.b16 %v2901
    %v3458 = vunpack.c.h.b16 %v2901
    %v3459 = vunpack.c.l.b16 %v2902
    %v3460 = vunpack.c.h.b16 %v2902
    %v3461 = vunpack.c.l.b16 %v2903
    %v3462 = vunpack.c.l.b16 %v2904
    %v3463 = vunpack.c.h.b16 %v2904
    %v3464 = vunpack.c.l.b16 %v2905
    %v3465 = vunpack.c.h.b16 %v2905
    %v3466 = vunpack.c.l.b16 %v2906
    %v3467 = vunpack.c.h.b16 %v2906
    %v3468 = vunpack.c.l.b16 %v2907
    %v3469 = vunpack.c.l.b16 %v2908
    %v3470 = vunpack.c.h.b16 %v2908
    %v3471 = vunpack.c.l.b16 %v2909
    %v3472 = vunpack.c.h.b16 %v2909
    %v3473 = vunpack.c.l.b16 %v2910
    %v3474 = vunpack.c.h.b16 %v2910
    %v3475 = vunpack.c.l.b16 %v2911
    %v3476 = vunpack.c.l.b16 %v2912
    %v3477 = vunpack.c.h.b16 %v2912
    %v3478 = vunpack.c.l.b16 %v2913
    %v3479 = vunpack.c.h.b16 %v2913
    %v3480 = vunpack.c.l.b16 %v2914
    %v3481 = vunpack.c.h.b16 %v2914
    %v3482 = vunpack.c.l.b16 %v2915
    %v3483 = vunpack.c.l.b16 %v2916
    %v3484 = vunpack.c.h.b16 %v2916
    %v3485 = vunpack.c.l.b16 %v2917
    %v3486 = vunpack.c.h.b16 %v2917
    %v3487 = vunpack.c.l.b16 %v2918
    %v3488 = vunpack.c.h.b16 %v2918
    %v3489 = vunpack.c.l.b16 %v2919
    %v3490 = vunpack.c.l.b16 %v2920
    %v3491 = vunpack.c.h.b16 %v2920
    %v3492 = vunpack.c.l.b16 %v2921
    %v3493 = vunpack.c.h.b16 %v2921
    %v3494 = vunpack.c.l.b16 %v2922
    %v3495 = vunpack.c.h.b16 %v2922
    %v3496 = vunpack.c.l.b16 %v2923
    %v3497 = vunpack.c.l.b16 %v2924
    %v3498 = vunpack.c.h.b16 %v2924
    %v3499 = vunpack.c.l.b16 %v2925
    %v3500 = vunpack.c.h.b16 %v2925
    %v3501 = vunpack.c.l.b16 %v2926
    %v3502 = vunpack.c.h.b16 %v2926
    %v3503 = vunpack.c.l.b16 %v2927
    %v3504 = vunpack.c.l.b16 %v2928
    %v3505 = vunpack.c.h.b16 %v2928
    %v3506 = vunpack.c.l.b16 %v2929
    %v3507 = vunpack.c.h.b16 %v2929
    %v3508 = vunpack.c.l.b16 %v2930
    %v3509 = vunpack.c.h.b16 %v2930
    %v3510 = vunpack.c.l.b16 %v2931
    %v3511 = vunpack.c.l.b16 %v2932
    %v3512 = vunpack.c.h.b16 %v2932
    %v3513 = vunpack.c.l.b16 %v2933
    %v3514 = vunpack.c.h.b16 %v2933
    %v3515 = vunpack.c.l.b16 %v2934
    %v3516 = vunpack.c.h.b16 %v2934
    %v3517 = vunpack.c.l.b16 %v2935
    %v3518 = vunpack.c.l.b16 %v2936
    %v3519 = vunpack.c.h.b16 %v2936
    %v3520 = vunpack.c.l.b16 %v2937
    %v3521 = vunpack.c.h.b16 %v2937
    %v3522 = vunpack.c.l.b16 %v2938
    %v3523 = vunpack.c.h.b16 %v2938
    %v3524 = vunpack.c.l.b16 %v2939
    %v3525 = vunpack.c.l.b16 %v2940
    %v3526 = vunpack.c.h.b16 %v2940
    %v3527 = vunpack.c.l.b16 %v2941
    %v3528 = vunpack.c.h.b16 %v2941
    %v3529 = vunpack.c.l.b16 %v2942
    %v3530 = vunpack.c.h.b16 %v2942
    %v3531 = vunpack.c.l.b16 %v2943
    %v3532 = vunpack.c.l.b16 %v2944
    %v3533 = vunpack.c.h.b16 %v2944
    %v3534 = vunpack.c.l.b16 %v2945
    %v3535 = vunpack.c.h.b16 %v2945
    %v3536 = vunpack.c.l.b16 %v2946
    %v3537 = vunpack.c.h.b16 %v2946
    %v3538 = vunpack.c.l.b16 %v2947
    %v3539 = vunpack.c.l.b16 %v2948
    %v3540 = vunpack.c.h.b16 %v2948
    %v3541 = vunpack.c.l.b16 %v2949
    %v3542 = vunpack.c.h.b16 %v2949
    %v3543 = vunpack.c.l.b16 %v2950
    %v3544 = vunpack.c.h.b16 %v2950
    %v3545 = vunpack.c.l.b16 %v2951
    %v3546 = vunpack.c.l.b16 %v2952
    %v3547 = vunpack.c.h.b16 %v2952
    %v3548 = vunpack.c.l.b16 %v2953
    %v3549 = vunpack.c.h.b16 %v2953
    %v3550 = vunpack.c.l.b16 %v2954
    %v3551 = vunpack.c.h.b16 %v2954
    %v3552 = vunpack.c.l.b16 %v2955
    %v3553 = vunpack.c.l.b16 %v2956
    %v3554 = vunpack.c.h.b16 %v2956
    %v3555 = vunpack.c.l.b16 %v2957
    %v3556 = vunpack.c.h.b16 %v2957
    %v3557 = vunpack.c.l.b16 %v2958
    %v3558 = vunpack.c.h.b16 %v2958
    %v3559 = vunpack.c.l.b16 %v2959
    %v3560 = vunpack.c.l.b16 %v2960
    %v3561 = vunpack.c.h.b16 %v2960
    %v3562 = vunpack.c.l.b16 %v2961
    %v3563 = vunpack.c.h.b16 %v2961
    %v3564 = vunpack.c.l.b16 %v2962
    %v3565 = vunpack.c.h.b16 %v2962
    %v3566 = vunpack.c.l.b16 %v2963
    %v3567 = vunpack.c.l.b16 %v2964
    %v3568 = vunpack.c.h.b16 %v2964
    %v3569 = vunpack.c.l.b16 %v2965
    %v3570 = vunpack.c.h.b16 %v2965
    %v3571 = vunpack.c.l.b16 %v2966
    %v3572 = vunpack.c.h.b16 %v2966
    %v3573 = vunpack.c.l.b16 %v2967
    %v3574 = vunpack.c.l.b16 %v2968
    %v3575 = vunpack.c.h.b16 %v2968
    %v3576 = vunpack.c.l.b16 %v2969
    %v3577 = vunpack.c.h.b16 %v2969
    %v3578 = vunpack.c.l.b16 %v2970
    %v3579 = vunpack.c.h.b16 %v2970
    %v3580 = vunpack.c.l.b16 %v2971
    %v3581 = vunpack.c.l.b16 %v2972
    %v3582 = vunpack.c.h.b16 %v2972
    %v3583 = vunpack.c.l.b16 %v2973
    %v3584 = vunpack.c.h.b16 %v2973
    %v3585 = vunpack.c.l.b16 %v2974
    %v3586 = vunpack.c.h.b16 %v2974
    %v3587 = vunpack.c.l.b16 %v2975
    %v3588 = vunpack.c.l.b16 %v2976
    %v3589 = vunpack.c.h.b16 %v2976
    %v3590 = vunpack.c.l.b16 %v2977
    %v3591 = vunpack.c.h.b16 %v2977
    %v3592 = vunpack.c.l.b16 %v2978
    %v3593 = vunpack.c.h.b16 %v2978
    %v3594 = vunpack.c.l.b16 %v2979
    %v3595 = vunpack.c.l.b16 %v2980
    %v3596 = vunpack.c.h.b16 %v2980
    %v3597 = vunpack.c.l.b16 %v2981
    %v3598 = vunpack.c.h.b16 %v2981
    %v3599 = vunpack.c.l.b16 %v2982
    %v3600 = vunpack.c.h.b16 %v2982
    %v3601 = vunpack.c.l.b16 %v2983
    %v3602 = vunpack.c.l.b16 %v2984
    %v3603 = vunpack.c.h.b16 %v2984
    %v3604 = vunpack.c.l.b16 %v2985
    %v3605 = vunpack.c.h.b16 %v2985
    %v3606 = vunpack.c.l.b16 %v2986
    %v3607 = vunpack.c.h.b16 %v2986
    %v3608 = vunpack.c.l.b16 %v2987
    %v3609 = vunpack.c.l.b16 %v2988
    %v3610 = vunpack.c.h.b16 %v2988
    %v3611 = vunpack.c.l.b16 %v2989
    %v3612 = vunpack.c.h.b16 %v2989
    %v3613 = vunpack.c.l.b16 %v2990
    %v3614 = vunpack.c.h.b16 %v2990
    %v3615 = vunpack.c.l.b16 %v2991
    %v3616 = vunpack.c.l.b16 %v2992
    %v3617 = vunpack.c.h.b16 %v2992
    %v3618 = vunpack.c.l.b16 %v2993
    %v3619 = vunpack.c.h.b16 %v2993
    %v3620 = vunpack.c.l.b16 %v2994
    %v3621 = vunpack.c.h.b16 %v2994
    %v3622 = vunpack.c.l.b16 %v2995
    %v3623 = vunpack.c.l.b16 %v2996
    %v3624 = vunpack.c.h.b16 %v2996
    %v3625 = vunpack.c.l.b16 %v2997
    %v3626 = vunpack.c.h.b16 %v2997
    %v3627 = vunpack.c.l.b16 %v2998
    %v3628 = vunpack.c.h.b16 %v2998
    %v3629 = vunpack.c.l.b16 %v2999
    %v3630 = vunpack.c.l.b16 %v3000
    %v3631 = vunpack.c.h.b16 %v3000
    %v3632 = vunpack.c.l.b16 %v3001
    %v3633 = vunpack.c.h.b16 %v3001
    %v3634 = vunpack.c.l.b16 %v3002
    %v3635 = vunpack.c.h.b16 %v3002
    %v3636 = vunpack.c.l.b16 %v3003
    %v3637 = vunpack.c.l.b16 %v3004
    %v3638 = vunpack.c.h.b16 %v3004
    %v3639 = vunpack.c.l.b16 %v3005
    %v3640 = vunpack.c.h.b16 %v3005
    %v3641 = vunpack.c.l.b16 %v3006
    %v3642 = vunpack.c.h.b16 %v3006
    %v3643 = vunpack.c.l.b16 %v3007
    %v3644 = vunpack.c.l.b16 %v3008
    %v3645 = vunpack.c.h.b16 %v3008
    %v3646 = vunpack.c.l.b16 %v3009
    %v3647 = vunpack.c.h.b16 %v3009
    %v3648 = vunpack.c.l.b16 %v3010
    %v3649 = vunpack.c.h.b16 %v3010
    %v3650 = vunpack.c.l.b16 %v3011
    %v3651 = vunpack.c.l.b16 %v3012
    %v3652 = vunpack.c.h.b16 %v3012
    %v3653 = vunpack.c.l.b16 %v3013
    %v3654 = vunpack.c.h.b16 %v3013
    %v3655 = vunpack.c.l.b16 %v3014
    %v3656 = vunpack.c.h.b16 %v3014
    %v3657 = vunpack.c.l.b16 %v3015
    %v3658 = vunpack.c.l.b16 %v3016
    %v3659 = vunpack.c.h.b16 %v3016
    %v3660 = vunpack.c.l.b16 %v3017
    %v3661 = vunpack.c.h.b16 %v3017
    %v3662 = vunpack.c.l.b16 %v3018
    %v3663 = vunpack.c.h.b16 %v3018
    %v3664 = vunpack.c.l.b16 %v3019
    %v3665 = vunpack.c.l.b16 %v3020
    %v3666 = vunpack.c.h.b16 %v3020
    %v3667 = vunpack.c.l.b16 %v3021
    %v3668 = vunpack.c.h.b16 %v3021
    %v3669 = vunpack.c.l.b16 %v3022
    %v3670 = vunpack.c.h.b16 %v3022
    %v3671 = vunpack.c.l.b16 %v3023
    %v3672 = vunpack.c.l.b16 %v3024
    %v3673 = vunpack.c.h.b16 %v3024
    %v3674 = vunpack.c.l.b16 %v3025
    %v3675 = vunpack.c.h.b16 %v3025
    %v3676 = vunpack.c.l.b16 %v3026
    %v3677 = vunpack.c.h.b16 %v3026
    %v3678 = vunpack.c.l.b16 %v3027
    %v3679 = vunpack.c.l.b16 %v3028
    %v3680 = vunpack.c.h.b16 %v3028
    %v3681 = vunpack.c.l.b16 %v3029
    %v3682 = vunpack.c.h.b16 %v3029
    %v3683 = vunpack.c.l.b16 %v3030
    %v3684 = vunpack.c.h.b16 %v3030
    %v3685 = vunpack.c.l.b16 %v3031
    %v3686 = vunpack.c.l.b16 %v3032
    %v3687 = vunpack.c.h.b16 %v3032
    %v3688 = vunpack.c.l.b16 %v3033
    %v3689 = vunpack.c.h.b16 %v3033
    %v3690 = vunpack.c.l.b16 %v3034
    %v3691 = vunpack.c.h.b16 %v3034
    %v3692 = vunpack.c.l.b16 %v3035
    %v3693 = vunpack.c.l.b16 %v3036
    %v3694 = vunpack.c.h.b16 %v3036
    %v3695 = vunpack.c.l.b16 %v3037
    %v3696 = vunpack.c.h.b16 %v3037
    %v3697 = vunpack.c.l.b16 %v3038
    %v3698 = vunpack.c.h.b16 %v3038
    %v3699 = vunpack.c.l.b16 %v3039
    %v3700 = vunpack.c.l.b16 %v3040
    %v3701 = vunpack.c.h.b16 %v3040
    %v3702 = vunpack.c.l.b16 %v3041
    %v3703 = vunpack.c.h.b16 %v3041
    %v3704 = vunpack.c.l.b16 %v3042
    %v3705 = vunpack.c.h.b16 %v3042
    %v3706 = vunpack.c.l.b16 %v3043
    %v3707 = vunpack.c.l.b16 %v3044
    %v3708 = vunpack.c.h.b16 %v3044
    %v3709 = vunpack.c.l.b16 %v3045
    %v3710 = vunpack.c.h.b16 %v3045
    %v3711 = vunpack.c.l.b16 %v3046
    %v3712 = vunpack.c.h.b16 %v3046
    %v3713 = vunpack.c.l.b16 %v3047
    %v3714 = vunpack.c.l.b16 %v3048
    %v3715 = vunpack.c.h.b16 %v3048
    %v3716 = vunpack.c.l.b16 %v3049
    %v3717 = vunpack.c.h.b16 %v3049
    %v3718 = vunpack.c.l.b16 %v3050
    %v3719 = vunpack.c.h.b16 %v3050
    %v3720 = vunpack.c.l.b16 %v3051
    %v3721 = vunpack.c.l.b16 %v3052
    %v3722 = vunpack.c.h.b16 %v3052
    %v3723 = vunpack.c.l.b16 %v3053
    %v3724 = vunpack.c.h.b16 %v3053
    %v3725 = vunpack.c.l.b16 %v3054
    %v3726 = vunpack.c.h.b16 %v3054
    %v3727 = vunpack.c.l.b16 %v3055
    %v3728 = vunpack.c.l.b16 %v3056
    %v3729 = vunpack.c.h.b16 %v3056
    %v3730 = vunpack.c.l.b16 %v3057
    %v3731 = vunpack.c.h.b16 %v3057
    %v3732 = vunpack.c.l.b16 %v3058
    %v3733 = vunpack.c.h.b16 %v3058
    %v3734 = vunpack.c.l.b16 %v3059
    %v3735 = vunpack.c.l.b16 %v3060
    %v3736 = vunpack.c.h.b16 %v3060
    %v3737 = vunpack.c.l.b16 %v3061
    %v3738 = vunpack.c.h.b16 %v3061
    %v3739 = vunpack.c.l.b16 %v3062
    %v3740 = vunpack.c.h.b16 %v3062
    %v3741 = vunpack.c.l.b16 %v3063
    %v3742 = vunpack.c.l.b16 %v3064
    %v3743 = vunpack.c.h.b16 %v3064
    %v3744 = vunpack.c.l.b16 %v3065
    %v3745 = vunpack.c.h.b16 %v3065
    %v3746 = vunpack.c.l.b16 %v3066
    %v3747 = vunpack.c.h.b16 %v3066
    %v3748 = vunpack.c.l.b16 %v3067
    %v3749 = vunpack.c.l.b16 %v3068
    %v3750 = vunpack.c.h.b16 %v3068
    %v3751 = vunpack.c.l.b16 %v3069
    %v3752 = vunpack.c.h.b16 %v3069
    %v3753 = vunpack.c.l.b16 %v3070
    %v3754 = vunpack.c.h.b16 %v3070
    %v3755 = vunpack.c.l.b16 %v3071
    %v3756 = vunpack.c.l.b16 %v3072
    %v3757 = vunpack.c.h.b16 %v3072
    %v3758 = vunpack.c.l.b16 %v3073
    %v3759 = vunpack.c.h.b16 %v3073
    %v3760 = vunpack.c.l.b16 %v3074
    %v3761 = vunpack.c.h.b16 %v3074
    %v3762 = vunpack.c.l.b16 %v3075
    %v3763 = vunpack.c.l.b16 %v3076
    %v3764 = vunpack.c.h.b16 %v3076
    %v3765 = vunpack.c.l.b16 %v3077
    %v3766 = vunpack.c.h.b16 %v3077
    %v3767 = vunpack.c.l.b16 %v3078
    %v3768 = vunpack.c.h.b16 %v3078
    %v3769 = vunpack.c.l.b16 %v3079
    %v3770 = vunpack.c.l.b16 %v3080
    %v3771 = vunpack.c.h.b16 %v3080
    %v3772 = vunpack.c.l.b16 %v3081
    %v3773 = vunpack.c.h.b16 %v3081
    %v3774 = vunpack.c.l.b16 %v3082
    %v3775 = vunpack.c.h.b16 %v3082
    %v3776 = vunpack.c.l.b16 %v3083
    %v3777 = vunpack.c.l.b16 %v3084
    %v3778 = vunpack.c.h.b16 %v3084
    %v3779 = vunpack.c.l.b16 %v3085
    %v3780 = vunpack.c.h.b16 %v3085
    %v3781 = vunpack.c.l.b16 %v3086
    %v3782 = vunpack.c.h.b16 %v3086
    %v3783 = vunpack.c.l.b16 %v3087
    %v3784 = vunpack.c.l.b16 %v3088
    %v3785 = vunpack.c.h.b16 %v3088
    %v3786 = vunpack.c.l.b16 %v3089
    %v3787 = vunpack.c.h.b16 %v3089
    %v3788 = vunpack.c.l.b16 %v3090
    %v3789 = vunpack.c.h.b16 %v3090
    %v3790 = vunpack.c.l.b16 %v3091
    %v3791 = vunpack.c.l.b16 %v3092
    %v3792 = vunpack.c.h.b16 %v3092
    %v3793 = vunpack.c.l.b16 %v3093
    %v3794 = vunpack.c.h.b16 %v3093
    %v3795 = vunpack.c.l.b16 %v3094
    %v3796 = vunpack.c.h.b16 %v3094
    %v3797 = vunpack.c.l.b16 %v3095
    %v3798 = vunpack.c.l.b16 %v3096
    %v3799 = vunpack.c.h.b16 %v3096
    %v3800 = vunpack.c.l.b16 %v3097
    %v3801 = vunpack.c.h.b16 %v3097
    %v3802 = vunpack.c.l.b16 %v3098
    %v3803 = vunpack.c.h.b16 %v3098
    %v3804 = vunpack.c.l.b16 %v3099
    %v3805 = vunpack.c.l.b16 %v3100
    %v3806 = vunpack.c.h.b16 %v3100
    %v3807 = vunpack.c.l.b16 %v3101
    %v3808 = vunpack.c.h.b16 %v3101
    %v3809 = vunpack.c.l.b16 %v3102
    %v3810 = vunpack.c.h.b16 %v3102
    %v3811 = vunpack.c.l.b16 %v3103
    %v3812 = vunpack.c.l.b16 %v3104
    %v3813 = vunpack.c.h.b16 %v3104
    %v3814 = vunpack.c.l.b16 %v3105
    %v3815 = vunpack.c.h.b16 %v3105
    %v3816 = vunpack.c.l.b16 %v3106
    %v3817 = vunpack.c.h.b16 %v3106
    %v3818 = vunpack.c.l.b16 %v3107
    %v3819 = vunpack.c.l.b16 %v3108
    %v3820 = vunpack.c.h.b16 %v3108
    %v3821 = vunpack.c.l.b16 %v3109
    %v3822 = vunpack.c.h.b16 %v3109
    %v3823 = vunpack.c.l.b16 %v3110
    %v3824 = vunpack.c.h.b16 %v3110
    %v3825 = vunpack.c.l.b16 %v3111
    %v3826 = vunpack.c.l.b16 %v3112
    %v3827 = vunpack.c.h.b16 %v3112
    %v3828 = vunpack.c.l.b16 %v3113
    %v3829 = vunpack.c.h.b16 %v3113
    %v3830 = vunpack.c.l.b16 %v3114
    %v3831 = vunpack.c.h.b16 %v3114
    %v3832 = vunpack.c.l.b16 %v3115
    %v3833 = vunpack.c.l.b16 %v3116
    %v3834 = vunpack.c.h.b16 %v3116
    %v3835 = vunpack.c.l.b16 %v3117
    %v3836 = vunpack.c.h.b16 %v3117
    %v3837 = vunpack.c.l.b16 %v3118
    %v3838 = vunpack.c.h.b16 %v3118
    %v3839 = vunpack.c.l.b16 %v3119
    %v3840 = vpack.c.b16 %v3399, %v3392
    %v3841 = vpack.c.b16 %v3400, %v3393
    %v3842 = vpack.c.b16 %v3401, %v3394
    %v3843 = vpack.c.b16 %v3402, %v3395
    %v3844 = vpack.c.b16 %v3403, %v3396
    %v3845 = vpack.c.b16 %v3404, %v3397
    %v3846 = vpack.c.b16 %v3405, %v3398
    %v3847 = vpack.c.b16 %v3413, %v3406
    %v3848 = vpack.c.b16 %v3414, %v3407
    %v3849 = vpack.c.b16 %v3415, %v3408
    %v3850 = vpack.c.b16 %v3416, %v3409
    %v3851 = vpack.c.b16 %v3417, %v3410
    %v3852 = vpack.c.b16 %v3418, %v3411
    %v3853 = vpack.c.b16 %v3419, %v3412
    %v3854 = vpack.c.b16 %v3427, %v3420
    %v3855 = vpack.c.b16 %v3428, %v3421
    %v3856 = vpack.c.b16 %v3429, %v3422
    %v3857 = vpack.c.b16 %v3430, %v3423
    %v3858 = vpack.c.b16 %v3431, %v3424
    %v3859 = vpack.c.b16 %v3432, %v3425
    %v3860 = vpack.c.b16 %v3433, %v3426
    %v3861 = vpack.c.b16 %v3441, %v3434
    %v3862 = vpack.c.b16 %v3442, %v3435
    %v3863 = vpack.c.b16 %v3443, %v3436
    %v3864 = vpack.c.b16 %v3444, %v3437
    %v3865 = vpack.c.b16 %v3445, %v3438
    %v3866 = vpack.c.b16 %v3446, %v3439
    %v3867 = vpack.c.b16 %v3447, %v3440
    %v3868 = vpack.c.b16 %v3455, %v3448
    %v3869 = vpack.c.b16 %v3456, %v3449
    %v3870 = vpack.c.b16 %v3457, %v3450
    %v3871 = vpack.c.b16 %v3458, %v3451
    %v3872 = vpack.c.b16 %v3459, %v3452
    %v3873 = vpack.c.b16 %v3460, %v3453
    %v3874 = vpack.c.b16 %v3461, %v3454
    %v3875 = vpack.c.b16 %v3469, %v3462
    %v3876 = vpack.c.b16 %v3470, %v3463
    %v3877 = vpack.c.b16 %v3471, %v3464
    %v3878 = vpack.c.b16 %v3472, %v3465
    %v3879 = vpack.c.b16 %v3473, %v3466
    %v3880 = vpack.c.b16 %v3474, %v3467
    %v3881 = vpack.c.b16 %v3475, %v3468
    %v3882 = vpack.c.b16 %v3483, %v3476
    %v3883 = vpack.c.b16 %v3484, %v3477
    %v3884 = vpack.c.b16 %v3485, %v3478
    %v3885 = vpack.c.b16 %v3486, %v3479
    %v3886 = vpack.c.b16 %v3487, %v3480
    %v3887 = vpack.c.b16 %v3488, %v3481
    %v3888 = vpack.c.b16 %v3489, %v3482
    %v3889 = vpack.c.b16 %v3497, %v3490
    %v3890 = vpack.c.b16 %v3498, %v3491
    %v3891 = vpack.c.b16 %v3499, %v3492
    %v3892 = vpack.c.b16 %v3500, %v3493
    %v3893 = vpack.c.b16 %v3501, %v3494
    %v3894 = vpack.c.b16 %v3502, %v3495
    %v3895 = vpack.c.b16 %v3503, %v3496
    %v3896 = vpack.c.b16 %v3511, %v3504
    %v3897 = vpack.c.b16 %v3512, %v3505
    %v3898 = vpack.c.b16 %v3513, %v3506
    %v3899 = vpack.c.b16 %v3514, %v3507
    %v3900 = vpack.c.b16 %v3515, %v3508
    %v3901 = vpack.c.b16 %v3516, %v3509
    %v3902 = vpack.c.b16 %v3517, %v3510
    %v3903 = vpack.c.b16 %v3525, %v3518
    %v3904 = vpack.c.b16 %v3526, %v3519
    %v3905 = vpack.c.b16 %v3527, %v3520
    %v3906 = vpack.c.b16 %v3528, %v3521
    %v3907 = vpack.c.b16 %v3529, %v3522
    %v3908 = vpack.c.b16 %v3530, %v3523
    %v3909 = vpack.c.b16 %v3531, %v3524
    %v3910 = vpack.c.b16 %v3539, %v3532
    %v3911 = vpack.c.b16 %v3540, %v3533
    %v3912 = vpack.c.b16 %v3541, %v3534
    %v3913 = vpack.c.b16 %v3542, %v3535
    %v3914 = vpack.c.b16 %v3543, %v3536
    %v3915 = vpack.c.b16 %v3544, %v3537
    %v3916 = vpack.c.b16 %v3545, %v3538
    %v3917 = vpack.c.b16 %v3553, %v3546
    %v3918 = vpack.c.b16 %v3554, %v3547
    %v3919 = vpack.c.b16 %v3555, %v3548
    %v3920 = vpack.c.b16 %v3556, %v3549
    %v3921 = vpack.c.b16 %v3557, %v3550
    %v3922 = vpack.c.b16 %v3558, %v3551
    %v3923 = vpack.c.b16 %v3559, %v3552
    %v3924 = vpack.c.b16 %v3567, %v3560
    %v3925 = vpack.c.b16 %v3568, %v3561
    %v3926 = vpack.c.b16 %v3569, %v3562
    %v3927 = vpack.c.b16 %v3570, %v3563
    %v3928 = vpack.c.b16 %v3571, %v3564
    %v3929 = vpack.c.b16 %v3572, %v3565
    %v3930 = vpack.c.b16 %v3573, %v3566
    %v3931 = vpack.c.b16 %v3581, %v3574
    %v3932 = vpack.c.b16 %v3582, %v3575
    %v3933 = vpack.c.b16 %v3583, %v3576
    %v3934 = vpack.c.b16 %v3584, %v3577
    %v3935 = vpack.c.b16 %v3585, %v3578
    %v3936 = vpack.c.b16 %v3586, %v3579
    %v3937 = vpack.c.b16 %v3587, %v3580
    %v3938 = vpack.c.b16 %v3595, %v3588
    %v3939 = vpack.c.b16 %v3596, %v3589
    %v3940 = vpack.c.b16 %v3597, %v3590
    %v3941 = vpack.c.b16 %v3598, %v3591
    %v3942 = vpack.c.b16 %v3599, %v3592
    %v3943 = vpack.c.b16 %v3600, %v3593
    %v3944 = vpack.c.b16 %v3601, %v3594
    %v3945 = vpack.c.b16 %v3609, %v3602
    %v3946 = vpack.c.b16 %v3610, %v3603
    %v3947 = vpack.c.b16 %v3611, %v3604
    %v3948 = vpack.c.b16 %v3612, %v3605
    %v3949 = vpack.c.b16 %v3613, %v3606
    %v3950 = vpack.c.b16 %v3614, %v3607
    %v3951 = vpack.c.b16 %v3615, %v3608
    %v3952 = vpack.c.b16 %v3623, %v3616
    %v3953 = vpack.c.b16 %v3624, %v3617
    %v3954 = vpack.c.b16 %v3625, %v3618
    %v3955 = vpack.c.b16 %v3626, %v3619
    %v3956 = vpack.c.b16 %v3627, %v3620
    %v3957 = vpack.c.b16 %v3628, %v3621
    %v3958 = vpack.c.b16 %v3629, %v3622
    %v3959 = vpack.c.b16 %v3637, %v3630
    %v3960 = vpack.c.b16 %v3638, %v3631
    %v3961 = vpack.c.b16 %v3639, %v3632
    %v3962 = vpack.c.b16 %v3640, %v3633
    %v3963 = vpack.c.b16 %v3641, %v3634
    %v3964 = vpack.c.b16 %v3642, %v3635
    %v3965 = vpack.c.b16 %v3643, %v3636
    %v3966 = vpack.c.b16 %v3651, %v3644
    %v3967 = vpack.c.b16 %v3652, %v3645
    %v3968 = vpack.c.b16 %v3653, %v3646
    %v3969 = vpack.c.b16 %v3654, %v3647
    %v3970 = vpack.c.b16 %v3655, %v3648
    %v3971 = vpack.c.b16 %v3656, %v3649
    %v3972 = vpack.c.b16 %v3657, %v3650
    %v3973 = vpack.c.b16 %v3665, %v3658
    %v3974 = vpack.c.b16 %v3666, %v3659
    %v3975 = vpack.c.b16 %v3667, %v3660
    %v3976 = vpack.c.b16 %v3668, %v3661
    %v3977 = vpack.c.b16 %v3669, %v3662
    %v3978 = vpack.c.b16 %v3670, %v3663
    %v3979 = vpack.c.b16 %v3671, %v3664
    %v3980 = vpack.c.b16 %v3679, %v3672
    %v3981 = vpack.c.b16 %v3680, %v3673
    %v3982 = vpack.c.b16 %v3681, %v3674
    %v3983 = vpack.c.b16 %v3682, %v3675
    %v3984 = vpack.c.b16 %v3683, %v3676
    %v3985 = vpack.c.b16 %v3684, %v3677
    %v3986 = vpack.c.b16 %v3685, %v3678
    %v3987 = vpack.c.b16 %v3693, %v3686
    %v3988 = vpack.c.b16 %v3694, %v3687
    %v3989 = vpack.c.b16 %v3695, %v3688
    %v3990 = vpack.c.b16 %v3696, %v3689
    %v3991 = vpack.c.b16 %v3697, %v3690
    %v3992 = vpack.c.b16 %v3698, %v3691
    %v3993 = vpack.c.b16 %v3699, %v3692
    %v3994 = vpack.c.b16 %v3707, %v3700
    %v3995 = vpack.c.b16 %v3708, %v3701
    %v3996 = vpack.c.b16 %v3709, %v3702
    %v3997 = vpack.c.b16 %v3710, %v3703
    %v3998 = vpack.c.b16 %v3711, %v3704
    %v3999 = vpack.c.b16 %v3712, %v3705
    %v4000 = vpack.c.b16 %v3713, %v3706
    %v4001 = vpack.c.b16 %v3721, %v3714
    %v4002 = vpack.c.b16 %v3722, %v3715
    %v4003 = vpack.c.b16 %v3723, %v3716
    %v4004 = vpack.c.b16 %v3724, %v3717
    %v4005 = vpack.c.b16 %v3725, %v3718
    %v4006 = vpack.c.b16 %v3726, %v3719
    %v4007 = vpack.c.b16 %v3727, %v3720
    %v4008 = vpack.c.b16 %v3735, %v3728
    %v4009 = vpack.c.b16 %v3736, %v3729
    %v4010 = vpack.c.b16 %v3737, %v3730
    %v4011 = vpack.c.b16 %v3738, %v3731
    %v4012 = vpack.c.b16 %v3739, %v3732
    %v4013 = vpack.c.b16 %v3740, %v3733
    %v4014 = vpack.c.b16 %v3741, %v3734
    %v4015 = vpack.c.b16 %v3749, %v3742
    %v4016 = vpack.c.b16 %v3750, %v3743
    %v4017 = vpack.c.b16 %v3751, %v3744
    %v4018 = vpack.c.b16 %v3752, %v3745
    %v4019 = vpack.c.b16 %v3753, %v3746
    %v4020 = vpack.c.b16 %v3754, %v3747
    %v4021 = vpack.c.b16 %v3755, %v3748
    %v4022 = vpack.c.b16 %v3763, %v3756
    %v4023 = vpack.c.b16 %v3764, %v3757
    %v4024 = vpack.c.b16 %v3765, %v3758
    %v4025 = vpack.c.b16 %v3766, %v3759
    %v4026 = vpack.c.b16 %v3767, %v3760
    %v4027 = vpack.c.b16 %v3768, %v3761
    %v4028 = vpack.c.b16 %v3769, %v3762
    %v4029 = vpack.c.b16 %v3777, %v3770
    %v4030 = vpack.c.b16 %v3778, %v3771
    %v4031 = vpack.c.b16 %v3779, %v3772
    %v4032 = vpack.c.b16 %v3780, %v3773
    %v4033 = vpack.c.b16 %v3781, %v3774
    %v4034 = vpack.c.b16 %v3782, %v3775
    %v4035 = vpack.c.b16 %v3783, %v3776
    %v4036 = vpack.c.b16 %v3791, %v3784
    %v4037 = vpack.c.b16 %v3792, %v3785
    %v4038 = vpack.c.b16 %v3793, %v3786
    %v4039 = vpack.c.b16 %v3794, %v3787
    %v4040 = vpack.c.b16 %v3795, %v3788
    %v4041 = vpack.c.b16 %v3796, %v3789
    %v4042 = vpack.c.b16 %v3797, %v3790
    %v4043 = vpack.c.b16 %v3805, %v3798
    %v4044 = vpack.c.b16 %v3806, %v3799
    %v4045 = vpack.c.b16 %v3807, %v3800
    %v4046 = vpack.c.b16 %v3808, %v3801
    %v4047 = vpack.c.b16 %v3809, %v3802
    %v4048 = vpack.c.b16 %v3810, %v3803
    %v4049 = vpack.c.b16 %v3811, %v3804
    %v4050 = vpack.c.b16 %v3819, %v3812
    %v4051 = vpack.c.b16 %v3820, %v3813
    %v4052 = vpack.c.b16 %v3821, %v3814
    %v4053 = vpack.c.b16 %v3822, %v3815
    %v4054 = vpack.c.b16 %v3823, %v3816
    %v4055 = vpack.c.b16 %v3824, %v3817
    %v4056 = vpack.c.b16 %v3825, %v3818
    %v4057 = vpack.c.b16 %v3833, %v3826
    %v4058 = vpack.c.b16 %v3834, %v3827
    %v4059 = vpack.c.b16 %v3835, %v3828
    %v4060 = vpack.c.b16 %v3836, %v3829
    %v4061 = vpack.c.b16 %v3837, %v3830
    %v4062 = vpack.c.b16 %v3838, %v3831
    %v4063 = vpack.c.b16 %v3839, %v3832
    %4288 = vmatpush.bf16.msra.mxu0 %v3889
    %4289 = vmatpush.bf16.msra.mxu0 %v3882
    %4290 = vmatpush.bf16.msra.mxu0 %v3875
    %4291 = vmatpush.bf16.msra.mxu0 %v3868
    %4292 = vmatpush.bf16.msra.mxu0 %v3861
    %4293 = vmatpush.bf16.msra.mxu0 %v3854
    %4294 = vmatpush.bf16.msra.mxu0 %v3847
    %4295 = vmatpush.bf16.msra.mxu0 %v3840
    %4296 = vmatmul.bf16.gmra.mxu0 %v2860
    %v4297 = vpop.f32.mrf.mxu0
    %v4298 = vadd.f32 %v3122, %v4297
    %v4299 = vpop.f32.mrf.mxu0
    %4300 = vdwg.mxu0
    %4301 = vmatpush.bf16.msra.mxu0 %v3945
    %4302 = vmatpush.bf16.msra.mxu0 %v3938
    %4303 = vmatpush.bf16.msra.mxu0 %v3931
    %4304 = vmatpush.bf16.msra.mxu0 %v3924
    %4305 = vmatpush.bf16.msra.mxu0 %v3917
    %4306 = vmatpush.bf16.msra.mxu0 %v3910
    %4307 = vmatpush.bf16.msra.mxu0 %v3903
    %4308 = vmatpush.bf16.msra.mxu0 %v3896
    %4309 = vmatmul.bf16.gmra.mxu0 %v2861
    %v4310 = vpop.f32.mrf.mxu0
    %v4311 = vadd.f32 %v4298, %v4310
    %v4312 = vpop.f32.mrf.mxu0
    %4313 = vdwg.mxu0
    %4314 = vmatpush.bf16.msra.mxu0 %v4001
    %4315 = vmatpush.bf16.msra.mxu0 %v3994
    %4316 = vmatpush.bf16.msra.mxu0 %v3987
    %4317 = vmatpush.bf16.msra.mxu0 %v3980
    %4318 = vmatpush.bf16.msra.mxu0 %v3973
    %4319 = vmatpush.bf16.msra.mxu0 %v3966
    %4320 = vmatpush.bf16.msra.mxu0 %v3959
    %4321 = vmatpush.bf16.msra.mxu0 %v3952
    %4322 = vmatmul.bf16.gmra.mxu0 %v2862
    %v4323 = vpop.f32.mrf.mxu0
    %v4324 = vadd.f32 %v4311, %v4323
    %v4325 = vpop.f32.mrf.mxu0
    %4326 = vdwg.mxu0
    %4327 = vmatpush.bf16.msra.mxu0 %v4057
    %4328 = vmatpush.bf16.msra.mxu0 %v4050
    %4329 = vmatpush.bf16.msra.mxu0 %v4043
    %4330 = vmatpush.bf16.msra.mxu0 %v4036
    %4331 = vmatpush.bf16.msra.mxu0 %v4029
    %4332 = vmatpush.bf16.msra.mxu0 %v4022
    %4333 = vmatpush.bf16.msra.mxu0 %v4015
    %4334 = vmatpush.bf16.msra.mxu0 %v4008
    %4335 = vmatmul.bf16.gmra.mxu0 %v2863
    %v4336 = vpop.f32.mrf.mxu0
    %v4337 = vadd.f32 %v4324, %v4336
    %v4338 = vpop.f32.mrf.mxu0
    %4339 = vdwg.mxu0
    %4340 = vmatpush.bf16.msra.mxu0 %v3890
    %4341 = vmatpush.bf16.msra.mxu0 %v3883
    %4342 = vmatpush.bf16.msra.mxu0 %v3876
    %4343 = vmatpush.bf16.msra.mxu0 %v3869
    %4344 = vmatpush.bf16.msra.mxu0 %v3862
    %4345 = vmatpush.bf16.msra.mxu0 %v3855
    %4346 = vmatpush.bf16.msra.mxu0 %v3848
    %4347 = vmatpush.bf16.msra.mxu0 %v3841
    %4348 = vmatmul.bf16.gmra.mxu0 %v2860
    %v4349 = vpop.f32.mrf.mxu0
    %v4350 = vadd.f32 %v3123, %v4349
    %v4351 = vpop.f32.mrf.mxu0
    %4352 = vdwg.mxu0
    %4353 = vmatpush.bf16.msra.mxu0 %v3946
    %4354 = vmatpush.bf16.msra.mxu0 %v3939
    %4355 = vmatpush.bf16.msra.mxu0 %v3932
    %4356 = vmatpush.bf16.msra.mxu0 %v3925
    %4357 = vmatpush.bf16.msra.mxu0 %v3918
    %4358 = vmatpush.bf16.msra.mxu0 %v3911
    %4359 = vmatpush.bf16.msra.mxu0 %v3904
    %4360 = vmatpush.bf16.msra.mxu0 %v3897
    %4361 = vmatmul.bf16.gmra.mxu0 %v2861
    %v4362 = vpop.f32.mrf.mxu0
    %v4363 = vadd.f32 %v4350, %v4362
    %v4364 = vpop.f32.mrf.mxu0
    %4365 = vdwg.mxu0
    %4366 = vmatpush.bf16.msra.mxu0 %v4002
    %4367 = vmatpush.bf16.msra.mxu0 %v3995
    %4368 = vmatpush.bf16.msra.mxu0 %v3988
    %4369 = vmatpush.bf16.msra.mxu0 %v3981
    %4370 = vmatpush.bf16.msra.mxu0 %v3974
    %4371 = vmatpush.bf16.msra.mxu0 %v3967
    %4372 = vmatpush.bf16.msra.mxu0 %v3960
    %4373 = vmatpush.bf16.msra.mxu0 %v3953
    %4374 = vmatmul.bf16.gmra.mxu0 %v2862
    %v4375 = vpop.f32.mrf.mxu0
    %v4376 = vadd.f32 %v4363, %v4375
    %v4377 = vpop.f32.mrf.mxu0
    %4378 = vdwg.mxu0
    %4379 = vmatpush.bf16.msra.mxu0 %v4058
    %4380 = vmatpush.bf16.msra.mxu0 %v4051
    %4381 = vmatpush.bf16.msra.mxu0 %v4044
    %4382 = vmatpush.bf16.msra.mxu0 %v4037
    %4383 = vmatpush.bf16.msra.mxu0 %v4030
    %4384 = vmatpush.bf16.msra.mxu0 %v4023
    %4385 = vmatpush.bf16.msra.mxu0 %v4016
    %4386 = vmatpush.bf16.msra.mxu0 %v4009
    %4387 = vmatmul.bf16.gmra.mxu0 %v2863
    %v4388 = vpop.f32.mrf.mxu0
    %v4389 = vadd.f32 %v4376, %v4388
    %v4390 = vpop.f32.mrf.mxu0
    %4391 = vdwg.mxu0
    %4392 = vmatpush.bf16.msra.mxu0 %v3891
    %4393 = vmatpush.bf16.msra.mxu0 %v3884
    %4394 = vmatpush.bf16.msra.mxu0 %v3877
    %4395 = vmatpush.bf16.msra.mxu0 %v3870
    %4396 = vmatpush.bf16.msra.mxu0 %v3863
    %4397 = vmatpush.bf16.msra.mxu0 %v3856
    %4398 = vmatpush.bf16.msra.mxu0 %v3849
    %4399 = vmatpush.bf16.msra.mxu0 %v3842
    %4400 = vmatmul.bf16.gmra.mxu0 %v2860
    %v4401 = vpop.f32.mrf.mxu0
    %v4402 = vadd.f32 %v3124, %v4401
    %v4403 = vpop.f32.mrf.mxu0
    %4404 = vdwg.mxu0
    %4405 = vmatpush.bf16.msra.mxu0 %v3947
    %4406 = vmatpush.bf16.msra.mxu0 %v3940
    %4407 = vmatpush.bf16.msra.mxu0 %v3933
    %4408 = vmatpush.bf16.msra.mxu0 %v3926
    %4409 = vmatpush.bf16.msra.mxu0 %v3919
    %4410 = vmatpush.bf16.msra.mxu0 %v3912
    %4411 = vmatpush.bf16.msra.mxu0 %v3905
    %4412 = vmatpush.bf16.msra.mxu0 %v3898
    %4413 = vmatmul.bf16.gmra.mxu0 %v2861
    %v4414 = vpop.f32.mrf.mxu0
    %v4415 = vadd.f32 %v4402, %v4414
    %v4416 = vpop.f32.mrf.mxu0
    %4417 = vdwg.mxu0
    %4418 = vmatpush.bf16.msra.mxu0 %v4003
    %4419 = vmatpush.bf16.msra.mxu0 %v3996
    %4420 = vmatpush.bf16.msra.mxu0 %v3989
    %4421 = vmatpush.bf16.msra.mxu0 %v3982
    %4422 = vmatpush.bf16.msra.mxu0 %v3975
    %4423 = vmatpush.bf16.msra.mxu0 %v3968
    %4424 = vmatpush.bf16.msra.mxu0 %v3961
    %4425 = vmatpush.bf16.msra.mxu0 %v3954
    %4426 = vmatmul.bf16.gmra.mxu0 %v2862
    %v4427 = vpop.f32.mrf.mxu0
    %v4428 = vadd.f32 %v4415, %v4427
    %v4429 = vpop.f32.mrf.mxu0
    %4430 = vdwg.mxu0
    %4431 = vmatpush.bf16.msra.mxu0 %v4059
    %4432 = vmatpush.bf16.msra.mxu0 %v4052
    %4433 = vmatpush.bf16.msra.mxu0 %v4045
    %4434 = vmatpush.bf16.msra.mxu0 %v4038
    %4435 = vmatpush.bf16.msra.mxu0 %v4031
    %4436 = vmatpush.bf16.msra.mxu0 %v4024
    %4437 = vmatpush.bf16.msra.mxu0 %v4017
    %4438 = vmatpush.bf16.msra.mxu0 %v4010
    %4439 = vmatmul.bf16.gmra.mxu0 %v2863
    %v4440 = vpop.f32.mrf.mxu0
    %v4441 = vadd.f32 %v4428, %v4440
    %v4442 = vpop.f32.mrf.mxu0
    %4443 = vdwg.mxu0
    %4444 = vmatpush.bf16.msra.mxu0 %v3892
    %4445 = vmatpush.bf16.msra.mxu0 %v3885
    %4446 = vmatpush.bf16.msra.mxu0 %v3878
    %4447 = vmatpush.bf16.msra.mxu0 %v3871
    %4448 = vmatpush.bf16.msra.mxu0 %v3864
    %4449 = vmatpush.bf16.msra.mxu0 %v3857
    %4450 = vmatpush.bf16.msra.mxu0 %v3850
    %4451 = vmatpush.bf16.msra.mxu0 %v3843
    %4452 = vmatmul.bf16.gmra.mxu0 %v2860
    %v4453 = vpop.f32.mrf.mxu0
    %v4454 = vadd.f32 %v3125, %v4453
    %v4455 = vpop.f32.mrf.mxu0
    %4456 = vdwg.mxu0
    %4457 = vmatpush.bf16.msra.mxu0 %v3948
    %4458 = vmatpush.bf16.msra.mxu0 %v3941
    %4459 = vmatpush.bf16.msra.mxu0 %v3934
    %4460 = vmatpush.bf16.msra.mxu0 %v3927
    %4461 = vmatpush.bf16.msra.mxu0 %v3920
    %4462 = vmatpush.bf16.msra.mxu0 %v3913
    %4463 = vmatpush.bf16.msra.mxu0 %v3906
    %4464 = vmatpush.bf16.msra.mxu0 %v3899
    %4465 = vmatmul.bf16.gmra.mxu0 %v2861
    %v4466 = vpop.f32.mrf.mxu0
    %v4467 = vadd.f32 %v4454, %v4466
    %v4468 = vpop.f32.mrf.mxu0
    %4469 = vdwg.mxu0
    %4470 = vmatpush.bf16.msra.mxu0 %v4004
    %4471 = vmatpush.bf16.msra.mxu0 %v3997
    %4472 = vmatpush.bf16.msra.mxu0 %v3990
    %4473 = vmatpush.bf16.msra.mxu0 %v3983
    %4474 = vmatpush.bf16.msra.mxu0 %v3976
    %4475 = vmatpush.bf16.msra.mxu0 %v3969
    %4476 = vmatpush.bf16.msra.mxu0 %v3962
    %4477 = vmatpush.bf16.msra.mxu0 %v3955
    %4478 = vmatmul.bf16.gmra.mxu0 %v2862
    %v4479 = vpop.f32.mrf.mxu0
    %v4480 = vadd.f32 %v4467, %v4479
    %v4481 = vpop.f32.mrf.mxu0
    %4482 = vdwg.mxu0
    %4483 = vmatpush.bf16.msra.mxu0 %v4060
    %4484 = vmatpush.bf16.msra.mxu0 %v4053
    %4485 = vmatpush.bf16.msra.mxu0 %v4046
    %4486 = vmatpush.bf16.msra.mxu0 %v4039
    %4487 = vmatpush.bf16.msra.mxu0 %v4032
    %4488 = vmatpush.bf16.msra.mxu0 %v4025
    %4489 = vmatpush.bf16.msra.mxu0 %v4018
    %4490 = vmatpush.bf16.msra.mxu0 %v4011
    %4491 = vmatmul.bf16.gmra.mxu0 %v2863
    %v4492 = vpop.f32.mrf.mxu0
    %v4493 = vadd.f32 %v4480, %v4492
    %v4494 = vpop.f32.mrf.mxu0
    %4495 = vdwg.mxu0
    %4496 = vmatpush.bf16.msra.mxu0 %v3893
    %4497 = vmatpush.bf16.msra.mxu0 %v3886
    %4498 = vmatpush.bf16.msra.mxu0 %v3879
    %4499 = vmatpush.bf16.msra.mxu0 %v3872
    %4500 = vmatpush.bf16.msra.mxu0 %v3865
    %4501 = vmatpush.bf16.msra.mxu0 %v3858
    %4502 = vmatpush.bf16.msra.mxu0 %v3851
    %4503 = vmatpush.bf16.msra.mxu0 %v3844
    %4504 = vmatmul.bf16.gmra.mxu0 %v2860
    %v4505 = vpop.f32.mrf.mxu0
    %v4506 = vadd.f32 %v3126, %v4505
    %v4507 = vpop.f32.mrf.mxu0
    %4508 = vdwg.mxu0
    %4509 = vmatpush.bf16.msra.mxu0 %v3949
    %4510 = vmatpush.bf16.msra.mxu0 %v3942
    %4511 = vmatpush.bf16.msra.mxu0 %v3935
    %4512 = vmatpush.bf16.msra.mxu0 %v3928
    %4513 = vmatpush.bf16.msra.mxu0 %v3921
    %4514 = vmatpush.bf16.msra.mxu0 %v3914
    %4515 = vmatpush.bf16.msra.mxu0 %v3907
    %4516 = vmatpush.bf16.msra.mxu0 %v3900
    %4517 = vmatmul.bf16.gmra.mxu0 %v2861
    %v4518 = vpop.f32.mrf.mxu0
    %v4519 = vadd.f32 %v4506, %v4518
    %v4520 = vpop.f32.mrf.mxu0
    %4521 = vdwg.mxu0
    %4522 = vmatpush.bf16.msra.mxu0 %v4005
    %4523 = vmatpush.bf16.msra.mxu0 %v3998
    %4524 = vmatpush.bf16.msra.mxu0 %v3991
    %4525 = vmatpush.bf16.msra.mxu0 %v3984
    %4526 = vmatpush.bf16.msra.mxu0 %v3977
    %4527 = vmatpush.bf16.msra.mxu0 %v3970
    %4528 = vmatpush.bf16.msra.mxu0 %v3963
    %4529 = vmatpush.bf16.msra.mxu0 %v3956
    %4530 = vmatmul.bf16.gmra.mxu0 %v2862
    %v4531 = vpop.f32.mrf.mxu0
    %v4532 = vadd.f32 %v4519, %v4531
    %v4533 = vpop.f32.mrf.mxu0
    %4534 = vdwg.mxu0
    %4535 = vmatpush.bf16.msra.mxu0 %v4061
    %4536 = vmatpush.bf16.msra.mxu0 %v4054
    %4537 = vmatpush.bf16.msra.mxu0 %v4047
    %4538 = vmatpush.bf16.msra.mxu0 %v4040
    %4539 = vmatpush.bf16.msra.mxu0 %v4033
    %4540 = vmatpush.bf16.msra.mxu0 %v4026
    %4541 = vmatpush.bf16.msra.mxu0 %v4019
    %4542 = vmatpush.bf16.msra.mxu0 %v4012
    %4543 = vmatmul.bf16.gmra.mxu0 %v2863
    %v4544 = vpop.f32.mrf.mxu0
    %v4545 = vadd.f32 %v4532, %v4544
    %v4546 = vpop.f32.mrf.mxu0
    %4547 = vdwg.mxu0
    %4548 = vmatpush.bf16.msra.mxu0 %v3894
    %4549 = vmatpush.bf16.msra.mxu0 %v3887
    %4550 = vmatpush.bf16.msra.mxu0 %v3880
    %4551 = vmatpush.bf16.msra.mxu0 %v3873
    %4552 = vmatpush.bf16.msra.mxu0 %v3866
    %4553 = vmatpush.bf16.msra.mxu0 %v3859
    %4554 = vmatpush.bf16.msra.mxu0 %v3852
    %4555 = vmatpush.bf16.msra.mxu0 %v3845
    %4556 = vmatmul.bf16.gmra.mxu0 %v2860
    %v4557 = vpop.f32.mrf.mxu0
    %v4558 = vadd.f32 %v3127, %v4557
    %v4559 = vpop.f32.mrf.mxu0
    %4560 = vdwg.mxu0
    %4561 = vmatpush.bf16.msra.mxu0 %v3950
    %4562 = vmatpush.bf16.msra.mxu0 %v3943
    %4563 = vmatpush.bf16.msra.mxu0 %v3936
    %4564 = vmatpush.bf16.msra.mxu0 %v3929
    %4565 = vmatpush.bf16.msra.mxu0 %v3922
    %4566 = vmatpush.bf16.msra.mxu0 %v3915
    %4567 = vmatpush.bf16.msra.mxu0 %v3908
    %4568 = vmatpush.bf16.msra.mxu0 %v3901
    %4569 = vmatmul.bf16.gmra.mxu0 %v2861
    %v4570 = vpop.f32.mrf.mxu0
    %v4571 = vadd.f32 %v4558, %v4570
    %v4572 = vpop.f32.mrf.mxu0
    %4573 = vdwg.mxu0
    %4574 = vmatpush.bf16.msra.mxu0 %v4006
    %4575 = vmatpush.bf16.msra.mxu0 %v3999
    %4576 = vmatpush.bf16.msra.mxu0 %v3992
    %4577 = vmatpush.bf16.msra.mxu0 %v3985
    %4578 = vmatpush.bf16.msra.mxu0 %v3978
    %4579 = vmatpush.bf16.msra.mxu0 %v3971
    %4580 = vmatpush.bf16.msra.mxu0 %v3964
    %4581 = vmatpush.bf16.msra.mxu0 %v3957
    %4582 = vmatmul.bf16.gmra.mxu0 %v2862
    %v4583 = vpop.f32.mrf.mxu0
    %v4584 = vadd.f32 %v4571, %v4583
    %v4585 = vpop.f32.mrf.mxu0
    %4586 = vdwg.mxu0
    %4587 = vmatpush.bf16.msra.mxu0 %v4062
    %4588 = vmatpush.bf16.msra.mxu0 %v4055
    %4589 = vmatpush.bf16.msra.mxu0 %v4048
    %4590 = vmatpush.bf16.msra.mxu0 %v4041
    %4591 = vmatpush.bf16.msra.mxu0 %v4034
    %4592 = vmatpush.bf16.msra.mxu0 %v4027
    %4593 = vmatpush.bf16.msra.mxu0 %v4020
    %4594 = vmatpush.bf16.msra.mxu0 %v4013
    %4595 = vmatmul.bf16.gmra.mxu0 %v2863
    %v4596 = vpop.f32.mrf.mxu0
    %v4597 = vadd.f32 %v4584, %v4596
    %v4598 = vpop.f32.mrf.mxu0
    %4599 = vdwg.mxu0
    %4600 = vmatpush.bf16.msra.mxu0 %v3895
    %4601 = vmatpush.bf16.msra.mxu0 %v3888
    %4602 = vmatpush.bf16.msra.mxu0 %v3881
    %4603 = vmatpush.bf16.msra.mxu0 %v3874
    %4604 = vmatpush.bf16.msra.mxu0 %v3867
    %4605 = vmatpush.bf16.msra.mxu0 %v3860
    %4606 = vmatpush.bf16.msra.mxu0 %v3853
    %4607 = vmatpush.bf16.msra.mxu0 %v3846
    %4608 = vmatmul.bf16.gmra.mxu0 %v2860
    %v4609 = vpop.f32.mrf.mxu0
    %v4610 = vadd.f32 %v3128, %v4609
    %v4611 = vpop.f32.mrf.mxu0
    %4612 = vdwg.mxu0
    %4613 = vmatpush.bf16.msra.mxu0 %v3951
    %4614 = vmatpush.bf16.msra.mxu0 %v3944
    %4615 = vmatpush.bf16.msra.mxu0 %v3937
    %4616 = vmatpush.bf16.msra.mxu0 %v3930
    %4617 = vmatpush.bf16.msra.mxu0 %v3923
    %4618 = vmatpush.bf16.msra.mxu0 %v3916
    %4619 = vmatpush.bf16.msra.mxu0 %v3909
    %4620 = vmatpush.bf16.msra.mxu0 %v3902
    %4621 = vmatmul.bf16.gmra.mxu0 %v2861
    %v4622 = vpop.f32.mrf.mxu0
    %v4623 = vadd.f32 %v4610, %v4622
    %v4624 = vpop.f32.mrf.mxu0
    %4625 = vdwg.mxu0
    %4626 = vmatpush.bf16.msra.mxu0 %v4007
    %4627 = vmatpush.bf16.msra.mxu0 %v4000
    %4628 = vmatpush.bf16.msra.mxu0 %v3993
    %4629 = vmatpush.bf16.msra.mxu0 %v3986
    %4630 = vmatpush.bf16.msra.mxu0 %v3979
    %4631 = vmatpush.bf16.msra.mxu0 %v3972
    %4632 = vmatpush.bf16.msra.mxu0 %v3965
    %4633 = vmatpush.bf16.msra.mxu0 %v3958
    %4634 = vmatmul.bf16.gmra.mxu0 %v2862
    %v4635 = vpop.f32.mrf.mxu0
    %v4636 = vadd.f32 %v4623, %v4635
    %v4637 = vpop.f32.mrf.mxu0
    %4638 = vdwg.mxu0
    %4639 = vmatpush.bf16.msra.mxu0 %v4063
    %4640 = vmatpush.bf16.msra.mxu0 %v4056
    %4641 = vmatpush.bf16.msra.mxu0 %v4049
    %4642 = vmatpush.bf16.msra.mxu0 %v4042
    %4643 = vmatpush.bf16.msra.mxu0 %v4035
    %4644 = vmatpush.bf16.msra.mxu0 %v4028
    %4645 = vmatpush.bf16.msra.mxu0 %v4021
    %4646 = vmatpush.bf16.msra.mxu0 %v4014
    %4647 = vmatmul.bf16.gmra.mxu0 %v2863
    %v4648 = vpop.f32.mrf.mxu0
    %v4649 = vadd.f32 %v4636, %v4648
    %v4650 = vpop.f32.mrf.mxu0
    %4651 = vdwg.mxu0
    %v4652 = vsub.f32 0.0, %v4337
    %v4653 = vsub.f32 0.0, %v4389
    %v4654 = vsub.f32 0.0, %v4441
    %v4655 = vsub.f32 0.0, %v4493
    %v4656 = vsub.f32 0.0, %v4545
    %v4657 = vsub.f32 0.0, %v4597
    %v4658 = vsub.f32 0.0, %v4649
    %v4659 = vmul.f32 %v4652, 1.442695
    %v4660 = vpow.pop %v4659
    %v4661 = vmul.f32 %v4653, 1.442695
    %v4662 = vpow.pop %v4661
    %v4663 = vmul.f32 %v4654, 1.442695
    %v4664 = vpow.pop %v4663
    %v4665 = vmul.f32 %v4655, 1.442695
    %v4666 = vpow.pop %v4665
    %v4667 = vmul.f32 %v4656, 1.442695
    %v4668 = vpow.pop %v4667
    %v4669 = vmul.f32 %v4657, 1.442695
    %v4670 = vpow.pop %v4669
    %v4671 = vmul.f32 %v4658, 1.442695
    %v4672 = vpow.pop %v4671
    %v4673 = vadd.f32 %v4660, 1.0
    %v4674 = vadd.f32 %v4662, 1.0
    %v4675 = vadd.f32 %v4664, 1.0
    %v4676 = vadd.f32 %v4666, 1.0
    %v4677 = vadd.f32 %v4668, 1.0
    %v4678 = vadd.f32 %v4670, 1.0
    %v4679 = vadd.f32 %v4672, 1.0
    %v4680 = vrcp.pop %v4673
    %v4681 = vrcp.pop %v4674
    %v4682 = vrcp.pop %v4675
    %v4683 = vrcp.pop %v4676
    %v4684 = vrcp.pop %v4677
    %v4685 = vrcp.pop %v4678
    %v4686 = vrcp.pop %v4679
    %4687 = vst [vmem:[#allocation2] sm:$0xff] %v4680
    %4688 = vst [vmem:[#allocation2 + $0x8] sm:$0xff] %v4681
    %4689 = vst [vmem:[#allocation2 + $0x10] sm:$0xff] %v4682
    %4690 = vst [vmem:[#allocation2 + $0x18] sm:$0xff] %v4683
    %4691 = vst [vmem:[#allocation2 + $0x20] sm:$0xff] %v4684
    %4692 = vst [vmem:[#allocation2 + $0x28] sm:$0xff] %v4685
    %4693 = vst.msk [vmem:[#allocation2 + $0x30] sm:$0xff] %vm1251, %v4686
    %vm4694 = vcmask 31744
    %4695 = vst.msk [vmem:[%s15] sm:$0xff] %vm4694, %v2292
    // Predicated region
    $region58: #{vae_forward.1} parent=1 // pred_check
      _
    $region59: #{vae_forward.1} parent=1 // pred_check_branch
      %4697 = sbr.rel (0) target = $region61
    $region60: #{vae_forward.1} parent=1 // pred_region
      %4699 = vsyncadd [#allocation3], 0
      %s4701 = sshll.u32 [#allocation2], 4
      %s4702 = int_to_ptr.vmem [resolvable:$true] %s4701
      %s4703 = sshll.u32 %s14, 4
      %s4704 = int_to_ptr.hbm [resolvable:$true] %s4703
      %4706 = dma.vmem_to_hbm [thread:$0]  %s4702, 896, %s4704, [#allocation3]
    $region61: #{vae_forward.1} parent=1 // pred_fallthru
      _
    // Predicated region
    $region62: #{vae_forward.1} parent=1 // pred_check
      _
    $region63: #{vae_forward.1} parent=1 // pred_check_branch
      %4708 = sbr.rel (0) target = $region65
    $region64: #{vae_forward.1} parent=1 // pred_region
      _
    $region65: #{vae_forward.1} parent=1 // pred_fallthru
      _
    // Predicated region
    $region66: #{vae_forward.1} parent=1 // pred_check
      _
    $region67: #{vae_forward.1} parent=1 // pred_check_branch
      %4710 = sbr.rel (0) target = $region69
    $region68: #{vae_forward.1} parent=1 // pred_region
      %4712 = dma.done [#allocation3], 896
    $region69: #{vae_forward.1} parent=1 // pred_fallthru
      _
    // Predicated region
    $region70: #{vae_forward.1} parent=1 // pred_check
      _
    $region71: #{vae_forward.1} parent=1 // pred_check_branch
      %4714 = sbr.rel (0) target = $region73
    $region72: #{vae_forward.1} parent=1 // pred_region
      _
    $region73: #{vae_forward.1} parent=1 // pred_fallthru
      _
    %4715 = vsyncpa [#allocation3], 1

</llo_original>
